<compile_context>
chip_gen: v6e
topology: v6e:2x2x1
jax: 0.10.0
libtpu: 0.0.40
codegen_flags: <defaults>
</compile_context>

<pallas_src>
import math

import jax
import jax.numpy as jnp
from jax.experimental import pallas as pl
from jax.experimental.pallas import tpu as pltpu


# ----------------------------- config ---------------------------------------
B = 2            # batch
S = 8            # seq_len
NH = 8           # num_attention_heads (== S, required by the torch broadcast)
HD = 4           # head_dim
H = NH * HD      # hidden_size = 32
FF = 64          # intermediate_size
EPS = 1e-5       # norm_eps
BS = B * S       # rows processed by the kernel = 16
SCALE = 1.0 / math.sqrt(HD)

_F32 = jnp.float32
_HIGH = jax.lax.Precision.HIGHEST   # keep f32 fidelity on the MXU


def _dot(a, b):
    return jnp.dot(a, b, preferred_element_type=_F32, precision=_HIGH)


def _rmsnorm(x, w):
    var = jnp.mean(x * x, axis=-1, keepdims=True)
    return x * jax.lax.rsqrt(var + EPS) * w


# ----------------------------- the Pallas kernel ------------------------------
def transformer_layer_kernel(
    x_ref, cos_ref, sin_ref, mask_ref,
    attn_nw_ref, wq_ref, bq_ref, wk_ref, bk_ref, wv_ref, bv_ref, wo_ref, bo_ref,
    ffn_nw_ref, wi_ref, bi_ref, wout_ref, bout_ref,
    o_ref,
):
    # ---- hoisted loads (each ref read exactly once) --------------------------
    x = x_ref[...]                       # (BS, H)
    cos_row = cos_ref[...]               # (1, H)  per-output-column cos
    sin_row = sin_ref[...]               # (1, H)  per-output-column sin
    mask3 = mask_ref[...]                # (BS, S, 1) additive mask, (b,i)-major
    attn_nw = attn_nw_ref[...]           # (1, H)
    ffn_nw = ffn_nw_ref[...]             # (1, H)
    bq = bq_ref[...]; bk = bk_ref[...]; bv = bv_ref[...]; bo = bo_ref[...]
    bi = bi_ref[...]; bout = bout_ref[...]

    # ---- constant routing matrices (iota only: no gathers, no reshuffles) ----
    # (S, HD, S*S are powers of two -> shifts/ands instead of //, %.)

    # rope (H, H): RoPE as a per-column linear map.  Column layout per head is
    # [re0, im0, re1, im1] in, [rot_re0, rot_re1, rot_im0, rot_im1] out
    # (matching the reference's cat([real, imag], -1)).
    src = jax.lax.broadcasted_iota(jnp.int32, (H, H), 0)    # input column
    dst = jax.lax.broadcasted_iota(jnp.int32, (H, H), 1)    # output column
    same_head = (src >> 2) == (dst >> 2)
    same_pair = ((src >> 1) & 1) == (dst & 1)
    src_is_imag = (src & 1) == 1
    dst_is_imag = ((dst >> 1) & 1) == 1
    cos_b = jnp.broadcast_to(cos_row, (H, H))
    sin_b = jnp.broadcast_to(sin_row, (H, H))
    val = jnp.where(src_is_imag,
                    jnp.where(dst_is_imag, cos_b, -sin_b),
                    jnp.where(dst_is_imag, sin_b, cos_b))
    rope = jnp.where(same_head & same_pair, val, 0.0)

    # head_sum (H, NH): sums each head's HD lanes (block-diagonal reducer).
    # head_rep (NH, H): replicates one value per head across its HD lanes.
    g_c = jax.lax.broadcasted_iota(jnp.int32, (H, NH), 0) >> 2
    g_h = jax.lax.broadcasted_iota(jnp.int32, (H, NH), 1)
    head_sum = jnp.where(g_c == g_h, 1.0, 0.0)
    t_h = jax.lax.broadcasted_iota(jnp.int32, (NH, H), 0)
    t_c = jax.lax.broadcasted_iota(jnp.int32, (NH, H), 1) >> 2
    head_rep = jnp.where(t_h == t_c, 1.0, 0.0)

    # rep_q / rep_k (BS*S, BS): replicate q rows per key position / tile k,v
    # rows per query position, so the per-head score contraction becomes one
    # elementwise multiply + one dense (.., H) @ (H, NH) reduction.
    row = jax.lax.broadcasted_iota(jnp.int32, (BS * S, BS), 0)
    col = jax.lax.broadcasted_iota(jnp.int32, (BS * S, BS), 1)
    b_idx = row >> 6            # row // (S*S)
    i_idx = (row >> 3) & 7      # query position
    j_idx = row & 7             # key position
    rep_q = jnp.where(col == b_idx * S + i_idx, 1.0, 0.0)
    rep_k = jnp.where(col == b_idx * S + j_idx, 1.0, 0.0)

    # ----------------------------- attention ---------------------------------
    xn = _rmsnorm(x, attn_nw)

    q = (_dot(xn, wq_ref[...]) + bq) * SCALE        # 1/sqrt(HD) folded into q
    k = _dot(xn, wk_ref[...]) + bk
    v = _dot(xn, wv_ref[...]) + bv
    q = _dot(q, rope)                               # RoPE (linear map over columns)
    k = _dot(k, rope)

    qe = _dot(rep_q, q)                             # (BS*S, H): row (b,i,j) -> q[b,i]
    ke = _dot(rep_k, k)                             # (BS*S, H): row (b,i,j) -> k[b,j]
    ve = _dot(rep_k, v)                             # (BS*S, H): row (b,i,j) -> v[b,j]

    scores = _dot(qe * ke, head_sum)                # (BS*S, NH)
    scores = scores.reshape(BS, S, NH) + mask3      # (b*S+i, j, h)

    m = jnp.max(scores, axis=1, keepdims=True)      # softmax over keys j
    p = jnp.exp(scores - m)
    denom = jnp.sum(p, axis=1, keepdims=True)
    probs = p * pl.reciprocal(denom, approx=True)   # EUP; no VPU divide

    pe = _dot(probs.reshape(BS * S, NH), head_rep)  # (BS*S, H)
    attn = jnp.sum((pe * ve).reshape(BS, S, H), axis=1)   # (BS, H)
    attn = _dot(attn, wo_ref[...]) + bo

    h = x + attn                                    # residual 1

    # ---------------------------- feed-forward --------------------------------
    hn = _rmsnorm(h, ffn_nw)
    inter = _dot(hn, wi_ref[...]) + bi
    inter = inter * jax.nn.sigmoid(inter)           # SiLU
    o_ref[...] = h + _dot(inter, wout_ref[...]) + bout   # residual 2


# ----------------------------- wrapper ---------------------------------------
def transformer_layer(x, freqs_cis, mask, params):
    """x: (B, S, H); freqs_cis: (S, HD//2, 2); mask: (S, S) additive."""
    (attn_nw, wq, bq, wk, bk, wv, bv, wo, bo,
     ffn_nw, wi, bi, wout, bout) = params

    # Layout plumbing only (no kernel math moved here):
    #  * fold batch into rows,
    #  * rotary cos/sin rearranged into per-hidden-column row vectors
    #    (cos_row[0, h*HD + j] = cos(theta[h, j % 2]); the reference broadcasts
    #     freqs over the head axis, so the freq row index is the head),
    #  * additive mask tiled to (B*S, S, 1) so it adds straight onto the
    #    (query-row, key, head) score layout.
    x2 = x.reshape(BS, H)
    f_cos = freqs_cis[:S, :, 0]                          # (S, HD//2)
    f_sin = freqs_cis[:S, :, 1]
    cos_row = jnp.tile(f_cos, (1, 2)).reshape(1, H)
    sin_row = jnp.tile(f_sin, (1, 2)).reshape(1, H)
    mask3 = jnp.tile(mask, (B, 1)).reshape(BS, S, 1)

    vmem = pl.BlockSpec(memory_space=pltpu.MemorySpace.VMEM)

    out = pl.pallas_call(
        transformer_layer_kernel,
        out_shape=jax.ShapeDtypeStruct((BS, H), jnp.float32),
        in_specs=[vmem] * 18,
        out_specs=vmem,
        # No grid: at S=8, H=32 the per-grid-step pipeline overhead dominates
        # the compute, and a grid would double-buffer the constant weights.
        # On v7x (2 TCs) one could instead use grid=(B,) with
        # dimension_semantics=("parallel",) to split batches across cores.
    )(x2, cos_row, sin_row, mask3,
      attn_nw, wq, bq, wk, bk, wv, bv, wo, bo,
      ffn_nw, wi, bi, wout, bout)
    return out.reshape(B, S, H)


# ----------------------------- pure-JAX reference -----------------------------
def reference(x, freqs_cis, mask, params):
    (attn_nw, wq, bq, wk, bk, wv, bv, wo, bo,
     ffn_nw, wi, bi, wout, bout) = params

    def rmsnorm(t, w):
        return t * jax.lax.rsqrt(jnp.mean(t * t, -1, keepdims=True) + EPS) * w[0]

    def rotary(t):  # t: (B, S, NH, HD)
        tr = t.reshape(B, S, NH, HD // 2, 2)
        t_real, t_imag = tr[..., 0], tr[..., 1]
        f = freqs_cis[:S][None, None]                    # (1,1,S,HD//2,2)
        fr, fi = f[..., 0], f[..., 1]
        rr = t_real * fr - t_imag * fi
        ri = t_real * fi + t_imag * fr
        return jnp.concatenate([rr, ri], -1).reshape(B, S, NH, HD)

    xn = rmsnorm(x, attn_nw)
    q = (xn @ wq + bq[0]).reshape(B, S, NH, HD)
    k = (xn @ wk + bk[0]).reshape(B, S, NH, HD)
    v = (xn @ wv + bv[0]).reshape(B, S, NH, HD)
    q, k = rotary(q), rotary(k)
    aw = jnp.einsum("bqhd,bkhd->bhqk", q, k) / math.sqrt(HD) + mask
    probs = jax.nn.softmax(aw, -1)
    ao = jnp.einsum("bhqk,bkhd->bqhd", probs, v).reshape(B, S, H)
    ao = ao @ wo + bo[0]
    h = x + ao
    hn = rmsnorm(h, ffn_nw)
    inter = jax.nn.silu(hn @ wi + bi[0])
    return h + inter @ wout + bout[0]


# ----------------------------- main -------------------------------------------
if __name__ == "__main__":
    key = jax.random.PRNGKey(0)
    ks = jax.random.split(key, 16)

    def lin(kw, kb, fan_in, fan_out):
        bound = 1.0 / math.sqrt(fan_in)
        w = jax.random.uniform(kw, (fan_in, fan_out), jnp.float32, -bound, bound)
        b = jax.random.uniform(kb, (1, fan_out), jnp.float32, -bound, bound)
        return w, b

    wq, bq = lin(ks[0], ks[1], H, H)
    wk, bk = lin(ks[2], ks[3], H, H)
    wv, bv = lin(ks[4], ks[5], H, H)
    wo, bo = lin(ks[6], ks[7], H, H)
    wi, bi = lin(ks[8], ks[9], H, FF)
    wout, bout = lin(ks[10], ks[11], FF, H)
    attn_nw = jnp.ones((1, H), jnp.float32)
    ffn_nw = jnp.ones((1, H), jnp.float32)

    params = (attn_nw, wq, bq, wk, bk, wv, bv, wo, bo,
              ffn_nw, wi, bi, wout, bout)

    x = jax.random.normal(ks[12], (B, S, H), jnp.float32)

    # precomputed rotary freqs (real/imag), (S, head_dim//2, 2)
    pos = jnp.arange(S, dtype=jnp.float32)[:, None]
    inv_freq = 1.0 / (10000.0 ** (jnp.arange(0, HD // 2, dtype=jnp.float32) / (HD // 2)))
    ang = pos * inv_freq[None, :]
    freqs_cis = jnp.stack([jnp.cos(ang), jnp.sin(ang)], axis=-1)

    # causal additive mask (S, S)
    idx = jnp.arange(S)
    mask = jnp.where(idx[None, :] <= idx[:, None], 0.0, -1e9).astype(jnp.float32)

    out = transformer_layer(x, freqs_cis, mask, params)
    out = jax.block_until_ready(out)

    with jax.default_matmul_precision("highest"):
        ref = reference(x, freqs_cis, mask, params)
    ref = jax.block_until_ready(ref)

    assert out.shape == (B, S, H)
    max_err = float(jnp.max(jnp.abs(out - ref)))
    # Tolerance covers the EUP approximate reciprocal used for the softmax
    # denominator (pl.reciprocal(approx=True)); the rest of the kernel is f32.
    assert jnp.allclose(out, ref, atol=5e-3, rtol=5e-3), (
        f"mismatch vs reference (max abs err {max_err:.3e})")
    print("KERNEL_OK")
</pallas_src>

<mosaic_0001>
module attributes {stable_mosaic.version = 11 : i64} {
  func.func @transformer_layer_kernel(%arg0: memref<16x32xf32, #tpu.memory_space<vmem>>, %arg1: memref<1x32xf32, #tpu.memory_space<vmem>>, %arg2: memref<1x32xf32, #tpu.memory_space<vmem>>, %arg3: memref<16x8x1xf32, #tpu.memory_space<vmem>>, %arg4: memref<1x32xf32, #tpu.memory_space<vmem>>, %arg5: memref<32x32xf32, #tpu.memory_space<vmem>>, %arg6: memref<1x32xf32, #tpu.memory_space<vmem>>, %arg7: memref<32x32xf32, #tpu.memory_space<vmem>>, %arg8: memref<1x32xf32, #tpu.memory_space<vmem>>, %arg9: memref<32x32xf32, #tpu.memory_space<vmem>>, %arg10: memref<1x32xf32, #tpu.memory_space<vmem>>, %arg11: memref<32x32xf32, #tpu.memory_space<vmem>>, %arg12: memref<1x32xf32, #tpu.memory_space<vmem>>, %arg13: memref<1x32xf32, #tpu.memory_space<vmem>>, %arg14: memref<32x64xf32, #tpu.memory_space<vmem>>, %arg15: memref<1x64xf32, #tpu.memory_space<vmem>>, %arg16: memref<64x32xf32, #tpu.memory_space<vmem>>, %arg17: memref<1x32xf32, #tpu.memory_space<vmem>>, %arg18: memref<16x32xf32, #tpu.memory_space<vmem>>) attributes {dimension_semantics = [], scalar_prefetch = 0 : i64, scratch_operands = 0 : i64, tpu.core_type = #tpu.core_type<tc>} {
    %c0 = arith.constant 0 : index
    %c0_0 = arith.constant 0 : index
    %0 = vector.load %arg0[%c0, %c0_0] : memref<16x32xf32, #tpu.memory_space<vmem>>, vector<16x32xf32>
    %c0_1 = arith.constant 0 : index
    %c0_2 = arith.constant 0 : index
    %1 = vector.load %arg1[%c0_1, %c0_2] : memref<1x32xf32, #tpu.memory_space<vmem>>, vector<1x32xf32>
    %c0_3 = arith.constant 0 : index
    %c0_4 = arith.constant 0 : index
    %2 = vector.load %arg2[%c0_3, %c0_4] : memref<1x32xf32, #tpu.memory_space<vmem>>, vector<1x32xf32>
    %c0_5 = arith.constant 0 : index
    %c0_6 = arith.constant 0 : index
    %c0_7 = arith.constant 0 : index
    %3 = vector.load %arg3[%c0_5, %c0_6, %c0_7] : memref<16x8x1xf32, #tpu.memory_space<vmem>>, vector<16x8x1xf32>
    %c0_8 = arith.constant 0 : index
    %c0_9 = arith.constant 0 : index
    %4 = vector.load %arg4[%c0_8, %c0_9] : memref<1x32xf32, #tpu.memory_space<vmem>>, vector<1x32xf32>
    %c0_10 = arith.constant 0 : index
    %c0_11 = arith.constant 0 : index
    %5 = vector.load %arg13[%c0_10, %c0_11] : memref<1x32xf32, #tpu.memory_space<vmem>>, vector<1x32xf32>
    %c0_12 = arith.constant 0 : index
    %c0_13 = arith.constant 0 : index
    %6 = vector.load %arg6[%c0_12, %c0_13] : memref<1x32xf32, #tpu.memory_space<vmem>>, vector<1x32xf32>
    %c0_14 = arith.constant 0 : index
    %c0_15 = arith.constant 0 : index
    %7 = vector.load %arg8[%c0_14, %c0_15] : memref<1x32xf32, #tpu.memory_space<vmem>>, vector<1x32xf32>
    %c0_16 = arith.constant 0 : index
    %c0_17 = arith.constant 0 : index
    %8 = vector.load %arg10[%c0_16, %c0_17] : memref<1x32xf32, #tpu.memory_space<vmem>>, vector<1x32xf32>
    %c0_18 = arith.constant 0 : index
    %c0_19 = arith.constant 0 : index
    %9 = vector.load %arg12[%c0_18, %c0_19] : memref<1x32xf32, #tpu.memory_space<vmem>>, vector<1x32xf32>
    %c0_20 = arith.constant 0 : index
    %c0_21 = arith.constant 0 : index
    %10 = vector.load %arg15[%c0_20, %c0_21] : memref<1x64xf32, #tpu.memory_space<vmem>>, vector<1x64xf32>
    %c0_22 = arith.constant 0 : index
    %c0_23 = arith.constant 0 : index
    %11 = vector.load %arg17[%c0_22, %c0_23] : memref<1x32xf32, #tpu.memory_space<vmem>>, vector<1x32xf32>
    %12 = tpu.iota {dimensions = array<i32: 0>} : vector<32x32xi32>
    %13 = tpu.iota {dimensions = array<i32: 1>} : vector<32x32xi32>
    %c2_i32 = arith.constant 2 : i32
    %14 = vector.broadcast %c2_i32 : i32 to vector<32x32xi32>
    %15 = arith.shrsi %12, %14 : vector<32x32xi32>
    %c2_i32_24 = arith.constant 2 : i32
    %16 = vector.broadcast %c2_i32_24 : i32 to vector<32x32xi32>
    %17 = arith.shrsi %13, %16 : vector<32x32xi32>
    %18 = arith.cmpi eq, %15, %17 : vector<32x32xi32>
    %c1_i32 = arith.constant 1 : i32
    %19 = vector.broadcast %c1_i32 : i32 to vector<32x32xi32>
    %20 = arith.shrsi %12, %19 : vector<32x32xi32>
    %c1_i32_25 = arith.constant 1 : i32
    %21 = vector.broadcast %c1_i32_25 : i32 to vector<32x32xi32>
    %22 = arith.andi %20, %21 : vector<32x32xi32>
    %c1_i32_26 = arith.constant 1 : i32
    %23 = vector.broadcast %c1_i32_26 : i32 to vector<32x32xi32>
    %24 = arith.andi %13, %23 : vector<32x32xi32>
    %25 = arith.cmpi eq, %22, %24 : vector<32x32xi32>
    %c1_i32_27 = arith.constant 1 : i32
    %26 = vector.broadcast %c1_i32_27 : i32 to vector<32x32xi32>
    %27 = arith.andi %12, %26 : vector<32x32xi32>
    %c1_i32_28 = arith.constant 1 : i32
    %28 = vector.broadcast %c1_i32_28 : i32 to vector<32x32xi32>
    %29 = arith.cmpi eq, %27, %28 : vector<32x32xi32>
    %c1_i32_29 = arith.constant 1 : i32
    %30 = vector.broadcast %c1_i32_29 : i32 to vector<32x32xi32>
    %31 = arith.shrsi %13, %30 : vector<32x32xi32>
    %c1_i32_30 = arith.constant 1 : i32
    %32 = vector.broadcast %c1_i32_30 : i32 to vector<32x32xi32>
    %33 = arith.andi %31, %32 : vector<32x32xi32>
    %c1_i32_31 = arith.constant 1 : i32
    %34 = vector.broadcast %c1_i32_31 : i32 to vector<32x32xi32>
    %35 = arith.cmpi eq, %33, %34 : vector<32x32xi32>
    %36 = vector.shape_cast %1 : vector<1x32xf32> to vector<1x32xf32>
    %37 = vector.broadcast %36 : vector<1x32xf32> to vector<32x32xf32>
    %38 = vector.shape_cast %2 : vector<1x32xf32> to vector<1x32xf32>
    %39 = vector.broadcast %38 : vector<1x32xf32> to vector<32x32xf32>
    %cst = arith.constant 0.000000e+00 : f32
    %40 = vector.broadcast %cst : f32 to vector<32x32xf32>
    %41 = arith.subf %40, %39 : vector<32x32xf32>
    %42 = arith.select %35, %37, %41 : vector<32x32xi1>, vector<32x32xf32>
    %43 = arith.select %35, %39, %37 : vector<32x32xi1>, vector<32x32xf32>
    %44 = arith.select %29, %42, %43 : vector<32x32xi1>, vector<32x32xf32>
    %45 = arith.andi %18, %25 : vector<32x32xi1>
    %cst_32 = arith.constant 0.000000e+00 : f32
    %46 = vector.broadcast %cst_32 : f32 to vector<32x32xf32>
    %47 = arith.select %45, %44, %46 : vector<32x32xi1>, vector<32x32xf32>
    %48 = tpu.iota {dimensions = array<i32: 0>} : vector<32x8xi32>
    %c2_i32_33 = arith.constant 2 : i32
    %49 = vector.broadcast %c2_i32_33 : i32 to vector<32x8xi32>
    %50 = arith.shrsi %48, %49 : vector<32x8xi32>
    %51 = tpu.iota {dimensions = array<i32: 1>} : vector<32x8xi32>
    %52 = arith.cmpi eq, %50, %51 : vector<32x8xi32>
    %cst_34 = arith.constant 1.000000e+00 : f32
    %cst_35 = arith.constant 0.000000e+00 : f32
    %53 = vector.broadcast %cst_34 : f32 to vector<32x8xf32>
    %54 = vector.broadcast %cst_35 : f32 to vector<32x8xf32>
    %55 = arith.select %52, %53, %54 : vector<32x8xi1>, vector<32x8xf32>
    %56 = tpu.iota {dimensions = array<i32: 0>} : vector<8x32xi32>
    %57 = tpu.iota {dimensions = array<i32: 1>} : vector<8x32xi32>
    %c2_i32_36 = arith.constant 2 : i32
    %58 = vector.broadcast %c2_i32_36 : i32 to vector<8x32xi32>
    %59 = arith.shrsi %57, %58 : vector<8x32xi32>
    %60 = arith.cmpi eq, %56, %59 : vector<8x32xi32>
    %cst_37 = arith.constant 1.000000e+00 : f32
    %cst_38 = arith.constant 0.000000e+00 : f32
    %61 = vector.broadcast %cst_37 : f32 to vector<8x32xf32>
    %62 = vector.broadcast %cst_38 : f32 to vector<8x32xf32>
    %63 = arith.select %60, %61, %62 : vector<8x32xi1>, vector<8x32xf32>
    %64 = tpu.iota {dimensions = array<i32: 0>} : vector<128x16xi32>
    %65 = tpu.iota {dimensions = array<i32: 1>} : vector<128x16xi32>
    %c6_i32 = arith.constant 6 : i32
    %66 = vector.broadcast %c6_i32 : i32 to vector<128x16xi32>
    %67 = arith.shrsi %64, %66 : vector<128x16xi32>
    %c3_i32 = arith.constant 3 : i32
    %68 = vector.broadcast %c3_i32 : i32 to vector<128x16xi32>
    %69 = arith.shrsi %64, %68 : vector<128x16xi32>
    %c7_i32 = arith.constant 7 : i32
    %70 = vector.broadcast %c7_i32 : i32 to vector<128x16xi32>
    %71 = arith.andi %69, %70 : vector<128x16xi32>
    %c7_i32_39 = arith.constant 7 : i32
    %72 = vector.broadcast %c7_i32_39 : i32 to vector<128x16xi32>
    %73 = arith.andi %64, %72 : vector<128x16xi32>
    %c8_i32 = arith.constant 8 : i32
    %74 = vector.broadcast %c8_i32 : i32 to vector<128x16xi32>
    %75 = arith.muli %67, %74 : vector<128x16xi32>
    %76 = arith.addi %75, %71 : vector<128x16xi32>
    %77 = arith.cmpi eq, %65, %76 : vector<128x16xi32>
    %cst_40 = arith.constant 1.000000e+00 : f32
    %cst_41 = arith.constant 0.000000e+00 : f32
    %78 = vector.broadcast %cst_40 : f32 to vector<128x16xf32>
    %79 = vector.broadcast %cst_41 : f32 to vector<128x16xf32>
    %80 = arith.select %77, %78, %79 : vector<128x16xi1>, vector<128x16xf32>
    %c8_i32_42 = arith.constant 8 : i32
    %81 = vector.broadcast %c8_i32_42 : i32 to vector<128x16xi32>
    %82 = arith.muli %67, %81 : vector<128x16xi32>
    %83 = arith.addi %82, %73 : vector<128x16xi32>
    %84 = arith.cmpi eq, %65, %83 : vector<128x16xi32>
    %cst_43 = arith.constant 1.000000e+00 : f32
    %cst_44 = arith.constant 0.000000e+00 : f32
    %85 = vector.broadcast %cst_43 : f32 to vector<128x16xf32>
    %86 = vector.broadcast %cst_44 : f32 to vector<128x16xf32>
    %87 = arith.select %84, %85, %86 : vector<128x16xi1>, vector<128x16xf32>
    %88 = arith.mulf %0, %0 : vector<16x32xf32>
    %cst_45 = arith.constant dense<0.000000e+00> : vector<16xf32>
    %89 = vector.multi_reduction <add>, %88, %cst_45 [1] : vector<16x32xf32> to vector<16xf32>
    %90 = vector.shape_cast %89 : vector<16xf32> to vector<16x1xf32>
    %cst_46 = arith.constant 3.200000e+01 : f32
    %91 = vector.broadcast %cst_46 : f32 to vector<16x1xf32>
    %92 = arith.divf %90, %91 : vector<16x1xf32>
    %cst_47 = arith.constant 9.99999974E-6 : f32
    %93 = vector.broadcast %cst_47 : f32 to vector<16x1xf32>
    %94 = arith.addf %92, %93 : vector<16x1xf32>
    %95 = math.rsqrt %94 : vector<16x1xf32>
    %96 = vector.broadcast %95 : vector<16x1xf32> to vector<16x32xf32>
    %97 = arith.mulf %0, %96 : vector<16x32xf32>
    %98 = vector.broadcast %4 : vector<1x32xf32> to vector<16x32xf32>
    %99 = arith.mulf %97, %98 : vector<16x32xf32>
    %c0_48 = arith.constant 0 : index
    %c0_49 = arith.constant 0 : index
    %100 = vector.load %arg5[%c0_48, %c0_49] : memref<32x32xf32, #tpu.memory_space<vmem>>, vector<32x32xf32>
    %cst_50 = arith.constant dense<0.000000e+00> : vector<16x32xf32>
    %101 = tpu.matmul %99, %100, %cst_50 {dimension_numbers = #tpu.dot_dimension_numbers<[1], [0], [0], [1], [0, 0, 1, 1], [], []>, precision = #tpu.contract_precision<fp32>} : vector<16x32xf32>, vector<32x32xf32>, vector<16x32xf32> -> vector<16x32xf32>
    %102 = vector.broadcast %6 : vector<1x32xf32> to vector<16x32xf32>
    %103 = arith.addf %101, %102 : vector<16x32xf32>
    %cst_51 = arith.constant 5.000000e-01 : f32
    %104 = vector.broadcast %cst_51 : f32 to vector<16x32xf32>
    %105 = arith.mulf %103, %104 : vector<16x32xf32>
    %c0_52 = arith.constant 0 : index
    %c0_53 = arith.constant 0 : index
    %106 = vector.load %arg7[%c0_52, %c0_53] : memref<32x32xf32, #tpu.memory_space<vmem>>, vector<32x32xf32>
    %cst_54 = arith.constant dense<0.000000e+00> : vector<16x32xf32>
    %107 = tpu.matmul %99, %106, %cst_54 {dimension_numbers = #tpu.dot_dimension_numbers<[1], [0], [0], [1], [0, 0, 1, 1], [], []>, precision = #tpu.contract_precision<fp32>} : vector<16x32xf32>, vector<32x32xf32>, vector<16x32xf32> -> vector<16x32xf32>
    %108 = vector.broadcast %7 : vector<1x32xf32> to vector<16x32xf32>
    %109 = arith.addf %107, %108 : vector<16x32xf32>
    %c0_55 = arith.constant 0 : index
    %c0_56 = arith.constant 0 : index
    %110 = vector.load %arg9[%c0_55, %c0_56] : memref<32x32xf32, #tpu.memory_space<vmem>>, vector<32x32xf32>
    %cst_57 = arith.constant dense<0.000000e+00> : vector<16x32xf32>
    %111 = tpu.matmul %99, %110, %cst_57 {dimension_numbers = #tpu.dot_dimension_numbers<[1], [0], [0], [1], [0, 0, 1, 1], [], []>, precision = #tpu.contract_precision<fp32>} : vector<16x32xf32>, vector<32x32xf32>, vector<16x32xf32> -> vector<16x32xf32>
    %112 = vector.broadcast %8 : vector<1x32xf32> to vector<16x32xf32>
    %113 = arith.addf %111, %112 : vector<16x32xf32>
    %cst_58 = arith.constant dense<0.000000e+00> : vector<16x32xf32>
    %114 = tpu.matmul %105, %47, %cst_58 {dimension_numbers = #tpu.dot_dimension_numbers<[1], [0], [0], [1], [0, 0, 1, 1], [], []>, precision = #tpu.contract_precision<fp32>} : vector<16x32xf32>, vector<32x32xf32>, vector<16x32xf32> -> vector<16x32xf32>
    %cst_59 = arith.constant dense<0.000000e+00> : vector<16x32xf32>
    %115 = tpu.matmul %109, %47, %cst_59 {dimension_numbers = #tpu.dot_dimension_numbers<[1], [0], [0], [1], [0, 0, 1, 1], [], []>, precision = #tpu.contract_precision<fp32>} : vector<16x32xf32>, vector<32x32xf32>, vector<16x32xf32> -> vector<16x32xf32>
    %cst_60 = arith.constant dense<0.000000e+00> : vector<128x32xf32>
    %116 = tpu.matmul %80, %114, %cst_60 {dimension_numbers = #tpu.dot_dimension_numbers<[1], [0], [0], [1], [0, 0, 1, 1], [], []>, precision = #tpu.contract_precision<fp32>} : vector<128x16xf32>, vector<16x32xf32>, vector<128x32xf32> -> vector<128x32xf32>
    %cst_61 = arith.constant dense<0.000000e+00> : vector<128x32xf32>
    %117 = tpu.matmul %87, %115, %cst_61 {dimension_numbers = #tpu.dot_dimension_numbers<[1], [0], [0], [1], [0, 0, 1, 1], [], []>, precision = #tpu.contract_precision<fp32>} : vector<128x16xf32>, vector<16x32xf32>, vector<128x32xf32> -> vector<128x32xf32>
    %cst_62 = arith.constant dense<0.000000e+00> : vector<128x32xf32>
    %118 = tpu.matmul %87, %113, %cst_62 {dimension_numbers = #tpu.dot_dimension_numbers<[1], [0], [0], [1], [0, 0, 1, 1], [], []>, precision = #tpu.contract_precision<fp32>} : vector<128x16xf32>, vector<16x32xf32>, vector<128x32xf32> -> vector<128x32xf32>
    %119 = arith.mulf %116, %117 : vector<128x32xf32>
    %cst_63 = arith.constant dense<0.000000e+00> : vector<128x8xf32>
    %120 = tpu.matmul %119, %55, %cst_63 {dimension_numbers = #tpu.dot_dimension_numbers<[1], [0], [0], [1], [0, 0, 1, 1], [], []>, precision = #tpu.contract_precision<fp32>} : vector<128x32xf32>, vector<32x8xf32>, vector<128x8xf32> -> vector<128x8xf32>
    %121 = vector.shape_cast %120 : vector<128x8xf32> to vector<16x8x8xf32>
    %122 = vector.broadcast %3 : vector<16x8x1xf32> to vector<16x8x8xf32>
    %123 = arith.addf %121, %122 : vector<16x8x8xf32>
    %cst_64 = arith.constant dense<0xFF800000> : vector<16x8xf32>
    %124 = vector.multi_reduction <maximumf>, %123, %cst_64 [1] : vector<16x8x8xf32> to vector<16x8xf32>
    %125 = vector.shape_cast %124 : vector<16x8xf32> to vector<16x1x8xf32>
    %126 = vector.broadcast %125 : vector<16x1x8xf32> to vector<16x8x8xf32>
    %127 = arith.subf %123, %126 : vector<16x8x8xf32>
    %128 = math.exp %127 : vector<16x8x8xf32>
    %cst_65 = arith.constant dense<0.000000e+00> : vector<16x8xf32>
    %129 = vector.multi_reduction <add>, %128, %cst_65 [1] : vector<16x8x8xf32> to vector<16x8xf32>
    %130 = vector.shape_cast %129 : vector<16x8xf32> to vector<16x1x8xf32>
    %131 = tpu.reciprocal %130 {approx = true} : vector<16x1x8xf32> -> vector<16x1x8xf32>
    %132 = vector.broadcast %131 : vector<16x1x8xf32> to vector<16x8x8xf32>
    %133 = arith.mulf %128, %132 : vector<16x8x8xf32>
    %134 = vector.shape_cast %133 : vector<16x8x8xf32> to vector<128x8xf32>
    %cst_66 = arith.constant dense<0.000000e+00> : vector<128x32xf32>
    %135 = tpu.matmul %134, %63, %cst_66 {dimension_numbers = #tpu.dot_dimension_numbers<[1], [0], [0], [1], [0, 0, 1, 1], [], []>, precision = #tpu.contract_precision<fp32>} : vector<128x8xf32>, vector<8x32xf32>, vector<128x32xf32> -> vector<128x32xf32>
    %136 = arith.mulf %135, %118 : vector<128x32xf32>
    %137 = vector.shape_cast %136 : vector<128x32xf32> to vector<16x8x32xf32>
    %cst_67 = arith.constant dense<0.000000e+00> : vector<16x32xf32>
    %138 = vector.multi_reduction <add>, %137, %cst_67 [1] : vector<16x8x32xf32> to vector<16x32xf32>
    %c0_68 = arith.constant 0 : index
    %c0_69 = arith.constant 0 : index
    %139 = vector.load %arg11[%c0_68, %c0_69] : memref<32x32xf32, #tpu.memory_space<vmem>>, vector<32x32xf32>
    %cst_70 = arith.constant dense<0.000000e+00> : vector<16x32xf32>
    %140 = tpu.matmul %138, %139, %cst_70 {dimension_numbers = #tpu.dot_dimension_numbers<[1], [0], [0], [1], [0, 0, 1, 1], [], []>, precision = #tpu.contract_precision<fp32>} : vector<16x32xf32>, vector<32x32xf32>, vector<16x32xf32> -> vector<16x32xf32>
    %141 = vector.broadcast %9 : vector<1x32xf32> to vector<16x32xf32>
    %142 = arith.addf %140, %141 : vector<16x32xf32>
    %143 = arith.addf %0, %142 : vector<16x32xf32>
    %144 = arith.mulf %143, %143 : vector<16x32xf32>
    %cst_71 = arith.constant dense<0.000000e+00> : vector<16xf32>
    %145 = vector.multi_reduction <add>, %144, %cst_71 [1] : vector<16x32xf32> to vector<16xf32>
    %146 = vector.shape_cast %145 : vector<16xf32> to vector<16x1xf32>
    %cst_72 = arith.constant 3.200000e+01 : f32
    %147 = vector.broadcast %cst_72 : f32 to vector<16x1xf32>
    %148 = arith.divf %146, %147 : vector<16x1xf32>
    %cst_73 = arith.constant 9.99999974E-6 : f32
    %149 = vector.broadcast %cst_73 : f32 to vector<16x1xf32>
    %150 = arith.addf %148, %149 : vector<16x1xf32>
    %151 = math.rsqrt %150 : vector<16x1xf32>
    %152 = vector.broadcast %151 : vector<16x1xf32> to vector<16x32xf32>
    %153 = arith.mulf %143, %152 : vector<16x32xf32>
    %154 = vector.broadcast %5 : vector<1x32xf32> to vector<16x32xf32>
    %155 = arith.mulf %153, %154 : vector<16x32xf32>
    %c0_74 = arith.constant 0 : index
    %c0_75 = arith.constant 0 : index
    %156 = vector.load %arg14[%c0_74, %c0_75] : memref<32x64xf32, #tpu.memory_space<vmem>>, vector<32x64xf32>
    %cst_76 = arith.constant dense<0.000000e+00> : vector<16x64xf32>
    %157 = tpu.matmul %155, %156, %cst_76 {dimension_numbers = #tpu.dot_dimension_numbers<[1], [0], [0], [1], [0, 0, 1, 1], [], []>, precision = #tpu.contract_precision<fp32>} : vector<16x32xf32>, vector<32x64xf32>, vector<16x64xf32> -> vector<16x64xf32>
    %158 = vector.broadcast %10 : vector<1x64xf32> to vector<16x64xf32>
    %159 = arith.addf %157, %158 : vector<16x64xf32>
    %160 = arith.negf %159 : vector<16x64xf32>
    %161 = math.exp %160 : vector<16x64xf32>
    %cst_77 = arith.constant 1.000000e+00 : f32
    %162 = vector.broadcast %cst_77 : f32 to vector<16x64xf32>
    %163 = arith.addf %162, %161 : vector<16x64xf32>
    %164 = arith.divf %162, %163 : vector<16x64xf32>
    %165 = arith.mulf %159, %164 : vector<16x64xf32>
    %c0_78 = arith.constant 0 : index
    %c0_79 = arith.constant 0 : index
    %166 = vector.load %arg16[%c0_78, %c0_79] : memref<64x32xf32, #tpu.memory_space<vmem>>, vector<64x32xf32>
    %cst_80 = arith.constant dense<0.000000e+00> : vector<16x32xf32>
    %167 = tpu.matmul %165, %166, %cst_80 {dimension_numbers = #tpu.dot_dimension_numbers<[1], [0], [0], [1], [0, 0, 1, 1], [], []>, precision = #tpu.contract_precision<fp32>} : vector<16x64xf32>, vector<64x32xf32>, vector<16x32xf32> -> vector<16x32xf32>
    %168 = arith.addf %143, %167 : vector<16x32xf32>
    %169 = vector.broadcast %11 : vector<1x32xf32> to vector<16x32xf32>
    %170 = arith.addf %168, %169 : vector<16x32xf32>
    %c0_81 = arith.constant 0 : index
    %c0_82 = arith.constant 0 : index
    %171 = vector.load %arg18[%c0_81, %c0_82] : memref<16x32xf32, #tpu.memory_space<vmem>>, vector<16x32xf32>
    tpu.vector_store %arg18[%c0_81, %c0_82], %170 {strides = array<i32>} : memref<16x32xf32, #tpu.memory_space<vmem>>, vector<16x32xf32>,
    return
  }
}

</mosaic_0001>

<llo_original>
// kernel: tpu_custom_call.1
$region0: #{tpu_custom_call.1}
  #allocation0 [shape = 'u32[]', space=smem, size = 0x4, offset = 0x4, fixed_abs, tag = 'smem constant byte address 0x4 - core index']
  #allocation1 [shape = 'u32[144,128]{1,0:T(1,128)}', space=vmem, size = 0x12000, scoped, tag = 'internal scratch']
  %s0 = inlined_call_operand.vmem [shape: f32[16,32], index: 0, kind: input, shape index: {}]
  %s1 = inlined_call_operand.vmem [shape: f32[1,32], index: 1, kind: input, shape index: {}]
  %s2 = inlined_call_operand.vmem [shape: f32[1,32], index: 2, kind: input, shape index: {}]
  %s3 = inlined_call_operand.vmem [shape: f32[16,8,1], index: 3, kind: input, shape index: {}]
  %s4 = inlined_call_operand.vmem [shape: f32[1,32], index: 4, kind: input, shape index: {}]
  %s5 = inlined_call_operand.vmem [shape: f32[32,32], index: 5, kind: input, shape index: {}]
  %s6 = inlined_call_operand.vmem [shape: f32[1,32], index: 6, kind: input, shape index: {}]
  %s7 = inlined_call_operand.vmem [shape: f32[32,32], index: 7, kind: input, shape index: {}]
  %s8 = inlined_call_operand.vmem [shape: f32[1,32], index: 8, kind: input, shape index: {}]
  %s9 = inlined_call_operand.vmem [shape: f32[32,32], index: 9, kind: input, shape index: {}]
  %s10 = inlined_call_operand.vmem [shape: f32[1,32], index: 10, kind: input, shape index: {}]
  %s11 = inlined_call_operand.vmem [shape: f32[32,32], index: 11, kind: input, shape index: {}]
  %s12 = inlined_call_operand.vmem [shape: f32[1,32], index: 12, kind: input, shape index: {}]
  %s13 = inlined_call_operand.vmem [shape: f32[1,32], index: 13, kind: input, shape index: {}]
  %s14 = inlined_call_operand.vmem [shape: f32[32,64], index: 14, kind: input, shape index: {}]
  %s15 = inlined_call_operand.vmem [shape: f32[1,64], index: 15, kind: input, shape index: {}]
  %s16 = inlined_call_operand.vmem [shape: f32[64,32], index: 16, kind: input, shape index: {}]
  %s17 = inlined_call_operand.vmem [shape: f32[1,32], index: 17, kind: input, shape index: {}]
  %s18 = inlined_call_operand.hbm [shape: f32[16,32], index: 18, kind: output, shape index: {}]
  %s19 = sld [smem:[#allocation0]]
  $region82: #{tpu_custom_call.1} parent=0
    _
  %s21 = ssub.s32 1, %s19
  %s22 = scalar_select 0, %s21, %s19
  $region1: #{tpu_custom_call.1} parent=0
    #allocation2 [shape = 'u8[8192]{0}', space=vmem, size = 0x2000, scoped, tag = 'output window, operand 0, single buffered']
    #allocation3 [shape = 's32[1]{0}', space=sflag, size = 0x4, scoped, tag = 'scoped memory for tpu_custom_call.1']
    %23 = vsyncpa [#allocation3], 0
    // Predicated region
    $region2: #{tpu_custom_call.1} parent=1 // pred_check
      _
    $region3: #{tpu_custom_call.1} parent=1 // pred_check_branch
      %25 = sbr.rel (0) target = $region5
    $region4: #{tpu_custom_call.1} parent=1 // pred_region
      _
    $region5: #{tpu_custom_call.1} parent=1 // pred_fallthru
      _
    // Predicated region
    $region6: #{tpu_custom_call.1} parent=1 // pred_check
      _
    $region7: #{tpu_custom_call.1} parent=1 // pred_check_branch
      %27 = sbr.rel (0) target = $region9
    $region8: #{tpu_custom_call.1} parent=1 // pred_region
      _
    $region9: #{tpu_custom_call.1} parent=1 // pred_fallthru
      _
    // Predicated region
    $region10: #{tpu_custom_call.1} parent=1 // pred_check
      _
    $region11: #{tpu_custom_call.1} parent=1 // pred_check_branch
      %29 = sbr.rel (0) target = $region13
    $region12: #{tpu_custom_call.1} parent=1 // pred_region
      _
    $region13: #{tpu_custom_call.1} parent=1 // pred_fallthru
      _
    // Predicated region
    $region14: #{tpu_custom_call.1} parent=1 // pred_check
      _
    $region15: #{tpu_custom_call.1} parent=1 // pred_check_branch
      %31 = sbr.rel (0) target = $region17
    $region16: #{tpu_custom_call.1} parent=1 // pred_region
      _
    $region17: #{tpu_custom_call.1} parent=1 // pred_fallthru
      _
    // Predicated region
    $region18: #{tpu_custom_call.1} parent=1 // pred_check
      _
    $region19: #{tpu_custom_call.1} parent=1 // pred_check_branch
      %33 = sbr.rel (0) target = $region21
    $region20: #{tpu_custom_call.1} parent=1 // pred_region
      _
    $region21: #{tpu_custom_call.1} parent=1 // pred_fallthru
      _
    // Predicated region
    $region22: #{tpu_custom_call.1} parent=1 // pred_check
      _
    $region23: #{tpu_custom_call.1} parent=1 // pred_check_branch
      %35 = sbr.rel (0) target = $region25
    $region24: #{tpu_custom_call.1} parent=1 // pred_region
      _
    $region25: #{tpu_custom_call.1} parent=1 // pred_fallthru
      _
    // Predicated region
    $region26: #{tpu_custom_call.1} parent=1 // pred_check
      _
    $region27: #{tpu_custom_call.1} parent=1 // pred_check_branch
      %37 = sbr.rel (0) target = $region29
    $region28: #{tpu_custom_call.1} parent=1 // pred_region
      _
    $region29: #{tpu_custom_call.1} parent=1 // pred_fallthru
      _
    // Predicated region
    $region30: #{tpu_custom_call.1} parent=1 // pred_check
      _
    $region31: #{tpu_custom_call.1} parent=1 // pred_check_branch
      %39 = sbr.rel (0) target = $region33
    $region32: #{tpu_custom_call.1} parent=1 // pred_region
      _
    $region33: #{tpu_custom_call.1} parent=1 // pred_fallthru
      _
    // Predicated region
    $region34: #{tpu_custom_call.1} parent=1 // pred_check
      _
    $region35: #{tpu_custom_call.1} parent=1 // pred_check_branch
      %41 = sbr.rel (0) target = $region37
    $region36: #{tpu_custom_call.1} parent=1 // pred_region
      _
    $region37: #{tpu_custom_call.1} parent=1 // pred_fallthru
      _
    // Predicated region
    $region38: #{tpu_custom_call.1} parent=1 // pred_check
      _
    $region39: #{tpu_custom_call.1} parent=1 // pred_check_branch
      %43 = sbr.rel (0) target = $region41
    $region40: #{tpu_custom_call.1} parent=1 // pred_region
      _
    $region41: #{tpu_custom_call.1} parent=1 // pred_fallthru
      _
    // Predicated region
    $region42: #{tpu_custom_call.1} parent=1 // pred_check
      _
    $region43: #{tpu_custom_call.1} parent=1 // pred_check_branch
      %45 = sbr.rel (0) target = $region45
    $region44: #{tpu_custom_call.1} parent=1 // pred_region
      _
    $region45: #{tpu_custom_call.1} parent=1 // pred_fallthru
      _
    // Predicated region
    $region46: #{tpu_custom_call.1} parent=1 // pred_check
      _
    $region47: #{tpu_custom_call.1} parent=1 // pred_check_branch
      %47 = sbr.rel (0) target = $region49
    $region48: #{tpu_custom_call.1} parent=1 // pred_region
      _
    $region49: #{tpu_custom_call.1} parent=1 // pred_fallthru
      _
    // Predicated region
    $region50: #{tpu_custom_call.1} parent=1 // pred_check
      _
    $region51: #{tpu_custom_call.1} parent=1 // pred_check_branch
      %49 = sbr.rel (0) target = $region53
    $region52: #{tpu_custom_call.1} parent=1 // pred_region
      _
    $region53: #{tpu_custom_call.1} parent=1 // pred_fallthru
      _
    // Predicated region
    $region54: #{tpu_custom_call.1} parent=1 // pred_check
      _
    $region55: #{tpu_custom_call.1} parent=1 // pred_check_branch
      %51 = sbr.rel (0) target = $region57
    $region56: #{tpu_custom_call.1} parent=1 // pred_region
      _
    $region57: #{tpu_custom_call.1} parent=1 // pred_fallthru
      _
    // Predicated region
    $region58: #{tpu_custom_call.1} parent=1 // pred_check
      _
    $region59: #{tpu_custom_call.1} parent=1 // pred_check_branch
      %53 = sbr.rel (0) target = $region61
    $region60: #{tpu_custom_call.1} parent=1 // pred_region
      _
    $region61: #{tpu_custom_call.1} parent=1 // pred_fallthru
      _
    // Predicated region
    $region62: #{tpu_custom_call.1} parent=1 // pred_check
      _
    $region63: #{tpu_custom_call.1} parent=1 // pred_check_branch
      %55 = sbr.rel (0) target = $region65
    $region64: #{tpu_custom_call.1} parent=1 // pred_region
      _
    $region65: #{tpu_custom_call.1} parent=1 // pred_fallthru
      _
    // Predicated region
    $region66: #{tpu_custom_call.1} parent=1 // pred_check
      _
    $region67: #{tpu_custom_call.1} parent=1 // pred_check_branch
      %57 = sbr.rel (0) target = $region69
    $region68: #{tpu_custom_call.1} parent=1 // pred_region
      _
    $region69: #{tpu_custom_call.1} parent=1 // pred_fallthru
      _
    // Predicated region
    $region70: #{tpu_custom_call.1} parent=1 // pred_check
      _
    $region71: #{tpu_custom_call.1} parent=1 // pred_check_branch
      %59 = sbr.rel (0) target = $region73
    $region72: #{tpu_custom_call.1} parent=1 // pred_region
      _
    $region73: #{tpu_custom_call.1} parent=1 // pred_fallthru
      _
    %v60 = vld [vmem:[%s0] sm:$0xff]
    %v61 = vld [vmem:[%s0 + $0x8] sm:$0xff]
    %v62 = vld [vmem:[%s1] sm:$0x1]
    %v63 = vld [vmem:[%s2] sm:$0x1]
    %v64 = vld [vmem:[%s3] sm:$0xff]
    %v65 = vld [vmem:[%s3 + $0x8] sm:$0xff]
    %v66 = vld [vmem:[%s3 + $0x10] sm:$0xff]
    %v67 = vld [vmem:[%s3 + $0x18] sm:$0xff]
    %v68 = vld [vmem:[%s3 + $0x20] sm:$0xff]
    %v69 = vld [vmem:[%s3 + $0x28] sm:$0xff]
    %v70 = vld [vmem:[%s3 + $0x30] sm:$0xff]
    %v71 = vld [vmem:[%s3 + $0x38] sm:$0xff]
    %v72 = vld [vmem:[%s3 + $0x40] sm:$0xff]
    %v73 = vld [vmem:[%s3 + $0x48] sm:$0xff]
    %v74 = vld [vmem:[%s3 + $0x50] sm:$0xff]
    %v75 = vld [vmem:[%s3 + $0x58] sm:$0xff]
    %v76 = vld [vmem:[%s3 + $0x60] sm:$0xff]
    %v77 = vld [vmem:[%s3 + $0x68] sm:$0xff]
    %v78 = vld [vmem:[%s3 + $0x70] sm:$0xff]
    %v79 = vld [vmem:[%s3 + $0x78] sm:$0xff]
    %v80 = vld [vmem:[%s4] sm:$0x1]
    %v81 = vld [vmem:[%s13] sm:$0x1]
    %v82 = vld [vmem:[%s6] sm:$0x1]
    %v83 = vld [vmem:[%s8] sm:$0x1]
    %v84 = vld [vmem:[%s10] sm:$0x1]
    %v85 = vld [vmem:[%s12] sm:$0x1]
    %v86 = vld [vmem:[%s15] sm:$0x1]
    %v87 = vld [vmem:[%s17] sm:$0x1]
    %v88 = vlaneseq
    %v89 = vshrl.u32 %v88, 7
    %v90 = vadd.s32 %v89, 8
    %v91 = vadd.s32 %v89, 16
    %v92 = vadd.s32 %v89, 24
    %v93 = vlaneseq
    %v94 = vand.u32 %v93, 127
    %v95 = vshra.s32 %v89, 2
    %v96 = vshra.s32 %v90, 2
    %v97 = vshra.s32 %v91, 2
    %v98 = vshra.s32 %v92, 2
    %v99 = vshra.s32 %v94, 2
    %vm100 = vcmp.eq.s32.totalorder %v95, %v99
    %vm101 = vcmp.eq.s32.totalorder %v96, %v99
    %vm102 = vcmp.eq.s32.totalorder %v97, %v99
    %vm103 = vcmp.eq.s32.totalorder %v98, %v99
    %v104 = vshra.s32 %v89, 1
    %v105 = vshra.s32 %v90, 1
    %v106 = vshra.s32 %v91, 1
    %v107 = vshra.s32 %v92, 1
    %v108 = vand.u32 %v104, 1
    %v109 = vand.u32 %v105, 1
    %v110 = vand.u32 %v106, 1
    %v111 = vand.u32 %v107, 1
    %v112 = vand.u32 %v94, 1
    %vm113 = vcmp.eq.s32.totalorder %v108, %v112
    %vm114 = vcmp.eq.s32.totalorder %v109, %v112
    %vm115 = vcmp.eq.s32.totalorder %v110, %v112
    %vm116 = vcmp.eq.s32.totalorder %v111, %v112
    %v117 = vand.u32 %v89, 1
    %v118 = vand.u32 %v90, 1
    %v119 = vand.u32 %v91, 1
    %v120 = vand.u32 %v92, 1
    %vm121 = vcmp.eq.s32.totalorder %v117, 1
    %vm122 = vcmp.eq.s32.totalorder %v118, 1
    %vm123 = vcmp.eq.s32.totalorder %v119, 1
    %vm124 = vcmp.eq.s32.totalorder %v120, 1
    %v125 = vshra.s32 %v94, 1
    %v126 = vand.u32 %v125, 1
    %vm127 = vcmp.eq.s32.totalorder %v126, 1
    %v129 = vlaneseq
    %v130 = vshrl.u32 %v129, 7
    %v131 = vsub.s32 0, %v130
    %v132 = vrot.slane %v62, %v131
    %v135 = vlaneseq
    %v136 = vshrl.u32 %v135, 7
    %v137 = vsub.s32 0, %v136
    %v138 = vrot.slane %v63, %v137
    %v140 = vsub.f32 0.0, %v138
    %v141 = vsel %vm127, %v132, %v140
    %v142 = vsel %vm127, %v138, %v132
    %v143 = vsel %vm121, %v141, %v142
    %v144 = vsel %vm122, %v141, %v142
    %v145 = vsel %vm123, %v141, %v142
    %v146 = vsel %vm124, %v141, %v142
    %vm147 = vmand %vm100, %vm113
    %vm148 = vmand %vm101, %vm114
    %vm149 = vmand %vm102, %vm115
    %vm150 = vmand %vm103, %vm116
    %v151 = vsel %vm147, %v143, 0.0
    %v152 = vsel %vm148, %v144, 0.0
    %v153 = vsel %vm149, %v145, 0.0
    %v154 = vsel %vm150, %v146, 0.0
    %vm155 = vcmp.eq.s32.totalorder %v95, %v94
    %vm156 = vcmp.eq.s32.totalorder %v96, %v94
    %vm157 = vcmp.eq.s32.totalorder %v97, %v94
    %vm158 = vcmp.eq.s32.totalorder %v98, %v94
    %v159 = vsel %vm155, 1.0, 0.0
    %v160 = vsel %vm156, 1.0, 0.0
    %v161 = vsel %vm157, 1.0, 0.0
    %v162 = vsel %vm158, 1.0, 0.0
    %vm163 = vcmp.eq.s32.totalorder %v89, %v99
    %v164 = vsel %vm163, 1.0, 0.0
    %v165 = vadd.s32 %v89, 32
    %v166 = vadd.s32 %v89, 40
    %v167 = vadd.s32 %v89, 48
    %v168 = vadd.s32 %v89, 56
    %v169 = vadd.s32 %v89, 64
    %v170 = vadd.s32 %v89, 72
    %v171 = vadd.s32 %v89, 80
    %v172 = vadd.s32 %v89, 88
    %v173 = vadd.s32 %v89, 96
    %v174 = vadd.s32 %v89, 104
    %v175 = vadd.s32 %v89, 112
    %v176 = vadd.s32 %v89, 120
    %v177 = vshra.s32 %v89, 6
    %v178 = vshra.s32 %v90, 6
    %v179 = vshra.s32 %v91, 6
    %v180 = vshra.s32 %v92, 6
    %v181 = vshra.s32 %v165, 6
    %v182 = vshra.s32 %v166, 6
    %v183 = vshra.s32 %v167, 6
    %v184 = vshra.s32 %v168, 6
    %v185 = vshra.s32 %v169, 6
    %v186 = vshra.s32 %v170, 6
    %v187 = vshra.s32 %v171, 6
    %v188 = vshra.s32 %v172, 6
    %v189 = vshra.s32 %v173, 6
    %v190 = vshra.s32 %v174, 6
    %v191 = vshra.s32 %v175, 6
    %v192 = vshra.s32 %v176, 6
    %v193 = vshra.s32 %v89, 3
    %v194 = vshra.s32 %v90, 3
    %v195 = vshra.s32 %v91, 3
    %v196 = vshra.s32 %v92, 3
    %v197 = vshra.s32 %v165, 3
    %v198 = vshra.s32 %v166, 3
    %v199 = vshra.s32 %v167, 3
    %v200 = vshra.s32 %v168, 3
    %v201 = vshra.s32 %v169, 3
    %v202 = vshra.s32 %v170, 3
    %v203 = vshra.s32 %v171, 3
    %v204 = vshra.s32 %v172, 3
    %v205 = vshra.s32 %v173, 3
    %v206 = vshra.s32 %v174, 3
    %v207 = vshra.s32 %v175, 3
    %v208 = vshra.s32 %v176, 3
    %v209 = vand.u32 %v193, 7
    %v210 = vand.u32 %v194, 7
    %v211 = vand.u32 %v195, 7
    %v212 = vand.u32 %v196, 7
    %v213 = vand.u32 %v197, 7
    %v214 = vand.u32 %v198, 7
    %v215 = vand.u32 %v199, 7
    %v216 = vand.u32 %v200, 7
    %v217 = vand.u32 %v201, 7
    %v218 = vand.u32 %v202, 7
    %v219 = vand.u32 %v203, 7
    %v220 = vand.u32 %v204, 7
    %v221 = vand.u32 %v205, 7
    %v222 = vand.u32 %v206, 7
    %v223 = vand.u32 %v207, 7
    %v224 = vand.u32 %v208, 7
    %v225 = vand.u32 %v89, 7
    %v226 = vand.u32 %v90, 7
    %v227 = vand.u32 %v91, 7
    %v228 = vand.u32 %v92, 7
    %v229 = vand.u32 %v165, 7
    %v230 = vand.u32 %v166, 7
    %v231 = vand.u32 %v167, 7
    %v232 = vand.u32 %v168, 7
    %v233 = vand.u32 %v169, 7
    %v234 = vand.u32 %v170, 7
    %v235 = vand.u32 %v171, 7
    %v236 = vand.u32 %v172, 7
    %v237 = vand.u32 %v173, 7
    %v238 = vand.u32 %v174, 7
    %v239 = vand.u32 %v175, 7
    %v240 = vand.u32 %v176, 7
    %v241 = vmul.u32 %v177, 8
    %v242 = vmul.u32 %v178, 8
    %v243 = vmul.u32 %v179, 8
    %v244 = vmul.u32 %v180, 8
    %v245 = vmul.u32 %v181, 8
    %v246 = vmul.u32 %v182, 8
    %v247 = vmul.u32 %v183, 8
    %v248 = vmul.u32 %v184, 8
    %v249 = vmul.u32 %v185, 8
    %v250 = vmul.u32 %v186, 8
    %v251 = vmul.u32 %v187, 8
    %v252 = vmul.u32 %v188, 8
    %v253 = vmul.u32 %v189, 8
    %v254 = vmul.u32 %v190, 8
    %v255 = vmul.u32 %v191, 8
    %v256 = vmul.u32 %v192, 8
    %v257 = vadd.s32 %v241, %v209
    %v258 = vadd.s32 %v242, %v210
    %v259 = vadd.s32 %v243, %v211
    %v260 = vadd.s32 %v244, %v212
    %v261 = vadd.s32 %v245, %v213
    %v262 = vadd.s32 %v246, %v214
    %v263 = vadd.s32 %v247, %v215
    %v264 = vadd.s32 %v248, %v216
    %v265 = vadd.s32 %v249, %v217
    %v266 = vadd.s32 %v250, %v218
    %v267 = vadd.s32 %v251, %v219
    %v268 = vadd.s32 %v252, %v220
    %v269 = vadd.s32 %v253, %v221
    %v270 = vadd.s32 %v254, %v222
    %v271 = vadd.s32 %v255, %v223
    %v272 = vadd.s32 %v256, %v224
    %vm273 = vcmp.eq.s32.totalorder %v94, %v257
    %vm274 = vcmp.eq.s32.totalorder %v94, %v258
    %vm275 = vcmp.eq.s32.totalorder %v94, %v259
    %vm276 = vcmp.eq.s32.totalorder %v94, %v260
    %vm277 = vcmp.eq.s32.totalorder %v94, %v261
    %vm278 = vcmp.eq.s32.totalorder %v94, %v262
    %vm279 = vcmp.eq.s32.totalorder %v94, %v263
    %vm280 = vcmp.eq.s32.totalorder %v94, %v264
    %vm281 = vcmp.eq.s32.totalorder %v94, %v265
    %vm282 = vcmp.eq.s32.totalorder %v94, %v266
    %vm283 = vcmp.eq.s32.totalorder %v94, %v267
    %vm284 = vcmp.eq.s32.totalorder %v94, %v268
    %vm285 = vcmp.eq.s32.totalorder %v94, %v269
    %vm286 = vcmp.eq.s32.totalorder %v94, %v270
    %vm287 = vcmp.eq.s32.totalorder %v94, %v271
    %vm288 = vcmp.eq.s32.totalorder %v94, %v272
    %v289 = vsel %vm273, 1.0, 0.0
    %v290 = vsel %vm274, 1.0, 0.0
    %v291 = vsel %vm275, 1.0, 0.0
    %v292 = vsel %vm276, 1.0, 0.0
    %v293 = vsel %vm277, 1.0, 0.0
    %v294 = vsel %vm278, 1.0, 0.0
    %v295 = vsel %vm279, 1.0, 0.0
    %v296 = vsel %vm280, 1.0, 0.0
    %v297 = vsel %vm281, 1.0, 0.0
    %v298 = vsel %vm282, 1.0, 0.0
    %v299 = vsel %vm283, 1.0, 0.0
    %v300 = vsel %vm284, 1.0, 0.0
    %v301 = vsel %vm285, 1.0, 0.0
    %v302 = vsel %vm286, 1.0, 0.0
    %v303 = vsel %vm287, 1.0, 0.0
    %v304 = vsel %vm288, 1.0, 0.0
    %v305 = vadd.s32 %v241, %v225
    %v306 = vadd.s32 %v242, %v226
    %v307 = vadd.s32 %v243, %v227
    %v308 = vadd.s32 %v244, %v228
    %v309 = vadd.s32 %v245, %v229
    %v310 = vadd.s32 %v246, %v230
    %v311 = vadd.s32 %v247, %v231
    %v312 = vadd.s32 %v248, %v232
    %v313 = vadd.s32 %v249, %v233
    %v314 = vadd.s32 %v250, %v234
    %v315 = vadd.s32 %v251, %v235
    %v316 = vadd.s32 %v252, %v236
    %v317 = vadd.s32 %v253, %v237
    %v318 = vadd.s32 %v254, %v238
    %v319 = vadd.s32 %v255, %v239
    %v320 = vadd.s32 %v256, %v240
    %vm321 = vcmp.eq.s32.totalorder %v94, %v305
    %vm322 = vcmp.eq.s32.totalorder %v94, %v306
    %vm323 = vcmp.eq.s32.totalorder %v94, %v307
    %vm324 = vcmp.eq.s32.totalorder %v94, %v308
    %vm325 = vcmp.eq.s32.totalorder %v94, %v309
    %vm326 = vcmp.eq.s32.totalorder %v94, %v310
    %vm327 = vcmp.eq.s32.totalorder %v94, %v311
    %vm328 = vcmp.eq.s32.totalorder %v94, %v312
    %vm329 = vcmp.eq.s32.totalorder %v94, %v313
    %vm330 = vcmp.eq.s32.totalorder %v94, %v314
    %vm331 = vcmp.eq.s32.totalorder %v94, %v315
    %vm332 = vcmp.eq.s32.totalorder %v94, %v316
    %vm333 = vcmp.eq.s32.totalorder %v94, %v317
    %vm334 = vcmp.eq.s32.totalorder %v94, %v318
    %vm335 = vcmp.eq.s32.totalorder %v94, %v319
    %vm336 = vcmp.eq.s32.totalorder %v94, %v320
    %v337 = vsel %vm321, 1.0, 0.0
    %v338 = vsel %vm322, 1.0, 0.0
    %v339 = vsel %vm323, 1.0, 0.0
    %v340 = vsel %vm324, 1.0, 0.0
    %v341 = vsel %vm325, 1.0, 0.0
    %v342 = vsel %vm326, 1.0, 0.0
    %v343 = vsel %vm327, 1.0, 0.0
    %v344 = vsel %vm328, 1.0, 0.0
    %v345 = vsel %vm329, 1.0, 0.0
    %v346 = vsel %vm330, 1.0, 0.0
    %v347 = vsel %vm331, 1.0, 0.0
    %v348 = vsel %vm332, 1.0, 0.0
    %v349 = vsel %vm333, 1.0, 0.0
    %v350 = vsel %vm334, 1.0, 0.0
    %v351 = vsel %vm335, 1.0, 0.0
    %v352 = vsel %vm336, 1.0, 0.0
    %v353 = vmul.f32 %v60, %v60
    %v354 = vmul.f32 %v61, %v61
    %vm355 = vcmask 261120
    %v356 = vsel %vm355, %v353, 0.0
    %357 = vadd.xlane.f32.xlu0 %v356
    %v358 = vpop.xlane.xlu0 %357
    %v359 = vsel %vm355, %v354, 0.0
    %360 = vadd.xlane.f32.xlu0 %v359
    %v361 = vpop.xlane.xlu0 %360
    %v362 = vrcp.pop 32.0
    %v363 = vmul.f32 %v358, %v362
    %v364 = vmul.f32 %v361, %v362
    %v365 = vadd.f32 %v363, 1e-05
    %v366 = vadd.f32 %v364, 1e-05
    %v367 = vrsqrt.pop %v365
    %v368 = vrsqrt.pop %v366
    %v369 = vmul.f32 %v60, %v367
    %v370 = vmul.f32 %v61, %v368
    %v372 = vlaneseq
    %v373 = vshrl.u32 %v372, 7
    %v374 = vsub.s32 0, %v373
    %v375 = vrot.slane %v80, %v374
    %v377 = vmul.f32 %v369, %v375
    %v378 = vmul.f32 %v370, %v375
    %v379 = vld [vmem:[%s5] sm:$0xff]
    %v380 = vld [vmem:[%s5 + $0x8] sm:$0xff]
    %v381 = vld [vmem:[%s5 + $0x10] sm:$0xff]
    %v382 = vld [vmem:[%s5 + $0x18] sm:$0xff]
    %v384 = vlaneseq
    %v385 = vshrl.u32 %v384, 7
    %v386 = vsub.s32 0, %v385
    %v387 = vrot.slane %v82, %v386
    %v390 = vsel %vm355, %v377, 0
    %v393 = vsel %vm355, %v378, 0
    %395 = vmatprep.subr.mxu0 0.0
    %396 = vmatpush1.msra.mxu0 0.0
    %397 = vmatprep.subr.mxu0 0.0
    %398 = vmatpush1.msra.mxu0 0.0
    %399 = vmatprep.subr.mxu0 0.0
    %400 = vmatpush1.msra.mxu0 0.0
    %401 = vmatprep.subr.mxu0 0.0
    %402 = vmatpush1.msra.mxu0 0.0
    %403 = vmatprep.subr.mxu0 0.0
    %404 = vmatpush1.msra.mxu0 0.0
    %405 = vmatprep.subr.mxu0 0.0
    %406 = vmatpush1.msra.mxu0 0.0
    %407 = vmatprep.subr.mxu0 0.0
    %408 = vmatpush1.msra.mxu0 0.0
    %409 = vmatprep.subr.mxu0 0.0
    %410 = vmatpush1.msra.mxu0 0.0
    %411 = vmatprep.subr.mxu0 0.0
    %412 = vmatpush1.msra.mxu0 0.0
    %413 = vmatprep.subr.mxu0 0.0
    %414 = vmatpush1.msra.mxu0 0.0
    %415 = vmatprep.subr.mxu0 0.0
    %416 = vmatpush1.msra.mxu0 0.0
    %417 = vmatprep.subr.mxu0 0.0
    %418 = vmatpush1.msra.mxu0 0.0
    %419 = vmatprep.subr.mxu0 0.0
    %v420 = vand.u32 %v382, 4294901760
    %421 = vmatpush1.msra.mxu0 %v420
    %422 = vmatprep.subr.mxu0 0.0
    %v423 = vand.u32 %v381, 4294901760
    %424 = vmatpush1.msra.mxu0 %v423
    %425 = vmatprep.subr.mxu0 0.0
    %v426 = vand.u32 %v380, 4294901760
    %427 = vmatpush1.msra.mxu0 %v426
    %428 = vmatprep.subr.mxu0 0.0
    %v429 = vand.u32 %v379, 4294901760
    %430 = vmatpush1.msra.mxu0 %v429
    %431 = vmatprep.subr.mxu0 0.0
    %432 = vmatpush2.msra.mxu0 0.0
    %433 = vmatprep.subr.mxu0 0.0
    %434 = vmatpush2.msra.mxu0 0.0
    %435 = vmatprep.subr.mxu0 0.0
    %436 = vmatpush2.msra.mxu0 0.0
    %437 = vmatprep.subr.mxu0 0.0
    %438 = vmatpush2.msra.mxu0 0.0
    %439 = vmatprep.subr.mxu0 0.0
    %440 = vmatpush2.msra.mxu0 0.0
    %441 = vmatprep.subr.mxu0 0.0
    %442 = vmatpush2.msra.mxu0 0.0
    %443 = vmatprep.subr.mxu0 0.0
    %444 = vmatpush2.msra.mxu0 0.0
    %445 = vmatprep.subr.mxu0 0.0
    %446 = vmatpush2.msra.mxu0 0.0
    %447 = vmatprep.subr.mxu0 0.0
    %448 = vmatpush2.msra.mxu0 0.0
    %449 = vmatprep.subr.mxu0 0.0
    %450 = vmatpush2.msra.mxu0 0.0
    %451 = vmatprep.subr.mxu0 0.0
    %452 = vmatpush2.msra.mxu0 0.0
    %453 = vmatprep.subr.mxu0 0.0
    %454 = vmatpush2.msra.mxu0 0.0
    %455 = vmatprep.subr.mxu0 0.0
    %456 = vmatpush2.msra.mxu0 0.0
    %457 = vmatprep.subr.mxu0 0.0
    %458 = vmatpush2.msra.mxu0 0.0
    %459 = vmatprep.subr.mxu0 0.0
    %460 = vmatpush2.msra.mxu0 0.0
    %461 = vmatprep.subr.mxu0 0.0
    %462 = vmatpush2.msra.mxu0 0.0
    %463 = vmatprep.mubr.f32.mxu0 0.0
    %v464 = vand.u32 %v390, 4294901760
    %v465 = vsub.f32 %v390, %v464
    %v466 = vand.u32 %v465, 4294901760
    %v467 = vsub.f32 %v465, %v466
    %v468 = vand.u32 %v467, 4294901760
    %469 = vmatmul.mubr.f32.gmra.mxu0 %v468
    %v470 = vpop.f32.mrf.mxu0
    %v471 = vadd.f32 %v387, %v470
    %v472 = vpop.f32.mrf.mxu0
    %473 = vmatprep.mubr.f32.mxu0 0.0
    %v474 = vand.u32 %v393, 4294901760
    %v475 = vsub.f32 %v393, %v474
    %v476 = vand.u32 %v475, 4294901760
    %v477 = vsub.f32 %v475, %v476
    %v478 = vand.u32 %v477, 4294901760
    %479 = vmatmul.mubr.f32.gmra.mxu0 %v478
    %v480 = vpop.f32.mrf.mxu0
    %v481 = vadd.f32 %v387, %v480
    %v482 = vpop.f32.mrf.mxu0
    %483 = vdwg.mxu0
    %484 = vmatprep.subr.mxu0 0.0
    %485 = vmatpush1.msra.mxu0 0.0
    %486 = vmatprep.subr.mxu0 0.0
    %487 = vmatpush1.msra.mxu0 0.0
    %488 = vmatprep.subr.mxu0 0.0
    %489 = vmatpush1.msra.mxu0 0.0
    %490 = vmatprep.subr.mxu0 0.0
    %491 = vmatpush1.msra.mxu0 0.0
    %492 = vmatprep.subr.mxu0 0.0
    %493 = vmatpush1.msra.mxu0 0.0
    %494 = vmatprep.subr.mxu0 0.0
    %495 = vmatpush1.msra.mxu0 0.0
    %496 = vmatprep.subr.mxu0 0.0
    %497 = vmatpush1.msra.mxu0 0.0
    %498 = vmatprep.subr.mxu0 0.0
    %499 = vmatpush1.msra.mxu0 0.0
    %500 = vmatprep.subr.mxu0 0.0
    %501 = vmatpush1.msra.mxu0 0.0
    %502 = vmatprep.subr.mxu0 0.0
    %503 = vmatpush1.msra.mxu0 0.0
    %504 = vmatprep.subr.mxu0 0.0
    %505 = vmatpush1.msra.mxu0 0.0
    %506 = vmatprep.subr.mxu0 0.0
    %507 = vmatpush1.msra.mxu0 0.0
    %508 = vmatprep.subr.mxu0 0.0
    %v509 = vand.u32 %v382, 4294901760
    %v510 = vsub.f32 %v382, %v509
    %v511 = vand.u32 %v510, 4294901760
    %v512 = vsub.f32 %v510, %v511
    %v513 = vand.u32 %v512, 4294901760
    %514 = vmatpush1.msra.mxu0 %v513
    %515 = vmatprep.subr.mxu0 0.0
    %v516 = vand.u32 %v381, 4294901760
    %v517 = vsub.f32 %v381, %v516
    %v518 = vand.u32 %v517, 4294901760
    %v519 = vsub.f32 %v517, %v518
    %v520 = vand.u32 %v519, 4294901760
    %521 = vmatpush1.msra.mxu0 %v520
    %522 = vmatprep.subr.mxu0 0.0
    %v523 = vand.u32 %v380, 4294901760
    %v524 = vsub.f32 %v380, %v523
    %v525 = vand.u32 %v524, 4294901760
    %v526 = vsub.f32 %v524, %v525
    %v527 = vand.u32 %v526, 4294901760
    %528 = vmatpush1.msra.mxu0 %v527
    %529 = vmatprep.subr.mxu0 0.0
    %v530 = vand.u32 %v379, 4294901760
    %v531 = vsub.f32 %v379, %v530
    %v532 = vand.u32 %v531, 4294901760
    %v533 = vsub.f32 %v531, %v532
    %v534 = vand.u32 %v533, 4294901760
    %535 = vmatpush1.msra.mxu0 %v534
    %536 = vmatprep.subr.mxu0 0.0
    %537 = vmatpush2.msra.mxu0 0.0
    %538 = vmatprep.subr.mxu0 0.0
    %539 = vmatpush2.msra.mxu0 0.0
    %540 = vmatprep.subr.mxu0 0.0
    %541 = vmatpush2.msra.mxu0 0.0
    %542 = vmatprep.subr.mxu0 0.0
    %543 = vmatpush2.msra.mxu0 0.0
    %544 = vmatprep.subr.mxu0 0.0
    %545 = vmatpush2.msra.mxu0 0.0
    %546 = vmatprep.subr.mxu0 0.0
    %547 = vmatpush2.msra.mxu0 0.0
    %548 = vmatprep.subr.mxu0 0.0
    %549 = vmatpush2.msra.mxu0 0.0
    %550 = vmatprep.subr.mxu0 0.0
    %551 = vmatpush2.msra.mxu0 0.0
    %552 = vmatprep.subr.mxu0 0.0
    %553 = vmatpush2.msra.mxu0 0.0
    %554 = vmatprep.subr.mxu0 0.0
    %555 = vmatpush2.msra.mxu0 0.0
    %556 = vmatprep.subr.mxu0 0.0
    %557 = vmatpush2.msra.mxu0 0.0
    %558 = vmatprep.subr.mxu0 0.0
    %559 = vmatpush2.msra.mxu0 0.0
    %560 = vmatprep.subr.mxu0 0.0
    %561 = vmatpush2.msra.mxu0 0.0
    %562 = vmatprep.subr.mxu0 0.0
    %563 = vmatpush2.msra.mxu0 0.0
    %564 = vmatprep.subr.mxu0 0.0
    %565 = vmatpush2.msra.mxu0 0.0
    %566 = vmatprep.subr.mxu0 0.0
    %567 = vmatpush2.msra.mxu0 0.0
    %568 = vmatprep.mubr.f32.mxu0 0.0
    %v569 = vand.u32 %v390, 4294901760
    %570 = vmatmul.mubr.f32.gmra.mxu0 %v569
    %v571 = vpop.f32.mrf.mxu0
    %v572 = vadd.f32 %v471, %v571
    %v573 = vpop.f32.mrf.mxu0
    %574 = vmatprep.mubr.f32.mxu0 0.0
    %v575 = vand.u32 %v393, 4294901760
    %576 = vmatmul.mubr.f32.gmra.mxu0 %v575
    %v577 = vpop.f32.mrf.mxu0
    %v578 = vadd.f32 %v481, %v577
    %v579 = vpop.f32.mrf.mxu0
    %580 = vdwg.mxu0
    %581 = vmatprep.subr.mxu0 0.0
    %582 = vmatpush1.msra.mxu0 0.0
    %583 = vmatprep.subr.mxu0 0.0
    %584 = vmatpush1.msra.mxu0 0.0
    %585 = vmatprep.subr.mxu0 0.0
    %586 = vmatpush1.msra.mxu0 0.0
    %587 = vmatprep.subr.mxu0 0.0
    %588 = vmatpush1.msra.mxu0 0.0
    %589 = vmatprep.subr.mxu0 0.0
    %590 = vmatpush1.msra.mxu0 0.0
    %591 = vmatprep.subr.mxu0 0.0
    %592 = vmatpush1.msra.mxu0 0.0
    %593 = vmatprep.subr.mxu0 0.0
    %594 = vmatpush1.msra.mxu0 0.0
    %595 = vmatprep.subr.mxu0 0.0
    %596 = vmatpush1.msra.mxu0 0.0
    %597 = vmatprep.subr.mxu0 0.0
    %598 = vmatpush1.msra.mxu0 0.0
    %599 = vmatprep.subr.mxu0 0.0
    %600 = vmatpush1.msra.mxu0 0.0
    %601 = vmatprep.subr.mxu0 0.0
    %602 = vmatpush1.msra.mxu0 0.0
    %603 = vmatprep.subr.mxu0 0.0
    %604 = vmatpush1.msra.mxu0 0.0
    %605 = vmatprep.subr.mxu0 0.0
    %v606 = vand.u32 %v382, 4294901760
    %v607 = vsub.f32 %v382, %v606
    %608 = vmatpush1.msra.mxu0 %v607
    %609 = vmatprep.subr.mxu0 0.0
    %v610 = vand.u32 %v381, 4294901760
    %v611 = vsub.f32 %v381, %v610
    %612 = vmatpush1.msra.mxu0 %v611
    %613 = vmatprep.subr.mxu0 0.0
    %v614 = vand.u32 %v380, 4294901760
    %v615 = vsub.f32 %v380, %v614
    %616 = vmatpush1.msra.mxu0 %v615
    %617 = vmatprep.subr.mxu0 0.0
    %v618 = vand.u32 %v379, 4294901760
    %v619 = vsub.f32 %v379, %v618
    %620 = vmatpush1.msra.mxu0 %v619
    %621 = vmatprep.subr.mxu0 0.0
    %622 = vmatpush2.msra.mxu0 0.0
    %623 = vmatprep.subr.mxu0 0.0
    %624 = vmatpush2.msra.mxu0 0.0
    %625 = vmatprep.subr.mxu0 0.0
    %626 = vmatpush2.msra.mxu0 0.0
    %627 = vmatprep.subr.mxu0 0.0
    %628 = vmatpush2.msra.mxu0 0.0
    %629 = vmatprep.subr.mxu0 0.0
    %630 = vmatpush2.msra.mxu0 0.0
    %631 = vmatprep.subr.mxu0 0.0
    %632 = vmatpush2.msra.mxu0 0.0
    %633 = vmatprep.subr.mxu0 0.0
    %634 = vmatpush2.msra.mxu0 0.0
    %635 = vmatprep.subr.mxu0 0.0
    %636 = vmatpush2.msra.mxu0 0.0
    %637 = vmatprep.subr.mxu0 0.0
    %638 = vmatpush2.msra.mxu0 0.0
    %639 = vmatprep.subr.mxu0 0.0
    %640 = vmatpush2.msra.mxu0 0.0
    %641 = vmatprep.subr.mxu0 0.0
    %642 = vmatpush2.msra.mxu0 0.0
    %643 = vmatprep.subr.mxu0 0.0
    %644 = vmatpush2.msra.mxu0 0.0
    %645 = vmatprep.subr.mxu0 0.0
    %646 = vmatpush2.msra.mxu0 0.0
    %647 = vmatprep.subr.mxu0 0.0
    %648 = vmatpush2.msra.mxu0 0.0
    %649 = vmatprep.subr.mxu0 0.0
    %650 = vmatpush2.msra.mxu0 0.0
    %651 = vmatprep.subr.mxu0 0.0
    %652 = vmatpush2.msra.mxu0 0.0
    %653 = vmatprep.mubr.f32.mxu0 0.0
    %v654 = vand.u32 %v390, 4294901760
    %v655 = vsub.f32 %v390, %v654
    %656 = vmatmul.mubr.f32.gmra.mxu0 %v655
    %v657 = vpop.f32.mrf.mxu0
    %v658 = vadd.f32 %v572, %v657
    %v659 = vpop.f32.mrf.mxu0
    %660 = vmatprep.mubr.f32.mxu0 0.0
    %v661 = vand.u32 %v393, 4294901760
    %v662 = vsub.f32 %v393, %v661
    %663 = vmatmul.mubr.f32.gmra.mxu0 %v662
    %v664 = vpop.f32.mrf.mxu0
    %v665 = vadd.f32 %v578, %v664
    %v666 = vpop.f32.mrf.mxu0
    %667 = vdwg.mxu0
    %668 = vmatprep.subr.mxu0 0.0
    %669 = vmatpush1.msra.mxu0 0.0
    %670 = vmatprep.subr.mxu0 0.0
    %671 = vmatpush1.msra.mxu0 0.0
    %672 = vmatprep.subr.mxu0 0.0
    %673 = vmatpush1.msra.mxu0 0.0
    %674 = vmatprep.subr.mxu0 0.0
    %675 = vmatpush1.msra.mxu0 0.0
    %676 = vmatprep.subr.mxu0 0.0
    %677 = vmatpush1.msra.mxu0 0.0
    %678 = vmatprep.subr.mxu0 0.0
    %679 = vmatpush1.msra.mxu0 0.0
    %680 = vmatprep.subr.mxu0 0.0
    %681 = vmatpush1.msra.mxu0 0.0
    %682 = vmatprep.subr.mxu0 0.0
    %683 = vmatpush1.msra.mxu0 0.0
    %684 = vmatprep.subr.mxu0 0.0
    %685 = vmatpush1.msra.mxu0 0.0
    %686 = vmatprep.subr.mxu0 0.0
    %687 = vmatpush1.msra.mxu0 0.0
    %688 = vmatprep.subr.mxu0 0.0
    %689 = vmatpush1.msra.mxu0 0.0
    %690 = vmatprep.subr.mxu0 0.0
    %691 = vmatpush1.msra.mxu0 0.0
    %692 = vmatprep.subr.mxu0 0.0
    %v693 = vand.u32 %v382, 4294901760
    %694 = vmatpush1.msra.mxu0 %v693
    %695 = vmatprep.subr.mxu0 0.0
    %v696 = vand.u32 %v381, 4294901760
    %697 = vmatpush1.msra.mxu0 %v696
    %698 = vmatprep.subr.mxu0 0.0
    %v699 = vand.u32 %v380, 4294901760
    %700 = vmatpush1.msra.mxu0 %v699
    %701 = vmatprep.subr.mxu0 0.0
    %v702 = vand.u32 %v379, 4294901760
    %703 = vmatpush1.msra.mxu0 %v702
    %704 = vmatprep.subr.mxu0 0.0
    %705 = vmatpush2.msra.mxu0 0.0
    %706 = vmatprep.subr.mxu0 0.0
    %707 = vmatpush2.msra.mxu0 0.0
    %708 = vmatprep.subr.mxu0 0.0
    %709 = vmatpush2.msra.mxu0 0.0
    %710 = vmatprep.subr.mxu0 0.0
    %711 = vmatpush2.msra.mxu0 0.0
    %712 = vmatprep.subr.mxu0 0.0
    %713 = vmatpush2.msra.mxu0 0.0
    %714 = vmatprep.subr.mxu0 0.0
    %715 = vmatpush2.msra.mxu0 0.0
    %716 = vmatprep.subr.mxu0 0.0
    %717 = vmatpush2.msra.mxu0 0.0
    %718 = vmatprep.subr.mxu0 0.0
    %719 = vmatpush2.msra.mxu0 0.0
    %720 = vmatprep.subr.mxu0 0.0
    %721 = vmatpush2.msra.mxu0 0.0
    %722 = vmatprep.subr.mxu0 0.0
    %723 = vmatpush2.msra.mxu0 0.0
    %724 = vmatprep.subr.mxu0 0.0
    %725 = vmatpush2.msra.mxu0 0.0
    %726 = vmatprep.subr.mxu0 0.0
    %727 = vmatpush2.msra.mxu0 0.0
    %728 = vmatprep.subr.mxu0 0.0
    %729 = vmatpush2.msra.mxu0 0.0
    %730 = vmatprep.subr.mxu0 0.0
    %731 = vmatpush2.msra.mxu0 0.0
    %732 = vmatprep.subr.mxu0 0.0
    %733 = vmatpush2.msra.mxu0 0.0
    %734 = vmatprep.subr.mxu0 0.0
    %735 = vmatpush2.msra.mxu0 0.0
    %736 = vmatprep.mubr.f32.mxu0 0.0
    %v737 = vand.u32 %v390, 4294901760
    %v738 = vsub.f32 %v390, %v737
    %v739 = vand.u32 %v738, 4294901760
    %740 = vmatmul.mubr.f32.gmra.mxu0 %v739
    %v741 = vpop.f32.mrf.mxu0
    %v742 = vadd.f32 %v658, %v741
    %v743 = vpop.f32.mrf.mxu0
    %744 = vmatprep.mubr.f32.mxu0 0.0
    %v745 = vand.u32 %v393, 4294901760
    %v746 = vsub.f32 %v393, %v745
    %v747 = vand.u32 %v746, 4294901760
    %748 = vmatmul.mubr.f32.gmra.mxu0 %v747
    %v749 = vpop.f32.mrf.mxu0
    %v750 = vadd.f32 %v665, %v749
    %v751 = vpop.f32.mrf.mxu0
    %752 = vdwg.mxu0
    %753 = vmatprep.subr.mxu0 0.0
    %754 = vmatpush1.msra.mxu0 0.0
    %755 = vmatprep.subr.mxu0 0.0
    %756 = vmatpush1.msra.mxu0 0.0
    %757 = vmatprep.subr.mxu0 0.0
    %758 = vmatpush1.msra.mxu0 0.0
    %759 = vmatprep.subr.mxu0 0.0
    %760 = vmatpush1.msra.mxu0 0.0
    %761 = vmatprep.subr.mxu0 0.0
    %762 = vmatpush1.msra.mxu0 0.0
    %763 = vmatprep.subr.mxu0 0.0
    %764 = vmatpush1.msra.mxu0 0.0
    %765 = vmatprep.subr.mxu0 0.0
    %766 = vmatpush1.msra.mxu0 0.0
    %767 = vmatprep.subr.mxu0 0.0
    %768 = vmatpush1.msra.mxu0 0.0
    %769 = vmatprep.subr.mxu0 0.0
    %770 = vmatpush1.msra.mxu0 0.0
    %771 = vmatprep.subr.mxu0 0.0
    %772 = vmatpush1.msra.mxu0 0.0
    %773 = vmatprep.subr.mxu0 0.0
    %774 = vmatpush1.msra.mxu0 0.0
    %775 = vmatprep.subr.mxu0 0.0
    %776 = vmatpush1.msra.mxu0 0.0
    %777 = vmatprep.subr.mxu0 0.0
    %v778 = vand.u32 %v382, 4294901760
    %v779 = vsub.f32 %v382, %v778
    %v780 = vand.u32 %v779, 4294901760
    %781 = vmatpush1.msra.mxu0 %v780
    %782 = vmatprep.subr.mxu0 0.0
    %v783 = vand.u32 %v381, 4294901760
    %v784 = vsub.f32 %v381, %v783
    %v785 = vand.u32 %v784, 4294901760
    %786 = vmatpush1.msra.mxu0 %v785
    %787 = vmatprep.subr.mxu0 0.0
    %v788 = vand.u32 %v380, 4294901760
    %v789 = vsub.f32 %v380, %v788
    %v790 = vand.u32 %v789, 4294901760
    %791 = vmatpush1.msra.mxu0 %v790
    %792 = vmatprep.subr.mxu0 0.0
    %v793 = vand.u32 %v379, 4294901760
    %v794 = vsub.f32 %v379, %v793
    %v795 = vand.u32 %v794, 4294901760
    %796 = vmatpush1.msra.mxu0 %v795
    %797 = vmatprep.subr.mxu0 0.0
    %798 = vmatpush2.msra.mxu0 0.0
    %799 = vmatprep.subr.mxu0 0.0
    %800 = vmatpush2.msra.mxu0 0.0
    %801 = vmatprep.subr.mxu0 0.0
    %802 = vmatpush2.msra.mxu0 0.0
    %803 = vmatprep.subr.mxu0 0.0
    %804 = vmatpush2.msra.mxu0 0.0
    %805 = vmatprep.subr.mxu0 0.0
    %806 = vmatpush2.msra.mxu0 0.0
    %807 = vmatprep.subr.mxu0 0.0
    %808 = vmatpush2.msra.mxu0 0.0
    %809 = vmatprep.subr.mxu0 0.0
    %810 = vmatpush2.msra.mxu0 0.0
    %811 = vmatprep.subr.mxu0 0.0
    %812 = vmatpush2.msra.mxu0 0.0
    %813 = vmatprep.subr.mxu0 0.0
    %814 = vmatpush2.msra.mxu0 0.0
    %815 = vmatprep.subr.mxu0 0.0
    %816 = vmatpush2.msra.mxu0 0.0
    %817 = vmatprep.subr.mxu0 0.0
    %818 = vmatpush2.msra.mxu0 0.0
    %819 = vmatprep.subr.mxu0 0.0
    %820 = vmatpush2.msra.mxu0 0.0
    %821 = vmatprep.subr.mxu0 0.0
    %822 = vmatpush2.msra.mxu0 0.0
    %823 = vmatprep.subr.mxu0 0.0
    %824 = vmatpush2.msra.mxu0 0.0
    %825 = vmatprep.subr.mxu0 0.0
    %826 = vmatpush2.msra.mxu0 0.0
    %827 = vmatprep.subr.mxu0 0.0
    %828 = vmatpush2.msra.mxu0 0.0
    %829 = vmatprep.mubr.f32.mxu0 0.0
    %v830 = vand.u32 %v390, 4294901760
    %831 = vmatmul.mubr.f32.gmra.mxu0 %v830
    %v832 = vpop.f32.mrf.mxu0
    %v833 = vadd.f32 %v742, %v832
    %v834 = vpop.f32.mrf.mxu0
    %835 = vmatprep.mubr.f32.mxu0 0.0
    %v836 = vand.u32 %v393, 4294901760
    %837 = vmatmul.mubr.f32.gmra.mxu0 %v836
    %v838 = vpop.f32.mrf.mxu0
    %v839 = vadd.f32 %v750, %v838
    %v840 = vpop.f32.mrf.mxu0
    %841 = vdwg.mxu0
    %842 = vmatprep.subr.mxu0 0.0
    %843 = vmatpush1.msra.mxu0 0.0
    %844 = vmatprep.subr.mxu0 0.0
    %845 = vmatpush1.msra.mxu0 0.0
    %846 = vmatprep.subr.mxu0 0.0
    %847 = vmatpush1.msra.mxu0 0.0
    %848 = vmatprep.subr.mxu0 0.0
    %849 = vmatpush1.msra.mxu0 0.0
    %850 = vmatprep.subr.mxu0 0.0
    %851 = vmatpush1.msra.mxu0 0.0
    %852 = vmatprep.subr.mxu0 0.0
    %853 = vmatpush1.msra.mxu0 0.0
    %854 = vmatprep.subr.mxu0 0.0
    %855 = vmatpush1.msra.mxu0 0.0
    %856 = vmatprep.subr.mxu0 0.0
    %857 = vmatpush1.msra.mxu0 0.0
    %858 = vmatprep.subr.mxu0 0.0
    %859 = vmatpush1.msra.mxu0 0.0
    %860 = vmatprep.subr.mxu0 0.0
    %861 = vmatpush1.msra.mxu0 0.0
    %862 = vmatprep.subr.mxu0 0.0
    %863 = vmatpush1.msra.mxu0 0.0
    %864 = vmatprep.subr.mxu0 0.0
    %865 = vmatpush1.msra.mxu0 0.0
    %866 = vmatprep.subr.mxu0 0.0
    %v867 = vand.u32 %v382, 4294901760
    %868 = vmatpush1.msra.mxu0 %v867
    %869 = vmatprep.subr.mxu0 0.0
    %v870 = vand.u32 %v381, 4294901760
    %871 = vmatpush1.msra.mxu0 %v870
    %872 = vmatprep.subr.mxu0 0.0
    %v873 = vand.u32 %v380, 4294901760
    %874 = vmatpush1.msra.mxu0 %v873
    %875 = vmatprep.subr.mxu0 0.0
    %v876 = vand.u32 %v379, 4294901760
    %877 = vmatpush1.msra.mxu0 %v876
    %878 = vmatprep.subr.mxu0 0.0
    %879 = vmatpush2.msra.mxu0 0.0
    %880 = vmatprep.subr.mxu0 0.0
    %881 = vmatpush2.msra.mxu0 0.0
    %882 = vmatprep.subr.mxu0 0.0
    %883 = vmatpush2.msra.mxu0 0.0
    %884 = vmatprep.subr.mxu0 0.0
    %885 = vmatpush2.msra.mxu0 0.0
    %886 = vmatprep.subr.mxu0 0.0
    %887 = vmatpush2.msra.mxu0 0.0
    %888 = vmatprep.subr.mxu0 0.0
    %889 = vmatpush2.msra.mxu0 0.0
    %890 = vmatprep.subr.mxu0 0.0
    %891 = vmatpush2.msra.mxu0 0.0
    %892 = vmatprep.subr.mxu0 0.0
    %893 = vmatpush2.msra.mxu0 0.0
    %894 = vmatprep.subr.mxu0 0.0
    %895 = vmatpush2.msra.mxu0 0.0
    %896 = vmatprep.subr.mxu0 0.0
    %897 = vmatpush2.msra.mxu0 0.0
    %898 = vmatprep.subr.mxu0 0.0
    %899 = vmatpush2.msra.mxu0 0.0
    %900 = vmatprep.subr.mxu0 0.0
    %901 = vmatpush2.msra.mxu0 0.0
    %902 = vmatprep.subr.mxu0 0.0
    %903 = vmatpush2.msra.mxu0 0.0
    %904 = vmatprep.subr.mxu0 0.0
    %905 = vmatpush2.msra.mxu0 0.0
    %906 = vmatprep.subr.mxu0 0.0
    %907 = vmatpush2.msra.mxu0 0.0
    %908 = vmatprep.subr.mxu0 0.0
    %909 = vmatpush2.msra.mxu0 0.0
    %910 = vmatprep.mubr.f32.mxu0 0.0
    %v911 = vand.u32 %v390, 4294901760
    %912 = vmatmul.mubr.f32.gmra.mxu0 %v911
    %v913 = vpop.f32.mrf.mxu0
    %v914 = vadd.f32 %v833, %v913
    %v915 = vpop.f32.mrf.mxu0
    %916 = vmatprep.mubr.f32.mxu0 0.0
    %v917 = vand.u32 %v393, 4294901760
    %918 = vmatmul.mubr.f32.gmra.mxu0 %v917
    %v919 = vpop.f32.mrf.mxu0
    %v920 = vadd.f32 %v839, %v919
    %v921 = vpop.f32.mrf.mxu0
    %922 = vdwg.mxu0
    %v923 = vmul.f32 %v914, 0.5
    %v924 = vmul.f32 %v920, 0.5
    %v925 = vld [vmem:[%s7] sm:$0xff]
    %v926 = vld [vmem:[%s7 + $0x8] sm:$0xff]
    %v927 = vld [vmem:[%s7 + $0x10] sm:$0xff]
    %v928 = vld [vmem:[%s7 + $0x18] sm:$0xff]
    %v930 = vlaneseq
    %v931 = vshrl.u32 %v930, 7
    %v932 = vsub.s32 0, %v931
    %v933 = vrot.slane %v83, %v932
    %935 = vmatprep.subr.mxu0 0.0
    %936 = vmatpush1.msra.mxu0 0.0
    %937 = vmatprep.subr.mxu0 0.0
    %938 = vmatpush1.msra.mxu0 0.0
    %939 = vmatprep.subr.mxu0 0.0
    %940 = vmatpush1.msra.mxu0 0.0
    %941 = vmatprep.subr.mxu0 0.0
    %942 = vmatpush1.msra.mxu0 0.0
    %943 = vmatprep.subr.mxu0 0.0
    %944 = vmatpush1.msra.mxu0 0.0
    %945 = vmatprep.subr.mxu0 0.0
    %946 = vmatpush1.msra.mxu0 0.0
    %947 = vmatprep.subr.mxu0 0.0
    %948 = vmatpush1.msra.mxu0 0.0
    %949 = vmatprep.subr.mxu0 0.0
    %950 = vmatpush1.msra.mxu0 0.0
    %951 = vmatprep.subr.mxu0 0.0
    %952 = vmatpush1.msra.mxu0 0.0
    %953 = vmatprep.subr.mxu0 0.0
    %954 = vmatpush1.msra.mxu0 0.0
    %955 = vmatprep.subr.mxu0 0.0
    %956 = vmatpush1.msra.mxu0 0.0
    %957 = vmatprep.subr.mxu0 0.0
    %958 = vmatpush1.msra.mxu0 0.0
    %959 = vmatprep.subr.mxu0 0.0
    %v960 = vand.u32 %v928, 4294901760
    %961 = vmatpush1.msra.mxu0 %v960
    %962 = vmatprep.subr.mxu0 0.0
    %v963 = vand.u32 %v927, 4294901760
    %964 = vmatpush1.msra.mxu0 %v963
    %965 = vmatprep.subr.mxu0 0.0
    %v966 = vand.u32 %v926, 4294901760
    %967 = vmatpush1.msra.mxu0 %v966
    %968 = vmatprep.subr.mxu0 0.0
    %v969 = vand.u32 %v925, 4294901760
    %970 = vmatpush1.msra.mxu0 %v969
    %971 = vmatprep.subr.mxu0 0.0
    %972 = vmatpush2.msra.mxu0 0.0
    %973 = vmatprep.subr.mxu0 0.0
    %974 = vmatpush2.msra.mxu0 0.0
    %975 = vmatprep.subr.mxu0 0.0
    %976 = vmatpush2.msra.mxu0 0.0
    %977 = vmatprep.subr.mxu0 0.0
    %978 = vmatpush2.msra.mxu0 0.0
    %979 = vmatprep.subr.mxu0 0.0
    %980 = vmatpush2.msra.mxu0 0.0
    %981 = vmatprep.subr.mxu0 0.0
    %982 = vmatpush2.msra.mxu0 0.0
    %983 = vmatprep.subr.mxu0 0.0
    %984 = vmatpush2.msra.mxu0 0.0
    %985 = vmatprep.subr.mxu0 0.0
    %986 = vmatpush2.msra.mxu0 0.0
    %987 = vmatprep.subr.mxu0 0.0
    %988 = vmatpush2.msra.mxu0 0.0
    %989 = vmatprep.subr.mxu0 0.0
    %990 = vmatpush2.msra.mxu0 0.0
    %991 = vmatprep.subr.mxu0 0.0
    %992 = vmatpush2.msra.mxu0 0.0
    %993 = vmatprep.subr.mxu0 0.0
    %994 = vmatpush2.msra.mxu0 0.0
    %995 = vmatprep.subr.mxu0 0.0
    %996 = vmatpush2.msra.mxu0 0.0
    %997 = vmatprep.subr.mxu0 0.0
    %998 = vmatpush2.msra.mxu0 0.0
    %999 = vmatprep.subr.mxu0 0.0
    %1000 = vmatpush2.msra.mxu0 0.0
    %1001 = vmatprep.subr.mxu0 0.0
    %1002 = vmatpush2.msra.mxu0 0.0
    %1003 = vmatprep.mubr.f32.mxu0 0.0
    %v1004 = vand.u32 %v390, 4294901760
    %v1005 = vsub.f32 %v390, %v1004
    %v1006 = vand.u32 %v1005, 4294901760
    %v1007 = vsub.f32 %v1005, %v1006
    %v1008 = vand.u32 %v1007, 4294901760
    %1009 = vmatmul.mubr.f32.gmra.mxu0 %v1008
    %v1010 = vpop.f32.mrf.mxu0
    %v1011 = vadd.f32 %v933, %v1010
    %v1012 = vpop.f32.mrf.mxu0
    %1013 = vmatprep.mubr.f32.mxu0 0.0
    %v1014 = vand.u32 %v393, 4294901760
    %v1015 = vsub.f32 %v393, %v1014
    %v1016 = vand.u32 %v1015, 4294901760
    %v1017 = vsub.f32 %v1015, %v1016
    %v1018 = vand.u32 %v1017, 4294901760
    %1019 = vmatmul.mubr.f32.gmra.mxu0 %v1018
    %v1020 = vpop.f32.mrf.mxu0
    %v1021 = vadd.f32 %v933, %v1020
    %v1022 = vpop.f32.mrf.mxu0
    %1023 = vdwg.mxu0
    %1024 = vmatprep.subr.mxu0 0.0
    %1025 = vmatpush1.msra.mxu0 0.0
    %1026 = vmatprep.subr.mxu0 0.0
    %1027 = vmatpush1.msra.mxu0 0.0
    %1028 = vmatprep.subr.mxu0 0.0
    %1029 = vmatpush1.msra.mxu0 0.0
    %1030 = vmatprep.subr.mxu0 0.0
    %1031 = vmatpush1.msra.mxu0 0.0
    %1032 = vmatprep.subr.mxu0 0.0
    %1033 = vmatpush1.msra.mxu0 0.0
    %1034 = vmatprep.subr.mxu0 0.0
    %1035 = vmatpush1.msra.mxu0 0.0
    %1036 = vmatprep.subr.mxu0 0.0
    %1037 = vmatpush1.msra.mxu0 0.0
    %1038 = vmatprep.subr.mxu0 0.0
    %1039 = vmatpush1.msra.mxu0 0.0
    %1040 = vmatprep.subr.mxu0 0.0
    %1041 = vmatpush1.msra.mxu0 0.0
    %1042 = vmatprep.subr.mxu0 0.0
    %1043 = vmatpush1.msra.mxu0 0.0
    %1044 = vmatprep.subr.mxu0 0.0
    %1045 = vmatpush1.msra.mxu0 0.0
    %1046 = vmatprep.subr.mxu0 0.0
    %1047 = vmatpush1.msra.mxu0 0.0
    %1048 = vmatprep.subr.mxu0 0.0
    %v1049 = vand.u32 %v928, 4294901760
    %v1050 = vsub.f32 %v928, %v1049
    %v1051 = vand.u32 %v1050, 4294901760
    %v1052 = vsub.f32 %v1050, %v1051
    %v1053 = vand.u32 %v1052, 4294901760
    %1054 = vmatpush1.msra.mxu0 %v1053
    %1055 = vmatprep.subr.mxu0 0.0
    %v1056 = vand.u32 %v927, 4294901760
    %v1057 = vsub.f32 %v927, %v1056
    %v1058 = vand.u32 %v1057, 4294901760
    %v1059 = vsub.f32 %v1057, %v1058
    %v1060 = vand.u32 %v1059, 4294901760
    %1061 = vmatpush1.msra.mxu0 %v1060
    %1062 = vmatprep.subr.mxu0 0.0
    %v1063 = vand.u32 %v926, 4294901760
    %v1064 = vsub.f32 %v926, %v1063
    %v1065 = vand.u32 %v1064, 4294901760
    %v1066 = vsub.f32 %v1064, %v1065
    %v1067 = vand.u32 %v1066, 4294901760
    %1068 = vmatpush1.msra.mxu0 %v1067
    %1069 = vmatprep.subr.mxu0 0.0
    %v1070 = vand.u32 %v925, 4294901760
    %v1071 = vsub.f32 %v925, %v1070
    %v1072 = vand.u32 %v1071, 4294901760
    %v1073 = vsub.f32 %v1071, %v1072
    %v1074 = vand.u32 %v1073, 4294901760
    %1075 = vmatpush1.msra.mxu0 %v1074
    %1076 = vmatprep.subr.mxu0 0.0
    %1077 = vmatpush2.msra.mxu0 0.0
    %1078 = vmatprep.subr.mxu0 0.0
    %1079 = vmatpush2.msra.mxu0 0.0
    %1080 = vmatprep.subr.mxu0 0.0
    %1081 = vmatpush2.msra.mxu0 0.0
    %1082 = vmatprep.subr.mxu0 0.0
    %1083 = vmatpush2.msra.mxu0 0.0
    %1084 = vmatprep.subr.mxu0 0.0
    %1085 = vmatpush2.msra.mxu0 0.0
    %1086 = vmatprep.subr.mxu0 0.0
    %1087 = vmatpush2.msra.mxu0 0.0
    %1088 = vmatprep.subr.mxu0 0.0
    %1089 = vmatpush2.msra.mxu0 0.0
    %1090 = vmatprep.subr.mxu0 0.0
    %1091 = vmatpush2.msra.mxu0 0.0
    %1092 = vmatprep.subr.mxu0 0.0
    %1093 = vmatpush2.msra.mxu0 0.0
    %1094 = vmatprep.subr.mxu0 0.0
    %1095 = vmatpush2.msra.mxu0 0.0
    %1096 = vmatprep.subr.mxu0 0.0
    %1097 = vmatpush2.msra.mxu0 0.0
    %1098 = vmatprep.subr.mxu0 0.0
    %1099 = vmatpush2.msra.mxu0 0.0
    %1100 = vmatprep.subr.mxu0 0.0
    %1101 = vmatpush2.msra.mxu0 0.0
    %1102 = vmatprep.subr.mxu0 0.0
    %1103 = vmatpush2.msra.mxu0 0.0
    %1104 = vmatprep.subr.mxu0 0.0
    %1105 = vmatpush2.msra.mxu0 0.0
    %1106 = vmatprep.subr.mxu0 0.0
    %1107 = vmatpush2.msra.mxu0 0.0
    %1108 = vmatprep.mubr.f32.mxu0 0.0
    %v1109 = vand.u32 %v390, 4294901760
    %1110 = vmatmul.mubr.f32.gmra.mxu0 %v1109
    %v1111 = vpop.f32.mrf.mxu0
    %v1112 = vadd.f32 %v1011, %v1111
    %v1113 = vpop.f32.mrf.mxu0
    %1114 = vmatprep.mubr.f32.mxu0 0.0
    %v1115 = vand.u32 %v393, 4294901760
    %1116 = vmatmul.mubr.f32.gmra.mxu0 %v1115
    %v1117 = vpop.f32.mrf.mxu0
    %v1118 = vadd.f32 %v1021, %v1117
    %v1119 = vpop.f32.mrf.mxu0
    %1120 = vdwg.mxu0
    %1121 = vmatprep.subr.mxu0 0.0
    %1122 = vmatpush1.msra.mxu0 0.0
    %1123 = vmatprep.subr.mxu0 0.0
    %1124 = vmatpush1.msra.mxu0 0.0
    %1125 = vmatprep.subr.mxu0 0.0
    %1126 = vmatpush1.msra.mxu0 0.0
    %1127 = vmatprep.subr.mxu0 0.0
    %1128 = vmatpush1.msra.mxu0 0.0
    %1129 = vmatprep.subr.mxu0 0.0
    %1130 = vmatpush1.msra.mxu0 0.0
    %1131 = vmatprep.subr.mxu0 0.0
    %1132 = vmatpush1.msra.mxu0 0.0
    %1133 = vmatprep.subr.mxu0 0.0
    %1134 = vmatpush1.msra.mxu0 0.0
    %1135 = vmatprep.subr.mxu0 0.0
    %1136 = vmatpush1.msra.mxu0 0.0
    %1137 = vmatprep.subr.mxu0 0.0
    %1138 = vmatpush1.msra.mxu0 0.0
    %1139 = vmatprep.subr.mxu0 0.0
    %1140 = vmatpush1.msra.mxu0 0.0
    %1141 = vmatprep.subr.mxu0 0.0
    %1142 = vmatpush1.msra.mxu0 0.0
    %1143 = vmatprep.subr.mxu0 0.0
    %1144 = vmatpush1.msra.mxu0 0.0
    %1145 = vmatprep.subr.mxu0 0.0
    %v1146 = vand.u32 %v928, 4294901760
    %v1147 = vsub.f32 %v928, %v1146
    %1148 = vmatpush1.msra.mxu0 %v1147
    %1149 = vmatprep.subr.mxu0 0.0
    %v1150 = vand.u32 %v927, 4294901760
    %v1151 = vsub.f32 %v927, %v1150
    %1152 = vmatpush1.msra.mxu0 %v1151
    %1153 = vmatprep.subr.mxu0 0.0
    %v1154 = vand.u32 %v926, 4294901760
    %v1155 = vsub.f32 %v926, %v1154
    %1156 = vmatpush1.msra.mxu0 %v1155
    %1157 = vmatprep.subr.mxu0 0.0
    %v1158 = vand.u32 %v925, 4294901760
    %v1159 = vsub.f32 %v925, %v1158
    %1160 = vmatpush1.msra.mxu0 %v1159
    %1161 = vmatprep.subr.mxu0 0.0
    %1162 = vmatpush2.msra.mxu0 0.0
    %1163 = vmatprep.subr.mxu0 0.0
    %1164 = vmatpush2.msra.mxu0 0.0
    %1165 = vmatprep.subr.mxu0 0.0
    %1166 = vmatpush2.msra.mxu0 0.0
    %1167 = vmatprep.subr.mxu0 0.0
    %1168 = vmatpush2.msra.mxu0 0.0
    %1169 = vmatprep.subr.mxu0 0.0
    %1170 = vmatpush2.msra.mxu0 0.0
    %1171 = vmatprep.subr.mxu0 0.0
    %1172 = vmatpush2.msra.mxu0 0.0
    %1173 = vmatprep.subr.mxu0 0.0
    %1174 = vmatpush2.msra.mxu0 0.0
    %1175 = vmatprep.subr.mxu0 0.0
    %1176 = vmatpush2.msra.mxu0 0.0
    %1177 = vmatprep.subr.mxu0 0.0
    %1178 = vmatpush2.msra.mxu0 0.0
    %1179 = vmatprep.subr.mxu0 0.0
    %1180 = vmatpush2.msra.mxu0 0.0
    %1181 = vmatprep.subr.mxu0 0.0
    %1182 = vmatpush2.msra.mxu0 0.0
    %1183 = vmatprep.subr.mxu0 0.0
    %1184 = vmatpush2.msra.mxu0 0.0
    %1185 = vmatprep.subr.mxu0 0.0
    %1186 = vmatpush2.msra.mxu0 0.0
    %1187 = vmatprep.subr.mxu0 0.0
    %1188 = vmatpush2.msra.mxu0 0.0
    %1189 = vmatprep.subr.mxu0 0.0
    %1190 = vmatpush2.msra.mxu0 0.0
    %1191 = vmatprep.subr.mxu0 0.0
    %1192 = vmatpush2.msra.mxu0 0.0
    %1193 = vmatprep.mubr.f32.mxu0 0.0
    %v1194 = vand.u32 %v390, 4294901760
    %v1195 = vsub.f32 %v390, %v1194
    %1196 = vmatmul.mubr.f32.gmra.mxu0 %v1195
    %v1197 = vpop.f32.mrf.mxu0
    %v1198 = vadd.f32 %v1112, %v1197
    %v1199 = vpop.f32.mrf.mxu0
    %1200 = vmatprep.mubr.f32.mxu0 0.0
    %v1201 = vand.u32 %v393, 4294901760
    %v1202 = vsub.f32 %v393, %v1201
    %1203 = vmatmul.mubr.f32.gmra.mxu0 %v1202
    %v1204 = vpop.f32.mrf.mxu0
    %v1205 = vadd.f32 %v1118, %v1204
    %v1206 = vpop.f32.mrf.mxu0
    %1207 = vdwg.mxu0
    %1208 = vmatprep.subr.mxu0 0.0
    %1209 = vmatpush1.msra.mxu0 0.0
    %1210 = vmatprep.subr.mxu0 0.0
    %1211 = vmatpush1.msra.mxu0 0.0
    %1212 = vmatprep.subr.mxu0 0.0
    %1213 = vmatpush1.msra.mxu0 0.0
    %1214 = vmatprep.subr.mxu0 0.0
    %1215 = vmatpush1.msra.mxu0 0.0
    %1216 = vmatprep.subr.mxu0 0.0
    %1217 = vmatpush1.msra.mxu0 0.0
    %1218 = vmatprep.subr.mxu0 0.0
    %1219 = vmatpush1.msra.mxu0 0.0
    %1220 = vmatprep.subr.mxu0 0.0
    %1221 = vmatpush1.msra.mxu0 0.0
    %1222 = vmatprep.subr.mxu0 0.0
    %1223 = vmatpush1.msra.mxu0 0.0
    %1224 = vmatprep.subr.mxu0 0.0
    %1225 = vmatpush1.msra.mxu0 0.0
    %1226 = vmatprep.subr.mxu0 0.0
    %1227 = vmatpush1.msra.mxu0 0.0
    %1228 = vmatprep.subr.mxu0 0.0
    %1229 = vmatpush1.msra.mxu0 0.0
    %1230 = vmatprep.subr.mxu0 0.0
    %1231 = vmatpush1.msra.mxu0 0.0
    %1232 = vmatprep.subr.mxu0 0.0
    %v1233 = vand.u32 %v928, 4294901760
    %1234 = vmatpush1.msra.mxu0 %v1233
    %1235 = vmatprep.subr.mxu0 0.0
    %v1236 = vand.u32 %v927, 4294901760
    %1237 = vmatpush1.msra.mxu0 %v1236
    %1238 = vmatprep.subr.mxu0 0.0
    %v1239 = vand.u32 %v926, 4294901760
    %1240 = vmatpush1.msra.mxu0 %v1239
    %1241 = vmatprep.subr.mxu0 0.0
    %v1242 = vand.u32 %v925, 4294901760
    %1243 = vmatpush1.msra.mxu0 %v1242
    %1244 = vmatprep.subr.mxu0 0.0
    %1245 = vmatpush2.msra.mxu0 0.0
    %1246 = vmatprep.subr.mxu0 0.0
    %1247 = vmatpush2.msra.mxu0 0.0
    %1248 = vmatprep.subr.mxu0 0.0
    %1249 = vmatpush2.msra.mxu0 0.0
    %1250 = vmatprep.subr.mxu0 0.0
    %1251 = vmatpush2.msra.mxu0 0.0
    %1252 = vmatprep.subr.mxu0 0.0
    %1253 = vmatpush2.msra.mxu0 0.0
    %1254 = vmatprep.subr.mxu0 0.0
    %1255 = vmatpush2.msra.mxu0 0.0
    %1256 = vmatprep.subr.mxu0 0.0
    %1257 = vmatpush2.msra.mxu0 0.0
    %1258 = vmatprep.subr.mxu0 0.0
    %1259 = vmatpush2.msra.mxu0 0.0
    %1260 = vmatprep.subr.mxu0 0.0
    %1261 = vmatpush2.msra.mxu0 0.0
    %1262 = vmatprep.subr.mxu0 0.0
    %1263 = vmatpush2.msra.mxu0 0.0
    %1264 = vmatprep.subr.mxu0 0.0
    %1265 = vmatpush2.msra.mxu0 0.0
    %1266 = vmatprep.subr.mxu0 0.0
    %1267 = vmatpush2.msra.mxu0 0.0
    %1268 = vmatprep.subr.mxu0 0.0
    %1269 = vmatpush2.msra.mxu0 0.0
    %1270 = vmatprep.subr.mxu0 0.0
    %1271 = vmatpush2.msra.mxu0 0.0
    %1272 = vmatprep.subr.mxu0 0.0
    %1273 = vmatpush2.msra.mxu0 0.0
    %1274 = vmatprep.subr.mxu0 0.0
    %1275 = vmatpush2.msra.mxu0 0.0
    %1276 = vmatprep.mubr.f32.mxu0 0.0
    %v1277 = vand.u32 %v390, 4294901760
    %v1278 = vsub.f32 %v390, %v1277
    %v1279 = vand.u32 %v1278, 4294901760
    %1280 = vmatmul.mubr.f32.gmra.mxu0 %v1279
    %v1281 = vpop.f32.mrf.mxu0
    %v1282 = vadd.f32 %v1198, %v1281
    %v1283 = vpop.f32.mrf.mxu0
    %1284 = vmatprep.mubr.f32.mxu0 0.0
    %v1285 = vand.u32 %v393, 4294901760
    %v1286 = vsub.f32 %v393, %v1285
    %v1287 = vand.u32 %v1286, 4294901760
    %1288 = vmatmul.mubr.f32.gmra.mxu0 %v1287
    %v1289 = vpop.f32.mrf.mxu0
    %v1290 = vadd.f32 %v1205, %v1289
    %v1291 = vpop.f32.mrf.mxu0
    %1292 = vdwg.mxu0
    %1293 = vmatprep.subr.mxu0 0.0
    %1294 = vmatpush1.msra.mxu0 0.0
    %1295 = vmatprep.subr.mxu0 0.0
    %1296 = vmatpush1.msra.mxu0 0.0
    %1297 = vmatprep.subr.mxu0 0.0
    %1298 = vmatpush1.msra.mxu0 0.0
    %1299 = vmatprep.subr.mxu0 0.0
    %1300 = vmatpush1.msra.mxu0 0.0
    %1301 = vmatprep.subr.mxu0 0.0
    %1302 = vmatpush1.msra.mxu0 0.0
    %1303 = vmatprep.subr.mxu0 0.0
    %1304 = vmatpush1.msra.mxu0 0.0
    %1305 = vmatprep.subr.mxu0 0.0
    %1306 = vmatpush1.msra.mxu0 0.0
    %1307 = vmatprep.subr.mxu0 0.0
    %1308 = vmatpush1.msra.mxu0 0.0
    %1309 = vmatprep.subr.mxu0 0.0
    %1310 = vmatpush1.msra.mxu0 0.0
    %1311 = vmatprep.subr.mxu0 0.0
    %1312 = vmatpush1.msra.mxu0 0.0
    %1313 = vmatprep.subr.mxu0 0.0
    %1314 = vmatpush1.msra.mxu0 0.0
    %1315 = vmatprep.subr.mxu0 0.0
    %1316 = vmatpush1.msra.mxu0 0.0
    %1317 = vmatprep.subr.mxu0 0.0
    %v1318 = vand.u32 %v928, 4294901760
    %v1319 = vsub.f32 %v928, %v1318
    %v1320 = vand.u32 %v1319, 4294901760
    %1321 = vmatpush1.msra.mxu0 %v1320
    %1322 = vmatprep.subr.mxu0 0.0
    %v1323 = vand.u32 %v927, 4294901760
    %v1324 = vsub.f32 %v927, %v1323
    %v1325 = vand.u32 %v1324, 4294901760
    %1326 = vmatpush1.msra.mxu0 %v1325
    %1327 = vmatprep.subr.mxu0 0.0
    %v1328 = vand.u32 %v926, 4294901760
    %v1329 = vsub.f32 %v926, %v1328
    %v1330 = vand.u32 %v1329, 4294901760
    %1331 = vmatpush1.msra.mxu0 %v1330
    %1332 = vmatprep.subr.mxu0 0.0
    %v1333 = vand.u32 %v925, 4294901760
    %v1334 = vsub.f32 %v925, %v1333
    %v1335 = vand.u32 %v1334, 4294901760
    %1336 = vmatpush1.msra.mxu0 %v1335
    %1337 = vmatprep.subr.mxu0 0.0
    %1338 = vmatpush2.msra.mxu0 0.0
    %1339 = vmatprep.subr.mxu0 0.0
    %1340 = vmatpush2.msra.mxu0 0.0
    %1341 = vmatprep.subr.mxu0 0.0
    %1342 = vmatpush2.msra.mxu0 0.0
    %1343 = vmatprep.subr.mxu0 0.0
    %1344 = vmatpush2.msra.mxu0 0.0
    %1345 = vmatprep.subr.mxu0 0.0
    %1346 = vmatpush2.msra.mxu0 0.0
    %1347 = vmatprep.subr.mxu0 0.0
    %1348 = vmatpush2.msra.mxu0 0.0
    %1349 = vmatprep.subr.mxu0 0.0
    %1350 = vmatpush2.msra.mxu0 0.0
    %1351 = vmatprep.subr.mxu0 0.0
    %1352 = vmatpush2.msra.mxu0 0.0
    %1353 = vmatprep.subr.mxu0 0.0
    %1354 = vmatpush2.msra.mxu0 0.0
    %1355 = vmatprep.subr.mxu0 0.0
    %1356 = vmatpush2.msra.mxu0 0.0
    %1357 = vmatprep.subr.mxu0 0.0
    %1358 = vmatpush2.msra.mxu0 0.0
    %1359 = vmatprep.subr.mxu0 0.0
    %1360 = vmatpush2.msra.mxu0 0.0
    %1361 = vmatprep.subr.mxu0 0.0
    %1362 = vmatpush2.msra.mxu0 0.0
    %1363 = vmatprep.subr.mxu0 0.0
    %1364 = vmatpush2.msra.mxu0 0.0
    %1365 = vmatprep.subr.mxu0 0.0
    %1366 = vmatpush2.msra.mxu0 0.0
    %1367 = vmatprep.subr.mxu0 0.0
    %1368 = vmatpush2.msra.mxu0 0.0
    %1369 = vmatprep.mubr.f32.mxu0 0.0
    %v1370 = vand.u32 %v390, 4294901760
    %1371 = vmatmul.mubr.f32.gmra.mxu0 %v1370
    %v1372 = vpop.f32.mrf.mxu0
    %v1373 = vadd.f32 %v1282, %v1372
    %v1374 = vpop.f32.mrf.mxu0
    %1375 = vmatprep.mubr.f32.mxu0 0.0
    %v1376 = vand.u32 %v393, 4294901760
    %1377 = vmatmul.mubr.f32.gmra.mxu0 %v1376
    %v1378 = vpop.f32.mrf.mxu0
    %v1379 = vadd.f32 %v1290, %v1378
    %v1380 = vpop.f32.mrf.mxu0
    %1381 = vdwg.mxu0
    %1382 = vmatprep.subr.mxu0 0.0
    %1383 = vmatpush1.msra.mxu0 0.0
    %1384 = vmatprep.subr.mxu0 0.0
    %1385 = vmatpush1.msra.mxu0 0.0
    %1386 = vmatprep.subr.mxu0 0.0
    %1387 = vmatpush1.msra.mxu0 0.0
    %1388 = vmatprep.subr.mxu0 0.0
    %1389 = vmatpush1.msra.mxu0 0.0
    %1390 = vmatprep.subr.mxu0 0.0
    %1391 = vmatpush1.msra.mxu0 0.0
    %1392 = vmatprep.subr.mxu0 0.0
    %1393 = vmatpush1.msra.mxu0 0.0
    %1394 = vmatprep.subr.mxu0 0.0
    %1395 = vmatpush1.msra.mxu0 0.0
    %1396 = vmatprep.subr.mxu0 0.0
    %1397 = vmatpush1.msra.mxu0 0.0
    %1398 = vmatprep.subr.mxu0 0.0
    %1399 = vmatpush1.msra.mxu0 0.0
    %1400 = vmatprep.subr.mxu0 0.0
    %1401 = vmatpush1.msra.mxu0 0.0
    %1402 = vmatprep.subr.mxu0 0.0
    %1403 = vmatpush1.msra.mxu0 0.0
    %1404 = vmatprep.subr.mxu0 0.0
    %1405 = vmatpush1.msra.mxu0 0.0
    %1406 = vmatprep.subr.mxu0 0.0
    %v1407 = vand.u32 %v928, 4294901760
    %1408 = vmatpush1.msra.mxu0 %v1407
    %1409 = vmatprep.subr.mxu0 0.0
    %v1410 = vand.u32 %v927, 4294901760
    %1411 = vmatpush1.msra.mxu0 %v1410
    %1412 = vmatprep.subr.mxu0 0.0
    %v1413 = vand.u32 %v926, 4294901760
    %1414 = vmatpush1.msra.mxu0 %v1413
    %1415 = vmatprep.subr.mxu0 0.0
    %v1416 = vand.u32 %v925, 4294901760
    %1417 = vmatpush1.msra.mxu0 %v1416
    %1418 = vmatprep.subr.mxu0 0.0
    %1419 = vmatpush2.msra.mxu0 0.0
    %1420 = vmatprep.subr.mxu0 0.0
    %1421 = vmatpush2.msra.mxu0 0.0
    %1422 = vmatprep.subr.mxu0 0.0
    %1423 = vmatpush2.msra.mxu0 0.0
    %1424 = vmatprep.subr.mxu0 0.0
    %1425 = vmatpush2.msra.mxu0 0.0
    %1426 = vmatprep.subr.mxu0 0.0
    %1427 = vmatpush2.msra.mxu0 0.0
    %1428 = vmatprep.subr.mxu0 0.0
    %1429 = vmatpush2.msra.mxu0 0.0
    %1430 = vmatprep.subr.mxu0 0.0
    %1431 = vmatpush2.msra.mxu0 0.0
    %1432 = vmatprep.subr.mxu0 0.0
    %1433 = vmatpush2.msra.mxu0 0.0
    %1434 = vmatprep.subr.mxu0 0.0
    %1435 = vmatpush2.msra.mxu0 0.0
    %1436 = vmatprep.subr.mxu0 0.0
    %1437 = vmatpush2.msra.mxu0 0.0
    %1438 = vmatprep.subr.mxu0 0.0
    %1439 = vmatpush2.msra.mxu0 0.0
    %1440 = vmatprep.subr.mxu0 0.0
    %1441 = vmatpush2.msra.mxu0 0.0
    %1442 = vmatprep.subr.mxu0 0.0
    %1443 = vmatpush2.msra.mxu0 0.0
    %1444 = vmatprep.subr.mxu0 0.0
    %1445 = vmatpush2.msra.mxu0 0.0
    %1446 = vmatprep.subr.mxu0 0.0
    %1447 = vmatpush2.msra.mxu0 0.0
    %1448 = vmatprep.subr.mxu0 0.0
    %1449 = vmatpush2.msra.mxu0 0.0
    %1450 = vmatprep.mubr.f32.mxu0 0.0
    %v1451 = vand.u32 %v390, 4294901760
    %1452 = vmatmul.mubr.f32.gmra.mxu0 %v1451
    %v1453 = vpop.f32.mrf.mxu0
    %v1454 = vadd.f32 %v1373, %v1453
    %v1455 = vpop.f32.mrf.mxu0
    %1456 = vmatprep.mubr.f32.mxu0 0.0
    %v1457 = vand.u32 %v393, 4294901760
    %1458 = vmatmul.mubr.f32.gmra.mxu0 %v1457
    %v1459 = vpop.f32.mrf.mxu0
    %v1460 = vadd.f32 %v1379, %v1459
    %v1461 = vpop.f32.mrf.mxu0
    %1462 = vdwg.mxu0
    %v1463 = vld [vmem:[%s9] sm:$0xff]
    %v1464 = vld [vmem:[%s9 + $0x8] sm:$0xff]
    %v1465 = vld [vmem:[%s9 + $0x10] sm:$0xff]
    %v1466 = vld [vmem:[%s9 + $0x18] sm:$0xff]
    %v1468 = vlaneseq
    %v1469 = vshrl.u32 %v1468, 7
    %v1470 = vsub.s32 0, %v1469
    %v1471 = vrot.slane %v84, %v1470
    %1473 = vmatprep.subr.mxu0 0.0
    %1474 = vmatpush1.msra.mxu0 0.0
    %1475 = vmatprep.subr.mxu0 0.0
    %1476 = vmatpush1.msra.mxu0 0.0
    %1477 = vmatprep.subr.mxu0 0.0
    %1478 = vmatpush1.msra.mxu0 0.0
    %1479 = vmatprep.subr.mxu0 0.0
    %1480 = vmatpush1.msra.mxu0 0.0
    %1481 = vmatprep.subr.mxu0 0.0
    %1482 = vmatpush1.msra.mxu0 0.0
    %1483 = vmatprep.subr.mxu0 0.0
    %1484 = vmatpush1.msra.mxu0 0.0
    %1485 = vmatprep.subr.mxu0 0.0
    %1486 = vmatpush1.msra.mxu0 0.0
    %1487 = vmatprep.subr.mxu0 0.0
    %1488 = vmatpush1.msra.mxu0 0.0
    %1489 = vmatprep.subr.mxu0 0.0
    %1490 = vmatpush1.msra.mxu0 0.0
    %1491 = vmatprep.subr.mxu0 0.0
    %1492 = vmatpush1.msra.mxu0 0.0
    %1493 = vmatprep.subr.mxu0 0.0
    %1494 = vmatpush1.msra.mxu0 0.0
    %1495 = vmatprep.subr.mxu0 0.0
    %1496 = vmatpush1.msra.mxu0 0.0
    %1497 = vmatprep.subr.mxu0 0.0
    %v1498 = vand.u32 %v1466, 4294901760
    %1499 = vmatpush1.msra.mxu0 %v1498
    %1500 = vmatprep.subr.mxu0 0.0
    %v1501 = vand.u32 %v1465, 4294901760
    %1502 = vmatpush1.msra.mxu0 %v1501
    %1503 = vmatprep.subr.mxu0 0.0
    %v1504 = vand.u32 %v1464, 4294901760
    %1505 = vmatpush1.msra.mxu0 %v1504
    %1506 = vmatprep.subr.mxu0 0.0
    %v1507 = vand.u32 %v1463, 4294901760
    %1508 = vmatpush1.msra.mxu0 %v1507
    %1509 = vmatprep.subr.mxu0 0.0
    %1510 = vmatpush2.msra.mxu0 0.0
    %1511 = vmatprep.subr.mxu0 0.0
    %1512 = vmatpush2.msra.mxu0 0.0
    %1513 = vmatprep.subr.mxu0 0.0
    %1514 = vmatpush2.msra.mxu0 0.0
    %1515 = vmatprep.subr.mxu0 0.0
    %1516 = vmatpush2.msra.mxu0 0.0
    %1517 = vmatprep.subr.mxu0 0.0
    %1518 = vmatpush2.msra.mxu0 0.0
    %1519 = vmatprep.subr.mxu0 0.0
    %1520 = vmatpush2.msra.mxu0 0.0
    %1521 = vmatprep.subr.mxu0 0.0
    %1522 = vmatpush2.msra.mxu0 0.0
    %1523 = vmatprep.subr.mxu0 0.0
    %1524 = vmatpush2.msra.mxu0 0.0
    %1525 = vmatprep.subr.mxu0 0.0
    %1526 = vmatpush2.msra.mxu0 0.0
    %1527 = vmatprep.subr.mxu0 0.0
    %1528 = vmatpush2.msra.mxu0 0.0
    %1529 = vmatprep.subr.mxu0 0.0
    %1530 = vmatpush2.msra.mxu0 0.0
    %1531 = vmatprep.subr.mxu0 0.0
    %1532 = vmatpush2.msra.mxu0 0.0
    %1533 = vmatprep.subr.mxu0 0.0
    %1534 = vmatpush2.msra.mxu0 0.0
    %1535 = vmatprep.subr.mxu0 0.0
    %1536 = vmatpush2.msra.mxu0 0.0
    %1537 = vmatprep.subr.mxu0 0.0
    %1538 = vmatpush2.msra.mxu0 0.0
    %1539 = vmatprep.subr.mxu0 0.0
    %1540 = vmatpush2.msra.mxu0 0.0
    %1541 = vmatprep.mubr.f32.mxu0 0.0
    %v1542 = vand.u32 %v390, 4294901760
    %v1543 = vsub.f32 %v390, %v1542
    %v1544 = vand.u32 %v1543, 4294901760
    %v1545 = vsub.f32 %v1543, %v1544
    %v1546 = vand.u32 %v1545, 4294901760
    %1547 = vmatmul.mubr.f32.gmra.mxu0 %v1546
    %v1548 = vpop.f32.mrf.mxu0
    %v1549 = vadd.f32 %v1471, %v1548
    %v1550 = vpop.f32.mrf.mxu0
    %1551 = vmatprep.mubr.f32.mxu0 0.0
    %v1552 = vand.u32 %v393, 4294901760
    %v1553 = vsub.f32 %v393, %v1552
    %v1554 = vand.u32 %v1553, 4294901760
    %v1555 = vsub.f32 %v1553, %v1554
    %v1556 = vand.u32 %v1555, 4294901760
    %1557 = vmatmul.mubr.f32.gmra.mxu0 %v1556
    %v1558 = vpop.f32.mrf.mxu0
    %v1559 = vadd.f32 %v1471, %v1558
    %v1560 = vpop.f32.mrf.mxu0
    %1561 = vdwg.mxu0
    %1562 = vmatprep.subr.mxu0 0.0
    %1563 = vmatpush1.msra.mxu0 0.0
    %1564 = vmatprep.subr.mxu0 0.0
    %1565 = vmatpush1.msra.mxu0 0.0
    %1566 = vmatprep.subr.mxu0 0.0
    %1567 = vmatpush1.msra.mxu0 0.0
    %1568 = vmatprep.subr.mxu0 0.0
    %1569 = vmatpush1.msra.mxu0 0.0
    %1570 = vmatprep.subr.mxu0 0.0
    %1571 = vmatpush1.msra.mxu0 0.0
    %1572 = vmatprep.subr.mxu0 0.0
    %1573 = vmatpush1.msra.mxu0 0.0
    %1574 = vmatprep.subr.mxu0 0.0
    %1575 = vmatpush1.msra.mxu0 0.0
    %1576 = vmatprep.subr.mxu0 0.0
    %1577 = vmatpush1.msra.mxu0 0.0
    %1578 = vmatprep.subr.mxu0 0.0
    %1579 = vmatpush1.msra.mxu0 0.0
    %1580 = vmatprep.subr.mxu0 0.0
    %1581 = vmatpush1.msra.mxu0 0.0
    %1582 = vmatprep.subr.mxu0 0.0
    %1583 = vmatpush1.msra.mxu0 0.0
    %1584 = vmatprep.subr.mxu0 0.0
    %1585 = vmatpush1.msra.mxu0 0.0
    %1586 = vmatprep.subr.mxu0 0.0
    %v1587 = vand.u32 %v1466, 4294901760
    %v1588 = vsub.f32 %v1466, %v1587
    %v1589 = vand.u32 %v1588, 4294901760
    %v1590 = vsub.f32 %v1588, %v1589
    %v1591 = vand.u32 %v1590, 4294901760
    %1592 = vmatpush1.msra.mxu0 %v1591
    %1593 = vmatprep.subr.mxu0 0.0
    %v1594 = vand.u32 %v1465, 4294901760
    %v1595 = vsub.f32 %v1465, %v1594
    %v1596 = vand.u32 %v1595, 4294901760
    %v1597 = vsub.f32 %v1595, %v1596
    %v1598 = vand.u32 %v1597, 4294901760
    %1599 = vmatpush1.msra.mxu0 %v1598
    %1600 = vmatprep.subr.mxu0 0.0
    %v1601 = vand.u32 %v1464, 4294901760
    %v1602 = vsub.f32 %v1464, %v1601
    %v1603 = vand.u32 %v1602, 4294901760
    %v1604 = vsub.f32 %v1602, %v1603
    %v1605 = vand.u32 %v1604, 4294901760
    %1606 = vmatpush1.msra.mxu0 %v1605
    %1607 = vmatprep.subr.mxu0 0.0
    %v1608 = vand.u32 %v1463, 4294901760
    %v1609 = vsub.f32 %v1463, %v1608
    %v1610 = vand.u32 %v1609, 4294901760
    %v1611 = vsub.f32 %v1609, %v1610
    %v1612 = vand.u32 %v1611, 4294901760
    %1613 = vmatpush1.msra.mxu0 %v1612
    %1614 = vmatprep.subr.mxu0 0.0
    %1615 = vmatpush2.msra.mxu0 0.0
    %1616 = vmatprep.subr.mxu0 0.0
    %1617 = vmatpush2.msra.mxu0 0.0
    %1618 = vmatprep.subr.mxu0 0.0
    %1619 = vmatpush2.msra.mxu0 0.0
    %1620 = vmatprep.subr.mxu0 0.0
    %1621 = vmatpush2.msra.mxu0 0.0
    %1622 = vmatprep.subr.mxu0 0.0
    %1623 = vmatpush2.msra.mxu0 0.0
    %1624 = vmatprep.subr.mxu0 0.0
    %1625 = vmatpush2.msra.mxu0 0.0
    %1626 = vmatprep.subr.mxu0 0.0
    %1627 = vmatpush2.msra.mxu0 0.0
    %1628 = vmatprep.subr.mxu0 0.0
    %1629 = vmatpush2.msra.mxu0 0.0
    %1630 = vmatprep.subr.mxu0 0.0
    %1631 = vmatpush2.msra.mxu0 0.0
    %1632 = vmatprep.subr.mxu0 0.0
    %1633 = vmatpush2.msra.mxu0 0.0
    %1634 = vmatprep.subr.mxu0 0.0
    %1635 = vmatpush2.msra.mxu0 0.0
    %1636 = vmatprep.subr.mxu0 0.0
    %1637 = vmatpush2.msra.mxu0 0.0
    %1638 = vmatprep.subr.mxu0 0.0
    %1639 = vmatpush2.msra.mxu0 0.0
    %1640 = vmatprep.subr.mxu0 0.0
    %1641 = vmatpush2.msra.mxu0 0.0
    %1642 = vmatprep.subr.mxu0 0.0
    %1643 = vmatpush2.msra.mxu0 0.0
    %1644 = vmatprep.subr.mxu0 0.0
    %1645 = vmatpush2.msra.mxu0 0.0
    %1646 = vmatprep.mubr.f32.mxu0 0.0
    %v1647 = vand.u32 %v390, 4294901760
    %1648 = vmatmul.mubr.f32.gmra.mxu0 %v1647
    %v1649 = vpop.f32.mrf.mxu0
    %v1650 = vadd.f32 %v1549, %v1649
    %v1651 = vpop.f32.mrf.mxu0
    %1652 = vmatprep.mubr.f32.mxu0 0.0
    %v1653 = vand.u32 %v393, 4294901760
    %1654 = vmatmul.mubr.f32.gmra.mxu0 %v1653
    %v1655 = vpop.f32.mrf.mxu0
    %v1656 = vadd.f32 %v1559, %v1655
    %v1657 = vpop.f32.mrf.mxu0
    %1658 = vdwg.mxu0
    %1659 = vmatprep.subr.mxu0 0.0
    %1660 = vmatpush1.msra.mxu0 0.0
    %1661 = vmatprep.subr.mxu0 0.0
    %1662 = vmatpush1.msra.mxu0 0.0
    %1663 = vmatprep.subr.mxu0 0.0
    %1664 = vmatpush1.msra.mxu0 0.0
    %1665 = vmatprep.subr.mxu0 0.0
    %1666 = vmatpush1.msra.mxu0 0.0
    %1667 = vmatprep.subr.mxu0 0.0
    %1668 = vmatpush1.msra.mxu0 0.0
    %1669 = vmatprep.subr.mxu0 0.0
    %1670 = vmatpush1.msra.mxu0 0.0
    %1671 = vmatprep.subr.mxu0 0.0
    %1672 = vmatpush1.msra.mxu0 0.0
    %1673 = vmatprep.subr.mxu0 0.0
    %1674 = vmatpush1.msra.mxu0 0.0
    %1675 = vmatprep.subr.mxu0 0.0
    %1676 = vmatpush1.msra.mxu0 0.0
    %1677 = vmatprep.subr.mxu0 0.0
    %1678 = vmatpush1.msra.mxu0 0.0
    %1679 = vmatprep.subr.mxu0 0.0
    %1680 = vmatpush1.msra.mxu0 0.0
    %1681 = vmatprep.subr.mxu0 0.0
    %1682 = vmatpush1.msra.mxu0 0.0
    %1683 = vmatprep.subr.mxu0 0.0
    %v1684 = vand.u32 %v1466, 4294901760
    %v1685 = vsub.f32 %v1466, %v1684
    %1686 = vmatpush1.msra.mxu0 %v1685
    %1687 = vmatprep.subr.mxu0 0.0
    %v1688 = vand.u32 %v1465, 4294901760
    %v1689 = vsub.f32 %v1465, %v1688
    %1690 = vmatpush1.msra.mxu0 %v1689
    %1691 = vmatprep.subr.mxu0 0.0
    %v1692 = vand.u32 %v1464, 4294901760
    %v1693 = vsub.f32 %v1464, %v1692
    %1694 = vmatpush1.msra.mxu0 %v1693
    %1695 = vmatprep.subr.mxu0 0.0
    %v1696 = vand.u32 %v1463, 4294901760
    %v1697 = vsub.f32 %v1463, %v1696
    %1698 = vmatpush1.msra.mxu0 %v1697
    %1699 = vmatprep.subr.mxu0 0.0
    %1700 = vmatpush2.msra.mxu0 0.0
    %1701 = vmatprep.subr.mxu0 0.0
    %1702 = vmatpush2.msra.mxu0 0.0
    %1703 = vmatprep.subr.mxu0 0.0
    %1704 = vmatpush2.msra.mxu0 0.0
    %1705 = vmatprep.subr.mxu0 0.0
    %1706 = vmatpush2.msra.mxu0 0.0
    %1707 = vmatprep.subr.mxu0 0.0
    %1708 = vmatpush2.msra.mxu0 0.0
    %1709 = vmatprep.subr.mxu0 0.0
    %1710 = vmatpush2.msra.mxu0 0.0
    %1711 = vmatprep.subr.mxu0 0.0
    %1712 = vmatpush2.msra.mxu0 0.0
    %1713 = vmatprep.subr.mxu0 0.0
    %1714 = vmatpush2.msra.mxu0 0.0
    %1715 = vmatprep.subr.mxu0 0.0
    %1716 = vmatpush2.msra.mxu0 0.0
    %1717 = vmatprep.subr.mxu0 0.0
    %1718 = vmatpush2.msra.mxu0 0.0
    %1719 = vmatprep.subr.mxu0 0.0
    %1720 = vmatpush2.msra.mxu0 0.0
    %1721 = vmatprep.subr.mxu0 0.0
    %1722 = vmatpush2.msra.mxu0 0.0
    %1723 = vmatprep.subr.mxu0 0.0
    %1724 = vmatpush2.msra.mxu0 0.0
    %1725 = vmatprep.subr.mxu0 0.0
    %1726 = vmatpush2.msra.mxu0 0.0
    %1727 = vmatprep.subr.mxu0 0.0
    %1728 = vmatpush2.msra.mxu0 0.0
    %1729 = vmatprep.subr.mxu0 0.0
    %1730 = vmatpush2.msra.mxu0 0.0
    %1731 = vmatprep.mubr.f32.mxu0 0.0
    %v1732 = vand.u32 %v390, 4294901760
    %v1733 = vsub.f32 %v390, %v1732
    %1734 = vmatmul.mubr.f32.gmra.mxu0 %v1733
    %v1735 = vpop.f32.mrf.mxu0
    %v1736 = vadd.f32 %v1650, %v1735
    %v1737 = vpop.f32.mrf.mxu0
    %1738 = vmatprep.mubr.f32.mxu0 0.0
    %v1739 = vand.u32 %v393, 4294901760
    %v1740 = vsub.f32 %v393, %v1739
    %1741 = vmatmul.mubr.f32.gmra.mxu0 %v1740
    %v1742 = vpop.f32.mrf.mxu0
    %v1743 = vadd.f32 %v1656, %v1742
    %v1744 = vpop.f32.mrf.mxu0
    %1745 = vdwg.mxu0
    %1746 = vmatprep.subr.mxu0 0.0
    %1747 = vmatpush1.msra.mxu0 0.0
    %1748 = vmatprep.subr.mxu0 0.0
    %1749 = vmatpush1.msra.mxu0 0.0
    %1750 = vmatprep.subr.mxu0 0.0
    %1751 = vmatpush1.msra.mxu0 0.0
    %1752 = vmatprep.subr.mxu0 0.0
    %1753 = vmatpush1.msra.mxu0 0.0
    %1754 = vmatprep.subr.mxu0 0.0
    %1755 = vmatpush1.msra.mxu0 0.0
    %1756 = vmatprep.subr.mxu0 0.0
    %1757 = vmatpush1.msra.mxu0 0.0
    %1758 = vmatprep.subr.mxu0 0.0
    %1759 = vmatpush1.msra.mxu0 0.0
    %1760 = vmatprep.subr.mxu0 0.0
    %1761 = vmatpush1.msra.mxu0 0.0
    %1762 = vmatprep.subr.mxu0 0.0
    %1763 = vmatpush1.msra.mxu0 0.0
    %1764 = vmatprep.subr.mxu0 0.0
    %1765 = vmatpush1.msra.mxu0 0.0
    %1766 = vmatprep.subr.mxu0 0.0
    %1767 = vmatpush1.msra.mxu0 0.0
    %1768 = vmatprep.subr.mxu0 0.0
    %1769 = vmatpush1.msra.mxu0 0.0
    %1770 = vmatprep.subr.mxu0 0.0
    %v1771 = vand.u32 %v1466, 4294901760
    %1772 = vmatpush1.msra.mxu0 %v1771
    %1773 = vmatprep.subr.mxu0 0.0
    %v1774 = vand.u32 %v1465, 4294901760
    %1775 = vmatpush1.msra.mxu0 %v1774
    %1776 = vmatprep.subr.mxu0 0.0
    %v1777 = vand.u32 %v1464, 4294901760
    %1778 = vmatpush1.msra.mxu0 %v1777
    %1779 = vmatprep.subr.mxu0 0.0
    %v1780 = vand.u32 %v1463, 4294901760
    %1781 = vmatpush1.msra.mxu0 %v1780
    %1782 = vmatprep.subr.mxu0 0.0
    %1783 = vmatpush2.msra.mxu0 0.0
    %1784 = vmatprep.subr.mxu0 0.0
    %1785 = vmatpush2.msra.mxu0 0.0
    %1786 = vmatprep.subr.mxu0 0.0
    %1787 = vmatpush2.msra.mxu0 0.0
    %1788 = vmatprep.subr.mxu0 0.0
    %1789 = vmatpush2.msra.mxu0 0.0
    %1790 = vmatprep.subr.mxu0 0.0
    %1791 = vmatpush2.msra.mxu0 0.0
    %1792 = vmatprep.subr.mxu0 0.0
    %1793 = vmatpush2.msra.mxu0 0.0
    %1794 = vmatprep.subr.mxu0 0.0
    %1795 = vmatpush2.msra.mxu0 0.0
    %1796 = vmatprep.subr.mxu0 0.0
    %1797 = vmatpush2.msra.mxu0 0.0
    %1798 = vmatprep.subr.mxu0 0.0
    %1799 = vmatpush2.msra.mxu0 0.0
    %1800 = vmatprep.subr.mxu0 0.0
    %1801 = vmatpush2.msra.mxu0 0.0
    %1802 = vmatprep.subr.mxu0 0.0
    %1803 = vmatpush2.msra.mxu0 0.0
    %1804 = vmatprep.subr.mxu0 0.0
    %1805 = vmatpush2.msra.mxu0 0.0
    %1806 = vmatprep.subr.mxu0 0.0
    %1807 = vmatpush2.msra.mxu0 0.0
    %1808 = vmatprep.subr.mxu0 0.0
    %1809 = vmatpush2.msra.mxu0 0.0
    %1810 = vmatprep.subr.mxu0 0.0
    %1811 = vmatpush2.msra.mxu0 0.0
    %1812 = vmatprep.subr.mxu0 0.0
    %1813 = vmatpush2.msra.mxu0 0.0
    %1814 = vmatprep.mubr.f32.mxu0 0.0
    %v1815 = vand.u32 %v390, 4294901760
    %v1816 = vsub.f32 %v390, %v1815
    %v1817 = vand.u32 %v1816, 4294901760
    %1818 = vmatmul.mubr.f32.gmra.mxu0 %v1817
    %v1819 = vpop.f32.mrf.mxu0
    %v1820 = vadd.f32 %v1736, %v1819
    %v1821 = vpop.f32.mrf.mxu0
    %1822 = vmatprep.mubr.f32.mxu0 0.0
    %v1823 = vand.u32 %v393, 4294901760
    %v1824 = vsub.f32 %v393, %v1823
    %v1825 = vand.u32 %v1824, 4294901760
    %1826 = vmatmul.mubr.f32.gmra.mxu0 %v1825
    %v1827 = vpop.f32.mrf.mxu0
    %v1828 = vadd.f32 %v1743, %v1827
    %v1829 = vpop.f32.mrf.mxu0
    %1830 = vdwg.mxu0
    %1831 = vmatprep.subr.mxu0 0.0
    %1832 = vmatpush1.msra.mxu0 0.0
    %1833 = vmatprep.subr.mxu0 0.0
    %1834 = vmatpush1.msra.mxu0 0.0
    %1835 = vmatprep.subr.mxu0 0.0
    %1836 = vmatpush1.msra.mxu0 0.0
    %1837 = vmatprep.subr.mxu0 0.0
    %1838 = vmatpush1.msra.mxu0 0.0
    %1839 = vmatprep.subr.mxu0 0.0
    %1840 = vmatpush1.msra.mxu0 0.0
    %1841 = vmatprep.subr.mxu0 0.0
    %1842 = vmatpush1.msra.mxu0 0.0
    %1843 = vmatprep.subr.mxu0 0.0
    %1844 = vmatpush1.msra.mxu0 0.0
    %1845 = vmatprep.subr.mxu0 0.0
    %1846 = vmatpush1.msra.mxu0 0.0
    %1847 = vmatprep.subr.mxu0 0.0
    %1848 = vmatpush1.msra.mxu0 0.0
    %1849 = vmatprep.subr.mxu0 0.0
    %1850 = vmatpush1.msra.mxu0 0.0
    %1851 = vmatprep.subr.mxu0 0.0
    %1852 = vmatpush1.msra.mxu0 0.0
    %1853 = vmatprep.subr.mxu0 0.0
    %1854 = vmatpush1.msra.mxu0 0.0
    %1855 = vmatprep.subr.mxu0 0.0
    %v1856 = vand.u32 %v1466, 4294901760
    %v1857 = vsub.f32 %v1466, %v1856
    %v1858 = vand.u32 %v1857, 4294901760
    %1859 = vmatpush1.msra.mxu0 %v1858
    %1860 = vmatprep.subr.mxu0 0.0
    %v1861 = vand.u32 %v1465, 4294901760
    %v1862 = vsub.f32 %v1465, %v1861
    %v1863 = vand.u32 %v1862, 4294901760
    %1864 = vmatpush1.msra.mxu0 %v1863
    %1865 = vmatprep.subr.mxu0 0.0
    %v1866 = vand.u32 %v1464, 4294901760
    %v1867 = vsub.f32 %v1464, %v1866
    %v1868 = vand.u32 %v1867, 4294901760
    %1869 = vmatpush1.msra.mxu0 %v1868
    %1870 = vmatprep.subr.mxu0 0.0
    %v1871 = vand.u32 %v1463, 4294901760
    %v1872 = vsub.f32 %v1463, %v1871
    %v1873 = vand.u32 %v1872, 4294901760
    %1874 = vmatpush1.msra.mxu0 %v1873
    %1875 = vmatprep.subr.mxu0 0.0
    %1876 = vmatpush2.msra.mxu0 0.0
    %1877 = vmatprep.subr.mxu0 0.0
    %1878 = vmatpush2.msra.mxu0 0.0
    %1879 = vmatprep.subr.mxu0 0.0
    %1880 = vmatpush2.msra.mxu0 0.0
    %1881 = vmatprep.subr.mxu0 0.0
    %1882 = vmatpush2.msra.mxu0 0.0
    %1883 = vmatprep.subr.mxu0 0.0
    %1884 = vmatpush2.msra.mxu0 0.0
    %1885 = vmatprep.subr.mxu0 0.0
    %1886 = vmatpush2.msra.mxu0 0.0
    %1887 = vmatprep.subr.mxu0 0.0
    %1888 = vmatpush2.msra.mxu0 0.0
    %1889 = vmatprep.subr.mxu0 0.0
    %1890 = vmatpush2.msra.mxu0 0.0
    %1891 = vmatprep.subr.mxu0 0.0
    %1892 = vmatpush2.msra.mxu0 0.0
    %1893 = vmatprep.subr.mxu0 0.0
    %1894 = vmatpush2.msra.mxu0 0.0
    %1895 = vmatprep.subr.mxu0 0.0
    %1896 = vmatpush2.msra.mxu0 0.0
    %1897 = vmatprep.subr.mxu0 0.0
    %1898 = vmatpush2.msra.mxu0 0.0
    %1899 = vmatprep.subr.mxu0 0.0
    %1900 = vmatpush2.msra.mxu0 0.0
    %1901 = vmatprep.subr.mxu0 0.0
    %1902 = vmatpush2.msra.mxu0 0.0
    %1903 = vmatprep.subr.mxu0 0.0
    %1904 = vmatpush2.msra.mxu0 0.0
    %1905 = vmatprep.subr.mxu0 0.0
    %1906 = vmatpush2.msra.mxu0 0.0
    %1907 = vmatprep.mubr.f32.mxu0 0.0
    %v1908 = vand.u32 %v390, 4294901760
    %1909 = vmatmul.mubr.f32.gmra.mxu0 %v1908
    %v1910 = vpop.f32.mrf.mxu0
    %v1911 = vadd.f32 %v1820, %v1910
    %v1912 = vpop.f32.mrf.mxu0
    %1913 = vmatprep.mubr.f32.mxu0 0.0
    %v1914 = vand.u32 %v393, 4294901760
    %1915 = vmatmul.mubr.f32.gmra.mxu0 %v1914
    %v1916 = vpop.f32.mrf.mxu0
    %v1917 = vadd.f32 %v1828, %v1916
    %v1918 = vpop.f32.mrf.mxu0
    %1919 = vdwg.mxu0
    %1920 = vmatprep.subr.mxu0 0.0
    %1921 = vmatpush1.msra.mxu0 0.0
    %1922 = vmatprep.subr.mxu0 0.0
    %1923 = vmatpush1.msra.mxu0 0.0
    %1924 = vmatprep.subr.mxu0 0.0
    %1925 = vmatpush1.msra.mxu0 0.0
    %1926 = vmatprep.subr.mxu0 0.0
    %1927 = vmatpush1.msra.mxu0 0.0
    %1928 = vmatprep.subr.mxu0 0.0
    %1929 = vmatpush1.msra.mxu0 0.0
    %1930 = vmatprep.subr.mxu0 0.0
    %1931 = vmatpush1.msra.mxu0 0.0
    %1932 = vmatprep.subr.mxu0 0.0
    %1933 = vmatpush1.msra.mxu0 0.0
    %1934 = vmatprep.subr.mxu0 0.0
    %1935 = vmatpush1.msra.mxu0 0.0
    %1936 = vmatprep.subr.mxu0 0.0
    %1937 = vmatpush1.msra.mxu0 0.0
    %1938 = vmatprep.subr.mxu0 0.0
    %1939 = vmatpush1.msra.mxu0 0.0
    %1940 = vmatprep.subr.mxu0 0.0
    %1941 = vmatpush1.msra.mxu0 0.0
    %1942 = vmatprep.subr.mxu0 0.0
    %1943 = vmatpush1.msra.mxu0 0.0
    %1944 = vmatprep.subr.mxu0 0.0
    %v1945 = vand.u32 %v1466, 4294901760
    %1946 = vmatpush1.msra.mxu0 %v1945
    %1947 = vmatprep.subr.mxu0 0.0
    %v1948 = vand.u32 %v1465, 4294901760
    %1949 = vmatpush1.msra.mxu0 %v1948
    %1950 = vmatprep.subr.mxu0 0.0
    %v1951 = vand.u32 %v1464, 4294901760
    %1952 = vmatpush1.msra.mxu0 %v1951
    %1953 = vmatprep.subr.mxu0 0.0
    %v1954 = vand.u32 %v1463, 4294901760
    %1955 = vmatpush1.msra.mxu0 %v1954
    %1956 = vmatprep.subr.mxu0 0.0
    %1957 = vmatpush2.msra.mxu0 0.0
    %1958 = vmatprep.subr.mxu0 0.0
    %1959 = vmatpush2.msra.mxu0 0.0
    %1960 = vmatprep.subr.mxu0 0.0
    %1961 = vmatpush2.msra.mxu0 0.0
    %1962 = vmatprep.subr.mxu0 0.0
    %1963 = vmatpush2.msra.mxu0 0.0
    %1964 = vmatprep.subr.mxu0 0.0
    %1965 = vmatpush2.msra.mxu0 0.0
    %1966 = vmatprep.subr.mxu0 0.0
    %1967 = vmatpush2.msra.mxu0 0.0
    %1968 = vmatprep.subr.mxu0 0.0
    %1969 = vmatpush2.msra.mxu0 0.0
    %1970 = vmatprep.subr.mxu0 0.0
    %1971 = vmatpush2.msra.mxu0 0.0
    %1972 = vmatprep.subr.mxu0 0.0
    %1973 = vmatpush2.msra.mxu0 0.0
    %1974 = vmatprep.subr.mxu0 0.0
    %1975 = vmatpush2.msra.mxu0 0.0
    %1976 = vmatprep.subr.mxu0 0.0
    %1977 = vmatpush2.msra.mxu0 0.0
    %1978 = vmatprep.subr.mxu0 0.0
    %1979 = vmatpush2.msra.mxu0 0.0
    %1980 = vmatprep.subr.mxu0 0.0
    %1981 = vmatpush2.msra.mxu0 0.0
    %1982 = vmatprep.subr.mxu0 0.0
    %1983 = vmatpush2.msra.mxu0 0.0
    %1984 = vmatprep.subr.mxu0 0.0
    %1985 = vmatpush2.msra.mxu0 0.0
    %1986 = vmatprep.subr.mxu0 0.0
    %1987 = vmatpush2.msra.mxu0 0.0
    %1988 = vmatprep.mubr.f32.mxu0 0.0
    %v1989 = vand.u32 %v390, 4294901760
    %1990 = vmatmul.mubr.f32.gmra.mxu0 %v1989
    %v1991 = vpop.f32.mrf.mxu0
    %v1992 = vadd.f32 %v1911, %v1991
    %v1993 = vpop.f32.mrf.mxu0
    %1994 = vmatprep.mubr.f32.mxu0 0.0
    %v1995 = vand.u32 %v393, 4294901760
    %1996 = vmatmul.mubr.f32.gmra.mxu0 %v1995
    %v1997 = vpop.f32.mrf.mxu0
    %v1998 = vadd.f32 %v1917, %v1997
    %v1999 = vpop.f32.mrf.mxu0
    %2000 = vdwg.mxu0
    %v2002 = vsel %vm355, %v923, 0
    %v2005 = vsel %vm355, %v924, 0
    %2007 = vmatprep.subr.mxu0 0.0
    %2008 = vmatpush1.msra.mxu0 0.0
    %2009 = vmatprep.subr.mxu0 0.0
    %2010 = vmatpush1.msra.mxu0 0.0
    %2011 = vmatprep.subr.mxu0 0.0
    %2012 = vmatpush1.msra.mxu0 0.0
    %2013 = vmatprep.subr.mxu0 0.0
    %2014 = vmatpush1.msra.mxu0 0.0
    %2015 = vmatprep.subr.mxu0 0.0
    %2016 = vmatpush1.msra.mxu0 0.0
    %2017 = vmatprep.subr.mxu0 0.0
    %2018 = vmatpush1.msra.mxu0 0.0
    %2019 = vmatprep.subr.mxu0 0.0
    %2020 = vmatpush1.msra.mxu0 0.0
    %2021 = vmatprep.subr.mxu0 0.0
    %2022 = vmatpush1.msra.mxu0 0.0
    %2023 = vmatprep.subr.mxu0 0.0
    %2024 = vmatpush1.msra.mxu0 0.0
    %2025 = vmatprep.subr.mxu0 0.0
    %2026 = vmatpush1.msra.mxu0 0.0
    %2027 = vmatprep.subr.mxu0 0.0
    %2028 = vmatpush1.msra.mxu0 0.0
    %2029 = vmatprep.subr.mxu0 0.0
    %2030 = vmatpush1.msra.mxu0 0.0
    %2031 = vmatprep.subr.mxu0 0.0
    %v2032 = vand.u32 %v154, 4294901760
    %2033 = vmatpush1.msra.mxu0 %v2032
    %2034 = vmatprep.subr.mxu0 0.0
    %v2035 = vand.u32 %v153, 4294901760
    %2036 = vmatpush1.msra.mxu0 %v2035
    %2037 = vmatprep.subr.mxu0 0.0
    %v2038 = vand.u32 %v152, 4294901760
    %2039 = vmatpush1.msra.mxu0 %v2038
    %2040 = vmatprep.subr.mxu0 0.0
    %v2041 = vand.u32 %v151, 4294901760
    %2042 = vmatpush1.msra.mxu0 %v2041
    %2043 = vmatprep.subr.mxu0 0.0
    %2044 = vmatpush2.msra.mxu0 0.0
    %2045 = vmatprep.subr.mxu0 0.0
    %2046 = vmatpush2.msra.mxu0 0.0
    %2047 = vmatprep.subr.mxu0 0.0
    %2048 = vmatpush2.msra.mxu0 0.0
    %2049 = vmatprep.subr.mxu0 0.0
    %2050 = vmatpush2.msra.mxu0 0.0
    %2051 = vmatprep.subr.mxu0 0.0
    %2052 = vmatpush2.msra.mxu0 0.0
    %2053 = vmatprep.subr.mxu0 0.0
    %2054 = vmatpush2.msra.mxu0 0.0
    %2055 = vmatprep.subr.mxu0 0.0
    %2056 = vmatpush2.msra.mxu0 0.0
    %2057 = vmatprep.subr.mxu0 0.0
    %2058 = vmatpush2.msra.mxu0 0.0
    %2059 = vmatprep.subr.mxu0 0.0
    %2060 = vmatpush2.msra.mxu0 0.0
    %2061 = vmatprep.subr.mxu0 0.0
    %2062 = vmatpush2.msra.mxu0 0.0
    %2063 = vmatprep.subr.mxu0 0.0
    %2064 = vmatpush2.msra.mxu0 0.0
    %2065 = vmatprep.subr.mxu0 0.0
    %2066 = vmatpush2.msra.mxu0 0.0
    %2067 = vmatprep.subr.mxu0 0.0
    %2068 = vmatpush2.msra.mxu0 0.0
    %2069 = vmatprep.subr.mxu0 0.0
    %2070 = vmatpush2.msra.mxu0 0.0
    %2071 = vmatprep.subr.mxu0 0.0
    %2072 = vmatpush2.msra.mxu0 0.0
    %2073 = vmatprep.subr.mxu0 0.0
    %2074 = vmatpush2.msra.mxu0 0.0
    %2075 = vmatprep.mubr.f32.mxu0 0.0
    %v2076 = vand.u32 %v2002, 4294901760
    %v2077 = vsub.f32 %v2002, %v2076
    %v2078 = vand.u32 %v2077, 4294901760
    %v2079 = vsub.f32 %v2077, %v2078
    %v2080 = vand.u32 %v2079, 4294901760
    %2081 = vmatmul.mubr.f32.gmra.mxu0 %v2080
    %v2082 = vpop.f32.mrf.mxu0
    %v2083 = vadd.f32 0.0, %v2082
    %v2084 = vpop.f32.mrf.mxu0
    %2085 = vmatprep.mubr.f32.mxu0 0.0
    %v2086 = vand.u32 %v2005, 4294901760
    %v2087 = vsub.f32 %v2005, %v2086
    %v2088 = vand.u32 %v2087, 4294901760
    %v2089 = vsub.f32 %v2087, %v2088
    %v2090 = vand.u32 %v2089, 4294901760
    %2091 = vmatmul.mubr.f32.gmra.mxu0 %v2090
    %v2092 = vpop.f32.mrf.mxu0
    %v2093 = vadd.f32 0.0, %v2092
    %v2094 = vpop.f32.mrf.mxu0
    %2095 = vdwg.mxu0
    %2096 = vmatprep.subr.mxu0 0.0
    %2097 = vmatpush1.msra.mxu0 0.0
    %2098 = vmatprep.subr.mxu0 0.0
    %2099 = vmatpush1.msra.mxu0 0.0
    %2100 = vmatprep.subr.mxu0 0.0
    %2101 = vmatpush1.msra.mxu0 0.0
    %2102 = vmatprep.subr.mxu0 0.0
    %2103 = vmatpush1.msra.mxu0 0.0
    %2104 = vmatprep.subr.mxu0 0.0
    %2105 = vmatpush1.msra.mxu0 0.0
    %2106 = vmatprep.subr.mxu0 0.0
    %2107 = vmatpush1.msra.mxu0 0.0
    %2108 = vmatprep.subr.mxu0 0.0
    %2109 = vmatpush1.msra.mxu0 0.0
    %2110 = vmatprep.subr.mxu0 0.0
    %2111 = vmatpush1.msra.mxu0 0.0
    %2112 = vmatprep.subr.mxu0 0.0
    %2113 = vmatpush1.msra.mxu0 0.0
    %2114 = vmatprep.subr.mxu0 0.0
    %2115 = vmatpush1.msra.mxu0 0.0
    %2116 = vmatprep.subr.mxu0 0.0
    %2117 = vmatpush1.msra.mxu0 0.0
    %2118 = vmatprep.subr.mxu0 0.0
    %2119 = vmatpush1.msra.mxu0 0.0
    %2120 = vmatprep.subr.mxu0 0.0
    %v2121 = vand.u32 %v154, 4294901760
    %v2122 = vsub.f32 %v154, %v2121
    %v2123 = vand.u32 %v2122, 4294901760
    %v2124 = vsub.f32 %v2122, %v2123
    %v2125 = vand.u32 %v2124, 4294901760
    %2126 = vmatpush1.msra.mxu0 %v2125
    %2127 = vmatprep.subr.mxu0 0.0
    %v2128 = vand.u32 %v153, 4294901760
    %v2129 = vsub.f32 %v153, %v2128
    %v2130 = vand.u32 %v2129, 4294901760
    %v2131 = vsub.f32 %v2129, %v2130
    %v2132 = vand.u32 %v2131, 4294901760
    %2133 = vmatpush1.msra.mxu0 %v2132
    %2134 = vmatprep.subr.mxu0 0.0
    %v2135 = vand.u32 %v152, 4294901760
    %v2136 = vsub.f32 %v152, %v2135
    %v2137 = vand.u32 %v2136, 4294901760
    %v2138 = vsub.f32 %v2136, %v2137
    %v2139 = vand.u32 %v2138, 4294901760
    %2140 = vmatpush1.msra.mxu0 %v2139
    %2141 = vmatprep.subr.mxu0 0.0
    %v2142 = vand.u32 %v151, 4294901760
    %v2143 = vsub.f32 %v151, %v2142
    %v2144 = vand.u32 %v2143, 4294901760
    %v2145 = vsub.f32 %v2143, %v2144
    %v2146 = vand.u32 %v2145, 4294901760
    %2147 = vmatpush1.msra.mxu0 %v2146
    %2148 = vmatprep.subr.mxu0 0.0
    %2149 = vmatpush2.msra.mxu0 0.0
    %2150 = vmatprep.subr.mxu0 0.0
    %2151 = vmatpush2.msra.mxu0 0.0
    %2152 = vmatprep.subr.mxu0 0.0
    %2153 = vmatpush2.msra.mxu0 0.0
    %2154 = vmatprep.subr.mxu0 0.0
    %2155 = vmatpush2.msra.mxu0 0.0
    %2156 = vmatprep.subr.mxu0 0.0
    %2157 = vmatpush2.msra.mxu0 0.0
    %2158 = vmatprep.subr.mxu0 0.0
    %2159 = vmatpush2.msra.mxu0 0.0
    %2160 = vmatprep.subr.mxu0 0.0
    %2161 = vmatpush2.msra.mxu0 0.0
    %2162 = vmatprep.subr.mxu0 0.0
    %2163 = vmatpush2.msra.mxu0 0.0
    %2164 = vmatprep.subr.mxu0 0.0
    %2165 = vmatpush2.msra.mxu0 0.0
    %2166 = vmatprep.subr.mxu0 0.0
    %2167 = vmatpush2.msra.mxu0 0.0
    %2168 = vmatprep.subr.mxu0 0.0
    %2169 = vmatpush2.msra.mxu0 0.0
    %2170 = vmatprep.subr.mxu0 0.0
    %2171 = vmatpush2.msra.mxu0 0.0
    %2172 = vmatprep.subr.mxu0 0.0
    %2173 = vmatpush2.msra.mxu0 0.0
    %2174 = vmatprep.subr.mxu0 0.0
    %2175 = vmatpush2.msra.mxu0 0.0
    %2176 = vmatprep.subr.mxu0 0.0
    %2177 = vmatpush2.msra.mxu0 0.0
    %2178 = vmatprep.subr.mxu0 0.0
    %2179 = vmatpush2.msra.mxu0 0.0
    %2180 = vmatprep.mubr.f32.mxu0 0.0
    %v2181 = vand.u32 %v2002, 4294901760
    %2182 = vmatmul.mubr.f32.gmra.mxu0 %v2181
    %v2183 = vpop.f32.mrf.mxu0
    %v2184 = vadd.f32 %v2083, %v2183
    %v2185 = vpop.f32.mrf.mxu0
    %2186 = vmatprep.mubr.f32.mxu0 0.0
    %v2187 = vand.u32 %v2005, 4294901760
    %2188 = vmatmul.mubr.f32.gmra.mxu0 %v2187
    %v2189 = vpop.f32.mrf.mxu0
    %v2190 = vadd.f32 %v2093, %v2189
    %v2191 = vpop.f32.mrf.mxu0
    %2192 = vdwg.mxu0
    %2193 = vmatprep.subr.mxu0 0.0
    %2194 = vmatpush1.msra.mxu0 0.0
    %2195 = vmatprep.subr.mxu0 0.0
    %2196 = vmatpush1.msra.mxu0 0.0
    %2197 = vmatprep.subr.mxu0 0.0
    %2198 = vmatpush1.msra.mxu0 0.0
    %2199 = vmatprep.subr.mxu0 0.0
    %2200 = vmatpush1.msra.mxu0 0.0
    %2201 = vmatprep.subr.mxu0 0.0
    %2202 = vmatpush1.msra.mxu0 0.0
    %2203 = vmatprep.subr.mxu0 0.0
    %2204 = vmatpush1.msra.mxu0 0.0
    %2205 = vmatprep.subr.mxu0 0.0
    %2206 = vmatpush1.msra.mxu0 0.0
    %2207 = vmatprep.subr.mxu0 0.0
    %2208 = vmatpush1.msra.mxu0 0.0
    %2209 = vmatprep.subr.mxu0 0.0
    %2210 = vmatpush1.msra.mxu0 0.0
    %2211 = vmatprep.subr.mxu0 0.0
    %2212 = vmatpush1.msra.mxu0 0.0
    %2213 = vmatprep.subr.mxu0 0.0
    %2214 = vmatpush1.msra.mxu0 0.0
    %2215 = vmatprep.subr.mxu0 0.0
    %2216 = vmatpush1.msra.mxu0 0.0
    %2217 = vmatprep.subr.mxu0 0.0
    %v2218 = vand.u32 %v154, 4294901760
    %v2219 = vsub.f32 %v154, %v2218
    %2220 = vmatpush1.msra.mxu0 %v2219
    %2221 = vmatprep.subr.mxu0 0.0
    %v2222 = vand.u32 %v153, 4294901760
    %v2223 = vsub.f32 %v153, %v2222
    %2224 = vmatpush1.msra.mxu0 %v2223
    %2225 = vmatprep.subr.mxu0 0.0
    %v2226 = vand.u32 %v152, 4294901760
    %v2227 = vsub.f32 %v152, %v2226
    %2228 = vmatpush1.msra.mxu0 %v2227
    %2229 = vmatprep.subr.mxu0 0.0
    %v2230 = vand.u32 %v151, 4294901760
    %v2231 = vsub.f32 %v151, %v2230
    %2232 = vmatpush1.msra.mxu0 %v2231
    %2233 = vmatprep.subr.mxu0 0.0
    %2234 = vmatpush2.msra.mxu0 0.0
    %2235 = vmatprep.subr.mxu0 0.0
    %2236 = vmatpush2.msra.mxu0 0.0
    %2237 = vmatprep.subr.mxu0 0.0
    %2238 = vmatpush2.msra.mxu0 0.0
    %2239 = vmatprep.subr.mxu0 0.0
    %2240 = vmatpush2.msra.mxu0 0.0
    %2241 = vmatprep.subr.mxu0 0.0
    %2242 = vmatpush2.msra.mxu0 0.0
    %2243 = vmatprep.subr.mxu0 0.0
    %2244 = vmatpush2.msra.mxu0 0.0
    %2245 = vmatprep.subr.mxu0 0.0
    %2246 = vmatpush2.msra.mxu0 0.0
    %2247 = vmatprep.subr.mxu0 0.0
    %2248 = vmatpush2.msra.mxu0 0.0
    %2249 = vmatprep.subr.mxu0 0.0
    %2250 = vmatpush2.msra.mxu0 0.0
    %2251 = vmatprep.subr.mxu0 0.0
    %2252 = vmatpush2.msra.mxu0 0.0
    %2253 = vmatprep.subr.mxu0 0.0
    %2254 = vmatpush2.msra.mxu0 0.0
    %2255 = vmatprep.subr.mxu0 0.0
    %2256 = vmatpush2.msra.mxu0 0.0
    %2257 = vmatprep.subr.mxu0 0.0
    %2258 = vmatpush2.msra.mxu0 0.0
    %2259 = vmatprep.subr.mxu0 0.0
    %2260 = vmatpush2.msra.mxu0 0.0
    %2261 = vmatprep.subr.mxu0 0.0
    %2262 = vmatpush2.msra.mxu0 0.0
    %2263 = vmatprep.subr.mxu0 0.0
    %2264 = vmatpush2.msra.mxu0 0.0
    %2265 = vmatprep.mubr.f32.mxu0 0.0
    %v2266 = vand.u32 %v2002, 4294901760
    %v2267 = vsub.f32 %v2002, %v2266
    %2268 = vmatmul.mubr.f32.gmra.mxu0 %v2267
    %v2269 = vpop.f32.mrf.mxu0
    %v2270 = vadd.f32 %v2184, %v2269
    %v2271 = vpop.f32.mrf.mxu0
    %2272 = vmatprep.mubr.f32.mxu0 0.0
    %v2273 = vand.u32 %v2005, 4294901760
    %v2274 = vsub.f32 %v2005, %v2273
    %2275 = vmatmul.mubr.f32.gmra.mxu0 %v2274
    %v2276 = vpop.f32.mrf.mxu0
    %v2277 = vadd.f32 %v2190, %v2276
    %v2278 = vpop.f32.mrf.mxu0
    %2279 = vdwg.mxu0
    %2280 = vmatprep.subr.mxu0 0.0
    %2281 = vmatpush1.msra.mxu0 0.0
    %2282 = vmatprep.subr.mxu0 0.0
    %2283 = vmatpush1.msra.mxu0 0.0
    %2284 = vmatprep.subr.mxu0 0.0
    %2285 = vmatpush1.msra.mxu0 0.0
    %2286 = vmatprep.subr.mxu0 0.0
    %2287 = vmatpush1.msra.mxu0 0.0
    %2288 = vmatprep.subr.mxu0 0.0
    %2289 = vmatpush1.msra.mxu0 0.0
    %2290 = vmatprep.subr.mxu0 0.0
    %2291 = vmatpush1.msra.mxu0 0.0
    %2292 = vmatprep.subr.mxu0 0.0
    %2293 = vmatpush1.msra.mxu0 0.0
    %2294 = vmatprep.subr.mxu0 0.0
    %2295 = vmatpush1.msra.mxu0 0.0
    %2296 = vmatprep.subr.mxu0 0.0
    %2297 = vmatpush1.msra.mxu0 0.0
    %2298 = vmatprep.subr.mxu0 0.0
    %2299 = vmatpush1.msra.mxu0 0.0
    %2300 = vmatprep.subr.mxu0 0.0
    %2301 = vmatpush1.msra.mxu0 0.0
    %2302 = vmatprep.subr.mxu0 0.0
    %2303 = vmatpush1.msra.mxu0 0.0
    %2304 = vmatprep.subr.mxu0 0.0
    %v2305 = vand.u32 %v154, 4294901760
    %2306 = vmatpush1.msra.mxu0 %v2305
    %2307 = vmatprep.subr.mxu0 0.0
    %v2308 = vand.u32 %v153, 4294901760
    %2309 = vmatpush1.msra.mxu0 %v2308
    %2310 = vmatprep.subr.mxu0 0.0
    %v2311 = vand.u32 %v152, 4294901760
    %2312 = vmatpush1.msra.mxu0 %v2311
    %2313 = vmatprep.subr.mxu0 0.0
    %v2314 = vand.u32 %v151, 4294901760
    %2315 = vmatpush1.msra.mxu0 %v2314
    %2316 = vmatprep.subr.mxu0 0.0
    %2317 = vmatpush2.msra.mxu0 0.0
    %2318 = vmatprep.subr.mxu0 0.0
    %2319 = vmatpush2.msra.mxu0 0.0
    %2320 = vmatprep.subr.mxu0 0.0
    %2321 = vmatpush2.msra.mxu0 0.0
    %2322 = vmatprep.subr.mxu0 0.0
    %2323 = vmatpush2.msra.mxu0 0.0
    %2324 = vmatprep.subr.mxu0 0.0
    %2325 = vmatpush2.msra.mxu0 0.0
    %2326 = vmatprep.subr.mxu0 0.0
    %2327 = vmatpush2.msra.mxu0 0.0
    %2328 = vmatprep.subr.mxu0 0.0
    %2329 = vmatpush2.msra.mxu0 0.0
    %2330 = vmatprep.subr.mxu0 0.0
    %2331 = vmatpush2.msra.mxu0 0.0
    %2332 = vmatprep.subr.mxu0 0.0
    %2333 = vmatpush2.msra.mxu0 0.0
    %2334 = vmatprep.subr.mxu0 0.0
    %2335 = vmatpush2.msra.mxu0 0.0
    %2336 = vmatprep.subr.mxu0 0.0
    %2337 = vmatpush2.msra.mxu0 0.0
    %2338 = vmatprep.subr.mxu0 0.0
    %2339 = vmatpush2.msra.mxu0 0.0
    %2340 = vmatprep.subr.mxu0 0.0
    %2341 = vmatpush2.msra.mxu0 0.0
    %2342 = vmatprep.subr.mxu0 0.0
    %2343 = vmatpush2.msra.mxu0 0.0
    %2344 = vmatprep.subr.mxu0 0.0
    %2345 = vmatpush2.msra.mxu0 0.0
    %2346 = vmatprep.subr.mxu0 0.0
    %2347 = vmatpush2.msra.mxu0 0.0
    %2348 = vmatprep.mubr.f32.mxu0 0.0
    %v2349 = vand.u32 %v2002, 4294901760
    %v2350 = vsub.f32 %v2002, %v2349
    %v2351 = vand.u32 %v2350, 4294901760
    %2352 = vmatmul.mubr.f32.gmra.mxu0 %v2351
    %v2353 = vpop.f32.mrf.mxu0
    %v2354 = vadd.f32 %v2270, %v2353
    %v2355 = vpop.f32.mrf.mxu0
    %2356 = vmatprep.mubr.f32.mxu0 0.0
    %v2357 = vand.u32 %v2005, 4294901760
    %v2358 = vsub.f32 %v2005, %v2357
    %v2359 = vand.u32 %v2358, 4294901760
    %2360 = vmatmul.mubr.f32.gmra.mxu0 %v2359
    %v2361 = vpop.f32.mrf.mxu0
    %v2362 = vadd.f32 %v2277, %v2361
    %v2363 = vpop.f32.mrf.mxu0
    %2364 = vdwg.mxu0
    %2365 = vmatprep.subr.mxu0 0.0
    %2366 = vmatpush1.msra.mxu0 0.0
    %2367 = vmatprep.subr.mxu0 0.0
    %2368 = vmatpush1.msra.mxu0 0.0
    %2369 = vmatprep.subr.mxu0 0.0
    %2370 = vmatpush1.msra.mxu0 0.0
    %2371 = vmatprep.subr.mxu0 0.0
    %2372 = vmatpush1.msra.mxu0 0.0
    %2373 = vmatprep.subr.mxu0 0.0
    %2374 = vmatpush1.msra.mxu0 0.0
    %2375 = vmatprep.subr.mxu0 0.0
    %2376 = vmatpush1.msra.mxu0 0.0
    %2377 = vmatprep.subr.mxu0 0.0
    %2378 = vmatpush1.msra.mxu0 0.0
    %2379 = vmatprep.subr.mxu0 0.0
    %2380 = vmatpush1.msra.mxu0 0.0
    %2381 = vmatprep.subr.mxu0 0.0
    %2382 = vmatpush1.msra.mxu0 0.0
    %2383 = vmatprep.subr.mxu0 0.0
    %2384 = vmatpush1.msra.mxu0 0.0
    %2385 = vmatprep.subr.mxu0 0.0
    %2386 = vmatpush1.msra.mxu0 0.0
    %2387 = vmatprep.subr.mxu0 0.0
    %2388 = vmatpush1.msra.mxu0 0.0
    %2389 = vmatprep.subr.mxu0 0.0
    %v2390 = vand.u32 %v154, 4294901760
    %v2391 = vsub.f32 %v154, %v2390
    %v2392 = vand.u32 %v2391, 4294901760
    %2393 = vmatpush1.msra.mxu0 %v2392
    %2394 = vmatprep.subr.mxu0 0.0
    %v2395 = vand.u32 %v153, 4294901760
    %v2396 = vsub.f32 %v153, %v2395
    %v2397 = vand.u32 %v2396, 4294901760
    %2398 = vmatpush1.msra.mxu0 %v2397
    %2399 = vmatprep.subr.mxu0 0.0
    %v2400 = vand.u32 %v152, 4294901760
    %v2401 = vsub.f32 %v152, %v2400
    %v2402 = vand.u32 %v2401, 4294901760
    %2403 = vmatpush1.msra.mxu0 %v2402
    %2404 = vmatprep.subr.mxu0 0.0
    %v2405 = vand.u32 %v151, 4294901760
    %v2406 = vsub.f32 %v151, %v2405
    %v2407 = vand.u32 %v2406, 4294901760
    %2408 = vmatpush1.msra.mxu0 %v2407
    %2409 = vmatprep.subr.mxu0 0.0
    %2410 = vmatpush2.msra.mxu0 0.0
    %2411 = vmatprep.subr.mxu0 0.0
    %2412 = vmatpush2.msra.mxu0 0.0
    %2413 = vmatprep.subr.mxu0 0.0
    %2414 = vmatpush2.msra.mxu0 0.0
    %2415 = vmatprep.subr.mxu0 0.0
    %2416 = vmatpush2.msra.mxu0 0.0
    %2417 = vmatprep.subr.mxu0 0.0
    %2418 = vmatpush2.msra.mxu0 0.0
    %2419 = vmatprep.subr.mxu0 0.0
    %2420 = vmatpush2.msra.mxu0 0.0
    %2421 = vmatprep.subr.mxu0 0.0
    %2422 = vmatpush2.msra.mxu0 0.0
    %2423 = vmatprep.subr.mxu0 0.0
    %2424 = vmatpush2.msra.mxu0 0.0
    %2425 = vmatprep.subr.mxu0 0.0
    %2426 = vmatpush2.msra.mxu0 0.0
    %2427 = vmatprep.subr.mxu0 0.0
    %2428 = vmatpush2.msra.mxu0 0.0
    %2429 = vmatprep.subr.mxu0 0.0
    %2430 = vmatpush2.msra.mxu0 0.0
    %2431 = vmatprep.subr.mxu0 0.0
    %2432 = vmatpush2.msra.mxu0 0.0
    %2433 = vmatprep.subr.mxu0 0.0
    %2434 = vmatpush2.msra.mxu0 0.0
    %2435 = vmatprep.subr.mxu0 0.0
    %2436 = vmatpush2.msra.mxu0 0.0
    %2437 = vmatprep.subr.mxu0 0.0
    %2438 = vmatpush2.msra.mxu0 0.0
    %2439 = vmatprep.subr.mxu0 0.0
    %2440 = vmatpush2.msra.mxu0 0.0
    %2441 = vmatprep.mubr.f32.mxu0 0.0
    %v2442 = vand.u32 %v2002, 4294901760
    %2443 = vmatmul.mubr.f32.gmra.mxu0 %v2442
    %v2444 = vpop.f32.mrf.mxu0
    %v2445 = vadd.f32 %v2354, %v2444
    %v2446 = vpop.f32.mrf.mxu0
    %2447 = vmatprep.mubr.f32.mxu0 0.0
    %v2448 = vand.u32 %v2005, 4294901760
    %2449 = vmatmul.mubr.f32.gmra.mxu0 %v2448
    %v2450 = vpop.f32.mrf.mxu0
    %v2451 = vadd.f32 %v2362, %v2450
    %v2452 = vpop.f32.mrf.mxu0
    %2453 = vdwg.mxu0
    %2454 = vmatprep.subr.mxu0 0.0
    %2455 = vmatpush1.msra.mxu0 0.0
    %2456 = vmatprep.subr.mxu0 0.0
    %2457 = vmatpush1.msra.mxu0 0.0
    %2458 = vmatprep.subr.mxu0 0.0
    %2459 = vmatpush1.msra.mxu0 0.0
    %2460 = vmatprep.subr.mxu0 0.0
    %2461 = vmatpush1.msra.mxu0 0.0
    %2462 = vmatprep.subr.mxu0 0.0
    %2463 = vmatpush1.msra.mxu0 0.0
    %2464 = vmatprep.subr.mxu0 0.0
    %2465 = vmatpush1.msra.mxu0 0.0
    %2466 = vmatprep.subr.mxu0 0.0
    %2467 = vmatpush1.msra.mxu0 0.0
    %2468 = vmatprep.subr.mxu0 0.0
    %2469 = vmatpush1.msra.mxu0 0.0
    %2470 = vmatprep.subr.mxu0 0.0
    %2471 = vmatpush1.msra.mxu0 0.0
    %2472 = vmatprep.subr.mxu0 0.0
    %2473 = vmatpush1.msra.mxu0 0.0
    %2474 = vmatprep.subr.mxu0 0.0
    %2475 = vmatpush1.msra.mxu0 0.0
    %2476 = vmatprep.subr.mxu0 0.0
    %2477 = vmatpush1.msra.mxu0 0.0
    %2478 = vmatprep.subr.mxu0 0.0
    %v2479 = vand.u32 %v154, 4294901760
    %2480 = vmatpush1.msra.mxu0 %v2479
    %2481 = vmatprep.subr.mxu0 0.0
    %v2482 = vand.u32 %v153, 4294901760
    %2483 = vmatpush1.msra.mxu0 %v2482
    %2484 = vmatprep.subr.mxu0 0.0
    %v2485 = vand.u32 %v152, 4294901760
    %2486 = vmatpush1.msra.mxu0 %v2485
    %2487 = vmatprep.subr.mxu0 0.0
    %v2488 = vand.u32 %v151, 4294901760
    %2489 = vmatpush1.msra.mxu0 %v2488
    %2490 = vmatprep.subr.mxu0 0.0
    %2491 = vmatpush2.msra.mxu0 0.0
    %2492 = vmatprep.subr.mxu0 0.0
    %2493 = vmatpush2.msra.mxu0 0.0
    %2494 = vmatprep.subr.mxu0 0.0
    %2495 = vmatpush2.msra.mxu0 0.0
    %2496 = vmatprep.subr.mxu0 0.0
    %2497 = vmatpush2.msra.mxu0 0.0
    %2498 = vmatprep.subr.mxu0 0.0
    %2499 = vmatpush2.msra.mxu0 0.0
    %2500 = vmatprep.subr.mxu0 0.0
    %2501 = vmatpush2.msra.mxu0 0.0
    %2502 = vmatprep.subr.mxu0 0.0
    %2503 = vmatpush2.msra.mxu0 0.0
    %2504 = vmatprep.subr.mxu0 0.0
    %2505 = vmatpush2.msra.mxu0 0.0
    %2506 = vmatprep.subr.mxu0 0.0
    %2507 = vmatpush2.msra.mxu0 0.0
    %2508 = vmatprep.subr.mxu0 0.0
    %2509 = vmatpush2.msra.mxu0 0.0
    %2510 = vmatprep.subr.mxu0 0.0
    %2511 = vmatpush2.msra.mxu0 0.0
    %2512 = vmatprep.subr.mxu0 0.0
    %2513 = vmatpush2.msra.mxu0 0.0
    %2514 = vmatprep.subr.mxu0 0.0
    %2515 = vmatpush2.msra.mxu0 0.0
    %2516 = vmatprep.subr.mxu0 0.0
    %2517 = vmatpush2.msra.mxu0 0.0
    %2518 = vmatprep.subr.mxu0 0.0
    %2519 = vmatpush2.msra.mxu0 0.0
    %2520 = vmatprep.subr.mxu0 0.0
    %2521 = vmatpush2.msra.mxu0 0.0
    %2522 = vmatprep.mubr.f32.mxu0 0.0
    %v2523 = vand.u32 %v2002, 4294901760
    %2524 = vmatmul.mubr.f32.gmra.mxu0 %v2523
    %v2525 = vpop.f32.mrf.mxu0
    %v2526 = vadd.f32 %v2445, %v2525
    %v2527 = vpop.f32.mrf.mxu0
    %2528 = vmatprep.mubr.f32.mxu0 0.0
    %v2529 = vand.u32 %v2005, 4294901760
    %2530 = vmatmul.mubr.f32.gmra.mxu0 %v2529
    %v2531 = vpop.f32.mrf.mxu0
    %v2532 = vadd.f32 %v2451, %v2531
    %v2533 = vpop.f32.mrf.mxu0
    %2534 = vdwg.mxu0
    %v2536 = vsel %vm355, %v1454, 0
    %v2539 = vsel %vm355, %v1460, 0
    %2541 = vmatprep.subr.mxu0 0.0
    %2542 = vmatpush1.msra.mxu0 0.0
    %2543 = vmatprep.subr.mxu0 0.0
    %2544 = vmatpush1.msra.mxu0 0.0
    %2545 = vmatprep.subr.mxu0 0.0
    %2546 = vmatpush1.msra.mxu0 0.0
    %2547 = vmatprep.subr.mxu0 0.0
    %2548 = vmatpush1.msra.mxu0 0.0
    %2549 = vmatprep.subr.mxu0 0.0
    %2550 = vmatpush1.msra.mxu0 0.0
    %2551 = vmatprep.subr.mxu0 0.0
    %2552 = vmatpush1.msra.mxu0 0.0
    %2553 = vmatprep.subr.mxu0 0.0
    %2554 = vmatpush1.msra.mxu0 0.0
    %2555 = vmatprep.subr.mxu0 0.0
    %2556 = vmatpush1.msra.mxu0 0.0
    %2557 = vmatprep.subr.mxu0 0.0
    %2558 = vmatpush1.msra.mxu0 0.0
    %2559 = vmatprep.subr.mxu0 0.0
    %2560 = vmatpush1.msra.mxu0 0.0
    %2561 = vmatprep.subr.mxu0 0.0
    %2562 = vmatpush1.msra.mxu0 0.0
    %2563 = vmatprep.subr.mxu0 0.0
    %2564 = vmatpush1.msra.mxu0 0.0
    %2565 = vmatprep.subr.mxu0 0.0
    %v2566 = vand.u32 %v154, 4294901760
    %2567 = vmatpush1.msra.mxu0 %v2566
    %2568 = vmatprep.subr.mxu0 0.0
    %v2569 = vand.u32 %v153, 4294901760
    %2570 = vmatpush1.msra.mxu0 %v2569
    %2571 = vmatprep.subr.mxu0 0.0
    %v2572 = vand.u32 %v152, 4294901760
    %2573 = vmatpush1.msra.mxu0 %v2572
    %2574 = vmatprep.subr.mxu0 0.0
    %v2575 = vand.u32 %v151, 4294901760
    %2576 = vmatpush1.msra.mxu0 %v2575
    %2577 = vmatprep.subr.mxu0 0.0
    %2578 = vmatpush2.msra.mxu0 0.0
    %2579 = vmatprep.subr.mxu0 0.0
    %2580 = vmatpush2.msra.mxu0 0.0
    %2581 = vmatprep.subr.mxu0 0.0
    %2582 = vmatpush2.msra.mxu0 0.0
    %2583 = vmatprep.subr.mxu0 0.0
    %2584 = vmatpush2.msra.mxu0 0.0
    %2585 = vmatprep.subr.mxu0 0.0
    %2586 = vmatpush2.msra.mxu0 0.0
    %2587 = vmatprep.subr.mxu0 0.0
    %2588 = vmatpush2.msra.mxu0 0.0
    %2589 = vmatprep.subr.mxu0 0.0
    %2590 = vmatpush2.msra.mxu0 0.0
    %2591 = vmatprep.subr.mxu0 0.0
    %2592 = vmatpush2.msra.mxu0 0.0
    %2593 = vmatprep.subr.mxu0 0.0
    %2594 = vmatpush2.msra.mxu0 0.0
    %2595 = vmatprep.subr.mxu0 0.0
    %2596 = vmatpush2.msra.mxu0 0.0
    %2597 = vmatprep.subr.mxu0 0.0
    %2598 = vmatpush2.msra.mxu0 0.0
    %2599 = vmatprep.subr.mxu0 0.0
    %2600 = vmatpush2.msra.mxu0 0.0
    %2601 = vmatprep.subr.mxu0 0.0
    %2602 = vmatpush2.msra.mxu0 0.0
    %2603 = vmatprep.subr.mxu0 0.0
    %2604 = vmatpush2.msra.mxu0 0.0
    %2605 = vmatprep.subr.mxu0 0.0
    %2606 = vmatpush2.msra.mxu0 0.0
    %2607 = vmatprep.subr.mxu0 0.0
    %2608 = vmatpush2.msra.mxu0 0.0
    %2609 = vmatprep.mubr.f32.mxu0 0.0
    %v2610 = vand.u32 %v2536, 4294901760
    %v2611 = vsub.f32 %v2536, %v2610
    %v2612 = vand.u32 %v2611, 4294901760
    %v2613 = vsub.f32 %v2611, %v2612
    %v2614 = vand.u32 %v2613, 4294901760
    %2615 = vmatmul.mubr.f32.gmra.mxu0 %v2614
    %v2616 = vpop.f32.mrf.mxu0
    %v2617 = vadd.f32 0.0, %v2616
    %v2618 = vpop.f32.mrf.mxu0
    %2619 = vmatprep.mubr.f32.mxu0 0.0
    %v2620 = vand.u32 %v2539, 4294901760
    %v2621 = vsub.f32 %v2539, %v2620
    %v2622 = vand.u32 %v2621, 4294901760
    %v2623 = vsub.f32 %v2621, %v2622
    %v2624 = vand.u32 %v2623, 4294901760
    %2625 = vmatmul.mubr.f32.gmra.mxu0 %v2624
    %v2626 = vpop.f32.mrf.mxu0
    %v2627 = vadd.f32 0.0, %v2626
    %v2628 = vpop.f32.mrf.mxu0
    %2629 = vdwg.mxu0
    %2630 = vmatprep.subr.mxu0 0.0
    %2631 = vmatpush1.msra.mxu0 0.0
    %2632 = vmatprep.subr.mxu0 0.0
    %2633 = vmatpush1.msra.mxu0 0.0
    %2634 = vmatprep.subr.mxu0 0.0
    %2635 = vmatpush1.msra.mxu0 0.0
    %2636 = vmatprep.subr.mxu0 0.0
    %2637 = vmatpush1.msra.mxu0 0.0
    %2638 = vmatprep.subr.mxu0 0.0
    %2639 = vmatpush1.msra.mxu0 0.0
    %2640 = vmatprep.subr.mxu0 0.0
    %2641 = vmatpush1.msra.mxu0 0.0
    %2642 = vmatprep.subr.mxu0 0.0
    %2643 = vmatpush1.msra.mxu0 0.0
    %2644 = vmatprep.subr.mxu0 0.0
    %2645 = vmatpush1.msra.mxu0 0.0
    %2646 = vmatprep.subr.mxu0 0.0
    %2647 = vmatpush1.msra.mxu0 0.0
    %2648 = vmatprep.subr.mxu0 0.0
    %2649 = vmatpush1.msra.mxu0 0.0
    %2650 = vmatprep.subr.mxu0 0.0
    %2651 = vmatpush1.msra.mxu0 0.0
    %2652 = vmatprep.subr.mxu0 0.0
    %2653 = vmatpush1.msra.mxu0 0.0
    %2654 = vmatprep.subr.mxu0 0.0
    %v2655 = vand.u32 %v154, 4294901760
    %v2656 = vsub.f32 %v154, %v2655
    %v2657 = vand.u32 %v2656, 4294901760
    %v2658 = vsub.f32 %v2656, %v2657
    %v2659 = vand.u32 %v2658, 4294901760
    %2660 = vmatpush1.msra.mxu0 %v2659
    %2661 = vmatprep.subr.mxu0 0.0
    %v2662 = vand.u32 %v153, 4294901760
    %v2663 = vsub.f32 %v153, %v2662
    %v2664 = vand.u32 %v2663, 4294901760
    %v2665 = vsub.f32 %v2663, %v2664
    %v2666 = vand.u32 %v2665, 4294901760
    %2667 = vmatpush1.msra.mxu0 %v2666
    %2668 = vmatprep.subr.mxu0 0.0
    %v2669 = vand.u32 %v152, 4294901760
    %v2670 = vsub.f32 %v152, %v2669
    %v2671 = vand.u32 %v2670, 4294901760
    %v2672 = vsub.f32 %v2670, %v2671
    %v2673 = vand.u32 %v2672, 4294901760
    %2674 = vmatpush1.msra.mxu0 %v2673
    %2675 = vmatprep.subr.mxu0 0.0
    %v2676 = vand.u32 %v151, 4294901760
    %v2677 = vsub.f32 %v151, %v2676
    %v2678 = vand.u32 %v2677, 4294901760
    %v2679 = vsub.f32 %v2677, %v2678
    %v2680 = vand.u32 %v2679, 4294901760
    %2681 = vmatpush1.msra.mxu0 %v2680
    %2682 = vmatprep.subr.mxu0 0.0
    %2683 = vmatpush2.msra.mxu0 0.0
    %2684 = vmatprep.subr.mxu0 0.0
    %2685 = vmatpush2.msra.mxu0 0.0
    %2686 = vmatprep.subr.mxu0 0.0
    %2687 = vmatpush2.msra.mxu0 0.0
    %2688 = vmatprep.subr.mxu0 0.0
    %2689 = vmatpush2.msra.mxu0 0.0
    %2690 = vmatprep.subr.mxu0 0.0
    %2691 = vmatpush2.msra.mxu0 0.0
    %2692 = vmatprep.subr.mxu0 0.0
    %2693 = vmatpush2.msra.mxu0 0.0
    %2694 = vmatprep.subr.mxu0 0.0
    %2695 = vmatpush2.msra.mxu0 0.0
    %2696 = vmatprep.subr.mxu0 0.0
    %2697 = vmatpush2.msra.mxu0 0.0
    %2698 = vmatprep.subr.mxu0 0.0
    %2699 = vmatpush2.msra.mxu0 0.0
    %2700 = vmatprep.subr.mxu0 0.0
    %2701 = vmatpush2.msra.mxu0 0.0
    %2702 = vmatprep.subr.mxu0 0.0
    %2703 = vmatpush2.msra.mxu0 0.0
    %2704 = vmatprep.subr.mxu0 0.0
    %2705 = vmatpush2.msra.mxu0 0.0
    %2706 = vmatprep.subr.mxu0 0.0
    %2707 = vmatpush2.msra.mxu0 0.0
    %2708 = vmatprep.subr.mxu0 0.0
    %2709 = vmatpush2.msra.mxu0 0.0
    %2710 = vmatprep.subr.mxu0 0.0
    %2711 = vmatpush2.msra.mxu0 0.0
    %2712 = vmatprep.subr.mxu0 0.0
    %2713 = vmatpush2.msra.mxu0 0.0
    %2714 = vmatprep.mubr.f32.mxu0 0.0
    %v2715 = vand.u32 %v2536, 4294901760
    %2716 = vmatmul.mubr.f32.gmra.mxu0 %v2715
    %v2717 = vpop.f32.mrf.mxu0
    %v2718 = vadd.f32 %v2617, %v2717
    %v2719 = vpop.f32.mrf.mxu0
    %2720 = vmatprep.mubr.f32.mxu0 0.0
    %v2721 = vand.u32 %v2539, 4294901760
    %2722 = vmatmul.mubr.f32.gmra.mxu0 %v2721
    %v2723 = vpop.f32.mrf.mxu0
    %v2724 = vadd.f32 %v2627, %v2723
    %v2725 = vpop.f32.mrf.mxu0
    %2726 = vdwg.mxu0
    %2727 = vmatprep.subr.mxu0 0.0
    %2728 = vmatpush1.msra.mxu0 0.0
    %2729 = vmatprep.subr.mxu0 0.0
    %2730 = vmatpush1.msra.mxu0 0.0
    %2731 = vmatprep.subr.mxu0 0.0
    %2732 = vmatpush1.msra.mxu0 0.0
    %2733 = vmatprep.subr.mxu0 0.0
    %2734 = vmatpush1.msra.mxu0 0.0
    %2735 = vmatprep.subr.mxu0 0.0
    %2736 = vmatpush1.msra.mxu0 0.0
    %2737 = vmatprep.subr.mxu0 0.0
    %2738 = vmatpush1.msra.mxu0 0.0
    %2739 = vmatprep.subr.mxu0 0.0
    %2740 = vmatpush1.msra.mxu0 0.0
    %2741 = vmatprep.subr.mxu0 0.0
    %2742 = vmatpush1.msra.mxu0 0.0
    %2743 = vmatprep.subr.mxu0 0.0
    %2744 = vmatpush1.msra.mxu0 0.0
    %2745 = vmatprep.subr.mxu0 0.0
    %2746 = vmatpush1.msra.mxu0 0.0
    %2747 = vmatprep.subr.mxu0 0.0
    %2748 = vmatpush1.msra.mxu0 0.0
    %2749 = vmatprep.subr.mxu0 0.0
    %2750 = vmatpush1.msra.mxu0 0.0
    %2751 = vmatprep.subr.mxu0 0.0
    %v2752 = vand.u32 %v154, 4294901760
    %v2753 = vsub.f32 %v154, %v2752
    %2754 = vmatpush1.msra.mxu0 %v2753
    %2755 = vmatprep.subr.mxu0 0.0
    %v2756 = vand.u32 %v153, 4294901760
    %v2757 = vsub.f32 %v153, %v2756
    %2758 = vmatpush1.msra.mxu0 %v2757
    %2759 = vmatprep.subr.mxu0 0.0
    %v2760 = vand.u32 %v152, 4294901760
    %v2761 = vsub.f32 %v152, %v2760
    %2762 = vmatpush1.msra.mxu0 %v2761
    %2763 = vmatprep.subr.mxu0 0.0
    %v2764 = vand.u32 %v151, 4294901760
    %v2765 = vsub.f32 %v151, %v2764
    %2766 = vmatpush1.msra.mxu0 %v2765
    %2767 = vmatprep.subr.mxu0 0.0
    %2768 = vmatpush2.msra.mxu0 0.0
    %2769 = vmatprep.subr.mxu0 0.0
    %2770 = vmatpush2.msra.mxu0 0.0
    %2771 = vmatprep.subr.mxu0 0.0
    %2772 = vmatpush2.msra.mxu0 0.0
    %2773 = vmatprep.subr.mxu0 0.0
    %2774 = vmatpush2.msra.mxu0 0.0
    %2775 = vmatprep.subr.mxu0 0.0
    %2776 = vmatpush2.msra.mxu0 0.0
    %2777 = vmatprep.subr.mxu0 0.0
    %2778 = vmatpush2.msra.mxu0 0.0
    %2779 = vmatprep.subr.mxu0 0.0
    %2780 = vmatpush2.msra.mxu0 0.0
    %2781 = vmatprep.subr.mxu0 0.0
    %2782 = vmatpush2.msra.mxu0 0.0
    %2783 = vmatprep.subr.mxu0 0.0
    %2784 = vmatpush2.msra.mxu0 0.0
    %2785 = vmatprep.subr.mxu0 0.0
    %2786 = vmatpush2.msra.mxu0 0.0
    %2787 = vmatprep.subr.mxu0 0.0
    %2788 = vmatpush2.msra.mxu0 0.0
    %2789 = vmatprep.subr.mxu0 0.0
    %2790 = vmatpush2.msra.mxu0 0.0
    %2791 = vmatprep.subr.mxu0 0.0
    %2792 = vmatpush2.msra.mxu0 0.0
    %2793 = vmatprep.subr.mxu0 0.0
    %2794 = vmatpush2.msra.mxu0 0.0
    %2795 = vmatprep.subr.mxu0 0.0
    %2796 = vmatpush2.msra.mxu0 0.0
    %2797 = vmatprep.subr.mxu0 0.0
    %2798 = vmatpush2.msra.mxu0 0.0
    %2799 = vmatprep.mubr.f32.mxu0 0.0
    %v2800 = vand.u32 %v2536, 4294901760
    %v2801 = vsub.f32 %v2536, %v2800
    %2802 = vmatmul.mubr.f32.gmra.mxu0 %v2801
    %v2803 = vpop.f32.mrf.mxu0
    %v2804 = vadd.f32 %v2718, %v2803
    %v2805 = vpop.f32.mrf.mxu0
    %2806 = vmatprep.mubr.f32.mxu0 0.0
    %v2807 = vand.u32 %v2539, 4294901760
    %v2808 = vsub.f32 %v2539, %v2807
    %2809 = vmatmul.mubr.f32.gmra.mxu0 %v2808
    %v2810 = vpop.f32.mrf.mxu0
    %v2811 = vadd.f32 %v2724, %v2810
    %v2812 = vpop.f32.mrf.mxu0
    %2813 = vdwg.mxu0
    %2814 = vmatprep.subr.mxu0 0.0
    %2815 = vmatpush1.msra.mxu0 0.0
    %2816 = vmatprep.subr.mxu0 0.0
    %2817 = vmatpush1.msra.mxu0 0.0
    %2818 = vmatprep.subr.mxu0 0.0
    %2819 = vmatpush1.msra.mxu0 0.0
    %2820 = vmatprep.subr.mxu0 0.0
    %2821 = vmatpush1.msra.mxu0 0.0
    %2822 = vmatprep.subr.mxu0 0.0
    %2823 = vmatpush1.msra.mxu0 0.0
    %2824 = vmatprep.subr.mxu0 0.0
    %2825 = vmatpush1.msra.mxu0 0.0
    %2826 = vmatprep.subr.mxu0 0.0
    %2827 = vmatpush1.msra.mxu0 0.0
    %2828 = vmatprep.subr.mxu0 0.0
    %2829 = vmatpush1.msra.mxu0 0.0
    %2830 = vmatprep.subr.mxu0 0.0
    %2831 = vmatpush1.msra.mxu0 0.0
    %2832 = vmatprep.subr.mxu0 0.0
    %2833 = vmatpush1.msra.mxu0 0.0
    %2834 = vmatprep.subr.mxu0 0.0
    %2835 = vmatpush1.msra.mxu0 0.0
    %2836 = vmatprep.subr.mxu0 0.0
    %2837 = vmatpush1.msra.mxu0 0.0
    %2838 = vmatprep.subr.mxu0 0.0
    %v2839 = vand.u32 %v154, 4294901760
    %2840 = vmatpush1.msra.mxu0 %v2839
    %2841 = vmatprep.subr.mxu0 0.0
    %v2842 = vand.u32 %v153, 4294901760
    %2843 = vmatpush1.msra.mxu0 %v2842
    %2844 = vmatprep.subr.mxu0 0.0
    %v2845 = vand.u32 %v152, 4294901760
    %2846 = vmatpush1.msra.mxu0 %v2845
    %2847 = vmatprep.subr.mxu0 0.0
    %v2848 = vand.u32 %v151, 4294901760
    %2849 = vmatpush1.msra.mxu0 %v2848
    %2850 = vmatprep.subr.mxu0 0.0
    %2851 = vmatpush2.msra.mxu0 0.0
    %2852 = vmatprep.subr.mxu0 0.0
    %2853 = vmatpush2.msra.mxu0 0.0
    %2854 = vmatprep.subr.mxu0 0.0
    %2855 = vmatpush2.msra.mxu0 0.0
    %2856 = vmatprep.subr.mxu0 0.0
    %2857 = vmatpush2.msra.mxu0 0.0
    %2858 = vmatprep.subr.mxu0 0.0
    %2859 = vmatpush2.msra.mxu0 0.0
    %2860 = vmatprep.subr.mxu0 0.0
    %2861 = vmatpush2.msra.mxu0 0.0
    %2862 = vmatprep.subr.mxu0 0.0
    %2863 = vmatpush2.msra.mxu0 0.0
    %2864 = vmatprep.subr.mxu0 0.0
    %2865 = vmatpush2.msra.mxu0 0.0
    %2866 = vmatprep.subr.mxu0 0.0
    %2867 = vmatpush2.msra.mxu0 0.0
    %2868 = vmatprep.subr.mxu0 0.0
    %2869 = vmatpush2.msra.mxu0 0.0
    %2870 = vmatprep.subr.mxu0 0.0
    %2871 = vmatpush2.msra.mxu0 0.0
    %2872 = vmatprep.subr.mxu0 0.0
    %2873 = vmatpush2.msra.mxu0 0.0
    %2874 = vmatprep.subr.mxu0 0.0
    %2875 = vmatpush2.msra.mxu0 0.0
    %2876 = vmatprep.subr.mxu0 0.0
    %2877 = vmatpush2.msra.mxu0 0.0
    %2878 = vmatprep.subr.mxu0 0.0
    %2879 = vmatpush2.msra.mxu0 0.0
    %2880 = vmatprep.subr.mxu0 0.0
    %2881 = vmatpush2.msra.mxu0 0.0
    %2882 = vmatprep.mubr.f32.mxu0 0.0
    %v2883 = vand.u32 %v2536, 4294901760
    %v2884 = vsub.f32 %v2536, %v2883
    %v2885 = vand.u32 %v2884, 4294901760
    %2886 = vmatmul.mubr.f32.gmra.mxu0 %v2885
    %v2887 = vpop.f32.mrf.mxu0
    %v2888 = vadd.f32 %v2804, %v2887
    %v2889 = vpop.f32.mrf.mxu0
    %2890 = vmatprep.mubr.f32.mxu0 0.0
    %v2891 = vand.u32 %v2539, 4294901760
    %v2892 = vsub.f32 %v2539, %v2891
    %v2893 = vand.u32 %v2892, 4294901760
    %2894 = vmatmul.mubr.f32.gmra.mxu0 %v2893
    %v2895 = vpop.f32.mrf.mxu0
    %v2896 = vadd.f32 %v2811, %v2895
    %v2897 = vpop.f32.mrf.mxu0
    %2898 = vdwg.mxu0
    %2899 = vmatprep.subr.mxu0 0.0
    %2900 = vmatpush1.msra.mxu0 0.0
    %2901 = vmatprep.subr.mxu0 0.0
    %2902 = vmatpush1.msra.mxu0 0.0
    %2903 = vmatprep.subr.mxu0 0.0
    %2904 = vmatpush1.msra.mxu0 0.0
    %2905 = vmatprep.subr.mxu0 0.0
    %2906 = vmatpush1.msra.mxu0 0.0
    %2907 = vmatprep.subr.mxu0 0.0
    %2908 = vmatpush1.msra.mxu0 0.0
    %2909 = vmatprep.subr.mxu0 0.0
    %2910 = vmatpush1.msra.mxu0 0.0
    %2911 = vmatprep.subr.mxu0 0.0
    %2912 = vmatpush1.msra.mxu0 0.0
    %2913 = vmatprep.subr.mxu0 0.0
    %2914 = vmatpush1.msra.mxu0 0.0
    %2915 = vmatprep.subr.mxu0 0.0
    %2916 = vmatpush1.msra.mxu0 0.0
    %2917 = vmatprep.subr.mxu0 0.0
    %2918 = vmatpush1.msra.mxu0 0.0
    %2919 = vmatprep.subr.mxu0 0.0
    %2920 = vmatpush1.msra.mxu0 0.0
    %2921 = vmatprep.subr.mxu0 0.0
    %2922 = vmatpush1.msra.mxu0 0.0
    %2923 = vmatprep.subr.mxu0 0.0
    %v2924 = vand.u32 %v154, 4294901760
    %v2925 = vsub.f32 %v154, %v2924
    %v2926 = vand.u32 %v2925, 4294901760
    %2927 = vmatpush1.msra.mxu0 %v2926
    %2928 = vmatprep.subr.mxu0 0.0
    %v2929 = vand.u32 %v153, 4294901760
    %v2930 = vsub.f32 %v153, %v2929
    %v2931 = vand.u32 %v2930, 4294901760
    %2932 = vmatpush1.msra.mxu0 %v2931
    %2933 = vmatprep.subr.mxu0 0.0
    %v2934 = vand.u32 %v152, 4294901760
    %v2935 = vsub.f32 %v152, %v2934
    %v2936 = vand.u32 %v2935, 4294901760
    %2937 = vmatpush1.msra.mxu0 %v2936
    %2938 = vmatprep.subr.mxu0 0.0
    %v2939 = vand.u32 %v151, 4294901760
    %v2940 = vsub.f32 %v151, %v2939
    %v2941 = vand.u32 %v2940, 4294901760
    %2942 = vmatpush1.msra.mxu0 %v2941
    %2943 = vmatprep.subr.mxu0 0.0
    %2944 = vmatpush2.msra.mxu0 0.0
    %2945 = vmatprep.subr.mxu0 0.0
    %2946 = vmatpush2.msra.mxu0 0.0
    %2947 = vmatprep.subr.mxu0 0.0
    %2948 = vmatpush2.msra.mxu0 0.0
    %2949 = vmatprep.subr.mxu0 0.0
    %2950 = vmatpush2.msra.mxu0 0.0
    %2951 = vmatprep.subr.mxu0 0.0
    %2952 = vmatpush2.msra.mxu0 0.0
    %2953 = vmatprep.subr.mxu0 0.0
    %2954 = vmatpush2.msra.mxu0 0.0
    %2955 = vmatprep.subr.mxu0 0.0
    %2956 = vmatpush2.msra.mxu0 0.0
    %2957 = vmatprep.subr.mxu0 0.0
    %2958 = vmatpush2.msra.mxu0 0.0
    %2959 = vmatprep.subr.mxu0 0.0
    %2960 = vmatpush2.msra.mxu0 0.0
    %2961 = vmatprep.subr.mxu0 0.0
    %2962 = vmatpush2.msra.mxu0 0.0
    %2963 = vmatprep.subr.mxu0 0.0
    %2964 = vmatpush2.msra.mxu0 0.0
    %2965 = vmatprep.subr.mxu0 0.0
    %2966 = vmatpush2.msra.mxu0 0.0
    %2967 = vmatprep.subr.mxu0 0.0
    %2968 = vmatpush2.msra.mxu0 0.0
    %2969 = vmatprep.subr.mxu0 0.0
    %2970 = vmatpush2.msra.mxu0 0.0
    %2971 = vmatprep.subr.mxu0 0.0
    %2972 = vmatpush2.msra.mxu0 0.0
    %2973 = vmatprep.subr.mxu0 0.0
    %2974 = vmatpush2.msra.mxu0 0.0
    %2975 = vmatprep.mubr.f32.mxu0 0.0
    %v2976 = vand.u32 %v2536, 4294901760
    %2977 = vmatmul.mubr.f32.gmra.mxu0 %v2976
    %v2978 = vpop.f32.mrf.mxu0
    %v2979 = vadd.f32 %v2888, %v2978
    %v2980 = vpop.f32.mrf.mxu0
    %2981 = vmatprep.mubr.f32.mxu0 0.0
    %v2982 = vand.u32 %v2539, 4294901760
    %2983 = vmatmul.mubr.f32.gmra.mxu0 %v2982
    %v2984 = vpop.f32.mrf.mxu0
    %v2985 = vadd.f32 %v2896, %v2984
    %v2986 = vpop.f32.mrf.mxu0
    %2987 = vdwg.mxu0
    %2988 = vmatprep.subr.mxu0 0.0
    %2989 = vmatpush1.msra.mxu0 0.0
    %2990 = vmatprep.subr.mxu0 0.0
    %2991 = vmatpush1.msra.mxu0 0.0
    %2992 = vmatprep.subr.mxu0 0.0
    %2993 = vmatpush1.msra.mxu0 0.0
    %2994 = vmatprep.subr.mxu0 0.0
    %2995 = vmatpush1.msra.mxu0 0.0
    %2996 = vmatprep.subr.mxu0 0.0
    %2997 = vmatpush1.msra.mxu0 0.0
    %2998 = vmatprep.subr.mxu0 0.0
    %2999 = vmatpush1.msra.mxu0 0.0
    %3000 = vmatprep.subr.mxu0 0.0
    %3001 = vmatpush1.msra.mxu0 0.0
    %3002 = vmatprep.subr.mxu0 0.0
    %3003 = vmatpush1.msra.mxu0 0.0
    %3004 = vmatprep.subr.mxu0 0.0
    %3005 = vmatpush1.msra.mxu0 0.0
    %3006 = vmatprep.subr.mxu0 0.0
    %3007 = vmatpush1.msra.mxu0 0.0
    %3008 = vmatprep.subr.mxu0 0.0
    %3009 = vmatpush1.msra.mxu0 0.0
    %3010 = vmatprep.subr.mxu0 0.0
    %3011 = vmatpush1.msra.mxu0 0.0
    %3012 = vmatprep.subr.mxu0 0.0
    %v3013 = vand.u32 %v154, 4294901760
    %3014 = vmatpush1.msra.mxu0 %v3013
    %3015 = vmatprep.subr.mxu0 0.0
    %v3016 = vand.u32 %v153, 4294901760
    %3017 = vmatpush1.msra.mxu0 %v3016
    %3018 = vmatprep.subr.mxu0 0.0
    %v3019 = vand.u32 %v152, 4294901760
    %3020 = vmatpush1.msra.mxu0 %v3019
    %3021 = vmatprep.subr.mxu0 0.0
    %v3022 = vand.u32 %v151, 4294901760
    %3023 = vmatpush1.msra.mxu0 %v3022
    %3024 = vmatprep.subr.mxu0 0.0
    %3025 = vmatpush2.msra.mxu0 0.0
    %3026 = vmatprep.subr.mxu0 0.0
    %3027 = vmatpush2.msra.mxu0 0.0
    %3028 = vmatprep.subr.mxu0 0.0
    %3029 = vmatpush2.msra.mxu0 0.0
    %3030 = vmatprep.subr.mxu0 0.0
    %3031 = vmatpush2.msra.mxu0 0.0
    %3032 = vmatprep.subr.mxu0 0.0
    %3033 = vmatpush2.msra.mxu0 0.0
    %3034 = vmatprep.subr.mxu0 0.0
    %3035 = vmatpush2.msra.mxu0 0.0
    %3036 = vmatprep.subr.mxu0 0.0
    %3037 = vmatpush2.msra.mxu0 0.0
    %3038 = vmatprep.subr.mxu0 0.0
    %3039 = vmatpush2.msra.mxu0 0.0
    %3040 = vmatprep.subr.mxu0 0.0
    %3041 = vmatpush2.msra.mxu0 0.0
    %3042 = vmatprep.subr.mxu0 0.0
    %3043 = vmatpush2.msra.mxu0 0.0
    %3044 = vmatprep.subr.mxu0 0.0
    %3045 = vmatpush2.msra.mxu0 0.0
    %3046 = vmatprep.subr.mxu0 0.0
    %3047 = vmatpush2.msra.mxu0 0.0
    %3048 = vmatprep.subr.mxu0 0.0
    %3049 = vmatpush2.msra.mxu0 0.0
    %3050 = vmatprep.subr.mxu0 0.0
    %3051 = vmatpush2.msra.mxu0 0.0
    %3052 = vmatprep.subr.mxu0 0.0
    %3053 = vmatpush2.msra.mxu0 0.0
    %3054 = vmatprep.subr.mxu0 0.0
    %3055 = vmatpush2.msra.mxu0 0.0
    %3056 = vmatprep.mubr.f32.mxu0 0.0
    %v3057 = vand.u32 %v2536, 4294901760
    %3058 = vmatmul.mubr.f32.gmra.mxu0 %v3057
    %v3059 = vpop.f32.mrf.mxu0
    %v3060 = vadd.f32 %v2979, %v3059
    %v3061 = vpop.f32.mrf.mxu0
    %3062 = vmatprep.mubr.f32.mxu0 0.0
    %v3063 = vand.u32 %v2539, 4294901760
    %3064 = vmatmul.mubr.f32.gmra.mxu0 %v3063
    %v3065 = vpop.f32.mrf.mxu0
    %v3066 = vadd.f32 %v2985, %v3065
    %v3067 = vpop.f32.mrf.mxu0
    %3068 = vdwg.mxu0
    %vm3069 = vcmask 130048
    %v3071 = vsel %vm3069, %v289, 0
    %v3074 = vsel %vm3069, %v290, 0
    %v3077 = vsel %vm3069, %v291, 0
    %v3080 = vsel %vm3069, %v292, 0
    %v3083 = vsel %vm3069, %v293, 0
    %v3086 = vsel %vm3069, %v294, 0
    %v3089 = vsel %vm3069, %v295, 0
    %v3092 = vsel %vm3069, %v296, 0
    %v3095 = vsel %vm3069, %v297, 0
    %v3098 = vsel %vm3069, %v298, 0
    %v3101 = vsel %vm3069, %v299, 0
    %v3104 = vsel %vm3069, %v300, 0
    %v3107 = vsel %vm3069, %v301, 0
    %v3110 = vsel %vm3069, %v302, 0
    %v3113 = vsel %vm3069, %v303, 0
    %v3116 = vsel %vm3069, %v304, 0
    %3118 = vmatprep.subr.mxu0 0.0
    %3119 = vmatpush1.msra.mxu0 0.0
    %3120 = vmatprep.subr.mxu0 0.0
    %3121 = vmatpush1.msra.mxu0 0.0
    %3122 = vmatprep.subr.mxu0 0.0
    %3123 = vmatpush1.msra.mxu0 0.0
    %3124 = vmatprep.subr.mxu0 0.0
    %3125 = vmatpush1.msra.mxu0 0.0
    %3126 = vmatprep.subr.mxu0 0.0
    %3127 = vmatpush1.msra.mxu0 0.0
    %3128 = vmatprep.subr.mxu0 0.0
    %3129 = vmatpush1.msra.mxu0 0.0
    %3130 = vmatprep.subr.mxu0 0.0
    %3131 = vmatpush1.msra.mxu0 0.0
    %3132 = vmatprep.subr.mxu0 0.0
    %3133 = vmatpush1.msra.mxu0 0.0
    %3134 = vmatprep.subr.mxu0 0.0
    %3135 = vmatpush1.msra.mxu0 0.0
    %3136 = vmatprep.subr.mxu0 0.0
    %3137 = vmatpush1.msra.mxu0 0.0
    %3138 = vmatprep.subr.mxu0 0.0
    %3139 = vmatpush1.msra.mxu0 0.0
    %3140 = vmatprep.subr.mxu0 0.0
    %3141 = vmatpush1.msra.mxu0 0.0
    %3142 = vmatprep.subr.mxu0 0.0
    %3143 = vmatpush1.msra.mxu0 0.0
    %3144 = vmatprep.subr.mxu0 0.0
    %3145 = vmatpush1.msra.mxu0 0.0
    %3146 = vmatprep.subr.mxu0 0.0
    %v3147 = vand.u32 %v2532, 4294901760
    %3148 = vmatpush1.msra.mxu0 %v3147
    %3149 = vmatprep.subr.mxu0 0.0
    %v3150 = vand.u32 %v2526, 4294901760
    %3151 = vmatpush1.msra.mxu0 %v3150
    %3152 = vmatprep.subr.mxu0 0.0
    %3153 = vmatpush2.msra.mxu0 0.0
    %3154 = vmatprep.subr.mxu0 0.0
    %3155 = vmatpush2.msra.mxu0 0.0
    %3156 = vmatprep.subr.mxu0 0.0
    %3157 = vmatpush2.msra.mxu0 0.0
    %3158 = vmatprep.subr.mxu0 0.0
    %3159 = vmatpush2.msra.mxu0 0.0
    %3160 = vmatprep.subr.mxu0 0.0
    %3161 = vmatpush2.msra.mxu0 0.0
    %3162 = vmatprep.subr.mxu0 0.0
    %3163 = vmatpush2.msra.mxu0 0.0
    %3164 = vmatprep.subr.mxu0 0.0
    %3165 = vmatpush2.msra.mxu0 0.0
    %3166 = vmatprep.subr.mxu0 0.0
    %3167 = vmatpush2.msra.mxu0 0.0
    %3168 = vmatprep.subr.mxu0 0.0
    %3169 = vmatpush2.msra.mxu0 0.0
    %3170 = vmatprep.subr.mxu0 0.0
    %3171 = vmatpush2.msra.mxu0 0.0
    %3172 = vmatprep.subr.mxu0 0.0
    %3173 = vmatpush2.msra.mxu0 0.0
    %3174 = vmatprep.subr.mxu0 0.0
    %3175 = vmatpush2.msra.mxu0 0.0
    %3176 = vmatprep.subr.mxu0 0.0
    %3177 = vmatpush2.msra.mxu0 0.0
    %3178 = vmatprep.subr.mxu0 0.0
    %3179 = vmatpush2.msra.mxu0 0.0
    %3180 = vmatprep.subr.mxu0 0.0
    %3181 = vmatpush2.msra.mxu0 0.0
    %3182 = vmatprep.subr.mxu0 0.0
    %3183 = vmatpush2.msra.mxu0 0.0
    %3184 = vmatprep.mubr.f32.mxu0 0.0
    %v3185 = vand.u32 %v3071, 4294901760
    %v3186 = vsub.f32 %v3071, %v3185
    %v3187 = vand.u32 %v3186, 4294901760
    %v3188 = vsub.f32 %v3186, %v3187
    %v3189 = vand.u32 %v3188, 4294901760
    %3190 = vmatmul.mubr.f32.gmra.mxu0 %v3189
    %v3191 = vpop.f32.mrf.mxu0
    %v3192 = vadd.f32 0.0, %v3191
    %v3193 = vpop.f32.mrf.mxu0
    %3194 = vmatprep.mubr.f32.mxu0 0.0
    %v3195 = vand.u32 %v3074, 4294901760
    %v3196 = vsub.f32 %v3074, %v3195
    %v3197 = vand.u32 %v3196, 4294901760
    %v3198 = vsub.f32 %v3196, %v3197
    %v3199 = vand.u32 %v3198, 4294901760
    %3200 = vmatmul.mubr.f32.gmra.mxu0 %v3199
    %v3201 = vpop.f32.mrf.mxu0
    %v3202 = vadd.f32 0.0, %v3201
    %v3203 = vpop.f32.mrf.mxu0
    %3204 = vmatprep.mubr.f32.mxu0 0.0
    %v3205 = vand.u32 %v3077, 4294901760
    %v3206 = vsub.f32 %v3077, %v3205
    %v3207 = vand.u32 %v3206, 4294901760
    %v3208 = vsub.f32 %v3206, %v3207
    %v3209 = vand.u32 %v3208, 4294901760
    %3210 = vmatmul.mubr.f32.gmra.mxu0 %v3209
    %v3211 = vpop.f32.mrf.mxu0
    %v3212 = vadd.f32 0.0, %v3211
    %v3213 = vpop.f32.mrf.mxu0
    %3214 = vmatprep.mubr.f32.mxu0 0.0
    %v3215 = vand.u32 %v3080, 4294901760
    %v3216 = vsub.f32 %v3080, %v3215
    %v3217 = vand.u32 %v3216, 4294901760
    %v3218 = vsub.f32 %v3216, %v3217
    %v3219 = vand.u32 %v3218, 4294901760
    %3220 = vmatmul.mubr.f32.gmra.mxu0 %v3219
    %v3221 = vpop.f32.mrf.mxu0
    %v3222 = vadd.f32 0.0, %v3221
    %v3223 = vpop.f32.mrf.mxu0
    %3224 = vmatprep.mubr.f32.mxu0 0.0
    %v3225 = vand.u32 %v3083, 4294901760
    %v3226 = vsub.f32 %v3083, %v3225
    %v3227 = vand.u32 %v3226, 4294901760
    %v3228 = vsub.f32 %v3226, %v3227
    %v3229 = vand.u32 %v3228, 4294901760
    %3230 = vmatmul.mubr.f32.gmra.mxu0 %v3229
    %v3231 = vpop.f32.mrf.mxu0
    %v3232 = vadd.f32 0.0, %v3231
    %v3233 = vpop.f32.mrf.mxu0
    %3234 = vmatprep.mubr.f32.mxu0 0.0
    %v3235 = vand.u32 %v3086, 4294901760
    %v3236 = vsub.f32 %v3086, %v3235
    %v3237 = vand.u32 %v3236, 4294901760
    %v3238 = vsub.f32 %v3236, %v3237
    %v3239 = vand.u32 %v3238, 4294901760
    %3240 = vmatmul.mubr.f32.gmra.mxu0 %v3239
    %v3241 = vpop.f32.mrf.mxu0
    %v3242 = vadd.f32 0.0, %v3241
    %v3243 = vpop.f32.mrf.mxu0
    %3244 = vmatprep.mubr.f32.mxu0 0.0
    %v3245 = vand.u32 %v3089, 4294901760
    %v3246 = vsub.f32 %v3089, %v3245
    %v3247 = vand.u32 %v3246, 4294901760
    %v3248 = vsub.f32 %v3246, %v3247
    %v3249 = vand.u32 %v3248, 4294901760
    %3250 = vmatmul.mubr.f32.gmra.mxu0 %v3249
    %v3251 = vpop.f32.mrf.mxu0
    %v3252 = vadd.f32 0.0, %v3251
    %v3253 = vpop.f32.mrf.mxu0
    %3254 = vmatprep.mubr.f32.mxu0 0.0
    %v3255 = vand.u32 %v3092, 4294901760
    %v3256 = vsub.f32 %v3092, %v3255
    %v3257 = vand.u32 %v3256, 4294901760
    %v3258 = vsub.f32 %v3256, %v3257
    %v3259 = vand.u32 %v3258, 4294901760
    %3260 = vmatmul.mubr.f32.gmra.mxu0 %v3259
    %v3261 = vpop.f32.mrf.mxu0
    %v3262 = vadd.f32 0.0, %v3261
    %v3263 = vpop.f32.mrf.mxu0
    %3264 = vmatprep.mubr.f32.mxu0 0.0
    %v3265 = vand.u32 %v3095, 4294901760
    %v3266 = vsub.f32 %v3095, %v3265
    %v3267 = vand.u32 %v3266, 4294901760
    %v3268 = vsub.f32 %v3266, %v3267
    %v3269 = vand.u32 %v3268, 4294901760
    %3270 = vmatmul.mubr.f32.gmra.mxu0 %v3269
    %v3271 = vpop.f32.mrf.mxu0
    %v3272 = vadd.f32 0.0, %v3271
    %v3273 = vpop.f32.mrf.mxu0
    %3274 = vmatprep.mubr.f32.mxu0 0.0
    %v3275 = vand.u32 %v3098, 4294901760
    %v3276 = vsub.f32 %v3098, %v3275
    %v3277 = vand.u32 %v3276, 4294901760
    %v3278 = vsub.f32 %v3276, %v3277
    %v3279 = vand.u32 %v3278, 4294901760
    %3280 = vmatmul.mubr.f32.gmra.mxu0 %v3279
    %v3281 = vpop.f32.mrf.mxu0
    %v3282 = vadd.f32 0.0, %v3281
    %v3283 = vpop.f32.mrf.mxu0
    %3284 = vmatprep.mubr.f32.mxu0 0.0
    %v3285 = vand.u32 %v3101, 4294901760
    %v3286 = vsub.f32 %v3101, %v3285
    %v3287 = vand.u32 %v3286, 4294901760
    %v3288 = vsub.f32 %v3286, %v3287
    %v3289 = vand.u32 %v3288, 4294901760
    %3290 = vmatmul.mubr.f32.gmra.mxu0 %v3289
    %v3291 = vpop.f32.mrf.mxu0
    %v3292 = vadd.f32 0.0, %v3291
    %v3293 = vpop.f32.mrf.mxu0
    %3294 = vmatprep.mubr.f32.mxu0 0.0
    %v3295 = vand.u32 %v3104, 4294901760
    %v3296 = vsub.f32 %v3104, %v3295
    %v3297 = vand.u32 %v3296, 4294901760
    %v3298 = vsub.f32 %v3296, %v3297
    %v3299 = vand.u32 %v3298, 4294901760
    %3300 = vmatmul.mubr.f32.gmra.mxu0 %v3299
    %v3301 = vpop.f32.mrf.mxu0
    %v3302 = vadd.f32 0.0, %v3301
    %v3303 = vpop.f32.mrf.mxu0
    %3304 = vmatprep.mubr.f32.mxu0 0.0
    %v3305 = vand.u32 %v3107, 4294901760
    %v3306 = vsub.f32 %v3107, %v3305
    %v3307 = vand.u32 %v3306, 4294901760
    %v3308 = vsub.f32 %v3306, %v3307
    %v3309 = vand.u32 %v3308, 4294901760
    %3310 = vmatmul.mubr.f32.gmra.mxu0 %v3309
    %v3311 = vpop.f32.mrf.mxu0
    %v3312 = vadd.f32 0.0, %v3311
    %v3313 = vpop.f32.mrf.mxu0
    %3314 = vmatprep.mubr.f32.mxu0 0.0
    %v3315 = vand.u32 %v3110, 4294901760
    %v3316 = vsub.f32 %v3110, %v3315
    %v3317 = vand.u32 %v3316, 4294901760
    %v3318 = vsub.f32 %v3316, %v3317
    %v3319 = vand.u32 %v3318, 4294901760
    %3320 = vmatmul.mubr.f32.gmra.mxu0 %v3319
    %v3321 = vpop.f32.mrf.mxu0
    %v3322 = vadd.f32 0.0, %v3321
    %v3323 = vpop.f32.mrf.mxu0
    %3324 = vmatprep.mubr.f32.mxu0 0.0
    %v3325 = vand.u32 %v3113, 4294901760
    %v3326 = vsub.f32 %v3113, %v3325
    %v3327 = vand.u32 %v3326, 4294901760
    %v3328 = vsub.f32 %v3326, %v3327
    %v3329 = vand.u32 %v3328, 4294901760
    %3330 = vmatmul.mubr.f32.gmra.mxu0 %v3329
    %v3331 = vpop.f32.mrf.mxu0
    %v3332 = vadd.f32 0.0, %v3331
    %v3333 = vpop.f32.mrf.mxu0
    %3334 = vmatprep.mubr.f32.mxu0 0.0
    %v3335 = vand.u32 %v3116, 4294901760
    %v3336 = vsub.f32 %v3116, %v3335
    %v3337 = vand.u32 %v3336, 4294901760
    %v3338 = vsub.f32 %v3336, %v3337
    %v3339 = vand.u32 %v3338, 4294901760
    %3340 = vmatmul.mubr.f32.gmra.mxu0 %v3339
    %v3341 = vpop.f32.mrf.mxu0
    %v3342 = vadd.f32 0.0, %v3341
    %v3343 = vpop.f32.mrf.mxu0
    %3344 = vdwg.mxu0
    %3345 = vmatprep.subr.mxu0 0.0
    %3346 = vmatpush1.msra.mxu0 0.0
    %3347 = vmatprep.subr.mxu0 0.0
    %3348 = vmatpush1.msra.mxu0 0.0
    %3349 = vmatprep.subr.mxu0 0.0
    %3350 = vmatpush1.msra.mxu0 0.0
    %3351 = vmatprep.subr.mxu0 0.0
    %3352 = vmatpush1.msra.mxu0 0.0
    %3353 = vmatprep.subr.mxu0 0.0
    %3354 = vmatpush1.msra.mxu0 0.0
    %3355 = vmatprep.subr.mxu0 0.0
    %3356 = vmatpush1.msra.mxu0 0.0
    %3357 = vmatprep.subr.mxu0 0.0
    %3358 = vmatpush1.msra.mxu0 0.0
    %3359 = vmatprep.subr.mxu0 0.0
    %3360 = vmatpush1.msra.mxu0 0.0
    %3361 = vmatprep.subr.mxu0 0.0
    %3362 = vmatpush1.msra.mxu0 0.0
    %3363 = vmatprep.subr.mxu0 0.0
    %3364 = vmatpush1.msra.mxu0 0.0
    %3365 = vmatprep.subr.mxu0 0.0
    %3366 = vmatpush1.msra.mxu0 0.0
    %3367 = vmatprep.subr.mxu0 0.0
    %3368 = vmatpush1.msra.mxu0 0.0
    %3369 = vmatprep.subr.mxu0 0.0
    %3370 = vmatpush1.msra.mxu0 0.0
    %3371 = vmatprep.subr.mxu0 0.0
    %3372 = vmatpush1.msra.mxu0 0.0
    %3373 = vmatprep.subr.mxu0 0.0
    %v3374 = vand.u32 %v2532, 4294901760
    %v3375 = vsub.f32 %v2532, %v3374
    %v3376 = vand.u32 %v3375, 4294901760
    %v3377 = vsub.f32 %v3375, %v3376
    %v3378 = vand.u32 %v3377, 4294901760
    %3379 = vmatpush1.msra.mxu0 %v3378
    %3380 = vmatprep.subr.mxu0 0.0
    %v3381 = vand.u32 %v2526, 4294901760
    %v3382 = vsub.f32 %v2526, %v3381
    %v3383 = vand.u32 %v3382, 4294901760
    %v3384 = vsub.f32 %v3382, %v3383
    %v3385 = vand.u32 %v3384, 4294901760
    %3386 = vmatpush1.msra.mxu0 %v3385
    %3387 = vmatprep.subr.mxu0 0.0
    %3388 = vmatpush2.msra.mxu0 0.0
    %3389 = vmatprep.subr.mxu0 0.0
    %3390 = vmatpush2.msra.mxu0 0.0
    %3391 = vmatprep.subr.mxu0 0.0
    %3392 = vmatpush2.msra.mxu0 0.0
    %3393 = vmatprep.subr.mxu0 0.0
    %3394 = vmatpush2.msra.mxu0 0.0
    %3395 = vmatprep.subr.mxu0 0.0
    %3396 = vmatpush2.msra.mxu0 0.0
    %3397 = vmatprep.subr.mxu0 0.0
    %3398 = vmatpush2.msra.mxu0 0.0
    %3399 = vmatprep.subr.mxu0 0.0
    %3400 = vmatpush2.msra.mxu0 0.0
    %3401 = vmatprep.subr.mxu0 0.0
    %3402 = vmatpush2.msra.mxu0 0.0
    %3403 = vmatprep.subr.mxu0 0.0
    %3404 = vmatpush2.msra.mxu0 0.0
    %3405 = vmatprep.subr.mxu0 0.0
    %3406 = vmatpush2.msra.mxu0 0.0
    %3407 = vmatprep.subr.mxu0 0.0
    %3408 = vmatpush2.msra.mxu0 0.0
    %3409 = vmatprep.subr.mxu0 0.0
    %3410 = vmatpush2.msra.mxu0 0.0
    %3411 = vmatprep.subr.mxu0 0.0
    %3412 = vmatpush2.msra.mxu0 0.0
    %3413 = vmatprep.subr.mxu0 0.0
    %3414 = vmatpush2.msra.mxu0 0.0
    %3415 = vmatprep.subr.mxu0 0.0
    %3416 = vmatpush2.msra.mxu0 0.0
    %3417 = vmatprep.subr.mxu0 0.0
    %3418 = vmatpush2.msra.mxu0 0.0
    %3419 = vmatprep.mubr.f32.mxu0 0.0
    %v3420 = vand.u32 %v3071, 4294901760
    %3421 = vmatmul.mubr.f32.gmra.mxu0 %v3420
    %v3422 = vpop.f32.mrf.mxu0
    %v3423 = vadd.f32 %v3192, %v3422
    %v3424 = vpop.f32.mrf.mxu0
    %3425 = vmatprep.mubr.f32.mxu0 0.0
    %v3426 = vand.u32 %v3074, 4294901760
    %3427 = vmatmul.mubr.f32.gmra.mxu0 %v3426
    %v3428 = vpop.f32.mrf.mxu0
    %v3429 = vadd.f32 %v3202, %v3428
    %v3430 = vpop.f32.mrf.mxu0
    %3431 = vmatprep.mubr.f32.mxu0 0.0
    %v3432 = vand.u32 %v3077, 4294901760
    %3433 = vmatmul.mubr.f32.gmra.mxu0 %v3432
    %v3434 = vpop.f32.mrf.mxu0
    %v3435 = vadd.f32 %v3212, %v3434
    %v3436 = vpop.f32.mrf.mxu0
    %3437 = vmatprep.mubr.f32.mxu0 0.0
    %v3438 = vand.u32 %v3080, 4294901760
    %3439 = vmatmul.mubr.f32.gmra.mxu0 %v3438
    %v3440 = vpop.f32.mrf.mxu0
    %v3441 = vadd.f32 %v3222, %v3440
    %v3442 = vpop.f32.mrf.mxu0
    %3443 = vmatprep.mubr.f32.mxu0 0.0
    %v3444 = vand.u32 %v3083, 4294901760
    %3445 = vmatmul.mubr.f32.gmra.mxu0 %v3444
    %v3446 = vpop.f32.mrf.mxu0
    %v3447 = vadd.f32 %v3232, %v3446
    %v3448 = vpop.f32.mrf.mxu0
    %3449 = vmatprep.mubr.f32.mxu0 0.0
    %v3450 = vand.u32 %v3086, 4294901760
    %3451 = vmatmul.mubr.f32.gmra.mxu0 %v3450
    %v3452 = vpop.f32.mrf.mxu0
    %v3453 = vadd.f32 %v3242, %v3452
    %v3454 = vpop.f32.mrf.mxu0
    %3455 = vmatprep.mubr.f32.mxu0 0.0
    %v3456 = vand.u32 %v3089, 4294901760
    %3457 = vmatmul.mubr.f32.gmra.mxu0 %v3456
    %v3458 = vpop.f32.mrf.mxu0
    %v3459 = vadd.f32 %v3252, %v3458
    %v3460 = vpop.f32.mrf.mxu0
    %3461 = vmatprep.mubr.f32.mxu0 0.0
    %v3462 = vand.u32 %v3092, 4294901760
    %3463 = vmatmul.mubr.f32.gmra.mxu0 %v3462
    %v3464 = vpop.f32.mrf.mxu0
    %v3465 = vadd.f32 %v3262, %v3464
    %v3466 = vpop.f32.mrf.mxu0
    %3467 = vmatprep.mubr.f32.mxu0 0.0
    %v3468 = vand.u32 %v3095, 4294901760
    %3469 = vmatmul.mubr.f32.gmra.mxu0 %v3468
    %v3470 = vpop.f32.mrf.mxu0
    %v3471 = vadd.f32 %v3272, %v3470
    %v3472 = vpop.f32.mrf.mxu0
    %3473 = vmatprep.mubr.f32.mxu0 0.0
    %v3474 = vand.u32 %v3098, 4294901760
    %3475 = vmatmul.mubr.f32.gmra.mxu0 %v3474
    %v3476 = vpop.f32.mrf.mxu0
    %v3477 = vadd.f32 %v3282, %v3476
    %v3478 = vpop.f32.mrf.mxu0
    %3479 = vmatprep.mubr.f32.mxu0 0.0
    %v3480 = vand.u32 %v3101, 4294901760
    %3481 = vmatmul.mubr.f32.gmra.mxu0 %v3480
    %v3482 = vpop.f32.mrf.mxu0
    %v3483 = vadd.f32 %v3292, %v3482
    %v3484 = vpop.f32.mrf.mxu0
    %3485 = vmatprep.mubr.f32.mxu0 0.0
    %v3486 = vand.u32 %v3104, 4294901760
    %3487 = vmatmul.mubr.f32.gmra.mxu0 %v3486
    %v3488 = vpop.f32.mrf.mxu0
    %v3489 = vadd.f32 %v3302, %v3488
    %v3490 = vpop.f32.mrf.mxu0
    %3491 = vmatprep.mubr.f32.mxu0 0.0
    %v3492 = vand.u32 %v3107, 4294901760
    %3493 = vmatmul.mubr.f32.gmra.mxu0 %v3492
    %v3494 = vpop.f32.mrf.mxu0
    %v3495 = vadd.f32 %v3312, %v3494
    %v3496 = vpop.f32.mrf.mxu0
    %3497 = vmatprep.mubr.f32.mxu0 0.0
    %v3498 = vand.u32 %v3110, 4294901760
    %3499 = vmatmul.mubr.f32.gmra.mxu0 %v3498
    %v3500 = vpop.f32.mrf.mxu0
    %v3501 = vadd.f32 %v3322, %v3500
    %v3502 = vpop.f32.mrf.mxu0
    %3503 = vmatprep.mubr.f32.mxu0 0.0
    %v3504 = vand.u32 %v3113, 4294901760
    %3505 = vmatmul.mubr.f32.gmra.mxu0 %v3504
    %v3506 = vpop.f32.mrf.mxu0
    %v3507 = vadd.f32 %v3332, %v3506
    %v3508 = vpop.f32.mrf.mxu0
    %3509 = vmatprep.mubr.f32.mxu0 0.0
    %v3510 = vand.u32 %v3116, 4294901760
    %3511 = vmatmul.mubr.f32.gmra.mxu0 %v3510
    %v3512 = vpop.f32.mrf.mxu0
    %v3513 = vadd.f32 %v3342, %v3512
    %v3514 = vpop.f32.mrf.mxu0
    %3515 = vdwg.mxu0
    %3516 = vmatprep.subr.mxu0 0.0
    %3517 = vmatpush1.msra.mxu0 0.0
    %3518 = vmatprep.subr.mxu0 0.0
    %3519 = vmatpush1.msra.mxu0 0.0
    %3520 = vmatprep.subr.mxu0 0.0
    %3521 = vmatpush1.msra.mxu0 0.0
    %3522 = vmatprep.subr.mxu0 0.0
    %3523 = vmatpush1.msra.mxu0 0.0
    %3524 = vmatprep.subr.mxu0 0.0
    %3525 = vmatpush1.msra.mxu0 0.0
    %3526 = vmatprep.subr.mxu0 0.0
    %3527 = vmatpush1.msra.mxu0 0.0
    %3528 = vmatprep.subr.mxu0 0.0
    %3529 = vmatpush1.msra.mxu0 0.0
    %3530 = vmatprep.subr.mxu0 0.0
    %3531 = vmatpush1.msra.mxu0 0.0
    %3532 = vmatprep.subr.mxu0 0.0
    %3533 = vmatpush1.msra.mxu0 0.0
    %3534 = vmatprep.subr.mxu0 0.0
    %3535 = vmatpush1.msra.mxu0 0.0
    %3536 = vmatprep.subr.mxu0 0.0
    %3537 = vmatpush1.msra.mxu0 0.0
    %3538 = vmatprep.subr.mxu0 0.0
    %3539 = vmatpush1.msra.mxu0 0.0
    %3540 = vmatprep.subr.mxu0 0.0
    %3541 = vmatpush1.msra.mxu0 0.0
    %3542 = vmatprep.subr.mxu0 0.0
    %3543 = vmatpush1.msra.mxu0 0.0
    %3544 = vmatprep.subr.mxu0 0.0
    %v3545 = vand.u32 %v2532, 4294901760
    %v3546 = vsub.f32 %v2532, %v3545
    %3547 = vmatpush1.msra.mxu0 %v3546
    %3548 = vmatprep.subr.mxu0 0.0
    %v3549 = vand.u32 %v2526, 4294901760
    %v3550 = vsub.f32 %v2526, %v3549
    %3551 = vmatpush1.msra.mxu0 %v3550
    %3552 = vmatprep.subr.mxu0 0.0
    %3553 = vmatpush2.msra.mxu0 0.0
    %3554 = vmatprep.subr.mxu0 0.0
    %3555 = vmatpush2.msra.mxu0 0.0
    %3556 = vmatprep.subr.mxu0 0.0
    %3557 = vmatpush2.msra.mxu0 0.0
    %3558 = vmatprep.subr.mxu0 0.0
    %3559 = vmatpush2.msra.mxu0 0.0
    %3560 = vmatprep.subr.mxu0 0.0
    %3561 = vmatpush2.msra.mxu0 0.0
    %3562 = vmatprep.subr.mxu0 0.0
    %3563 = vmatpush2.msra.mxu0 0.0
    %3564 = vmatprep.subr.mxu0 0.0
    %3565 = vmatpush2.msra.mxu0 0.0
    %3566 = vmatprep.subr.mxu0 0.0
    %3567 = vmatpush2.msra.mxu0 0.0
    %3568 = vmatprep.subr.mxu0 0.0
    %3569 = vmatpush2.msra.mxu0 0.0
    %3570 = vmatprep.subr.mxu0 0.0
    %3571 = vmatpush2.msra.mxu0 0.0
    %3572 = vmatprep.subr.mxu0 0.0
    %3573 = vmatpush2.msra.mxu0 0.0
    %3574 = vmatprep.subr.mxu0 0.0
    %3575 = vmatpush2.msra.mxu0 0.0
    %3576 = vmatprep.subr.mxu0 0.0
    %3577 = vmatpush2.msra.mxu0 0.0
    %3578 = vmatprep.subr.mxu0 0.0
    %3579 = vmatpush2.msra.mxu0 0.0
    %3580 = vmatprep.subr.mxu0 0.0
    %3581 = vmatpush2.msra.mxu0 0.0
    %3582 = vmatprep.subr.mxu0 0.0
    %3583 = vmatpush2.msra.mxu0 0.0
    %3584 = vmatprep.mubr.f32.mxu0 0.0
    %v3585 = vand.u32 %v3071, 4294901760
    %v3586 = vsub.f32 %v3071, %v3585
    %3587 = vmatmul.mubr.f32.gmra.mxu0 %v3586
    %v3588 = vpop.f32.mrf.mxu0
    %v3589 = vadd.f32 %v3423, %v3588
    %v3590 = vpop.f32.mrf.mxu0
    %3591 = vmatprep.mubr.f32.mxu0 0.0
    %v3592 = vand.u32 %v3074, 4294901760
    %v3593 = vsub.f32 %v3074, %v3592
    %3594 = vmatmul.mubr.f32.gmra.mxu0 %v3593
    %v3595 = vpop.f32.mrf.mxu0
    %v3596 = vadd.f32 %v3429, %v3595
    %v3597 = vpop.f32.mrf.mxu0
    %3598 = vmatprep.mubr.f32.mxu0 0.0
    %v3599 = vand.u32 %v3077, 4294901760
    %v3600 = vsub.f32 %v3077, %v3599
    %3601 = vmatmul.mubr.f32.gmra.mxu0 %v3600
    %v3602 = vpop.f32.mrf.mxu0
    %v3603 = vadd.f32 %v3435, %v3602
    %v3604 = vpop.f32.mrf.mxu0
    %3605 = vmatprep.mubr.f32.mxu0 0.0
    %v3606 = vand.u32 %v3080, 4294901760
    %v3607 = vsub.f32 %v3080, %v3606
    %3608 = vmatmul.mubr.f32.gmra.mxu0 %v3607
    %v3609 = vpop.f32.mrf.mxu0
    %v3610 = vadd.f32 %v3441, %v3609
    %v3611 = vpop.f32.mrf.mxu0
    %3612 = vmatprep.mubr.f32.mxu0 0.0
    %v3613 = vand.u32 %v3083, 4294901760
    %v3614 = vsub.f32 %v3083, %v3613
    %3615 = vmatmul.mubr.f32.gmra.mxu0 %v3614
    %v3616 = vpop.f32.mrf.mxu0
    %v3617 = vadd.f32 %v3447, %v3616
    %v3618 = vpop.f32.mrf.mxu0
    %3619 = vmatprep.mubr.f32.mxu0 0.0
    %v3620 = vand.u32 %v3086, 4294901760
    %v3621 = vsub.f32 %v3086, %v3620
    %3622 = vmatmul.mubr.f32.gmra.mxu0 %v3621
    %v3623 = vpop.f32.mrf.mxu0
    %v3624 = vadd.f32 %v3453, %v3623
    %v3625 = vpop.f32.mrf.mxu0
    %3626 = vmatprep.mubr.f32.mxu0 0.0
    %v3627 = vand.u32 %v3089, 4294901760
    %v3628 = vsub.f32 %v3089, %v3627
    %3629 = vmatmul.mubr.f32.gmra.mxu0 %v3628
    %v3630 = vpop.f32.mrf.mxu0
    %v3631 = vadd.f32 %v3459, %v3630
    %v3632 = vpop.f32.mrf.mxu0
    %3633 = vmatprep.mubr.f32.mxu0 0.0
    %v3634 = vand.u32 %v3092, 4294901760
    %v3635 = vsub.f32 %v3092, %v3634
    %3636 = vmatmul.mubr.f32.gmra.mxu0 %v3635
    %v3637 = vpop.f32.mrf.mxu0
    %v3638 = vadd.f32 %v3465, %v3637
    %v3639 = vpop.f32.mrf.mxu0
    %3640 = vmatprep.mubr.f32.mxu0 0.0
    %v3641 = vand.u32 %v3095, 4294901760
    %v3642 = vsub.f32 %v3095, %v3641
    %3643 = vmatmul.mubr.f32.gmra.mxu0 %v3642
    %v3644 = vpop.f32.mrf.mxu0
    %v3645 = vadd.f32 %v3471, %v3644
    %v3646 = vpop.f32.mrf.mxu0
    %3647 = vmatprep.mubr.f32.mxu0 0.0
    %v3648 = vand.u32 %v3098, 4294901760
    %v3649 = vsub.f32 %v3098, %v3648
    %3650 = vmatmul.mubr.f32.gmra.mxu0 %v3649
    %v3651 = vpop.f32.mrf.mxu0
    %v3652 = vadd.f32 %v3477, %v3651
    %v3653 = vpop.f32.mrf.mxu0
    %3654 = vmatprep.mubr.f32.mxu0 0.0
    %v3655 = vand.u32 %v3101, 4294901760
    %v3656 = vsub.f32 %v3101, %v3655
    %3657 = vmatmul.mubr.f32.gmra.mxu0 %v3656
    %v3658 = vpop.f32.mrf.mxu0
    %v3659 = vadd.f32 %v3483, %v3658
    %v3660 = vpop.f32.mrf.mxu0
    %3661 = vmatprep.mubr.f32.mxu0 0.0
    %v3662 = vand.u32 %v3104, 4294901760
    %v3663 = vsub.f32 %v3104, %v3662
    %3664 = vmatmul.mubr.f32.gmra.mxu0 %v3663
    %v3665 = vpop.f32.mrf.mxu0
    %v3666 = vadd.f32 %v3489, %v3665
    %v3667 = vpop.f32.mrf.mxu0
    %3668 = vmatprep.mubr.f32.mxu0 0.0
    %v3669 = vand.u32 %v3107, 4294901760
    %v3670 = vsub.f32 %v3107, %v3669
    %3671 = vmatmul.mubr.f32.gmra.mxu0 %v3670
    %v3672 = vpop.f32.mrf.mxu0
    %v3673 = vadd.f32 %v3495, %v3672
    %v3674 = vpop.f32.mrf.mxu0
    %3675 = vmatprep.mubr.f32.mxu0 0.0
    %v3676 = vand.u32 %v3110, 4294901760
    %v3677 = vsub.f32 %v3110, %v3676
    %3678 = vmatmul.mubr.f32.gmra.mxu0 %v3677
    %v3679 = vpop.f32.mrf.mxu0
    %v3680 = vadd.f32 %v3501, %v3679
    %v3681 = vpop.f32.mrf.mxu0
    %3682 = vmatprep.mubr.f32.mxu0 0.0
    %v3683 = vand.u32 %v3113, 4294901760
    %v3684 = vsub.f32 %v3113, %v3683
    %3685 = vmatmul.mubr.f32.gmra.mxu0 %v3684
    %v3686 = vpop.f32.mrf.mxu0
    %v3687 = vadd.f32 %v3507, %v3686
    %v3688 = vpop.f32.mrf.mxu0
    %3689 = vmatprep.mubr.f32.mxu0 0.0
    %v3690 = vand.u32 %v3116, 4294901760
    %v3691 = vsub.f32 %v3116, %v3690
    %3692 = vmatmul.mubr.f32.gmra.mxu0 %v3691
    %v3693 = vpop.f32.mrf.mxu0
    %v3694 = vadd.f32 %v3513, %v3693
    %v3695 = vpop.f32.mrf.mxu0
    %3696 = vdwg.mxu0
    %3697 = vmatprep.subr.mxu0 0.0
    %3698 = vmatpush1.msra.mxu0 0.0
    %3699 = vmatprep.subr.mxu0 0.0
    %3700 = vmatpush1.msra.mxu0 0.0
    %3701 = vmatprep.subr.mxu0 0.0
    %3702 = vmatpush1.msra.mxu0 0.0
    %3703 = vmatprep.subr.mxu0 0.0
    %3704 = vmatpush1.msra.mxu0 0.0
    %3705 = vmatprep.subr.mxu0 0.0
    %3706 = vmatpush1.msra.mxu0 0.0
    %3707 = vmatprep.subr.mxu0 0.0
    %3708 = vmatpush1.msra.mxu0 0.0
    %3709 = vmatprep.subr.mxu0 0.0
    %3710 = vmatpush1.msra.mxu0 0.0
    %3711 = vmatprep.subr.mxu0 0.0
    %3712 = vmatpush1.msra.mxu0 0.0
    %3713 = vmatprep.subr.mxu0 0.0
    %3714 = vmatpush1.msra.mxu0 0.0
    %3715 = vmatprep.subr.mxu0 0.0
    %3716 = vmatpush1.msra.mxu0 0.0
    %3717 = vmatprep.subr.mxu0 0.0
    %3718 = vmatpush1.msra.mxu0 0.0
    %3719 = vmatprep.subr.mxu0 0.0
    %3720 = vmatpush1.msra.mxu0 0.0
    %3721 = vmatprep.subr.mxu0 0.0
    %3722 = vmatpush1.msra.mxu0 0.0
    %3723 = vmatprep.subr.mxu0 0.0
    %3724 = vmatpush1.msra.mxu0 0.0
    %3725 = vmatprep.subr.mxu0 0.0
    %v3726 = vand.u32 %v2532, 4294901760
    %3727 = vmatpush1.msra.mxu0 %v3726
    %3728 = vmatprep.subr.mxu0 0.0
    %v3729 = vand.u32 %v2526, 4294901760
    %3730 = vmatpush1.msra.mxu0 %v3729
    %3731 = vmatprep.subr.mxu0 0.0
    %3732 = vmatpush2.msra.mxu0 0.0
    %3733 = vmatprep.subr.mxu0 0.0
    %3734 = vmatpush2.msra.mxu0 0.0
    %3735 = vmatprep.subr.mxu0 0.0
    %3736 = vmatpush2.msra.mxu0 0.0
    %3737 = vmatprep.subr.mxu0 0.0
    %3738 = vmatpush2.msra.mxu0 0.0
    %3739 = vmatprep.subr.mxu0 0.0
    %3740 = vmatpush2.msra.mxu0 0.0
    %3741 = vmatprep.subr.mxu0 0.0
    %3742 = vmatpush2.msra.mxu0 0.0
    %3743 = vmatprep.subr.mxu0 0.0
    %3744 = vmatpush2.msra.mxu0 0.0
    %3745 = vmatprep.subr.mxu0 0.0
    %3746 = vmatpush2.msra.mxu0 0.0
    %3747 = vmatprep.subr.mxu0 0.0
    %3748 = vmatpush2.msra.mxu0 0.0
    %3749 = vmatprep.subr.mxu0 0.0
    %3750 = vmatpush2.msra.mxu0 0.0
    %3751 = vmatprep.subr.mxu0 0.0
    %3752 = vmatpush2.msra.mxu0 0.0
    %3753 = vmatprep.subr.mxu0 0.0
    %3754 = vmatpush2.msra.mxu0 0.0
    %3755 = vmatprep.subr.mxu0 0.0
    %3756 = vmatpush2.msra.mxu0 0.0
    %3757 = vmatprep.subr.mxu0 0.0
    %3758 = vmatpush2.msra.mxu0 0.0
    %3759 = vmatprep.subr.mxu0 0.0
    %3760 = vmatpush2.msra.mxu0 0.0
    %3761 = vmatprep.subr.mxu0 0.0
    %3762 = vmatpush2.msra.mxu0 0.0
    %3763 = vmatprep.mubr.f32.mxu0 0.0
    %v3764 = vand.u32 %v3071, 4294901760
    %v3765 = vsub.f32 %v3071, %v3764
    %v3766 = vand.u32 %v3765, 4294901760
    %3767 = vmatmul.mubr.f32.gmra.mxu0 %v3766
    %v3768 = vpop.f32.mrf.mxu0
    %v3769 = vadd.f32 %v3589, %v3768
    %v3770 = vpop.f32.mrf.mxu0
    %3771 = vmatprep.mubr.f32.mxu0 0.0
    %v3772 = vand.u32 %v3074, 4294901760
    %v3773 = vsub.f32 %v3074, %v3772
    %v3774 = vand.u32 %v3773, 4294901760
    %3775 = vmatmul.mubr.f32.gmra.mxu0 %v3774
    %v3776 = vpop.f32.mrf.mxu0
    %v3777 = vadd.f32 %v3596, %v3776
    %v3778 = vpop.f32.mrf.mxu0
    %3779 = vmatprep.mubr.f32.mxu0 0.0
    %v3780 = vand.u32 %v3077, 4294901760
    %v3781 = vsub.f32 %v3077, %v3780
    %v3782 = vand.u32 %v3781, 4294901760
    %3783 = vmatmul.mubr.f32.gmra.mxu0 %v3782
    %v3784 = vpop.f32.mrf.mxu0
    %v3785 = vadd.f32 %v3603, %v3784
    %v3786 = vpop.f32.mrf.mxu0
    %3787 = vmatprep.mubr.f32.mxu0 0.0
    %v3788 = vand.u32 %v3080, 4294901760
    %v3789 = vsub.f32 %v3080, %v3788
    %v3790 = vand.u32 %v3789, 4294901760
    %3791 = vmatmul.mubr.f32.gmra.mxu0 %v3790
    %v3792 = vpop.f32.mrf.mxu0
    %v3793 = vadd.f32 %v3610, %v3792
    %v3794 = vpop.f32.mrf.mxu0
    %3795 = vmatprep.mubr.f32.mxu0 0.0
    %v3796 = vand.u32 %v3083, 4294901760
    %v3797 = vsub.f32 %v3083, %v3796
    %v3798 = vand.u32 %v3797, 4294901760
    %3799 = vmatmul.mubr.f32.gmra.mxu0 %v3798
    %v3800 = vpop.f32.mrf.mxu0
    %v3801 = vadd.f32 %v3617, %v3800
    %v3802 = vpop.f32.mrf.mxu0
    %3803 = vmatprep.mubr.f32.mxu0 0.0
    %v3804 = vand.u32 %v3086, 4294901760
    %v3805 = vsub.f32 %v3086, %v3804
    %v3806 = vand.u32 %v3805, 4294901760
    %3807 = vmatmul.mubr.f32.gmra.mxu0 %v3806
    %v3808 = vpop.f32.mrf.mxu0
    %v3809 = vadd.f32 %v3624, %v3808
    %v3810 = vpop.f32.mrf.mxu0
    %3811 = vmatprep.mubr.f32.mxu0 0.0
    %v3812 = vand.u32 %v3089, 4294901760
    %v3813 = vsub.f32 %v3089, %v3812
    %v3814 = vand.u32 %v3813, 4294901760
    %3815 = vmatmul.mubr.f32.gmra.mxu0 %v3814
    %v3816 = vpop.f32.mrf.mxu0
    %v3817 = vadd.f32 %v3631, %v3816
    %v3818 = vpop.f32.mrf.mxu0
    %3819 = vmatprep.mubr.f32.mxu0 0.0
    %v3820 = vand.u32 %v3092, 4294901760
    %v3821 = vsub.f32 %v3092, %v3820
    %v3822 = vand.u32 %v3821, 4294901760
    %3823 = vmatmul.mubr.f32.gmra.mxu0 %v3822
    %v3824 = vpop.f32.mrf.mxu0
    %v3825 = vadd.f32 %v3638, %v3824
    %v3826 = vpop.f32.mrf.mxu0
    %3827 = vmatprep.mubr.f32.mxu0 0.0
    %v3828 = vand.u32 %v3095, 4294901760
    %v3829 = vsub.f32 %v3095, %v3828
    %v3830 = vand.u32 %v3829, 4294901760
    %3831 = vmatmul.mubr.f32.gmra.mxu0 %v3830
    %v3832 = vpop.f32.mrf.mxu0
    %v3833 = vadd.f32 %v3645, %v3832
    %v3834 = vpop.f32.mrf.mxu0
    %3835 = vmatprep.mubr.f32.mxu0 0.0
    %v3836 = vand.u32 %v3098, 4294901760
    %v3837 = vsub.f32 %v3098, %v3836
    %v3838 = vand.u32 %v3837, 4294901760
    %3839 = vmatmul.mubr.f32.gmra.mxu0 %v3838
    %v3840 = vpop.f32.mrf.mxu0
    %v3841 = vadd.f32 %v3652, %v3840
    %v3842 = vpop.f32.mrf.mxu0
    %3843 = vmatprep.mubr.f32.mxu0 0.0
    %v3844 = vand.u32 %v3101, 4294901760
    %v3845 = vsub.f32 %v3101, %v3844
    %v3846 = vand.u32 %v3845, 4294901760
    %3847 = vmatmul.mubr.f32.gmra.mxu0 %v3846
    %v3848 = vpop.f32.mrf.mxu0
    %v3849 = vadd.f32 %v3659, %v3848
    %v3850 = vpop.f32.mrf.mxu0
    %3851 = vmatprep.mubr.f32.mxu0 0.0
    %v3852 = vand.u32 %v3104, 4294901760
    %v3853 = vsub.f32 %v3104, %v3852
    %v3854 = vand.u32 %v3853, 4294901760
    %3855 = vmatmul.mubr.f32.gmra.mxu0 %v3854
    %v3856 = vpop.f32.mrf.mxu0
    %v3857 = vadd.f32 %v3666, %v3856
    %v3858 = vpop.f32.mrf.mxu0
    %3859 = vmatprep.mubr.f32.mxu0 0.0
    %v3860 = vand.u32 %v3107, 4294901760
    %v3861 = vsub.f32 %v3107, %v3860
    %v3862 = vand.u32 %v3861, 4294901760
    %3863 = vmatmul.mubr.f32.gmra.mxu0 %v3862
    %v3864 = vpop.f32.mrf.mxu0
    %v3865 = vadd.f32 %v3673, %v3864
    %v3866 = vpop.f32.mrf.mxu0
    %3867 = vmatprep.mubr.f32.mxu0 0.0
    %v3868 = vand.u32 %v3110, 4294901760
    %v3869 = vsub.f32 %v3110, %v3868
    %v3870 = vand.u32 %v3869, 4294901760
    %3871 = vmatmul.mubr.f32.gmra.mxu0 %v3870
    %v3872 = vpop.f32.mrf.mxu0
    %v3873 = vadd.f32 %v3680, %v3872
    %v3874 = vpop.f32.mrf.mxu0
    %3875 = vmatprep.mubr.f32.mxu0 0.0
    %v3876 = vand.u32 %v3113, 4294901760
    %v3877 = vsub.f32 %v3113, %v3876
    %v3878 = vand.u32 %v3877, 4294901760
    %3879 = vmatmul.mubr.f32.gmra.mxu0 %v3878
    %v3880 = vpop.f32.mrf.mxu0
    %v3881 = vadd.f32 %v3687, %v3880
    %v3882 = vpop.f32.mrf.mxu0
    %3883 = vmatprep.mubr.f32.mxu0 0.0
    %v3884 = vand.u32 %v3116, 4294901760
    %v3885 = vsub.f32 %v3116, %v3884
    %v3886 = vand.u32 %v3885, 4294901760
    %3887 = vmatmul.mubr.f32.gmra.mxu0 %v3886
    %v3888 = vpop.f32.mrf.mxu0
    %v3889 = vadd.f32 %v3694, %v3888
    %v3890 = vpop.f32.mrf.mxu0
    %3891 = vdwg.mxu0
    %3892 = vmatprep.subr.mxu0 0.0
    %3893 = vmatpush1.msra.mxu0 0.0
    %3894 = vmatprep.subr.mxu0 0.0
    %3895 = vmatpush1.msra.mxu0 0.0
    %3896 = vmatprep.subr.mxu0 0.0
    %3897 = vmatpush1.msra.mxu0 0.0
    %3898 = vmatprep.subr.mxu0 0.0
    %3899 = vmatpush1.msra.mxu0 0.0
    %3900 = vmatprep.subr.mxu0 0.0
    %3901 = vmatpush1.msra.mxu0 0.0
    %3902 = vmatprep.subr.mxu0 0.0
    %3903 = vmatpush1.msra.mxu0 0.0
    %3904 = vmatprep.subr.mxu0 0.0
    %3905 = vmatpush1.msra.mxu0 0.0
    %3906 = vmatprep.subr.mxu0 0.0
    %3907 = vmatpush1.msra.mxu0 0.0
    %3908 = vmatprep.subr.mxu0 0.0
    %3909 = vmatpush1.msra.mxu0 0.0
    %3910 = vmatprep.subr.mxu0 0.0
    %3911 = vmatpush1.msra.mxu0 0.0
    %3912 = vmatprep.subr.mxu0 0.0
    %3913 = vmatpush1.msra.mxu0 0.0
    %3914 = vmatprep.subr.mxu0 0.0
    %3915 = vmatpush1.msra.mxu0 0.0
    %3916 = vmatprep.subr.mxu0 0.0
    %3917 = vmatpush1.msra.mxu0 0.0
    %3918 = vmatprep.subr.mxu0 0.0
    %3919 = vmatpush1.msra.mxu0 0.0
    %3920 = vmatprep.subr.mxu0 0.0
    %v3921 = vand.u32 %v2532, 4294901760
    %v3922 = vsub.f32 %v2532, %v3921
    %v3923 = vand.u32 %v3922, 4294901760
    %3924 = vmatpush1.msra.mxu0 %v3923
    %3925 = vmatprep.subr.mxu0 0.0
    %v3926 = vand.u32 %v2526, 4294901760
    %v3927 = vsub.f32 %v2526, %v3926
    %v3928 = vand.u32 %v3927, 4294901760
    %3929 = vmatpush1.msra.mxu0 %v3928
    %3930 = vmatprep.subr.mxu0 0.0
    %3931 = vmatpush2.msra.mxu0 0.0
    %3932 = vmatprep.subr.mxu0 0.0
    %3933 = vmatpush2.msra.mxu0 0.0
    %3934 = vmatprep.subr.mxu0 0.0
    %3935 = vmatpush2.msra.mxu0 0.0
    %3936 = vmatprep.subr.mxu0 0.0
    %3937 = vmatpush2.msra.mxu0 0.0
    %3938 = vmatprep.subr.mxu0 0.0
    %3939 = vmatpush2.msra.mxu0 0.0
    %3940 = vmatprep.subr.mxu0 0.0
    %3941 = vmatpush2.msra.mxu0 0.0
    %3942 = vmatprep.subr.mxu0 0.0
    %3943 = vmatpush2.msra.mxu0 0.0
    %3944 = vmatprep.subr.mxu0 0.0
    %3945 = vmatpush2.msra.mxu0 0.0
    %3946 = vmatprep.subr.mxu0 0.0
    %3947 = vmatpush2.msra.mxu0 0.0
    %3948 = vmatprep.subr.mxu0 0.0
    %3949 = vmatpush2.msra.mxu0 0.0
    %3950 = vmatprep.subr.mxu0 0.0
    %3951 = vmatpush2.msra.mxu0 0.0
    %3952 = vmatprep.subr.mxu0 0.0
    %3953 = vmatpush2.msra.mxu0 0.0
    %3954 = vmatprep.subr.mxu0 0.0
    %3955 = vmatpush2.msra.mxu0 0.0
    %3956 = vmatprep.subr.mxu0 0.0
    %3957 = vmatpush2.msra.mxu0 0.0
    %3958 = vmatprep.subr.mxu0 0.0
    %3959 = vmatpush2.msra.mxu0 0.0
    %3960 = vmatprep.subr.mxu0 0.0
    %3961 = vmatpush2.msra.mxu0 0.0
    %3962 = vmatprep.mubr.f32.mxu0 0.0
    %v3963 = vand.u32 %v3071, 4294901760
    %3964 = vmatmul.mubr.f32.gmra.mxu0 %v3963
    %v3965 = vpop.f32.mrf.mxu0
    %v3966 = vadd.f32 %v3769, %v3965
    %v3967 = vpop.f32.mrf.mxu0
    %3968 = vmatprep.mubr.f32.mxu0 0.0
    %v3969 = vand.u32 %v3074, 4294901760
    %3970 = vmatmul.mubr.f32.gmra.mxu0 %v3969
    %v3971 = vpop.f32.mrf.mxu0
    %v3972 = vadd.f32 %v3777, %v3971
    %v3973 = vpop.f32.mrf.mxu0
    %3974 = vmatprep.mubr.f32.mxu0 0.0
    %v3975 = vand.u32 %v3077, 4294901760
    %3976 = vmatmul.mubr.f32.gmra.mxu0 %v3975
    %v3977 = vpop.f32.mrf.mxu0
    %v3978 = vadd.f32 %v3785, %v3977
    %v3979 = vpop.f32.mrf.mxu0
    %3980 = vmatprep.mubr.f32.mxu0 0.0
    %v3981 = vand.u32 %v3080, 4294901760
    %3982 = vmatmul.mubr.f32.gmra.mxu0 %v3981
    %v3983 = vpop.f32.mrf.mxu0
    %v3984 = vadd.f32 %v3793, %v3983
    %v3985 = vpop.f32.mrf.mxu0
    %3986 = vmatprep.mubr.f32.mxu0 0.0
    %v3987 = vand.u32 %v3083, 4294901760
    %3988 = vmatmul.mubr.f32.gmra.mxu0 %v3987
    %v3989 = vpop.f32.mrf.mxu0
    %v3990 = vadd.f32 %v3801, %v3989
    %v3991 = vpop.f32.mrf.mxu0
    %3992 = vmatprep.mubr.f32.mxu0 0.0
    %v3993 = vand.u32 %v3086, 4294901760
    %3994 = vmatmul.mubr.f32.gmra.mxu0 %v3993
    %v3995 = vpop.f32.mrf.mxu0
    %v3996 = vadd.f32 %v3809, %v3995
    %v3997 = vpop.f32.mrf.mxu0
    %3998 = vmatprep.mubr.f32.mxu0 0.0
    %v3999 = vand.u32 %v3089, 4294901760
    %4000 = vmatmul.mubr.f32.gmra.mxu0 %v3999
    %v4001 = vpop.f32.mrf.mxu0
    %v4002 = vadd.f32 %v3817, %v4001
    %v4003 = vpop.f32.mrf.mxu0
    %4004 = vmatprep.mubr.f32.mxu0 0.0
    %v4005 = vand.u32 %v3092, 4294901760
    %4006 = vmatmul.mubr.f32.gmra.mxu0 %v4005
    %v4007 = vpop.f32.mrf.mxu0
    %v4008 = vadd.f32 %v3825, %v4007
    %v4009 = vpop.f32.mrf.mxu0
    %4010 = vmatprep.mubr.f32.mxu0 0.0
    %v4011 = vand.u32 %v3095, 4294901760
    %4012 = vmatmul.mubr.f32.gmra.mxu0 %v4011
    %v4013 = vpop.f32.mrf.mxu0
    %v4014 = vadd.f32 %v3833, %v4013
    %v4015 = vpop.f32.mrf.mxu0
    %4016 = vmatprep.mubr.f32.mxu0 0.0
    %v4017 = vand.u32 %v3098, 4294901760
    %4018 = vmatmul.mubr.f32.gmra.mxu0 %v4017
    %v4019 = vpop.f32.mrf.mxu0
    %v4020 = vadd.f32 %v3841, %v4019
    %v4021 = vpop.f32.mrf.mxu0
    %4022 = vmatprep.mubr.f32.mxu0 0.0
    %v4023 = vand.u32 %v3101, 4294901760
    %4024 = vmatmul.mubr.f32.gmra.mxu0 %v4023
    %v4025 = vpop.f32.mrf.mxu0
    %v4026 = vadd.f32 %v3849, %v4025
    %v4027 = vpop.f32.mrf.mxu0
    %4028 = vmatprep.mubr.f32.mxu0 0.0
    %v4029 = vand.u32 %v3104, 4294901760
    %4030 = vmatmul.mubr.f32.gmra.mxu0 %v4029
    %v4031 = vpop.f32.mrf.mxu0
    %v4032 = vadd.f32 %v3857, %v4031
    %v4033 = vpop.f32.mrf.mxu0
    %4034 = vmatprep.mubr.f32.mxu0 0.0
    %v4035 = vand.u32 %v3107, 4294901760
    %4036 = vmatmul.mubr.f32.gmra.mxu0 %v4035
    %v4037 = vpop.f32.mrf.mxu0
    %v4038 = vadd.f32 %v3865, %v4037
    %v4039 = vpop.f32.mrf.mxu0
    %4040 = vmatprep.mubr.f32.mxu0 0.0
    %v4041 = vand.u32 %v3110, 4294901760
    %4042 = vmatmul.mubr.f32.gmra.mxu0 %v4041
    %v4043 = vpop.f32.mrf.mxu0
    %v4044 = vadd.f32 %v3873, %v4043
    %v4045 = vpop.f32.mrf.mxu0
    %4046 = vmatprep.mubr.f32.mxu0 0.0
    %v4047 = vand.u32 %v3113, 4294901760
    %4048 = vmatmul.mubr.f32.gmra.mxu0 %v4047
    %v4049 = vpop.f32.mrf.mxu0
    %v4050 = vadd.f32 %v3881, %v4049
    %v4051 = vpop.f32.mrf.mxu0
    %4052 = vmatprep.mubr.f32.mxu0 0.0
    %v4053 = vand.u32 %v3116, 4294901760
    %4054 = vmatmul.mubr.f32.gmra.mxu0 %v4053
    %v4055 = vpop.f32.mrf.mxu0
    %v4056 = vadd.f32 %v3889, %v4055
    %v4057 = vpop.f32.mrf.mxu0
    %4058 = vdwg.mxu0
    %4059 = vmatprep.subr.mxu0 0.0
    %4060 = vmatpush1.msra.mxu0 0.0
    %4061 = vmatprep.subr.mxu0 0.0
    %4062 = vmatpush1.msra.mxu0 0.0
    %4063 = vmatprep.subr.mxu0 0.0
    %4064 = vmatpush1.msra.mxu0 0.0
    %4065 = vmatprep.subr.mxu0 0.0
    %4066 = vmatpush1.msra.mxu0 0.0
    %4067 = vmatprep.subr.mxu0 0.0
    %4068 = vmatpush1.msra.mxu0 0.0
    %4069 = vmatprep.subr.mxu0 0.0
    %4070 = vmatpush1.msra.mxu0 0.0
    %4071 = vmatprep.subr.mxu0 0.0
    %4072 = vmatpush1.msra.mxu0 0.0
    %4073 = vmatprep.subr.mxu0 0.0
    %4074 = vmatpush1.msra.mxu0 0.0
    %4075 = vmatprep.subr.mxu0 0.0
    %4076 = vmatpush1.msra.mxu0 0.0
    %4077 = vmatprep.subr.mxu0 0.0
    %4078 = vmatpush1.msra.mxu0 0.0
    %4079 = vmatprep.subr.mxu0 0.0
    %4080 = vmatpush1.msra.mxu0 0.0
    %4081 = vmatprep.subr.mxu0 0.0
    %4082 = vmatpush1.msra.mxu0 0.0
    %4083 = vmatprep.subr.mxu0 0.0
    %4084 = vmatpush1.msra.mxu0 0.0
    %4085 = vmatprep.subr.mxu0 0.0
    %4086 = vmatpush1.msra.mxu0 0.0
    %4087 = vmatprep.subr.mxu0 0.0
    %v4088 = vand.u32 %v2532, 4294901760
    %4089 = vmatpush1.msra.mxu0 %v4088
    %4090 = vmatprep.subr.mxu0 0.0
    %v4091 = vand.u32 %v2526, 4294901760
    %4092 = vmatpush1.msra.mxu0 %v4091
    %4093 = vmatprep.subr.mxu0 0.0
    %4094 = vmatpush2.msra.mxu0 0.0
    %4095 = vmatprep.subr.mxu0 0.0
    %4096 = vmatpush2.msra.mxu0 0.0
    %4097 = vmatprep.subr.mxu0 0.0
    %4098 = vmatpush2.msra.mxu0 0.0
    %4099 = vmatprep.subr.mxu0 0.0
    %4100 = vmatpush2.msra.mxu0 0.0
    %4101 = vmatprep.subr.mxu0 0.0
    %4102 = vmatpush2.msra.mxu0 0.0
    %4103 = vmatprep.subr.mxu0 0.0
    %4104 = vmatpush2.msra.mxu0 0.0
    %4105 = vmatprep.subr.mxu0 0.0
    %4106 = vmatpush2.msra.mxu0 0.0
    %4107 = vmatprep.subr.mxu0 0.0
    %4108 = vmatpush2.msra.mxu0 0.0
    %4109 = vmatprep.subr.mxu0 0.0
    %4110 = vmatpush2.msra.mxu0 0.0
    %4111 = vmatprep.subr.mxu0 0.0
    %4112 = vmatpush2.msra.mxu0 0.0
    %4113 = vmatprep.subr.mxu0 0.0
    %4114 = vmatpush2.msra.mxu0 0.0
    %4115 = vmatprep.subr.mxu0 0.0
    %4116 = vmatpush2.msra.mxu0 0.0
    %4117 = vmatprep.subr.mxu0 0.0
    %4118 = vmatpush2.msra.mxu0 0.0
    %4119 = vmatprep.subr.mxu0 0.0
    %4120 = vmatpush2.msra.mxu0 0.0
    %4121 = vmatprep.subr.mxu0 0.0
    %4122 = vmatpush2.msra.mxu0 0.0
    %4123 = vmatprep.subr.mxu0 0.0
    %4124 = vmatpush2.msra.mxu0 0.0
    %4125 = vmatprep.mubr.f32.mxu0 0.0
    %v4126 = vand.u32 %v3071, 4294901760
    %4127 = vmatmul.mubr.f32.gmra.mxu0 %v4126
    %v4128 = vpop.f32.mrf.mxu0
    %v4129 = vadd.f32 %v3966, %v4128
    %v4130 = vpop.f32.mrf.mxu0
    %4131 = vmatprep.mubr.f32.mxu0 0.0
    %v4132 = vand.u32 %v3074, 4294901760
    %4133 = vmatmul.mubr.f32.gmra.mxu0 %v4132
    %v4134 = vpop.f32.mrf.mxu0
    %v4135 = vadd.f32 %v3972, %v4134
    %v4136 = vpop.f32.mrf.mxu0
    %4137 = vmatprep.mubr.f32.mxu0 0.0
    %v4138 = vand.u32 %v3077, 4294901760
    %4139 = vmatmul.mubr.f32.gmra.mxu0 %v4138
    %v4140 = vpop.f32.mrf.mxu0
    %v4141 = vadd.f32 %v3978, %v4140
    %v4142 = vpop.f32.mrf.mxu0
    %4143 = vmatprep.mubr.f32.mxu0 0.0
    %v4144 = vand.u32 %v3080, 4294901760
    %4145 = vmatmul.mubr.f32.gmra.mxu0 %v4144
    %v4146 = vpop.f32.mrf.mxu0
    %v4147 = vadd.f32 %v3984, %v4146
    %v4148 = vpop.f32.mrf.mxu0
    %4149 = vmatprep.mubr.f32.mxu0 0.0
    %v4150 = vand.u32 %v3083, 4294901760
    %4151 = vmatmul.mubr.f32.gmra.mxu0 %v4150
    %v4152 = vpop.f32.mrf.mxu0
    %v4153 = vadd.f32 %v3990, %v4152
    %v4154 = vpop.f32.mrf.mxu0
    %4155 = vmatprep.mubr.f32.mxu0 0.0
    %v4156 = vand.u32 %v3086, 4294901760
    %4157 = vmatmul.mubr.f32.gmra.mxu0 %v4156
    %v4158 = vpop.f32.mrf.mxu0
    %v4159 = vadd.f32 %v3996, %v4158
    %v4160 = vpop.f32.mrf.mxu0
    %4161 = vmatprep.mubr.f32.mxu0 0.0
    %v4162 = vand.u32 %v3089, 4294901760
    %4163 = vmatmul.mubr.f32.gmra.mxu0 %v4162
    %v4164 = vpop.f32.mrf.mxu0
    %v4165 = vadd.f32 %v4002, %v4164
    %v4166 = vpop.f32.mrf.mxu0
    %4167 = vmatprep.mubr.f32.mxu0 0.0
    %v4168 = vand.u32 %v3092, 4294901760
    %4169 = vmatmul.mubr.f32.gmra.mxu0 %v4168
    %v4170 = vpop.f32.mrf.mxu0
    %v4171 = vadd.f32 %v4008, %v4170
    %v4172 = vpop.f32.mrf.mxu0
    %4173 = vmatprep.mubr.f32.mxu0 0.0
    %v4174 = vand.u32 %v3095, 4294901760
    %4175 = vmatmul.mubr.f32.gmra.mxu0 %v4174
    %v4176 = vpop.f32.mrf.mxu0
    %v4177 = vadd.f32 %v4014, %v4176
    %v4178 = vpop.f32.mrf.mxu0
    %4179 = vmatprep.mubr.f32.mxu0 0.0
    %v4180 = vand.u32 %v3098, 4294901760
    %4181 = vmatmul.mubr.f32.gmra.mxu0 %v4180
    %v4182 = vpop.f32.mrf.mxu0
    %v4183 = vadd.f32 %v4020, %v4182
    %v4184 = vpop.f32.mrf.mxu0
    %4185 = vmatprep.mubr.f32.mxu0 0.0
    %v4186 = vand.u32 %v3101, 4294901760
    %4187 = vmatmul.mubr.f32.gmra.mxu0 %v4186
    %v4188 = vpop.f32.mrf.mxu0
    %v4189 = vadd.f32 %v4026, %v4188
    %v4190 = vpop.f32.mrf.mxu0
    %4191 = vmatprep.mubr.f32.mxu0 0.0
    %v4192 = vand.u32 %v3104, 4294901760
    %4193 = vmatmul.mubr.f32.gmra.mxu0 %v4192
    %v4194 = vpop.f32.mrf.mxu0
    %v4195 = vadd.f32 %v4032, %v4194
    %v4196 = vpop.f32.mrf.mxu0
    %4197 = vmatprep.mubr.f32.mxu0 0.0
    %v4198 = vand.u32 %v3107, 4294901760
    %4199 = vmatmul.mubr.f32.gmra.mxu0 %v4198
    %v4200 = vpop.f32.mrf.mxu0
    %v4201 = vadd.f32 %v4038, %v4200
    %v4202 = vpop.f32.mrf.mxu0
    %4203 = vmatprep.mubr.f32.mxu0 0.0
    %v4204 = vand.u32 %v3110, 4294901760
    %4205 = vmatmul.mubr.f32.gmra.mxu0 %v4204
    %v4206 = vpop.f32.mrf.mxu0
    %v4207 = vadd.f32 %v4044, %v4206
    %v4208 = vpop.f32.mrf.mxu0
    %4209 = vmatprep.mubr.f32.mxu0 0.0
    %v4210 = vand.u32 %v3113, 4294901760
    %4211 = vmatmul.mubr.f32.gmra.mxu0 %v4210
    %v4212 = vpop.f32.mrf.mxu0
    %v4213 = vadd.f32 %v4050, %v4212
    %v4214 = vpop.f32.mrf.mxu0
    %4215 = vmatprep.mubr.f32.mxu0 0.0
    %v4216 = vand.u32 %v3116, 4294901760
    %4217 = vmatmul.mubr.f32.gmra.mxu0 %v4216
    %v4218 = vpop.f32.mrf.mxu0
    %v4219 = vadd.f32 %v4056, %v4218
    %v4220 = vpop.f32.mrf.mxu0
    %4221 = vdwg.mxu0
    %v4223 = vsel %vm3069, %v337, 0
    %v4226 = vsel %vm3069, %v338, 0
    %v4229 = vsel %vm3069, %v339, 0
    %v4232 = vsel %vm3069, %v340, 0
    %v4235 = vsel %vm3069, %v341, 0
    %v4238 = vsel %vm3069, %v342, 0
    %v4241 = vsel %vm3069, %v343, 0
    %v4244 = vsel %vm3069, %v344, 0
    %v4247 = vsel %vm3069, %v345, 0
    %v4250 = vsel %vm3069, %v346, 0
    %v4253 = vsel %vm3069, %v347, 0
    %v4256 = vsel %vm3069, %v348, 0
    %v4259 = vsel %vm3069, %v349, 0
    %v4262 = vsel %vm3069, %v350, 0
    %v4265 = vsel %vm3069, %v351, 0
    %v4268 = vsel %vm3069, %v352, 0
    %4270 = vmatprep.subr.mxu0 0.0
    %4271 = vmatpush1.msra.mxu0 0.0
    %4272 = vmatprep.subr.mxu0 0.0
    %4273 = vmatpush1.msra.mxu0 0.0
    %4274 = vmatprep.subr.mxu0 0.0
    %4275 = vmatpush1.msra.mxu0 0.0
    %4276 = vmatprep.subr.mxu0 0.0
    %4277 = vmatpush1.msra.mxu0 0.0
    %4278 = vmatprep.subr.mxu0 0.0
    %4279 = vmatpush1.msra.mxu0 0.0
    %4280 = vmatprep.subr.mxu0 0.0
    %4281 = vmatpush1.msra.mxu0 0.0
    %4282 = vmatprep.subr.mxu0 0.0
    %4283 = vmatpush1.msra.mxu0 0.0
    %4284 = vmatprep.subr.mxu0 0.0
    %4285 = vmatpush1.msra.mxu0 0.0
    %4286 = vmatprep.subr.mxu0 0.0
    %4287 = vmatpush1.msra.mxu0 0.0
    %4288 = vmatprep.subr.mxu0 0.0
    %4289 = vmatpush1.msra.mxu0 0.0
    %4290 = vmatprep.subr.mxu0 0.0
    %4291 = vmatpush1.msra.mxu0 0.0
    %4292 = vmatprep.subr.mxu0 0.0
    %4293 = vmatpush1.msra.mxu0 0.0
    %4294 = vmatprep.subr.mxu0 0.0
    %4295 = vmatpush1.msra.mxu0 0.0
    %4296 = vmatprep.subr.mxu0 0.0
    %4297 = vmatpush1.msra.mxu0 0.0
    %4298 = vmatprep.subr.mxu0 0.0
    %v4299 = vand.u32 %v3066, 4294901760
    %4300 = vmatpush1.msra.mxu0 %v4299
    %4301 = vmatprep.subr.mxu0 0.0
    %v4302 = vand.u32 %v3060, 4294901760
    %4303 = vmatpush1.msra.mxu0 %v4302
    %4304 = vmatprep.subr.mxu0 0.0
    %4305 = vmatpush2.msra.mxu0 0.0
    %4306 = vmatprep.subr.mxu0 0.0
    %4307 = vmatpush2.msra.mxu0 0.0
    %4308 = vmatprep.subr.mxu0 0.0
    %4309 = vmatpush2.msra.mxu0 0.0
    %4310 = vmatprep.subr.mxu0 0.0
    %4311 = vmatpush2.msra.mxu0 0.0
    %4312 = vmatprep.subr.mxu0 0.0
    %4313 = vmatpush2.msra.mxu0 0.0
    %4314 = vmatprep.subr.mxu0 0.0
    %4315 = vmatpush2.msra.mxu0 0.0
    %4316 = vmatprep.subr.mxu0 0.0
    %4317 = vmatpush2.msra.mxu0 0.0
    %4318 = vmatprep.subr.mxu0 0.0
    %4319 = vmatpush2.msra.mxu0 0.0
    %4320 = vmatprep.subr.mxu0 0.0
    %4321 = vmatpush2.msra.mxu0 0.0
    %4322 = vmatprep.subr.mxu0 0.0
    %4323 = vmatpush2.msra.mxu0 0.0
    %4324 = vmatprep.subr.mxu0 0.0
    %4325 = vmatpush2.msra.mxu0 0.0
    %4326 = vmatprep.subr.mxu0 0.0
    %4327 = vmatpush2.msra.mxu0 0.0
    %4328 = vmatprep.subr.mxu0 0.0
    %4329 = vmatpush2.msra.mxu0 0.0
    %4330 = vmatprep.subr.mxu0 0.0
    %4331 = vmatpush2.msra.mxu0 0.0
    %4332 = vmatprep.subr.mxu0 0.0
    %4333 = vmatpush2.msra.mxu0 0.0
    %4334 = vmatprep.subr.mxu0 0.0
    %4335 = vmatpush2.msra.mxu0 0.0
    %4336 = vmatprep.mubr.f32.mxu0 0.0
    %v4337 = vand.u32 %v4223, 4294901760
    %v4338 = vsub.f32 %v4223, %v4337
    %v4339 = vand.u32 %v4338, 4294901760
    %v4340 = vsub.f32 %v4338, %v4339
    %v4341 = vand.u32 %v4340, 4294901760
    %4342 = vmatmul.mubr.f32.gmra.mxu0 %v4341
    %v4343 = vpop.f32.mrf.mxu0
    %v4344 = vadd.f32 0.0, %v4343
    %v4345 = vpop.f32.mrf.mxu0
    %4346 = vmatprep.mubr.f32.mxu0 0.0
    %v4347 = vand.u32 %v4226, 4294901760
    %v4348 = vsub.f32 %v4226, %v4347
    %v4349 = vand.u32 %v4348, 4294901760
    %v4350 = vsub.f32 %v4348, %v4349
    %v4351 = vand.u32 %v4350, 4294901760
    %4352 = vmatmul.mubr.f32.gmra.mxu0 %v4351
    %v4353 = vpop.f32.mrf.mxu0
    %v4354 = vadd.f32 0.0, %v4353
    %v4355 = vpop.f32.mrf.mxu0
    %4356 = vmatprep.mubr.f32.mxu0 0.0
    %v4357 = vand.u32 %v4229, 4294901760
    %v4358 = vsub.f32 %v4229, %v4357
    %v4359 = vand.u32 %v4358, 4294901760
    %v4360 = vsub.f32 %v4358, %v4359
    %v4361 = vand.u32 %v4360, 4294901760
    %4362 = vmatmul.mubr.f32.gmra.mxu0 %v4361
    %v4363 = vpop.f32.mrf.mxu0
    %v4364 = vadd.f32 0.0, %v4363
    %v4365 = vpop.f32.mrf.mxu0
    %4366 = vmatprep.mubr.f32.mxu0 0.0
    %v4367 = vand.u32 %v4232, 4294901760
    %v4368 = vsub.f32 %v4232, %v4367
    %v4369 = vand.u32 %v4368, 4294901760
    %v4370 = vsub.f32 %v4368, %v4369
    %v4371 = vand.u32 %v4370, 4294901760
    %4372 = vmatmul.mubr.f32.gmra.mxu0 %v4371
    %v4373 = vpop.f32.mrf.mxu0
    %v4374 = vadd.f32 0.0, %v4373
    %v4375 = vpop.f32.mrf.mxu0
    %4376 = vmatprep.mubr.f32.mxu0 0.0
    %v4377 = vand.u32 %v4235, 4294901760
    %v4378 = vsub.f32 %v4235, %v4377
    %v4379 = vand.u32 %v4378, 4294901760
    %v4380 = vsub.f32 %v4378, %v4379
    %v4381 = vand.u32 %v4380, 4294901760
    %4382 = vmatmul.mubr.f32.gmra.mxu0 %v4381
    %v4383 = vpop.f32.mrf.mxu0
    %v4384 = vadd.f32 0.0, %v4383
    %v4385 = vpop.f32.mrf.mxu0
    %4386 = vmatprep.mubr.f32.mxu0 0.0
    %v4387 = vand.u32 %v4238, 4294901760
    %v4388 = vsub.f32 %v4238, %v4387
    %v4389 = vand.u32 %v4388, 4294901760
    %v4390 = vsub.f32 %v4388, %v4389
    %v4391 = vand.u32 %v4390, 4294901760
    %4392 = vmatmul.mubr.f32.gmra.mxu0 %v4391
    %v4393 = vpop.f32.mrf.mxu0
    %v4394 = vadd.f32 0.0, %v4393
    %v4395 = vpop.f32.mrf.mxu0
    %4396 = vmatprep.mubr.f32.mxu0 0.0
    %v4397 = vand.u32 %v4241, 4294901760
    %v4398 = vsub.f32 %v4241, %v4397
    %v4399 = vand.u32 %v4398, 4294901760
    %v4400 = vsub.f32 %v4398, %v4399
    %v4401 = vand.u32 %v4400, 4294901760
    %4402 = vmatmul.mubr.f32.gmra.mxu0 %v4401
    %v4403 = vpop.f32.mrf.mxu0
    %v4404 = vadd.f32 0.0, %v4403
    %v4405 = vpop.f32.mrf.mxu0
    %4406 = vmatprep.mubr.f32.mxu0 0.0
    %v4407 = vand.u32 %v4244, 4294901760
    %v4408 = vsub.f32 %v4244, %v4407
    %v4409 = vand.u32 %v4408, 4294901760
    %v4410 = vsub.f32 %v4408, %v4409
    %v4411 = vand.u32 %v4410, 4294901760
    %4412 = vmatmul.mubr.f32.gmra.mxu0 %v4411
    %v4413 = vpop.f32.mrf.mxu0
    %v4414 = vadd.f32 0.0, %v4413
    %v4415 = vpop.f32.mrf.mxu0
    %4416 = vmatprep.mubr.f32.mxu0 0.0
    %v4417 = vand.u32 %v4247, 4294901760
    %v4418 = vsub.f32 %v4247, %v4417
    %v4419 = vand.u32 %v4418, 4294901760
    %v4420 = vsub.f32 %v4418, %v4419
    %v4421 = vand.u32 %v4420, 4294901760
    %4422 = vmatmul.mubr.f32.gmra.mxu0 %v4421
    %v4423 = vpop.f32.mrf.mxu0
    %v4424 = vadd.f32 0.0, %v4423
    %v4425 = vpop.f32.mrf.mxu0
    %4426 = vmatprep.mubr.f32.mxu0 0.0
    %v4427 = vand.u32 %v4250, 4294901760
    %v4428 = vsub.f32 %v4250, %v4427
    %v4429 = vand.u32 %v4428, 4294901760
    %v4430 = vsub.f32 %v4428, %v4429
    %v4431 = vand.u32 %v4430, 4294901760
    %4432 = vmatmul.mubr.f32.gmra.mxu0 %v4431
    %v4433 = vpop.f32.mrf.mxu0
    %v4434 = vadd.f32 0.0, %v4433
    %v4435 = vpop.f32.mrf.mxu0
    %4436 = vmatprep.mubr.f32.mxu0 0.0
    %v4437 = vand.u32 %v4253, 4294901760
    %v4438 = vsub.f32 %v4253, %v4437
    %v4439 = vand.u32 %v4438, 4294901760
    %v4440 = vsub.f32 %v4438, %v4439
    %v4441 = vand.u32 %v4440, 4294901760
    %4442 = vmatmul.mubr.f32.gmra.mxu0 %v4441
    %v4443 = vpop.f32.mrf.mxu0
    %v4444 = vadd.f32 0.0, %v4443
    %v4445 = vpop.f32.mrf.mxu0
    %4446 = vmatprep.mubr.f32.mxu0 0.0
    %v4447 = vand.u32 %v4256, 4294901760
    %v4448 = vsub.f32 %v4256, %v4447
    %v4449 = vand.u32 %v4448, 4294901760
    %v4450 = vsub.f32 %v4448, %v4449
    %v4451 = vand.u32 %v4450, 4294901760
    %4452 = vmatmul.mubr.f32.gmra.mxu0 %v4451
    %v4453 = vpop.f32.mrf.mxu0
    %v4454 = vadd.f32 0.0, %v4453
    %v4455 = vpop.f32.mrf.mxu0
    %4456 = vmatprep.mubr.f32.mxu0 0.0
    %v4457 = vand.u32 %v4259, 4294901760
    %v4458 = vsub.f32 %v4259, %v4457
    %v4459 = vand.u32 %v4458, 4294901760
    %v4460 = vsub.f32 %v4458, %v4459
    %v4461 = vand.u32 %v4460, 4294901760
    %4462 = vmatmul.mubr.f32.gmra.mxu0 %v4461
    %v4463 = vpop.f32.mrf.mxu0
    %v4464 = vadd.f32 0.0, %v4463
    %v4465 = vpop.f32.mrf.mxu0
    %4466 = vmatprep.mubr.f32.mxu0 0.0
    %v4467 = vand.u32 %v4262, 4294901760
    %v4468 = vsub.f32 %v4262, %v4467
    %v4469 = vand.u32 %v4468, 4294901760
    %v4470 = vsub.f32 %v4468, %v4469
    %v4471 = vand.u32 %v4470, 4294901760
    %4472 = vmatmul.mubr.f32.gmra.mxu0 %v4471
    %v4473 = vpop.f32.mrf.mxu0
    %v4474 = vadd.f32 0.0, %v4473
    %v4475 = vpop.f32.mrf.mxu0
    %4476 = vmatprep.mubr.f32.mxu0 0.0
    %v4477 = vand.u32 %v4265, 4294901760
    %v4478 = vsub.f32 %v4265, %v4477
    %v4479 = vand.u32 %v4478, 4294901760
    %v4480 = vsub.f32 %v4478, %v4479
    %v4481 = vand.u32 %v4480, 4294901760
    %4482 = vmatmul.mubr.f32.gmra.mxu0 %v4481
    %v4483 = vpop.f32.mrf.mxu0
    %v4484 = vadd.f32 0.0, %v4483
    %v4485 = vpop.f32.mrf.mxu0
    %4486 = vmatprep.mubr.f32.mxu0 0.0
    %v4487 = vand.u32 %v4268, 4294901760
    %v4488 = vsub.f32 %v4268, %v4487
    %v4489 = vand.u32 %v4488, 4294901760
    %v4490 = vsub.f32 %v4488, %v4489
    %v4491 = vand.u32 %v4490, 4294901760
    %4492 = vmatmul.mubr.f32.gmra.mxu0 %v4491
    %v4493 = vpop.f32.mrf.mxu0
    %v4494 = vadd.f32 0.0, %v4493
    %v4495 = vpop.f32.mrf.mxu0
    %4496 = vdwg.mxu0
    %4497 = vmatprep.subr.mxu0 0.0
    %4498 = vmatpush1.msra.mxu0 0.0
    %4499 = vmatprep.subr.mxu0 0.0
    %4500 = vmatpush1.msra.mxu0 0.0
    %4501 = vmatprep.subr.mxu0 0.0
    %4502 = vmatpush1.msra.mxu0 0.0
    %4503 = vmatprep.subr.mxu0 0.0
    %4504 = vmatpush1.msra.mxu0 0.0
    %4505 = vmatprep.subr.mxu0 0.0
    %4506 = vmatpush1.msra.mxu0 0.0
    %4507 = vmatprep.subr.mxu0 0.0
    %4508 = vmatpush1.msra.mxu0 0.0
    %4509 = vmatprep.subr.mxu0 0.0
    %4510 = vmatpush1.msra.mxu0 0.0
    %4511 = vmatprep.subr.mxu0 0.0
    %4512 = vmatpush1.msra.mxu0 0.0
    %4513 = vmatprep.subr.mxu0 0.0
    %4514 = vmatpush1.msra.mxu0 0.0
    %4515 = vmatprep.subr.mxu0 0.0
    %4516 = vmatpush1.msra.mxu0 0.0
    %4517 = vmatprep.subr.mxu0 0.0
    %4518 = vmatpush1.msra.mxu0 0.0
    %4519 = vmatprep.subr.mxu0 0.0
    %4520 = vmatpush1.msra.mxu0 0.0
    %4521 = vmatprep.subr.mxu0 0.0
    %4522 = vmatpush1.msra.mxu0 0.0
    %4523 = vmatprep.subr.mxu0 0.0
    %4524 = vmatpush1.msra.mxu0 0.0
    %4525 = vmatprep.subr.mxu0 0.0
    %v4526 = vand.u32 %v3066, 4294901760
    %v4527 = vsub.f32 %v3066, %v4526
    %v4528 = vand.u32 %v4527, 4294901760
    %v4529 = vsub.f32 %v4527, %v4528
    %v4530 = vand.u32 %v4529, 4294901760
    %4531 = vmatpush1.msra.mxu0 %v4530
    %4532 = vmatprep.subr.mxu0 0.0
    %v4533 = vand.u32 %v3060, 4294901760
    %v4534 = vsub.f32 %v3060, %v4533
    %v4535 = vand.u32 %v4534, 4294901760
    %v4536 = vsub.f32 %v4534, %v4535
    %v4537 = vand.u32 %v4536, 4294901760
    %4538 = vmatpush1.msra.mxu0 %v4537
    %4539 = vmatprep.subr.mxu0 0.0
    %4540 = vmatpush2.msra.mxu0 0.0
    %4541 = vmatprep.subr.mxu0 0.0
    %4542 = vmatpush2.msra.mxu0 0.0
    %4543 = vmatprep.subr.mxu0 0.0
    %4544 = vmatpush2.msra.mxu0 0.0
    %4545 = vmatprep.subr.mxu0 0.0
    %4546 = vmatpush2.msra.mxu0 0.0
    %4547 = vmatprep.subr.mxu0 0.0
    %4548 = vmatpush2.msra.mxu0 0.0
    %4549 = vmatprep.subr.mxu0 0.0
    %4550 = vmatpush2.msra.mxu0 0.0
    %4551 = vmatprep.subr.mxu0 0.0
    %4552 = vmatpush2.msra.mxu0 0.0
    %4553 = vmatprep.subr.mxu0 0.0
    %4554 = vmatpush2.msra.mxu0 0.0
    %4555 = vmatprep.subr.mxu0 0.0
    %4556 = vmatpush2.msra.mxu0 0.0
    %4557 = vmatprep.subr.mxu0 0.0
    %4558 = vmatpush2.msra.mxu0 0.0
    %4559 = vmatprep.subr.mxu0 0.0
    %4560 = vmatpush2.msra.mxu0 0.0
    %4561 = vmatprep.subr.mxu0 0.0
    %4562 = vmatpush2.msra.mxu0 0.0
    %4563 = vmatprep.subr.mxu0 0.0
    %4564 = vmatpush2.msra.mxu0 0.0
    %4565 = vmatprep.subr.mxu0 0.0
    %4566 = vmatpush2.msra.mxu0 0.0
    %4567 = vmatprep.subr.mxu0 0.0
    %4568 = vmatpush2.msra.mxu0 0.0
    %4569 = vmatprep.subr.mxu0 0.0
    %4570 = vmatpush2.msra.mxu0 0.0
    %4571 = vmatprep.mubr.f32.mxu0 0.0
    %v4572 = vand.u32 %v4223, 4294901760
    %4573 = vmatmul.mubr.f32.gmra.mxu0 %v4572
    %v4574 = vpop.f32.mrf.mxu0
    %v4575 = vadd.f32 %v4344, %v4574
    %v4576 = vpop.f32.mrf.mxu0
    %4577 = vmatprep.mubr.f32.mxu0 0.0
    %v4578 = vand.u32 %v4226, 4294901760
    %4579 = vmatmul.mubr.f32.gmra.mxu0 %v4578
    %v4580 = vpop.f32.mrf.mxu0
    %v4581 = vadd.f32 %v4354, %v4580
    %v4582 = vpop.f32.mrf.mxu0
    %4583 = vmatprep.mubr.f32.mxu0 0.0
    %v4584 = vand.u32 %v4229, 4294901760
    %4585 = vmatmul.mubr.f32.gmra.mxu0 %v4584
    %v4586 = vpop.f32.mrf.mxu0
    %v4587 = vadd.f32 %v4364, %v4586
    %v4588 = vpop.f32.mrf.mxu0
    %4589 = vmatprep.mubr.f32.mxu0 0.0
    %v4590 = vand.u32 %v4232, 4294901760
    %4591 = vmatmul.mubr.f32.gmra.mxu0 %v4590
    %v4592 = vpop.f32.mrf.mxu0
    %v4593 = vadd.f32 %v4374, %v4592
    %v4594 = vpop.f32.mrf.mxu0
    %4595 = vmatprep.mubr.f32.mxu0 0.0
    %v4596 = vand.u32 %v4235, 4294901760
    %4597 = vmatmul.mubr.f32.gmra.mxu0 %v4596
    %v4598 = vpop.f32.mrf.mxu0
    %v4599 = vadd.f32 %v4384, %v4598
    %v4600 = vpop.f32.mrf.mxu0
    %4601 = vmatprep.mubr.f32.mxu0 0.0
    %v4602 = vand.u32 %v4238, 4294901760
    %4603 = vmatmul.mubr.f32.gmra.mxu0 %v4602
    %v4604 = vpop.f32.mrf.mxu0
    %v4605 = vadd.f32 %v4394, %v4604
    %v4606 = vpop.f32.mrf.mxu0
    %4607 = vmatprep.mubr.f32.mxu0 0.0
    %v4608 = vand.u32 %v4241, 4294901760
    %4609 = vmatmul.mubr.f32.gmra.mxu0 %v4608
    %v4610 = vpop.f32.mrf.mxu0
    %v4611 = vadd.f32 %v4404, %v4610
    %v4612 = vpop.f32.mrf.mxu0
    %4613 = vmatprep.mubr.f32.mxu0 0.0
    %v4614 = vand.u32 %v4244, 4294901760
    %4615 = vmatmul.mubr.f32.gmra.mxu0 %v4614
    %v4616 = vpop.f32.mrf.mxu0
    %v4617 = vadd.f32 %v4414, %v4616
    %v4618 = vpop.f32.mrf.mxu0
    %4619 = vmatprep.mubr.f32.mxu0 0.0
    %v4620 = vand.u32 %v4247, 4294901760
    %4621 = vmatmul.mubr.f32.gmra.mxu0 %v4620
    %v4622 = vpop.f32.mrf.mxu0
    %v4623 = vadd.f32 %v4424, %v4622
    %v4624 = vpop.f32.mrf.mxu0
    %4625 = vmatprep.mubr.f32.mxu0 0.0
    %v4626 = vand.u32 %v4250, 4294901760
    %4627 = vmatmul.mubr.f32.gmra.mxu0 %v4626
    %v4628 = vpop.f32.mrf.mxu0
    %v4629 = vadd.f32 %v4434, %v4628
    %v4630 = vpop.f32.mrf.mxu0
    %4631 = vmatprep.mubr.f32.mxu0 0.0
    %v4632 = vand.u32 %v4253, 4294901760
    %4633 = vmatmul.mubr.f32.gmra.mxu0 %v4632
    %v4634 = vpop.f32.mrf.mxu0
    %v4635 = vadd.f32 %v4444, %v4634
    %v4636 = vpop.f32.mrf.mxu0
    %4637 = vmatprep.mubr.f32.mxu0 0.0
    %v4638 = vand.u32 %v4256, 4294901760
    %4639 = vmatmul.mubr.f32.gmra.mxu0 %v4638
    %v4640 = vpop.f32.mrf.mxu0
    %v4641 = vadd.f32 %v4454, %v4640
    %v4642 = vpop.f32.mrf.mxu0
    %4643 = vmatprep.mubr.f32.mxu0 0.0
    %v4644 = vand.u32 %v4259, 4294901760
    %4645 = vmatmul.mubr.f32.gmra.mxu0 %v4644
    %v4646 = vpop.f32.mrf.mxu0
    %v4647 = vadd.f32 %v4464, %v4646
    %v4648 = vpop.f32.mrf.mxu0
    %4649 = vmatprep.mubr.f32.mxu0 0.0
    %v4650 = vand.u32 %v4262, 4294901760
    %4651 = vmatmul.mubr.f32.gmra.mxu0 %v4650
    %v4652 = vpop.f32.mrf.mxu0
    %v4653 = vadd.f32 %v4474, %v4652
    %v4654 = vpop.f32.mrf.mxu0
    %4655 = vmatprep.mubr.f32.mxu0 0.0
    %v4656 = vand.u32 %v4265, 4294901760
    %4657 = vmatmul.mubr.f32.gmra.mxu0 %v4656
    %v4658 = vpop.f32.mrf.mxu0
    %v4659 = vadd.f32 %v4484, %v4658
    %v4660 = vpop.f32.mrf.mxu0
    %4661 = vmatprep.mubr.f32.mxu0 0.0
    %v4662 = vand.u32 %v4268, 4294901760
    %4663 = vmatmul.mubr.f32.gmra.mxu0 %v4662
    %v4664 = vpop.f32.mrf.mxu0
    %v4665 = vadd.f32 %v4494, %v4664
    %v4666 = vpop.f32.mrf.mxu0
    %4667 = vdwg.mxu0
    %4668 = vmatprep.subr.mxu0 0.0
    %4669 = vmatpush1.msra.mxu0 0.0
    %4670 = vmatprep.subr.mxu0 0.0
    %4671 = vmatpush1.msra.mxu0 0.0
    %4672 = vmatprep.subr.mxu0 0.0
    %4673 = vmatpush1.msra.mxu0 0.0
    %4674 = vmatprep.subr.mxu0 0.0
    %4675 = vmatpush1.msra.mxu0 0.0
    %4676 = vmatprep.subr.mxu0 0.0
    %4677 = vmatpush1.msra.mxu0 0.0
    %4678 = vmatprep.subr.mxu0 0.0
    %4679 = vmatpush1.msra.mxu0 0.0
    %4680 = vmatprep.subr.mxu0 0.0
    %4681 = vmatpush1.msra.mxu0 0.0
    %4682 = vmatprep.subr.mxu0 0.0
    %4683 = vmatpush1.msra.mxu0 0.0
    %4684 = vmatprep.subr.mxu0 0.0
    %4685 = vmatpush1.msra.mxu0 0.0
    %4686 = vmatprep.subr.mxu0 0.0
    %4687 = vmatpush1.msra.mxu0 0.0
    %4688 = vmatprep.subr.mxu0 0.0
    %4689 = vmatpush1.msra.mxu0 0.0
    %4690 = vmatprep.subr.mxu0 0.0
    %4691 = vmatpush1.msra.mxu0 0.0
    %4692 = vmatprep.subr.mxu0 0.0
    %4693 = vmatpush1.msra.mxu0 0.0
    %4694 = vmatprep.subr.mxu0 0.0
    %4695 = vmatpush1.msra.mxu0 0.0
    %4696 = vmatprep.subr.mxu0 0.0
    %v4697 = vand.u32 %v3066, 4294901760
    %v4698 = vsub.f32 %v3066, %v4697
    %4699 = vmatpush1.msra.mxu0 %v4698
    %4700 = vmatprep.subr.mxu0 0.0
    %v4701 = vand.u32 %v3060, 4294901760
    %v4702 = vsub.f32 %v3060, %v4701
    %4703 = vmatpush1.msra.mxu0 %v4702
    %4704 = vmatprep.subr.mxu0 0.0
    %4705 = vmatpush2.msra.mxu0 0.0
    %4706 = vmatprep.subr.mxu0 0.0
    %4707 = vmatpush2.msra.mxu0 0.0
    %4708 = vmatprep.subr.mxu0 0.0
    %4709 = vmatpush2.msra.mxu0 0.0
    %4710 = vmatprep.subr.mxu0 0.0
    %4711 = vmatpush2.msra.mxu0 0.0
    %4712 = vmatprep.subr.mxu0 0.0
    %4713 = vmatpush2.msra.mxu0 0.0
    %4714 = vmatprep.subr.mxu0 0.0
    %4715 = vmatpush2.msra.mxu0 0.0
    %4716 = vmatprep.subr.mxu0 0.0
    %4717 = vmatpush2.msra.mxu0 0.0
    %4718 = vmatprep.subr.mxu0 0.0
    %4719 = vmatpush2.msra.mxu0 0.0
    %4720 = vmatprep.subr.mxu0 0.0
    %4721 = vmatpush2.msra.mxu0 0.0
    %4722 = vmatprep.subr.mxu0 0.0
    %4723 = vmatpush2.msra.mxu0 0.0
    %4724 = vmatprep.subr.mxu0 0.0
    %4725 = vmatpush2.msra.mxu0 0.0
    %4726 = vmatprep.subr.mxu0 0.0
    %4727 = vmatpush2.msra.mxu0 0.0
    %4728 = vmatprep.subr.mxu0 0.0
    %4729 = vmatpush2.msra.mxu0 0.0
    %4730 = vmatprep.subr.mxu0 0.0
    %4731 = vmatpush2.msra.mxu0 0.0
    %4732 = vmatprep.subr.mxu0 0.0
    %4733 = vmatpush2.msra.mxu0 0.0
    %4734 = vmatprep.subr.mxu0 0.0
    %4735 = vmatpush2.msra.mxu0 0.0
    %4736 = vmatprep.mubr.f32.mxu0 0.0
    %v4737 = vand.u32 %v4223, 4294901760
    %v4738 = vsub.f32 %v4223, %v4737
    %4739 = vmatmul.mubr.f32.gmra.mxu0 %v4738
    %v4740 = vpop.f32.mrf.mxu0
    %v4741 = vadd.f32 %v4575, %v4740
    %v4742 = vpop.f32.mrf.mxu0
    %4743 = vmatprep.mubr.f32.mxu0 0.0
    %v4744 = vand.u32 %v4226, 4294901760
    %v4745 = vsub.f32 %v4226, %v4744
    %4746 = vmatmul.mubr.f32.gmra.mxu0 %v4745
    %v4747 = vpop.f32.mrf.mxu0
    %v4748 = vadd.f32 %v4581, %v4747
    %v4749 = vpop.f32.mrf.mxu0
    %4750 = vmatprep.mubr.f32.mxu0 0.0
    %v4751 = vand.u32 %v4229, 4294901760
    %v4752 = vsub.f32 %v4229, %v4751
    %4753 = vmatmul.mubr.f32.gmra.mxu0 %v4752
    %v4754 = vpop.f32.mrf.mxu0
    %v4755 = vadd.f32 %v4587, %v4754
    %v4756 = vpop.f32.mrf.mxu0
    %4757 = vmatprep.mubr.f32.mxu0 0.0
    %v4758 = vand.u32 %v4232, 4294901760
    %v4759 = vsub.f32 %v4232, %v4758
    %4760 = vmatmul.mubr.f32.gmra.mxu0 %v4759
    %v4761 = vpop.f32.mrf.mxu0
    %v4762 = vadd.f32 %v4593, %v4761
    %v4763 = vpop.f32.mrf.mxu0
    %4764 = vmatprep.mubr.f32.mxu0 0.0
    %v4765 = vand.u32 %v4235, 4294901760
    %v4766 = vsub.f32 %v4235, %v4765
    %4767 = vmatmul.mubr.f32.gmra.mxu0 %v4766
    %v4768 = vpop.f32.mrf.mxu0
    %v4769 = vadd.f32 %v4599, %v4768
    %v4770 = vpop.f32.mrf.mxu0
    %4771 = vmatprep.mubr.f32.mxu0 0.0
    %v4772 = vand.u32 %v4238, 4294901760
    %v4773 = vsub.f32 %v4238, %v4772
    %4774 = vmatmul.mubr.f32.gmra.mxu0 %v4773
    %v4775 = vpop.f32.mrf.mxu0
    %v4776 = vadd.f32 %v4605, %v4775
    %v4777 = vpop.f32.mrf.mxu0
    %4778 = vmatprep.mubr.f32.mxu0 0.0
    %v4779 = vand.u32 %v4241, 4294901760
    %v4780 = vsub.f32 %v4241, %v4779
    %4781 = vmatmul.mubr.f32.gmra.mxu0 %v4780
    %v4782 = vpop.f32.mrf.mxu0
    %v4783 = vadd.f32 %v4611, %v4782
    %v4784 = vpop.f32.mrf.mxu0
    %4785 = vmatprep.mubr.f32.mxu0 0.0
    %v4786 = vand.u32 %v4244, 4294901760
    %v4787 = vsub.f32 %v4244, %v4786
    %4788 = vmatmul.mubr.f32.gmra.mxu0 %v4787
    %v4789 = vpop.f32.mrf.mxu0
    %v4790 = vadd.f32 %v4617, %v4789
    %v4791 = vpop.f32.mrf.mxu0
    %4792 = vmatprep.mubr.f32.mxu0 0.0
    %v4793 = vand.u32 %v4247, 4294901760
    %v4794 = vsub.f32 %v4247, %v4793
    %4795 = vmatmul.mubr.f32.gmra.mxu0 %v4794
    %v4796 = vpop.f32.mrf.mxu0
    %v4797 = vadd.f32 %v4623, %v4796
    %v4798 = vpop.f32.mrf.mxu0
    %4799 = vmatprep.mubr.f32.mxu0 0.0
    %v4800 = vand.u32 %v4250, 4294901760
    %v4801 = vsub.f32 %v4250, %v4800
    %4802 = vmatmul.mubr.f32.gmra.mxu0 %v4801
    %v4803 = vpop.f32.mrf.mxu0
    %v4804 = vadd.f32 %v4629, %v4803
    %v4805 = vpop.f32.mrf.mxu0
    %4806 = vmatprep.mubr.f32.mxu0 0.0
    %v4807 = vand.u32 %v4253, 4294901760
    %v4808 = vsub.f32 %v4253, %v4807
    %4809 = vmatmul.mubr.f32.gmra.mxu0 %v4808
    %v4810 = vpop.f32.mrf.mxu0
    %v4811 = vadd.f32 %v4635, %v4810
    %v4812 = vpop.f32.mrf.mxu0
    %4813 = vmatprep.mubr.f32.mxu0 0.0
    %v4814 = vand.u32 %v4256, 4294901760
    %v4815 = vsub.f32 %v4256, %v4814
    %4816 = vmatmul.mubr.f32.gmra.mxu0 %v4815
    %v4817 = vpop.f32.mrf.mxu0
    %v4818 = vadd.f32 %v4641, %v4817
    %v4819 = vpop.f32.mrf.mxu0
    %4820 = vmatprep.mubr.f32.mxu0 0.0
    %v4821 = vand.u32 %v4259, 4294901760
    %v4822 = vsub.f32 %v4259, %v4821
    %4823 = vmatmul.mubr.f32.gmra.mxu0 %v4822
    %v4824 = vpop.f32.mrf.mxu0
    %v4825 = vadd.f32 %v4647, %v4824
    %v4826 = vpop.f32.mrf.mxu0
    %4827 = vmatprep.mubr.f32.mxu0 0.0
    %v4828 = vand.u32 %v4262, 4294901760
    %v4829 = vsub.f32 %v4262, %v4828
    %4830 = vmatmul.mubr.f32.gmra.mxu0 %v4829
    %v4831 = vpop.f32.mrf.mxu0
    %v4832 = vadd.f32 %v4653, %v4831
    %v4833 = vpop.f32.mrf.mxu0
    %4834 = vmatprep.mubr.f32.mxu0 0.0
    %v4835 = vand.u32 %v4265, 4294901760
    %v4836 = vsub.f32 %v4265, %v4835
    %4837 = vmatmul.mubr.f32.gmra.mxu0 %v4836
    %v4838 = vpop.f32.mrf.mxu0
    %v4839 = vadd.f32 %v4659, %v4838
    %v4840 = vpop.f32.mrf.mxu0
    %4841 = vmatprep.mubr.f32.mxu0 0.0
    %v4842 = vand.u32 %v4268, 4294901760
    %v4843 = vsub.f32 %v4268, %v4842
    %4844 = vmatmul.mubr.f32.gmra.mxu0 %v4843
    %v4845 = vpop.f32.mrf.mxu0
    %v4846 = vadd.f32 %v4665, %v4845
    %v4847 = vpop.f32.mrf.mxu0
    %4848 = vdwg.mxu0
    %4849 = vmatprep.subr.mxu0 0.0
    %4850 = vmatpush1.msra.mxu0 0.0
    %4851 = vmatprep.subr.mxu0 0.0
    %4852 = vmatpush1.msra.mxu0 0.0
    %4853 = vmatprep.subr.mxu0 0.0
    %4854 = vmatpush1.msra.mxu0 0.0
    %4855 = vmatprep.subr.mxu0 0.0
    %4856 = vmatpush1.msra.mxu0 0.0
    %4857 = vmatprep.subr.mxu0 0.0
    %4858 = vmatpush1.msra.mxu0 0.0
    %4859 = vmatprep.subr.mxu0 0.0
    %4860 = vmatpush1.msra.mxu0 0.0
    %4861 = vmatprep.subr.mxu0 0.0
    %4862 = vmatpush1.msra.mxu0 0.0
    %4863 = vmatprep.subr.mxu0 0.0
    %4864 = vmatpush1.msra.mxu0 0.0
    %4865 = vmatprep.subr.mxu0 0.0
    %4866 = vmatpush1.msra.mxu0 0.0
    %4867 = vmatprep.subr.mxu0 0.0
    %4868 = vmatpush1.msra.mxu0 0.0
    %4869 = vmatprep.subr.mxu0 0.0
    %4870 = vmatpush1.msra.mxu0 0.0
    %4871 = vmatprep.subr.mxu0 0.0
    %4872 = vmatpush1.msra.mxu0 0.0
    %4873 = vmatprep.subr.mxu0 0.0
    %4874 = vmatpush1.msra.mxu0 0.0
    %4875 = vmatprep.subr.mxu0 0.0
    %4876 = vmatpush1.msra.mxu0 0.0
    %4877 = vmatprep.subr.mxu0 0.0
    %v4878 = vand.u32 %v3066, 4294901760
    %4879 = vmatpush1.msra.mxu0 %v4878
    %4880 = vmatprep.subr.mxu0 0.0
    %v4881 = vand.u32 %v3060, 4294901760
    %4882 = vmatpush1.msra.mxu0 %v4881
    %4883 = vmatprep.subr.mxu0 0.0
    %4884 = vmatpush2.msra.mxu0 0.0
    %4885 = vmatprep.subr.mxu0 0.0
    %4886 = vmatpush2.msra.mxu0 0.0
    %4887 = vmatprep.subr.mxu0 0.0
    %4888 = vmatpush2.msra.mxu0 0.0
    %4889 = vmatprep.subr.mxu0 0.0
    %4890 = vmatpush2.msra.mxu0 0.0
    %4891 = vmatprep.subr.mxu0 0.0
    %4892 = vmatpush2.msra.mxu0 0.0
    %4893 = vmatprep.subr.mxu0 0.0
    %4894 = vmatpush2.msra.mxu0 0.0
    %4895 = vmatprep.subr.mxu0 0.0
    %4896 = vmatpush2.msra.mxu0 0.0
    %4897 = vmatprep.subr.mxu0 0.0
    %4898 = vmatpush2.msra.mxu0 0.0
    %4899 = vmatprep.subr.mxu0 0.0
    %4900 = vmatpush2.msra.mxu0 0.0
    %4901 = vmatprep.subr.mxu0 0.0
    %4902 = vmatpush2.msra.mxu0 0.0
    %4903 = vmatprep.subr.mxu0 0.0
    %4904 = vmatpush2.msra.mxu0 0.0
    %4905 = vmatprep.subr.mxu0 0.0
    %4906 = vmatpush2.msra.mxu0 0.0
    %4907 = vmatprep.subr.mxu0 0.0
    %4908 = vmatpush2.msra.mxu0 0.0
    %4909 = vmatprep.subr.mxu0 0.0
    %4910 = vmatpush2.msra.mxu0 0.0
    %4911 = vmatprep.subr.mxu0 0.0
    %4912 = vmatpush2.msra.mxu0 0.0
    %4913 = vmatprep.subr.mxu0 0.0
    %4914 = vmatpush2.msra.mxu0 0.0
    %4915 = vmatprep.mubr.f32.mxu0 0.0
    %v4916 = vand.u32 %v4223, 4294901760
    %v4917 = vsub.f32 %v4223, %v4916
    %v4918 = vand.u32 %v4917, 4294901760
    %4919 = vmatmul.mubr.f32.gmra.mxu0 %v4918
    %v4920 = vpop.f32.mrf.mxu0
    %v4921 = vadd.f32 %v4741, %v4920
    %v4922 = vpop.f32.mrf.mxu0
    %4923 = vmatprep.mubr.f32.mxu0 0.0
    %v4924 = vand.u32 %v4226, 4294901760
    %v4925 = vsub.f32 %v4226, %v4924
    %v4926 = vand.u32 %v4925, 4294901760
    %4927 = vmatmul.mubr.f32.gmra.mxu0 %v4926
    %v4928 = vpop.f32.mrf.mxu0
    %v4929 = vadd.f32 %v4748, %v4928
    %v4930 = vpop.f32.mrf.mxu0
    %4931 = vmatprep.mubr.f32.mxu0 0.0
    %v4932 = vand.u32 %v4229, 4294901760
    %v4933 = vsub.f32 %v4229, %v4932
    %v4934 = vand.u32 %v4933, 4294901760
    %4935 = vmatmul.mubr.f32.gmra.mxu0 %v4934
    %v4936 = vpop.f32.mrf.mxu0
    %v4937 = vadd.f32 %v4755, %v4936
    %v4938 = vpop.f32.mrf.mxu0
    %4939 = vmatprep.mubr.f32.mxu0 0.0
    %v4940 = vand.u32 %v4232, 4294901760
    %v4941 = vsub.f32 %v4232, %v4940
    %v4942 = vand.u32 %v4941, 4294901760
    %4943 = vmatmul.mubr.f32.gmra.mxu0 %v4942
    %v4944 = vpop.f32.mrf.mxu0
    %v4945 = vadd.f32 %v4762, %v4944
    %v4946 = vpop.f32.mrf.mxu0
    %4947 = vmatprep.mubr.f32.mxu0 0.0
    %v4948 = vand.u32 %v4235, 4294901760
    %v4949 = vsub.f32 %v4235, %v4948
    %v4950 = vand.u32 %v4949, 4294901760
    %4951 = vmatmul.mubr.f32.gmra.mxu0 %v4950
    %v4952 = vpop.f32.mrf.mxu0
    %v4953 = vadd.f32 %v4769, %v4952
    %v4954 = vpop.f32.mrf.mxu0
    %4955 = vmatprep.mubr.f32.mxu0 0.0
    %v4956 = vand.u32 %v4238, 4294901760
    %v4957 = vsub.f32 %v4238, %v4956
    %v4958 = vand.u32 %v4957, 4294901760
    %4959 = vmatmul.mubr.f32.gmra.mxu0 %v4958
    %v4960 = vpop.f32.mrf.mxu0
    %v4961 = vadd.f32 %v4776, %v4960
    %v4962 = vpop.f32.mrf.mxu0
    %4963 = vmatprep.mubr.f32.mxu0 0.0
    %v4964 = vand.u32 %v4241, 4294901760
    %v4965 = vsub.f32 %v4241, %v4964
    %v4966 = vand.u32 %v4965, 4294901760
    %4967 = vmatmul.mubr.f32.gmra.mxu0 %v4966
    %v4968 = vpop.f32.mrf.mxu0
    %v4969 = vadd.f32 %v4783, %v4968
    %v4970 = vpop.f32.mrf.mxu0
    %4971 = vmatprep.mubr.f32.mxu0 0.0
    %v4972 = vand.u32 %v4244, 4294901760
    %v4973 = vsub.f32 %v4244, %v4972
    %v4974 = vand.u32 %v4973, 4294901760
    %4975 = vmatmul.mubr.f32.gmra.mxu0 %v4974
    %v4976 = vpop.f32.mrf.mxu0
    %v4977 = vadd.f32 %v4790, %v4976
    %v4978 = vpop.f32.mrf.mxu0
    %4979 = vmatprep.mubr.f32.mxu0 0.0
    %v4980 = vand.u32 %v4247, 4294901760
    %v4981 = vsub.f32 %v4247, %v4980
    %v4982 = vand.u32 %v4981, 4294901760
    %4983 = vmatmul.mubr.f32.gmra.mxu0 %v4982
    %v4984 = vpop.f32.mrf.mxu0
    %v4985 = vadd.f32 %v4797, %v4984
    %v4986 = vpop.f32.mrf.mxu0
    %4987 = vmatprep.mubr.f32.mxu0 0.0
    %v4988 = vand.u32 %v4250, 4294901760
    %v4989 = vsub.f32 %v4250, %v4988
    %v4990 = vand.u32 %v4989, 4294901760
    %4991 = vmatmul.mubr.f32.gmra.mxu0 %v4990
    %v4992 = vpop.f32.mrf.mxu0
    %v4993 = vadd.f32 %v4804, %v4992
    %v4994 = vpop.f32.mrf.mxu0
    %4995 = vmatprep.mubr.f32.mxu0 0.0
    %v4996 = vand.u32 %v4253, 4294901760
    %v4997 = vsub.f32 %v4253, %v4996
    %v4998 = vand.u32 %v4997, 4294901760
    %4999 = vmatmul.mubr.f32.gmra.mxu0 %v4998
    %v5000 = vpop.f32.mrf.mxu0
    %v5001 = vadd.f32 %v4811, %v5000
    %v5002 = vpop.f32.mrf.mxu0
    %5003 = vmatprep.mubr.f32.mxu0 0.0
    %v5004 = vand.u32 %v4256, 4294901760
    %v5005 = vsub.f32 %v4256, %v5004
    %v5006 = vand.u32 %v5005, 4294901760
    %5007 = vmatmul.mubr.f32.gmra.mxu0 %v5006
    %v5008 = vpop.f32.mrf.mxu0
    %v5009 = vadd.f32 %v4818, %v5008
    %v5010 = vpop.f32.mrf.mxu0
    %5011 = vmatprep.mubr.f32.mxu0 0.0
    %v5012 = vand.u32 %v4259, 4294901760
    %v5013 = vsub.f32 %v4259, %v5012
    %v5014 = vand.u32 %v5013, 4294901760
    %5015 = vmatmul.mubr.f32.gmra.mxu0 %v5014
    %v5016 = vpop.f32.mrf.mxu0
    %v5017 = vadd.f32 %v4825, %v5016
    %v5018 = vpop.f32.mrf.mxu0
    %5019 = vmatprep.mubr.f32.mxu0 0.0
    %v5020 = vand.u32 %v4262, 4294901760
    %v5021 = vsub.f32 %v4262, %v5020
    %v5022 = vand.u32 %v5021, 4294901760
    %5023 = vmatmul.mubr.f32.gmra.mxu0 %v5022
    %v5024 = vpop.f32.mrf.mxu0
    %v5025 = vadd.f32 %v4832, %v5024
    %v5026 = vpop.f32.mrf.mxu0
    %5027 = vmatprep.mubr.f32.mxu0 0.0
    %v5028 = vand.u32 %v4265, 4294901760
    %v5029 = vsub.f32 %v4265, %v5028
    %v5030 = vand.u32 %v5029, 4294901760
    %5031 = vmatmul.mubr.f32.gmra.mxu0 %v5030
    %v5032 = vpop.f32.mrf.mxu0
    %v5033 = vadd.f32 %v4839, %v5032
    %v5034 = vpop.f32.mrf.mxu0
    %5035 = vmatprep.mubr.f32.mxu0 0.0
    %v5036 = vand.u32 %v4268, 4294901760
    %v5037 = vsub.f32 %v4268, %v5036
    %v5038 = vand.u32 %v5037, 4294901760
    %5039 = vmatmul.mubr.f32.gmra.mxu0 %v5038
    %v5040 = vpop.f32.mrf.mxu0
    %v5041 = vadd.f32 %v4846, %v5040
    %v5042 = vpop.f32.mrf.mxu0
    %5043 = vdwg.mxu0
    %5044 = vmatprep.subr.mxu0 0.0
    %5045 = vmatpush1.msra.mxu0 0.0
    %5046 = vmatprep.subr.mxu0 0.0
    %5047 = vmatpush1.msra.mxu0 0.0
    %5048 = vmatprep.subr.mxu0 0.0
    %5049 = vmatpush1.msra.mxu0 0.0
    %5050 = vmatprep.subr.mxu0 0.0
    %5051 = vmatpush1.msra.mxu0 0.0
    %5052 = vmatprep.subr.mxu0 0.0
    %5053 = vmatpush1.msra.mxu0 0.0
    %5054 = vmatprep.subr.mxu0 0.0
    %5055 = vmatpush1.msra.mxu0 0.0
    %5056 = vmatprep.subr.mxu0 0.0
    %5057 = vmatpush1.msra.mxu0 0.0
    %5058 = vmatprep.subr.mxu0 0.0
    %5059 = vmatpush1.msra.mxu0 0.0
    %5060 = vmatprep.subr.mxu0 0.0
    %5061 = vmatpush1.msra.mxu0 0.0
    %5062 = vmatprep.subr.mxu0 0.0
    %5063 = vmatpush1.msra.mxu0 0.0
    %5064 = vmatprep.subr.mxu0 0.0
    %5065 = vmatpush1.msra.mxu0 0.0
    %5066 = vmatprep.subr.mxu0 0.0
    %5067 = vmatpush1.msra.mxu0 0.0
    %5068 = vmatprep.subr.mxu0 0.0
    %5069 = vmatpush1.msra.mxu0 0.0
    %5070 = vmatprep.subr.mxu0 0.0
    %5071 = vmatpush1.msra.mxu0 0.0
    %5072 = vmatprep.subr.mxu0 0.0
    %v5073 = vand.u32 %v3066, 4294901760
    %v5074 = vsub.f32 %v3066, %v5073
    %v5075 = vand.u32 %v5074, 4294901760
    %5076 = vmatpush1.msra.mxu0 %v5075
    %5077 = vmatprep.subr.mxu0 0.0
    %v5078 = vand.u32 %v3060, 4294901760
    %v5079 = vsub.f32 %v3060, %v5078
    %v5080 = vand.u32 %v5079, 4294901760
    %5081 = vmatpush1.msra.mxu0 %v5080
    %5082 = vmatprep.subr.mxu0 0.0
    %5083 = vmatpush2.msra.mxu0 0.0
    %5084 = vmatprep.subr.mxu0 0.0
    %5085 = vmatpush2.msra.mxu0 0.0
    %5086 = vmatprep.subr.mxu0 0.0
    %5087 = vmatpush2.msra.mxu0 0.0
    %5088 = vmatprep.subr.mxu0 0.0
    %5089 = vmatpush2.msra.mxu0 0.0
    %5090 = vmatprep.subr.mxu0 0.0
    %5091 = vmatpush2.msra.mxu0 0.0
    %5092 = vmatprep.subr.mxu0 0.0
    %5093 = vmatpush2.msra.mxu0 0.0
    %5094 = vmatprep.subr.mxu0 0.0
    %5095 = vmatpush2.msra.mxu0 0.0
    %5096 = vmatprep.subr.mxu0 0.0
    %5097 = vmatpush2.msra.mxu0 0.0
    %5098 = vmatprep.subr.mxu0 0.0
    %5099 = vmatpush2.msra.mxu0 0.0
    %5100 = vmatprep.subr.mxu0 0.0
    %5101 = vmatpush2.msra.mxu0 0.0
    %5102 = vmatprep.subr.mxu0 0.0
    %5103 = vmatpush2.msra.mxu0 0.0
    %5104 = vmatprep.subr.mxu0 0.0
    %5105 = vmatpush2.msra.mxu0 0.0
    %5106 = vmatprep.subr.mxu0 0.0
    %5107 = vmatpush2.msra.mxu0 0.0
    %5108 = vmatprep.subr.mxu0 0.0
    %5109 = vmatpush2.msra.mxu0 0.0
    %5110 = vmatprep.subr.mxu0 0.0
    %5111 = vmatpush2.msra.mxu0 0.0
    %5112 = vmatprep.subr.mxu0 0.0
    %5113 = vmatpush2.msra.mxu0 0.0
    %5114 = vmatprep.mubr.f32.mxu0 0.0
    %v5115 = vand.u32 %v4223, 4294901760
    %5116 = vmatmul.mubr.f32.gmra.mxu0 %v5115
    %v5117 = vpop.f32.mrf.mxu0
    %v5118 = vadd.f32 %v4921, %v5117
    %v5119 = vpop.f32.mrf.mxu0
    %5120 = vmatprep.mubr.f32.mxu0 0.0
    %v5121 = vand.u32 %v4226, 4294901760
    %5122 = vmatmul.mubr.f32.gmra.mxu0 %v5121
    %v5123 = vpop.f32.mrf.mxu0
    %v5124 = vadd.f32 %v4929, %v5123
    %v5125 = vpop.f32.mrf.mxu0
    %5126 = vmatprep.mubr.f32.mxu0 0.0
    %v5127 = vand.u32 %v4229, 4294901760
    %5128 = vmatmul.mubr.f32.gmra.mxu0 %v5127
    %v5129 = vpop.f32.mrf.mxu0
    %v5130 = vadd.f32 %v4937, %v5129
    %v5131 = vpop.f32.mrf.mxu0
    %5132 = vmatprep.mubr.f32.mxu0 0.0
    %v5133 = vand.u32 %v4232, 4294901760
    %5134 = vmatmul.mubr.f32.gmra.mxu0 %v5133
    %v5135 = vpop.f32.mrf.mxu0
    %v5136 = vadd.f32 %v4945, %v5135
    %v5137 = vpop.f32.mrf.mxu0
    %5138 = vmatprep.mubr.f32.mxu0 0.0
    %v5139 = vand.u32 %v4235, 4294901760
    %5140 = vmatmul.mubr.f32.gmra.mxu0 %v5139
    %v5141 = vpop.f32.mrf.mxu0
    %v5142 = vadd.f32 %v4953, %v5141
    %v5143 = vpop.f32.mrf.mxu0
    %5144 = vmatprep.mubr.f32.mxu0 0.0
    %v5145 = vand.u32 %v4238, 4294901760
    %5146 = vmatmul.mubr.f32.gmra.mxu0 %v5145
    %v5147 = vpop.f32.mrf.mxu0
    %v5148 = vadd.f32 %v4961, %v5147
    %v5149 = vpop.f32.mrf.mxu0
    %5150 = vmatprep.mubr.f32.mxu0 0.0
    %v5151 = vand.u32 %v4241, 4294901760
    %5152 = vmatmul.mubr.f32.gmra.mxu0 %v5151
    %v5153 = vpop.f32.mrf.mxu0
    %v5154 = vadd.f32 %v4969, %v5153
    %v5155 = vpop.f32.mrf.mxu0
    %5156 = vmatprep.mubr.f32.mxu0 0.0
    %v5157 = vand.u32 %v4244, 4294901760
    %5158 = vmatmul.mubr.f32.gmra.mxu0 %v5157
    %v5159 = vpop.f32.mrf.mxu0
    %v5160 = vadd.f32 %v4977, %v5159
    %v5161 = vpop.f32.mrf.mxu0
    %5162 = vmatprep.mubr.f32.mxu0 0.0
    %v5163 = vand.u32 %v4247, 4294901760
    %5164 = vmatmul.mubr.f32.gmra.mxu0 %v5163
    %v5165 = vpop.f32.mrf.mxu0
    %v5166 = vadd.f32 %v4985, %v5165
    %v5167 = vpop.f32.mrf.mxu0
    %5168 = vmatprep.mubr.f32.mxu0 0.0
    %v5169 = vand.u32 %v4250, 4294901760
    %5170 = vmatmul.mubr.f32.gmra.mxu0 %v5169
    %v5171 = vpop.f32.mrf.mxu0
    %v5172 = vadd.f32 %v4993, %v5171
    %v5173 = vpop.f32.mrf.mxu0
    %5174 = vmatprep.mubr.f32.mxu0 0.0
    %v5175 = vand.u32 %v4253, 4294901760
    %5176 = vmatmul.mubr.f32.gmra.mxu0 %v5175
    %v5177 = vpop.f32.mrf.mxu0
    %v5178 = vadd.f32 %v5001, %v5177
    %v5179 = vpop.f32.mrf.mxu0
    %5180 = vmatprep.mubr.f32.mxu0 0.0
    %v5181 = vand.u32 %v4256, 4294901760
    %5182 = vmatmul.mubr.f32.gmra.mxu0 %v5181
    %v5183 = vpop.f32.mrf.mxu0
    %v5184 = vadd.f32 %v5009, %v5183
    %v5185 = vpop.f32.mrf.mxu0
    %5186 = vmatprep.mubr.f32.mxu0 0.0
    %v5187 = vand.u32 %v4259, 4294901760
    %5188 = vmatmul.mubr.f32.gmra.mxu0 %v5187
    %v5189 = vpop.f32.mrf.mxu0
    %v5190 = vadd.f32 %v5017, %v5189
    %v5191 = vpop.f32.mrf.mxu0
    %5192 = vmatprep.mubr.f32.mxu0 0.0
    %v5193 = vand.u32 %v4262, 4294901760
    %5194 = vmatmul.mubr.f32.gmra.mxu0 %v5193
    %v5195 = vpop.f32.mrf.mxu0
    %v5196 = vadd.f32 %v5025, %v5195
    %v5197 = vpop.f32.mrf.mxu0
    %5198 = vmatprep.mubr.f32.mxu0 0.0
    %v5199 = vand.u32 %v4265, 4294901760
    %5200 = vmatmul.mubr.f32.gmra.mxu0 %v5199
    %v5201 = vpop.f32.mrf.mxu0
    %v5202 = vadd.f32 %v5033, %v5201
    %v5203 = vpop.f32.mrf.mxu0
    %5204 = vmatprep.mubr.f32.mxu0 0.0
    %v5205 = vand.u32 %v4268, 4294901760
    %5206 = vmatmul.mubr.f32.gmra.mxu0 %v5205
    %v5207 = vpop.f32.mrf.mxu0
    %v5208 = vadd.f32 %v5041, %v5207
    %v5209 = vpop.f32.mrf.mxu0
    %5210 = vdwg.mxu0
    %5211 = vmatprep.subr.mxu0 0.0
    %5212 = vmatpush1.msra.mxu0 0.0
    %5213 = vmatprep.subr.mxu0 0.0
    %5214 = vmatpush1.msra.mxu0 0.0
    %5215 = vmatprep.subr.mxu0 0.0
    %5216 = vmatpush1.msra.mxu0 0.0
    %5217 = vmatprep.subr.mxu0 0.0
    %5218 = vmatpush1.msra.mxu0 0.0
    %5219 = vmatprep.subr.mxu0 0.0
    %5220 = vmatpush1.msra.mxu0 0.0
    %5221 = vmatprep.subr.mxu0 0.0
    %5222 = vmatpush1.msra.mxu0 0.0
    %5223 = vmatprep.subr.mxu0 0.0
    %5224 = vmatpush1.msra.mxu0 0.0
    %5225 = vmatprep.subr.mxu0 0.0
    %5226 = vmatpush1.msra.mxu0 0.0
    %5227 = vmatprep.subr.mxu0 0.0
    %5228 = vmatpush1.msra.mxu0 0.0
    %5229 = vmatprep.subr.mxu0 0.0
    %5230 = vmatpush1.msra.mxu0 0.0
    %5231 = vmatprep.subr.mxu0 0.0
    %5232 = vmatpush1.msra.mxu0 0.0
    %5233 = vmatprep.subr.mxu0 0.0
    %5234 = vmatpush1.msra.mxu0 0.0
    %5235 = vmatprep.subr.mxu0 0.0
    %5236 = vmatpush1.msra.mxu0 0.0
    %5237 = vmatprep.subr.mxu0 0.0
    %5238 = vmatpush1.msra.mxu0 0.0
    %5239 = vmatprep.subr.mxu0 0.0
    %v5240 = vand.u32 %v3066, 4294901760
    %5241 = vmatpush1.msra.mxu0 %v5240
    %5242 = vmatprep.subr.mxu0 0.0
    %v5243 = vand.u32 %v3060, 4294901760
    %5244 = vmatpush1.msra.mxu0 %v5243
    %5245 = vmatprep.subr.mxu0 0.0
    %5246 = vmatpush2.msra.mxu0 0.0
    %5247 = vmatprep.subr.mxu0 0.0
    %5248 = vmatpush2.msra.mxu0 0.0
    %5249 = vmatprep.subr.mxu0 0.0
    %5250 = vmatpush2.msra.mxu0 0.0
    %5251 = vmatprep.subr.mxu0 0.0
    %5252 = vmatpush2.msra.mxu0 0.0
    %5253 = vmatprep.subr.mxu0 0.0
    %5254 = vmatpush2.msra.mxu0 0.0
    %5255 = vmatprep.subr.mxu0 0.0
    %5256 = vmatpush2.msra.mxu0 0.0
    %5257 = vmatprep.subr.mxu0 0.0
    %5258 = vmatpush2.msra.mxu0 0.0
    %5259 = vmatprep.subr.mxu0 0.0
    %5260 = vmatpush2.msra.mxu0 0.0
    %5261 = vmatprep.subr.mxu0 0.0
    %5262 = vmatpush2.msra.mxu0 0.0
    %5263 = vmatprep.subr.mxu0 0.0
    %5264 = vmatpush2.msra.mxu0 0.0
    %5265 = vmatprep.subr.mxu0 0.0
    %5266 = vmatpush2.msra.mxu0 0.0
    %5267 = vmatprep.subr.mxu0 0.0
    %5268 = vmatpush2.msra.mxu0 0.0
    %5269 = vmatprep.subr.mxu0 0.0
    %5270 = vmatpush2.msra.mxu0 0.0
    %5271 = vmatprep.subr.mxu0 0.0
    %5272 = vmatpush2.msra.mxu0 0.0
    %5273 = vmatprep.subr.mxu0 0.0
    %5274 = vmatpush2.msra.mxu0 0.0
    %5275 = vmatprep.subr.mxu0 0.0
    %5276 = vmatpush2.msra.mxu0 0.0
    %5277 = vmatprep.mubr.f32.mxu0 0.0
    %v5278 = vand.u32 %v4223, 4294901760
    %5279 = vmatmul.mubr.f32.gmra.mxu0 %v5278
    %v5280 = vpop.f32.mrf.mxu0
    %v5281 = vadd.f32 %v5118, %v5280
    %v5282 = vpop.f32.mrf.mxu0
    %5283 = vmatprep.mubr.f32.mxu0 0.0
    %v5284 = vand.u32 %v4226, 4294901760
    %5285 = vmatmul.mubr.f32.gmra.mxu0 %v5284
    %v5286 = vpop.f32.mrf.mxu0
    %v5287 = vadd.f32 %v5124, %v5286
    %v5288 = vpop.f32.mrf.mxu0
    %5289 = vmatprep.mubr.f32.mxu0 0.0
    %v5290 = vand.u32 %v4229, 4294901760
    %5291 = vmatmul.mubr.f32.gmra.mxu0 %v5290
    %v5292 = vpop.f32.mrf.mxu0
    %v5293 = vadd.f32 %v5130, %v5292
    %v5294 = vpop.f32.mrf.mxu0
    %5295 = vmatprep.mubr.f32.mxu0 0.0
    %v5296 = vand.u32 %v4232, 4294901760
    %5297 = vmatmul.mubr.f32.gmra.mxu0 %v5296
    %v5298 = vpop.f32.mrf.mxu0
    %v5299 = vadd.f32 %v5136, %v5298
    %v5300 = vpop.f32.mrf.mxu0
    %5301 = vmatprep.mubr.f32.mxu0 0.0
    %v5302 = vand.u32 %v4235, 4294901760
    %5303 = vmatmul.mubr.f32.gmra.mxu0 %v5302
    %v5304 = vpop.f32.mrf.mxu0
    %v5305 = vadd.f32 %v5142, %v5304
    %v5306 = vpop.f32.mrf.mxu0
    %5307 = vmatprep.mubr.f32.mxu0 0.0
    %v5308 = vand.u32 %v4238, 4294901760
    %5309 = vmatmul.mubr.f32.gmra.mxu0 %v5308
    %v5310 = vpop.f32.mrf.mxu0
    %v5311 = vadd.f32 %v5148, %v5310
    %v5312 = vpop.f32.mrf.mxu0
    %5313 = vmatprep.mubr.f32.mxu0 0.0
    %v5314 = vand.u32 %v4241, 4294901760
    %5315 = vmatmul.mubr.f32.gmra.mxu0 %v5314
    %v5316 = vpop.f32.mrf.mxu0
    %v5317 = vadd.f32 %v5154, %v5316
    %v5318 = vpop.f32.mrf.mxu0
    %5319 = vmatprep.mubr.f32.mxu0 0.0
    %v5320 = vand.u32 %v4244, 4294901760
    %5321 = vmatmul.mubr.f32.gmra.mxu0 %v5320
    %v5322 = vpop.f32.mrf.mxu0
    %v5323 = vadd.f32 %v5160, %v5322
    %v5324 = vpop.f32.mrf.mxu0
    %5325 = vmatprep.mubr.f32.mxu0 0.0
    %v5326 = vand.u32 %v4247, 4294901760
    %5327 = vmatmul.mubr.f32.gmra.mxu0 %v5326
    %v5328 = vpop.f32.mrf.mxu0
    %v5329 = vadd.f32 %v5166, %v5328
    %v5330 = vpop.f32.mrf.mxu0
    %5331 = vmatprep.mubr.f32.mxu0 0.0
    %v5332 = vand.u32 %v4250, 4294901760
    %5333 = vmatmul.mubr.f32.gmra.mxu0 %v5332
    %v5334 = vpop.f32.mrf.mxu0
    %v5335 = vadd.f32 %v5172, %v5334
    %v5336 = vpop.f32.mrf.mxu0
    %5337 = vmatprep.mubr.f32.mxu0 0.0
    %v5338 = vand.u32 %v4253, 4294901760
    %5339 = vmatmul.mubr.f32.gmra.mxu0 %v5338
    %v5340 = vpop.f32.mrf.mxu0
    %v5341 = vadd.f32 %v5178, %v5340
    %v5342 = vpop.f32.mrf.mxu0
    %5343 = vmatprep.mubr.f32.mxu0 0.0
    %v5344 = vand.u32 %v4256, 4294901760
    %5345 = vmatmul.mubr.f32.gmra.mxu0 %v5344
    %v5346 = vpop.f32.mrf.mxu0
    %v5347 = vadd.f32 %v5184, %v5346
    %v5348 = vpop.f32.mrf.mxu0
    %5349 = vmatprep.mubr.f32.mxu0 0.0
    %v5350 = vand.u32 %v4259, 4294901760
    %5351 = vmatmul.mubr.f32.gmra.mxu0 %v5350
    %v5352 = vpop.f32.mrf.mxu0
    %v5353 = vadd.f32 %v5190, %v5352
    %v5354 = vpop.f32.mrf.mxu0
    %5355 = vmatprep.mubr.f32.mxu0 0.0
    %v5356 = vand.u32 %v4262, 4294901760
    %5357 = vmatmul.mubr.f32.gmra.mxu0 %v5356
    %v5358 = vpop.f32.mrf.mxu0
    %v5359 = vadd.f32 %v5196, %v5358
    %v5360 = vpop.f32.mrf.mxu0
    %5361 = vmatprep.mubr.f32.mxu0 0.0
    %v5362 = vand.u32 %v4265, 4294901760
    %5363 = vmatmul.mubr.f32.gmra.mxu0 %v5362
    %v5364 = vpop.f32.mrf.mxu0
    %v5365 = vadd.f32 %v5202, %v5364
    %v5366 = vpop.f32.mrf.mxu0
    %5367 = vmatprep.mubr.f32.mxu0 0.0
    %v5368 = vand.u32 %v4268, 4294901760
    %5369 = vmatmul.mubr.f32.gmra.mxu0 %v5368
    %v5370 = vpop.f32.mrf.mxu0
    %v5371 = vadd.f32 %v5208, %v5370
    %v5372 = vpop.f32.mrf.mxu0
    %5373 = vdwg.mxu0
    %5374 = vmatprep.subr.mxu0 0.0
    %5375 = vmatpush1.msra.mxu0 0.0
    %5376 = vmatprep.subr.mxu0 0.0
    %5377 = vmatpush1.msra.mxu0 0.0
    %5378 = vmatprep.subr.mxu0 0.0
    %5379 = vmatpush1.msra.mxu0 0.0
    %5380 = vmatprep.subr.mxu0 0.0
    %5381 = vmatpush1.msra.mxu0 0.0
    %5382 = vmatprep.subr.mxu0 0.0
    %5383 = vmatpush1.msra.mxu0 0.0
    %5384 = vmatprep.subr.mxu0 0.0
    %5385 = vmatpush1.msra.mxu0 0.0
    %5386 = vmatprep.subr.mxu0 0.0
    %5387 = vmatpush1.msra.mxu0 0.0
    %5388 = vmatprep.subr.mxu0 0.0
    %5389 = vmatpush1.msra.mxu0 0.0
    %5390 = vmatprep.subr.mxu0 0.0
    %5391 = vmatpush1.msra.mxu0 0.0
    %5392 = vmatprep.subr.mxu0 0.0
    %5393 = vmatpush1.msra.mxu0 0.0
    %5394 = vmatprep.subr.mxu0 0.0
    %5395 = vmatpush1.msra.mxu0 0.0
    %5396 = vmatprep.subr.mxu0 0.0
    %5397 = vmatpush1.msra.mxu0 0.0
    %5398 = vmatprep.subr.mxu0 0.0
    %5399 = vmatpush1.msra.mxu0 0.0
    %5400 = vmatprep.subr.mxu0 0.0
    %5401 = vmatpush1.msra.mxu0 0.0
    %5402 = vmatprep.subr.mxu0 0.0
    %v5403 = vand.u32 %v1998, 4294901760
    %5404 = vmatpush1.msra.mxu0 %v5403
    %5405 = vmatprep.subr.mxu0 0.0
    %v5406 = vand.u32 %v1992, 4294901760
    %5407 = vmatpush1.msra.mxu0 %v5406
    %5408 = vmatprep.subr.mxu0 0.0
    %5409 = vmatpush2.msra.mxu0 0.0
    %5410 = vmatprep.subr.mxu0 0.0
    %5411 = vmatpush2.msra.mxu0 0.0
    %5412 = vmatprep.subr.mxu0 0.0
    %5413 = vmatpush2.msra.mxu0 0.0
    %5414 = vmatprep.subr.mxu0 0.0
    %5415 = vmatpush2.msra.mxu0 0.0
    %5416 = vmatprep.subr.mxu0 0.0
    %5417 = vmatpush2.msra.mxu0 0.0
    %5418 = vmatprep.subr.mxu0 0.0
    %5419 = vmatpush2.msra.mxu0 0.0
    %5420 = vmatprep.subr.mxu0 0.0
    %5421 = vmatpush2.msra.mxu0 0.0
    %5422 = vmatprep.subr.mxu0 0.0
    %5423 = vmatpush2.msra.mxu0 0.0
    %5424 = vmatprep.subr.mxu0 0.0
    %5425 = vmatpush2.msra.mxu0 0.0
    %5426 = vmatprep.subr.mxu0 0.0
    %5427 = vmatpush2.msra.mxu0 0.0
    %5428 = vmatprep.subr.mxu0 0.0
    %5429 = vmatpush2.msra.mxu0 0.0
    %5430 = vmatprep.subr.mxu0 0.0
    %5431 = vmatpush2.msra.mxu0 0.0
    %5432 = vmatprep.subr.mxu0 0.0
    %5433 = vmatpush2.msra.mxu0 0.0
    %5434 = vmatprep.subr.mxu0 0.0
    %5435 = vmatpush2.msra.mxu0 0.0
    %5436 = vmatprep.subr.mxu0 0.0
    %5437 = vmatpush2.msra.mxu0 0.0
    %5438 = vmatprep.subr.mxu0 0.0
    %5439 = vmatpush2.msra.mxu0 0.0
    %5440 = vmatprep.mubr.f32.mxu0 0.0
    %v5441 = vand.u32 %v4223, 4294901760
    %v5442 = vsub.f32 %v4223, %v5441
    %v5443 = vand.u32 %v5442, 4294901760
    %v5444 = vsub.f32 %v5442, %v5443
    %v5445 = vand.u32 %v5444, 4294901760
    %5446 = vmatmul.mubr.f32.gmra.mxu0 %v5445
    %v5447 = vpop.f32.mrf.mxu0
    %v5448 = vadd.f32 0.0, %v5447
    %v5449 = vpop.f32.mrf.mxu0
    %5450 = vmatprep.mubr.f32.mxu0 0.0
    %v5451 = vand.u32 %v4226, 4294901760
    %v5452 = vsub.f32 %v4226, %v5451
    %v5453 = vand.u32 %v5452, 4294901760
    %v5454 = vsub.f32 %v5452, %v5453
    %v5455 = vand.u32 %v5454, 4294901760
    %5456 = vmatmul.mubr.f32.gmra.mxu0 %v5455
    %v5457 = vpop.f32.mrf.mxu0
    %v5458 = vadd.f32 0.0, %v5457
    %v5459 = vpop.f32.mrf.mxu0
    %5460 = vmatprep.mubr.f32.mxu0 0.0
    %v5461 = vand.u32 %v4229, 4294901760
    %v5462 = vsub.f32 %v4229, %v5461
    %v5463 = vand.u32 %v5462, 4294901760
    %v5464 = vsub.f32 %v5462, %v5463
    %v5465 = vand.u32 %v5464, 4294901760
    %5466 = vmatmul.mubr.f32.gmra.mxu0 %v5465
    %v5467 = vpop.f32.mrf.mxu0
    %v5468 = vadd.f32 0.0, %v5467
    %v5469 = vpop.f32.mrf.mxu0
    %5470 = vmatprep.mubr.f32.mxu0 0.0
    %v5471 = vand.u32 %v4232, 4294901760
    %v5472 = vsub.f32 %v4232, %v5471
    %v5473 = vand.u32 %v5472, 4294901760
    %v5474 = vsub.f32 %v5472, %v5473
    %v5475 = vand.u32 %v5474, 4294901760
    %5476 = vmatmul.mubr.f32.gmra.mxu0 %v5475
    %v5477 = vpop.f32.mrf.mxu0
    %v5478 = vadd.f32 0.0, %v5477
    %v5479 = vpop.f32.mrf.mxu0
    %5480 = vmatprep.mubr.f32.mxu0 0.0
    %v5481 = vand.u32 %v4235, 4294901760
    %v5482 = vsub.f32 %v4235, %v5481
    %v5483 = vand.u32 %v5482, 4294901760
    %v5484 = vsub.f32 %v5482, %v5483
    %v5485 = vand.u32 %v5484, 4294901760
    %5486 = vmatmul.mubr.f32.gmra.mxu0 %v5485
    %v5487 = vpop.f32.mrf.mxu0
    %v5488 = vadd.f32 0.0, %v5487
    %v5489 = vpop.f32.mrf.mxu0
    %5490 = vmatprep.mubr.f32.mxu0 0.0
    %v5491 = vand.u32 %v4238, 4294901760
    %v5492 = vsub.f32 %v4238, %v5491
    %v5493 = vand.u32 %v5492, 4294901760
    %v5494 = vsub.f32 %v5492, %v5493
    %v5495 = vand.u32 %v5494, 4294901760
    %5496 = vmatmul.mubr.f32.gmra.mxu0 %v5495
    %v5497 = vpop.f32.mrf.mxu0
    %v5498 = vadd.f32 0.0, %v5497
    %v5499 = vpop.f32.mrf.mxu0
    %5500 = vmatprep.mubr.f32.mxu0 0.0
    %v5501 = vand.u32 %v4241, 4294901760
    %v5502 = vsub.f32 %v4241, %v5501
    %v5503 = vand.u32 %v5502, 4294901760
    %v5504 = vsub.f32 %v5502, %v5503
    %v5505 = vand.u32 %v5504, 4294901760
    %5506 = vmatmul.mubr.f32.gmra.mxu0 %v5505
    %v5507 = vpop.f32.mrf.mxu0
    %v5508 = vadd.f32 0.0, %v5507
    %v5509 = vpop.f32.mrf.mxu0
    %5510 = vmatprep.mubr.f32.mxu0 0.0
    %v5511 = vand.u32 %v4244, 4294901760
    %v5512 = vsub.f32 %v4244, %v5511
    %v5513 = vand.u32 %v5512, 4294901760
    %v5514 = vsub.f32 %v5512, %v5513
    %v5515 = vand.u32 %v5514, 4294901760
    %5516 = vmatmul.mubr.f32.gmra.mxu0 %v5515
    %v5517 = vpop.f32.mrf.mxu0
    %v5518 = vadd.f32 0.0, %v5517
    %v5519 = vpop.f32.mrf.mxu0
    %5520 = vmatprep.mubr.f32.mxu0 0.0
    %v5521 = vand.u32 %v4247, 4294901760
    %v5522 = vsub.f32 %v4247, %v5521
    %v5523 = vand.u32 %v5522, 4294901760
    %v5524 = vsub.f32 %v5522, %v5523
    %v5525 = vand.u32 %v5524, 4294901760
    %5526 = vmatmul.mubr.f32.gmra.mxu0 %v5525
    %v5527 = vpop.f32.mrf.mxu0
    %v5528 = vadd.f32 0.0, %v5527
    %v5529 = vpop.f32.mrf.mxu0
    %5530 = vmatprep.mubr.f32.mxu0 0.0
    %v5531 = vand.u32 %v4250, 4294901760
    %v5532 = vsub.f32 %v4250, %v5531
    %v5533 = vand.u32 %v5532, 4294901760
    %v5534 = vsub.f32 %v5532, %v5533
    %v5535 = vand.u32 %v5534, 4294901760
    %5536 = vmatmul.mubr.f32.gmra.mxu0 %v5535
    %v5537 = vpop.f32.mrf.mxu0
    %v5538 = vadd.f32 0.0, %v5537
    %v5539 = vpop.f32.mrf.mxu0
    %5540 = vmatprep.mubr.f32.mxu0 0.0
    %v5541 = vand.u32 %v4253, 4294901760
    %v5542 = vsub.f32 %v4253, %v5541
    %v5543 = vand.u32 %v5542, 4294901760
    %v5544 = vsub.f32 %v5542, %v5543
    %v5545 = vand.u32 %v5544, 4294901760
    %5546 = vmatmul.mubr.f32.gmra.mxu0 %v5545
    %v5547 = vpop.f32.mrf.mxu0
    %v5548 = vadd.f32 0.0, %v5547
    %v5549 = vpop.f32.mrf.mxu0
    %5550 = vmatprep.mubr.f32.mxu0 0.0
    %v5551 = vand.u32 %v4256, 4294901760
    %v5552 = vsub.f32 %v4256, %v5551
    %v5553 = vand.u32 %v5552, 4294901760
    %v5554 = vsub.f32 %v5552, %v5553
    %v5555 = vand.u32 %v5554, 4294901760
    %5556 = vmatmul.mubr.f32.gmra.mxu0 %v5555
    %v5557 = vpop.f32.mrf.mxu0
    %v5558 = vadd.f32 0.0, %v5557
    %v5559 = vpop.f32.mrf.mxu0
    %5560 = vmatprep.mubr.f32.mxu0 0.0
    %v5561 = vand.u32 %v4259, 4294901760
    %v5562 = vsub.f32 %v4259, %v5561
    %v5563 = vand.u32 %v5562, 4294901760
    %v5564 = vsub.f32 %v5562, %v5563
    %v5565 = vand.u32 %v5564, 4294901760
    %5566 = vmatmul.mubr.f32.gmra.mxu0 %v5565
    %v5567 = vpop.f32.mrf.mxu0
    %v5568 = vadd.f32 0.0, %v5567
    %v5569 = vpop.f32.mrf.mxu0
    %5570 = vmatprep.mubr.f32.mxu0 0.0
    %v5571 = vand.u32 %v4262, 4294901760
    %v5572 = vsub.f32 %v4262, %v5571
    %v5573 = vand.u32 %v5572, 4294901760
    %v5574 = vsub.f32 %v5572, %v5573
    %v5575 = vand.u32 %v5574, 4294901760
    %5576 = vmatmul.mubr.f32.gmra.mxu0 %v5575
    %v5577 = vpop.f32.mrf.mxu0
    %v5578 = vadd.f32 0.0, %v5577
    %v5579 = vpop.f32.mrf.mxu0
    %5580 = vmatprep.mubr.f32.mxu0 0.0
    %v5581 = vand.u32 %v4265, 4294901760
    %v5582 = vsub.f32 %v4265, %v5581
    %v5583 = vand.u32 %v5582, 4294901760
    %v5584 = vsub.f32 %v5582, %v5583
    %v5585 = vand.u32 %v5584, 4294901760
    %5586 = vmatmul.mubr.f32.gmra.mxu0 %v5585
    %v5587 = vpop.f32.mrf.mxu0
    %v5588 = vadd.f32 0.0, %v5587
    %v5589 = vpop.f32.mrf.mxu0
    %5590 = vmatprep.mubr.f32.mxu0 0.0
    %v5591 = vand.u32 %v4268, 4294901760
    %v5592 = vsub.f32 %v4268, %v5591
    %v5593 = vand.u32 %v5592, 4294901760
    %v5594 = vsub.f32 %v5592, %v5593
    %v5595 = vand.u32 %v5594, 4294901760
    %5596 = vmatmul.mubr.f32.gmra.mxu0 %v5595
    %v5597 = vpop.f32.mrf.mxu0
    %v5598 = vadd.f32 0.0, %v5597
    %v5599 = vpop.f32.mrf.mxu0
    %5600 = vdwg.mxu0
    %5601 = vmatprep.subr.mxu0 0.0
    %5602 = vmatpush1.msra.mxu0 0.0
    %5603 = vmatprep.subr.mxu0 0.0
    %5604 = vmatpush1.msra.mxu0 0.0
    %5605 = vmatprep.subr.mxu0 0.0
    %5606 = vmatpush1.msra.mxu0 0.0
    %5607 = vmatprep.subr.mxu0 0.0
    %5608 = vmatpush1.msra.mxu0 0.0
    %5609 = vmatprep.subr.mxu0 0.0
    %5610 = vmatpush1.msra.mxu0 0.0
    %5611 = vmatprep.subr.mxu0 0.0
    %5612 = vmatpush1.msra.mxu0 0.0
    %5613 = vmatprep.subr.mxu0 0.0
    %5614 = vmatpush1.msra.mxu0 0.0
    %5615 = vmatprep.subr.mxu0 0.0
    %5616 = vmatpush1.msra.mxu0 0.0
    %5617 = vmatprep.subr.mxu0 0.0
    %5618 = vmatpush1.msra.mxu0 0.0
    %5619 = vmatprep.subr.mxu0 0.0
    %5620 = vmatpush1.msra.mxu0 0.0
    %5621 = vmatprep.subr.mxu0 0.0
    %5622 = vmatpush1.msra.mxu0 0.0
    %5623 = vmatprep.subr.mxu0 0.0
    %5624 = vmatpush1.msra.mxu0 0.0
    %5625 = vmatprep.subr.mxu0 0.0
    %5626 = vmatpush1.msra.mxu0 0.0
    %5627 = vmatprep.subr.mxu0 0.0
    %5628 = vmatpush1.msra.mxu0 0.0
    %5629 = vmatprep.subr.mxu0 0.0
    %v5630 = vand.u32 %v1998, 4294901760
    %v5631 = vsub.f32 %v1998, %v5630
    %v5632 = vand.u32 %v5631, 4294901760
    %v5633 = vsub.f32 %v5631, %v5632
    %v5634 = vand.u32 %v5633, 4294901760
    %5635 = vmatpush1.msra.mxu0 %v5634
    %5636 = vmatprep.subr.mxu0 0.0
    %v5637 = vand.u32 %v1992, 4294901760
    %v5638 = vsub.f32 %v1992, %v5637
    %v5639 = vand.u32 %v5638, 4294901760
    %v5640 = vsub.f32 %v5638, %v5639
    %v5641 = vand.u32 %v5640, 4294901760
    %5642 = vmatpush1.msra.mxu0 %v5641
    %5643 = vmatprep.subr.mxu0 0.0
    %5644 = vmatpush2.msra.mxu0 0.0
    %5645 = vmatprep.subr.mxu0 0.0
    %5646 = vmatpush2.msra.mxu0 0.0
    %5647 = vmatprep.subr.mxu0 0.0
    %5648 = vmatpush2.msra.mxu0 0.0
    %5649 = vmatprep.subr.mxu0 0.0
    %5650 = vmatpush2.msra.mxu0 0.0
    %5651 = vmatprep.subr.mxu0 0.0
    %5652 = vmatpush2.msra.mxu0 0.0
    %5653 = vmatprep.subr.mxu0 0.0
    %5654 = vmatpush2.msra.mxu0 0.0
    %5655 = vmatprep.subr.mxu0 0.0
    %5656 = vmatpush2.msra.mxu0 0.0
    %5657 = vmatprep.subr.mxu0 0.0
    %5658 = vmatpush2.msra.mxu0 0.0
    %5659 = vmatprep.subr.mxu0 0.0
    %5660 = vmatpush2.msra.mxu0 0.0
    %5661 = vmatprep.subr.mxu0 0.0
    %5662 = vmatpush2.msra.mxu0 0.0
    %5663 = vmatprep.subr.mxu0 0.0
    %5664 = vmatpush2.msra.mxu0 0.0
    %5665 = vmatprep.subr.mxu0 0.0
    %5666 = vmatpush2.msra.mxu0 0.0
    %5667 = vmatprep.subr.mxu0 0.0
    %5668 = vmatpush2.msra.mxu0 0.0
    %5669 = vmatprep.subr.mxu0 0.0
    %5670 = vmatpush2.msra.mxu0 0.0
    %5671 = vmatprep.subr.mxu0 0.0
    %5672 = vmatpush2.msra.mxu0 0.0
    %5673 = vmatprep.subr.mxu0 0.0
    %5674 = vmatpush2.msra.mxu0 0.0
    %5675 = vmatprep.mubr.f32.mxu0 0.0
    %v5676 = vand.u32 %v4223, 4294901760
    %5677 = vmatmul.mubr.f32.gmra.mxu0 %v5676
    %v5678 = vpop.f32.mrf.mxu0
    %v5679 = vadd.f32 %v5448, %v5678
    %v5680 = vpop.f32.mrf.mxu0
    %5681 = vmatprep.mubr.f32.mxu0 0.0
    %v5682 = vand.u32 %v4226, 4294901760
    %5683 = vmatmul.mubr.f32.gmra.mxu0 %v5682
    %v5684 = vpop.f32.mrf.mxu0
    %v5685 = vadd.f32 %v5458, %v5684
    %v5686 = vpop.f32.mrf.mxu0
    %5687 = vmatprep.mubr.f32.mxu0 0.0
    %v5688 = vand.u32 %v4229, 4294901760
    %5689 = vmatmul.mubr.f32.gmra.mxu0 %v5688
    %v5690 = vpop.f32.mrf.mxu0
    %v5691 = vadd.f32 %v5468, %v5690
    %v5692 = vpop.f32.mrf.mxu0
    %5693 = vmatprep.mubr.f32.mxu0 0.0
    %v5694 = vand.u32 %v4232, 4294901760
    %5695 = vmatmul.mubr.f32.gmra.mxu0 %v5694
    %v5696 = vpop.f32.mrf.mxu0
    %v5697 = vadd.f32 %v5478, %v5696
    %v5698 = vpop.f32.mrf.mxu0
    %5699 = vmatprep.mubr.f32.mxu0 0.0
    %v5700 = vand.u32 %v4235, 4294901760
    %5701 = vmatmul.mubr.f32.gmra.mxu0 %v5700
    %v5702 = vpop.f32.mrf.mxu0
    %v5703 = vadd.f32 %v5488, %v5702
    %v5704 = vpop.f32.mrf.mxu0
    %5705 = vmatprep.mubr.f32.mxu0 0.0
    %v5706 = vand.u32 %v4238, 4294901760
    %5707 = vmatmul.mubr.f32.gmra.mxu0 %v5706
    %v5708 = vpop.f32.mrf.mxu0
    %v5709 = vadd.f32 %v5498, %v5708
    %v5710 = vpop.f32.mrf.mxu0
    %5711 = vmatprep.mubr.f32.mxu0 0.0
    %v5712 = vand.u32 %v4241, 4294901760
    %5713 = vmatmul.mubr.f32.gmra.mxu0 %v5712
    %v5714 = vpop.f32.mrf.mxu0
    %v5715 = vadd.f32 %v5508, %v5714
    %v5716 = vpop.f32.mrf.mxu0
    %5717 = vmatprep.mubr.f32.mxu0 0.0
    %v5718 = vand.u32 %v4244, 4294901760
    %5719 = vmatmul.mubr.f32.gmra.mxu0 %v5718
    %v5720 = vpop.f32.mrf.mxu0
    %v5721 = vadd.f32 %v5518, %v5720
    %v5722 = vpop.f32.mrf.mxu0
    %5723 = vmatprep.mubr.f32.mxu0 0.0
    %v5724 = vand.u32 %v4247, 4294901760
    %5725 = vmatmul.mubr.f32.gmra.mxu0 %v5724
    %v5726 = vpop.f32.mrf.mxu0
    %v5727 = vadd.f32 %v5528, %v5726
    %v5728 = vpop.f32.mrf.mxu0
    %5729 = vmatprep.mubr.f32.mxu0 0.0
    %v5730 = vand.u32 %v4250, 4294901760
    %5731 = vmatmul.mubr.f32.gmra.mxu0 %v5730
    %v5732 = vpop.f32.mrf.mxu0
    %v5733 = vadd.f32 %v5538, %v5732
    %v5734 = vpop.f32.mrf.mxu0
    %5735 = vmatprep.mubr.f32.mxu0 0.0
    %v5736 = vand.u32 %v4253, 4294901760
    %5737 = vmatmul.mubr.f32.gmra.mxu0 %v5736
    %v5738 = vpop.f32.mrf.mxu0
    %v5739 = vadd.f32 %v5548, %v5738
    %v5740 = vpop.f32.mrf.mxu0
    %5741 = vmatprep.mubr.f32.mxu0 0.0
    %v5742 = vand.u32 %v4256, 4294901760
    %5743 = vmatmul.mubr.f32.gmra.mxu0 %v5742
    %v5744 = vpop.f32.mrf.mxu0
    %v5745 = vadd.f32 %v5558, %v5744
    %v5746 = vpop.f32.mrf.mxu0
    %5747 = vmatprep.mubr.f32.mxu0 0.0
    %v5748 = vand.u32 %v4259, 4294901760
    %5749 = vmatmul.mubr.f32.gmra.mxu0 %v5748
    %v5750 = vpop.f32.mrf.mxu0
    %v5751 = vadd.f32 %v5568, %v5750
    %v5752 = vpop.f32.mrf.mxu0
    %5753 = vmatprep.mubr.f32.mxu0 0.0
    %v5754 = vand.u32 %v4262, 4294901760
    %5755 = vmatmul.mubr.f32.gmra.mxu0 %v5754
    %v5756 = vpop.f32.mrf.mxu0
    %v5757 = vadd.f32 %v5578, %v5756
    %v5758 = vpop.f32.mrf.mxu0
    %5759 = vmatprep.mubr.f32.mxu0 0.0
    %v5760 = vand.u32 %v4265, 4294901760
    %5761 = vmatmul.mubr.f32.gmra.mxu0 %v5760
    %v5762 = vpop.f32.mrf.mxu0
    %v5763 = vadd.f32 %v5588, %v5762
    %v5764 = vpop.f32.mrf.mxu0
    %5765 = vmatprep.mubr.f32.mxu0 0.0
    %v5766 = vand.u32 %v4268, 4294901760
    %5767 = vmatmul.mubr.f32.gmra.mxu0 %v5766
    %v5768 = vpop.f32.mrf.mxu0
    %v5769 = vadd.f32 %v5598, %v5768
    %v5770 = vpop.f32.mrf.mxu0
    %5771 = vdwg.mxu0
    %5772 = vmatprep.subr.mxu0 0.0
    %5773 = vmatpush1.msra.mxu0 0.0
    %5774 = vmatprep.subr.mxu0 0.0
    %5775 = vmatpush1.msra.mxu0 0.0
    %5776 = vmatprep.subr.mxu0 0.0
    %5777 = vmatpush1.msra.mxu0 0.0
    %5778 = vmatprep.subr.mxu0 0.0
    %5779 = vmatpush1.msra.mxu0 0.0
    %5780 = vmatprep.subr.mxu0 0.0
    %5781 = vmatpush1.msra.mxu0 0.0
    %5782 = vmatprep.subr.mxu0 0.0
    %5783 = vmatpush1.msra.mxu0 0.0
    %5784 = vmatprep.subr.mxu0 0.0
    %5785 = vmatpush1.msra.mxu0 0.0
    %5786 = vmatprep.subr.mxu0 0.0
    %5787 = vmatpush1.msra.mxu0 0.0
    %5788 = vmatprep.subr.mxu0 0.0
    %5789 = vmatpush1.msra.mxu0 0.0
    %5790 = vmatprep.subr.mxu0 0.0
    %5791 = vmatpush1.msra.mxu0 0.0
    %5792 = vmatprep.subr.mxu0 0.0
    %5793 = vmatpush1.msra.mxu0 0.0
    %5794 = vmatprep.subr.mxu0 0.0
    %5795 = vmatpush1.msra.mxu0 0.0
    %5796 = vmatprep.subr.mxu0 0.0
    %5797 = vmatpush1.msra.mxu0 0.0
    %5798 = vmatprep.subr.mxu0 0.0
    %5799 = vmatpush1.msra.mxu0 0.0
    %5800 = vmatprep.subr.mxu0 0.0
    %v5801 = vand.u32 %v1998, 4294901760
    %v5802 = vsub.f32 %v1998, %v5801
    %5803 = vmatpush1.msra.mxu0 %v5802
    %5804 = vmatprep.subr.mxu0 0.0
    %v5805 = vand.u32 %v1992, 4294901760
    %v5806 = vsub.f32 %v1992, %v5805
    %5807 = vmatpush1.msra.mxu0 %v5806
    %5808 = vmatprep.subr.mxu0 0.0
    %5809 = vmatpush2.msra.mxu0 0.0
    %5810 = vmatprep.subr.mxu0 0.0
    %5811 = vmatpush2.msra.mxu0 0.0
    %5812 = vmatprep.subr.mxu0 0.0
    %5813 = vmatpush2.msra.mxu0 0.0
    %5814 = vmatprep.subr.mxu0 0.0
    %5815 = vmatpush2.msra.mxu0 0.0
    %5816 = vmatprep.subr.mxu0 0.0
    %5817 = vmatpush2.msra.mxu0 0.0
    %5818 = vmatprep.subr.mxu0 0.0
    %5819 = vmatpush2.msra.mxu0 0.0
    %5820 = vmatprep.subr.mxu0 0.0
    %5821 = vmatpush2.msra.mxu0 0.0
    %5822 = vmatprep.subr.mxu0 0.0
    %5823 = vmatpush2.msra.mxu0 0.0
    %5824 = vmatprep.subr.mxu0 0.0
    %5825 = vmatpush2.msra.mxu0 0.0
    %5826 = vmatprep.subr.mxu0 0.0
    %5827 = vmatpush2.msra.mxu0 0.0
    %5828 = vmatprep.subr.mxu0 0.0
    %5829 = vmatpush2.msra.mxu0 0.0
    %5830 = vmatprep.subr.mxu0 0.0
    %5831 = vmatpush2.msra.mxu0 0.0
    %5832 = vmatprep.subr.mxu0 0.0
    %5833 = vmatpush2.msra.mxu0 0.0
    %5834 = vmatprep.subr.mxu0 0.0
    %5835 = vmatpush2.msra.mxu0 0.0
    %5836 = vmatprep.subr.mxu0 0.0
    %5837 = vmatpush2.msra.mxu0 0.0
    %5838 = vmatprep.subr.mxu0 0.0
    %5839 = vmatpush2.msra.mxu0 0.0
    %5840 = vmatprep.mubr.f32.mxu0 0.0
    %v5841 = vand.u32 %v4223, 4294901760
    %v5842 = vsub.f32 %v4223, %v5841
    %5843 = vmatmul.mubr.f32.gmra.mxu0 %v5842
    %v5844 = vpop.f32.mrf.mxu0
    %v5845 = vadd.f32 %v5679, %v5844
    %v5846 = vpop.f32.mrf.mxu0
    %5847 = vmatprep.mubr.f32.mxu0 0.0
    %v5848 = vand.u32 %v4226, 4294901760
    %v5849 = vsub.f32 %v4226, %v5848
    %5850 = vmatmul.mubr.f32.gmra.mxu0 %v5849
    %v5851 = vpop.f32.mrf.mxu0
    %v5852 = vadd.f32 %v5685, %v5851
    %v5853 = vpop.f32.mrf.mxu0
    %5854 = vmatprep.mubr.f32.mxu0 0.0
    %v5855 = vand.u32 %v4229, 4294901760
    %v5856 = vsub.f32 %v4229, %v5855
    %5857 = vmatmul.mubr.f32.gmra.mxu0 %v5856
    %v5858 = vpop.f32.mrf.mxu0
    %v5859 = vadd.f32 %v5691, %v5858
    %v5860 = vpop.f32.mrf.mxu0
    %5861 = vmatprep.mubr.f32.mxu0 0.0
    %v5862 = vand.u32 %v4232, 4294901760
    %v5863 = vsub.f32 %v4232, %v5862
    %5864 = vmatmul.mubr.f32.gmra.mxu0 %v5863
    %v5865 = vpop.f32.mrf.mxu0
    %v5866 = vadd.f32 %v5697, %v5865
    %v5867 = vpop.f32.mrf.mxu0
    %5868 = vmatprep.mubr.f32.mxu0 0.0
    %v5869 = vand.u32 %v4235, 4294901760
    %v5870 = vsub.f32 %v4235, %v5869
    %5871 = vmatmul.mubr.f32.gmra.mxu0 %v5870
    %v5872 = vpop.f32.mrf.mxu0
    %v5873 = vadd.f32 %v5703, %v5872
    %v5874 = vpop.f32.mrf.mxu0
    %5875 = vmatprep.mubr.f32.mxu0 0.0
    %v5876 = vand.u32 %v4238, 4294901760
    %v5877 = vsub.f32 %v4238, %v5876
    %5878 = vmatmul.mubr.f32.gmra.mxu0 %v5877
    %v5879 = vpop.f32.mrf.mxu0
    %v5880 = vadd.f32 %v5709, %v5879
    %v5881 = vpop.f32.mrf.mxu0
    %5882 = vmatprep.mubr.f32.mxu0 0.0
    %v5883 = vand.u32 %v4241, 4294901760
    %v5884 = vsub.f32 %v4241, %v5883
    %5885 = vmatmul.mubr.f32.gmra.mxu0 %v5884
    %v5886 = vpop.f32.mrf.mxu0
    %v5887 = vadd.f32 %v5715, %v5886
    %v5888 = vpop.f32.mrf.mxu0
    %5889 = vmatprep.mubr.f32.mxu0 0.0
    %v5890 = vand.u32 %v4244, 4294901760
    %v5891 = vsub.f32 %v4244, %v5890
    %5892 = vmatmul.mubr.f32.gmra.mxu0 %v5891
    %v5893 = vpop.f32.mrf.mxu0
    %v5894 = vadd.f32 %v5721, %v5893
    %v5895 = vpop.f32.mrf.mxu0
    %5896 = vmatprep.mubr.f32.mxu0 0.0
    %v5897 = vand.u32 %v4247, 4294901760
    %v5898 = vsub.f32 %v4247, %v5897
    %5899 = vmatmul.mubr.f32.gmra.mxu0 %v5898
    %v5900 = vpop.f32.mrf.mxu0
    %v5901 = vadd.f32 %v5727, %v5900
    %v5902 = vpop.f32.mrf.mxu0
    %5903 = vmatprep.mubr.f32.mxu0 0.0
    %v5904 = vand.u32 %v4250, 4294901760
    %v5905 = vsub.f32 %v4250, %v5904
    %5906 = vmatmul.mubr.f32.gmra.mxu0 %v5905
    %v5907 = vpop.f32.mrf.mxu0
    %v5908 = vadd.f32 %v5733, %v5907
    %v5909 = vpop.f32.mrf.mxu0
    %5910 = vmatprep.mubr.f32.mxu0 0.0
    %v5911 = vand.u32 %v4253, 4294901760
    %v5912 = vsub.f32 %v4253, %v5911
    %5913 = vmatmul.mubr.f32.gmra.mxu0 %v5912
    %v5914 = vpop.f32.mrf.mxu0
    %v5915 = vadd.f32 %v5739, %v5914
    %v5916 = vpop.f32.mrf.mxu0
    %5917 = vmatprep.mubr.f32.mxu0 0.0
    %v5918 = vand.u32 %v4256, 4294901760
    %v5919 = vsub.f32 %v4256, %v5918
    %5920 = vmatmul.mubr.f32.gmra.mxu0 %v5919
    %v5921 = vpop.f32.mrf.mxu0
    %v5922 = vadd.f32 %v5745, %v5921
    %v5923 = vpop.f32.mrf.mxu0
    %5924 = vmatprep.mubr.f32.mxu0 0.0
    %v5925 = vand.u32 %v4259, 4294901760
    %v5926 = vsub.f32 %v4259, %v5925
    %5927 = vmatmul.mubr.f32.gmra.mxu0 %v5926
    %v5928 = vpop.f32.mrf.mxu0
    %v5929 = vadd.f32 %v5751, %v5928
    %v5930 = vpop.f32.mrf.mxu0
    %5931 = vmatprep.mubr.f32.mxu0 0.0
    %v5932 = vand.u32 %v4262, 4294901760
    %v5933 = vsub.f32 %v4262, %v5932
    %5934 = vmatmul.mubr.f32.gmra.mxu0 %v5933
    %v5935 = vpop.f32.mrf.mxu0
    %v5936 = vadd.f32 %v5757, %v5935
    %v5937 = vpop.f32.mrf.mxu0
    %5938 = vmatprep.mubr.f32.mxu0 0.0
    %v5939 = vand.u32 %v4265, 4294901760
    %v5940 = vsub.f32 %v4265, %v5939
    %5941 = vmatmul.mubr.f32.gmra.mxu0 %v5940
    %v5942 = vpop.f32.mrf.mxu0
    %v5943 = vadd.f32 %v5763, %v5942
    %v5944 = vpop.f32.mrf.mxu0
    %5945 = vmatprep.mubr.f32.mxu0 0.0
    %v5946 = vand.u32 %v4268, 4294901760
    %v5947 = vsub.f32 %v4268, %v5946
    %5948 = vmatmul.mubr.f32.gmra.mxu0 %v5947
    %v5949 = vpop.f32.mrf.mxu0
    %v5950 = vadd.f32 %v5769, %v5949
    %v5951 = vpop.f32.mrf.mxu0
    %5952 = vdwg.mxu0
    %5953 = vmatprep.subr.mxu0 0.0
    %5954 = vmatpush1.msra.mxu0 0.0
    %5955 = vmatprep.subr.mxu0 0.0
    %5956 = vmatpush1.msra.mxu0 0.0
    %5957 = vmatprep.subr.mxu0 0.0
    %5958 = vmatpush1.msra.mxu0 0.0
    %5959 = vmatprep.subr.mxu0 0.0
    %5960 = vmatpush1.msra.mxu0 0.0
    %5961 = vmatprep.subr.mxu0 0.0
    %5962 = vmatpush1.msra.mxu0 0.0
    %5963 = vmatprep.subr.mxu0 0.0
    %5964 = vmatpush1.msra.mxu0 0.0
    %5965 = vmatprep.subr.mxu0 0.0
    %5966 = vmatpush1.msra.mxu0 0.0
    %5967 = vmatprep.subr.mxu0 0.0
    %5968 = vmatpush1.msra.mxu0 0.0
    %5969 = vmatprep.subr.mxu0 0.0
    %5970 = vmatpush1.msra.mxu0 0.0
    %5971 = vmatprep.subr.mxu0 0.0
    %5972 = vmatpush1.msra.mxu0 0.0
    %5973 = vmatprep.subr.mxu0 0.0
    %5974 = vmatpush1.msra.mxu0 0.0
    %5975 = vmatprep.subr.mxu0 0.0
    %5976 = vmatpush1.msra.mxu0 0.0
    %5977 = vmatprep.subr.mxu0 0.0
    %5978 = vmatpush1.msra.mxu0 0.0
    %5979 = vmatprep.subr.mxu0 0.0
    %5980 = vmatpush1.msra.mxu0 0.0
    %5981 = vmatprep.subr.mxu0 0.0
    %v5982 = vand.u32 %v1998, 4294901760
    %5983 = vmatpush1.msra.mxu0 %v5982
    %5984 = vmatprep.subr.mxu0 0.0
    %v5985 = vand.u32 %v1992, 4294901760
    %5986 = vmatpush1.msra.mxu0 %v5985
    %5987 = vmatprep.subr.mxu0 0.0
    %5988 = vmatpush2.msra.mxu0 0.0
    %5989 = vmatprep.subr.mxu0 0.0
    %5990 = vmatpush2.msra.mxu0 0.0
    %5991 = vmatprep.subr.mxu0 0.0
    %5992 = vmatpush2.msra.mxu0 0.0
    %5993 = vmatprep.subr.mxu0 0.0
    %5994 = vmatpush2.msra.mxu0 0.0
    %5995 = vmatprep.subr.mxu0 0.0
    %5996 = vmatpush2.msra.mxu0 0.0
    %5997 = vmatprep.subr.mxu0 0.0
    %5998 = vmatpush2.msra.mxu0 0.0
    %5999 = vmatprep.subr.mxu0 0.0
    %6000 = vmatpush2.msra.mxu0 0.0
    %6001 = vmatprep.subr.mxu0 0.0
    %6002 = vmatpush2.msra.mxu0 0.0
    %6003 = vmatprep.subr.mxu0 0.0
    %6004 = vmatpush2.msra.mxu0 0.0
    %6005 = vmatprep.subr.mxu0 0.0
    %6006 = vmatpush2.msra.mxu0 0.0
    %6007 = vmatprep.subr.mxu0 0.0
    %6008 = vmatpush2.msra.mxu0 0.0
    %6009 = vmatprep.subr.mxu0 0.0
    %6010 = vmatpush2.msra.mxu0 0.0
    %6011 = vmatprep.subr.mxu0 0.0
    %6012 = vmatpush2.msra.mxu0 0.0
    %6013 = vmatprep.subr.mxu0 0.0
    %6014 = vmatpush2.msra.mxu0 0.0
    %6015 = vmatprep.subr.mxu0 0.0
    %6016 = vmatpush2.msra.mxu0 0.0
    %6017 = vmatprep.subr.mxu0 0.0
    %6018 = vmatpush2.msra.mxu0 0.0
    %6019 = vmatprep.mubr.f32.mxu0 0.0
    %v6020 = vand.u32 %v4223, 4294901760
    %v6021 = vsub.f32 %v4223, %v6020
    %v6022 = vand.u32 %v6021, 4294901760
    %6023 = vmatmul.mubr.f32.gmra.mxu0 %v6022
    %v6024 = vpop.f32.mrf.mxu0
    %v6025 = vadd.f32 %v5845, %v6024
    %v6026 = vpop.f32.mrf.mxu0
    %6027 = vmatprep.mubr.f32.mxu0 0.0
    %v6028 = vand.u32 %v4226, 4294901760
    %v6029 = vsub.f32 %v4226, %v6028
    %v6030 = vand.u32 %v6029, 4294901760
    %6031 = vmatmul.mubr.f32.gmra.mxu0 %v6030
    %v6032 = vpop.f32.mrf.mxu0
    %v6033 = vadd.f32 %v5852, %v6032
    %v6034 = vpop.f32.mrf.mxu0
    %6035 = vmatprep.mubr.f32.mxu0 0.0
    %v6036 = vand.u32 %v4229, 4294901760
    %v6037 = vsub.f32 %v4229, %v6036
    %v6038 = vand.u32 %v6037, 4294901760
    %6039 = vmatmul.mubr.f32.gmra.mxu0 %v6038
    %v6040 = vpop.f32.mrf.mxu0
    %v6041 = vadd.f32 %v5859, %v6040
    %v6042 = vpop.f32.mrf.mxu0
    %6043 = vmatprep.mubr.f32.mxu0 0.0
    %v6044 = vand.u32 %v4232, 4294901760
    %v6045 = vsub.f32 %v4232, %v6044
    %v6046 = vand.u32 %v6045, 4294901760
    %6047 = vmatmul.mubr.f32.gmra.mxu0 %v6046
    %v6048 = vpop.f32.mrf.mxu0
    %v6049 = vadd.f32 %v5866, %v6048
    %v6050 = vpop.f32.mrf.mxu0
    %6051 = vmatprep.mubr.f32.mxu0 0.0
    %v6052 = vand.u32 %v4235, 4294901760
    %v6053 = vsub.f32 %v4235, %v6052
    %v6054 = vand.u32 %v6053, 4294901760
    %6055 = vmatmul.mubr.f32.gmra.mxu0 %v6054
    %v6056 = vpop.f32.mrf.mxu0
    %v6057 = vadd.f32 %v5873, %v6056
    %v6058 = vpop.f32.mrf.mxu0
    %6059 = vmatprep.mubr.f32.mxu0 0.0
    %v6060 = vand.u32 %v4238, 4294901760
    %v6061 = vsub.f32 %v4238, %v6060
    %v6062 = vand.u32 %v6061, 4294901760
    %6063 = vmatmul.mubr.f32.gmra.mxu0 %v6062
    %v6064 = vpop.f32.mrf.mxu0
    %v6065 = vadd.f32 %v5880, %v6064
    %v6066 = vpop.f32.mrf.mxu0
    %6067 = vmatprep.mubr.f32.mxu0 0.0
    %v6068 = vand.u32 %v4241, 4294901760
    %v6069 = vsub.f32 %v4241, %v6068
    %v6070 = vand.u32 %v6069, 4294901760
    %6071 = vmatmul.mubr.f32.gmra.mxu0 %v6070
    %v6072 = vpop.f32.mrf.mxu0
    %v6073 = vadd.f32 %v5887, %v6072
    %v6074 = vpop.f32.mrf.mxu0
    %6075 = vmatprep.mubr.f32.mxu0 0.0
    %v6076 = vand.u32 %v4244, 4294901760
    %v6077 = vsub.f32 %v4244, %v6076
    %v6078 = vand.u32 %v6077, 4294901760
    %6079 = vmatmul.mubr.f32.gmra.mxu0 %v6078
    %v6080 = vpop.f32.mrf.mxu0
    %v6081 = vadd.f32 %v5894, %v6080
    %v6082 = vpop.f32.mrf.mxu0
    %6083 = vmatprep.mubr.f32.mxu0 0.0
    %v6084 = vand.u32 %v4247, 4294901760
    %v6085 = vsub.f32 %v4247, %v6084
    %v6086 = vand.u32 %v6085, 4294901760
    %6087 = vmatmul.mubr.f32.gmra.mxu0 %v6086
    %v6088 = vpop.f32.mrf.mxu0
    %v6089 = vadd.f32 %v5901, %v6088
    %v6090 = vpop.f32.mrf.mxu0
    %6091 = vmatprep.mubr.f32.mxu0 0.0
    %v6092 = vand.u32 %v4250, 4294901760
    %v6093 = vsub.f32 %v4250, %v6092
    %v6094 = vand.u32 %v6093, 4294901760
    %6095 = vmatmul.mubr.f32.gmra.mxu0 %v6094
    %v6096 = vpop.f32.mrf.mxu0
    %v6097 = vadd.f32 %v5908, %v6096
    %v6098 = vpop.f32.mrf.mxu0
    %6099 = vmatprep.mubr.f32.mxu0 0.0
    %v6100 = vand.u32 %v4253, 4294901760
    %v6101 = vsub.f32 %v4253, %v6100
    %v6102 = vand.u32 %v6101, 4294901760
    %6103 = vmatmul.mubr.f32.gmra.mxu0 %v6102
    %v6104 = vpop.f32.mrf.mxu0
    %v6105 = vadd.f32 %v5915, %v6104
    %v6106 = vpop.f32.mrf.mxu0
    %6107 = vmatprep.mubr.f32.mxu0 0.0
    %v6108 = vand.u32 %v4256, 4294901760
    %v6109 = vsub.f32 %v4256, %v6108
    %v6110 = vand.u32 %v6109, 4294901760
    %6111 = vmatmul.mubr.f32.gmra.mxu0 %v6110
    %v6112 = vpop.f32.mrf.mxu0
    %v6113 = vadd.f32 %v5922, %v6112
    %v6114 = vpop.f32.mrf.mxu0
    %6115 = vmatprep.mubr.f32.mxu0 0.0
    %v6116 = vand.u32 %v4259, 4294901760
    %v6117 = vsub.f32 %v4259, %v6116
    %v6118 = vand.u32 %v6117, 4294901760
    %6119 = vmatmul.mubr.f32.gmra.mxu0 %v6118
    %v6120 = vpop.f32.mrf.mxu0
    %v6121 = vadd.f32 %v5929, %v6120
    %v6122 = vpop.f32.mrf.mxu0
    %6123 = vmatprep.mubr.f32.mxu0 0.0
    %v6124 = vand.u32 %v4262, 4294901760
    %v6125 = vsub.f32 %v4262, %v6124
    %v6126 = vand.u32 %v6125, 4294901760
    %6127 = vmatmul.mubr.f32.gmra.mxu0 %v6126
    %v6128 = vpop.f32.mrf.mxu0
    %v6129 = vadd.f32 %v5936, %v6128
    %v6130 = vpop.f32.mrf.mxu0
    %6131 = vmatprep.mubr.f32.mxu0 0.0
    %v6132 = vand.u32 %v4265, 4294901760
    %v6133 = vsub.f32 %v4265, %v6132
    %v6134 = vand.u32 %v6133, 4294901760
    %6135 = vmatmul.mubr.f32.gmra.mxu0 %v6134
    %v6136 = vpop.f32.mrf.mxu0
    %v6137 = vadd.f32 %v5943, %v6136
    %v6138 = vpop.f32.mrf.mxu0
    %6139 = vmatprep.mubr.f32.mxu0 0.0
    %v6140 = vand.u32 %v4268, 4294901760
    %v6141 = vsub.f32 %v4268, %v6140
    %v6142 = vand.u32 %v6141, 4294901760
    %6143 = vmatmul.mubr.f32.gmra.mxu0 %v6142
    %v6144 = vpop.f32.mrf.mxu0
    %v6145 = vadd.f32 %v5950, %v6144
    %v6146 = vpop.f32.mrf.mxu0
    %6147 = vdwg.mxu0
    %6148 = vmatprep.subr.mxu0 0.0
    %6149 = vmatpush1.msra.mxu0 0.0
    %6150 = vmatprep.subr.mxu0 0.0
    %6151 = vmatpush1.msra.mxu0 0.0
    %6152 = vmatprep.subr.mxu0 0.0
    %6153 = vmatpush1.msra.mxu0 0.0
    %6154 = vmatprep.subr.mxu0 0.0
    %6155 = vmatpush1.msra.mxu0 0.0
    %6156 = vmatprep.subr.mxu0 0.0
    %6157 = vmatpush1.msra.mxu0 0.0
    %6158 = vmatprep.subr.mxu0 0.0
    %6159 = vmatpush1.msra.mxu0 0.0
    %6160 = vmatprep.subr.mxu0 0.0
    %6161 = vmatpush1.msra.mxu0 0.0
    %6162 = vmatprep.subr.mxu0 0.0
    %6163 = vmatpush1.msra.mxu0 0.0
    %6164 = vmatprep.subr.mxu0 0.0
    %6165 = vmatpush1.msra.mxu0 0.0
    %6166 = vmatprep.subr.mxu0 0.0
    %6167 = vmatpush1.msra.mxu0 0.0
    %6168 = vmatprep.subr.mxu0 0.0
    %6169 = vmatpush1.msra.mxu0 0.0
    %6170 = vmatprep.subr.mxu0 0.0
    %6171 = vmatpush1.msra.mxu0 0.0
    %6172 = vmatprep.subr.mxu0 0.0
    %6173 = vmatpush1.msra.mxu0 0.0
    %6174 = vmatprep.subr.mxu0 0.0
    %6175 = vmatpush1.msra.mxu0 0.0
    %6176 = vmatprep.subr.mxu0 0.0
    %v6177 = vand.u32 %v1998, 4294901760
    %v6178 = vsub.f32 %v1998, %v6177
    %v6179 = vand.u32 %v6178, 4294901760
    %6180 = vmatpush1.msra.mxu0 %v6179
    %6181 = vmatprep.subr.mxu0 0.0
    %v6182 = vand.u32 %v1992, 4294901760
    %v6183 = vsub.f32 %v1992, %v6182
    %v6184 = vand.u32 %v6183, 4294901760
    %6185 = vmatpush1.msra.mxu0 %v6184
    %6186 = vmatprep.subr.mxu0 0.0
    %6187 = vmatpush2.msra.mxu0 0.0
    %6188 = vmatprep.subr.mxu0 0.0
    %6189 = vmatpush2.msra.mxu0 0.0
    %6190 = vmatprep.subr.mxu0 0.0
    %6191 = vmatpush2.msra.mxu0 0.0
    %6192 = vmatprep.subr.mxu0 0.0
    %6193 = vmatpush2.msra.mxu0 0.0
    %6194 = vmatprep.subr.mxu0 0.0
    %6195 = vmatpush2.msra.mxu0 0.0
    %6196 = vmatprep.subr.mxu0 0.0
    %6197 = vmatpush2.msra.mxu0 0.0
    %6198 = vmatprep.subr.mxu0 0.0
    %6199 = vmatpush2.msra.mxu0 0.0
    %6200 = vmatprep.subr.mxu0 0.0
    %6201 = vmatpush2.msra.mxu0 0.0
    %6202 = vmatprep.subr.mxu0 0.0
    %6203 = vmatpush2.msra.mxu0 0.0
    %6204 = vmatprep.subr.mxu0 0.0
    %6205 = vmatpush2.msra.mxu0 0.0
    %6206 = vmatprep.subr.mxu0 0.0
    %6207 = vmatpush2.msra.mxu0 0.0
    %6208 = vmatprep.subr.mxu0 0.0
    %6209 = vmatpush2.msra.mxu0 0.0
    %6210 = vmatprep.subr.mxu0 0.0
    %6211 = vmatpush2.msra.mxu0 0.0
    %6212 = vmatprep.subr.mxu0 0.0
    %6213 = vmatpush2.msra.mxu0 0.0
    %6214 = vmatprep.subr.mxu0 0.0
    %6215 = vmatpush2.msra.mxu0 0.0
    %6216 = vmatprep.subr.mxu0 0.0
    %6217 = vmatpush2.msra.mxu0 0.0
    %6218 = vmatprep.mubr.f32.mxu0 0.0
    %v6219 = vand.u32 %v4223, 4294901760
    %6220 = vmatmul.mubr.f32.gmra.mxu0 %v6219
    %v6221 = vpop.f32.mrf.mxu0
    %v6222 = vadd.f32 %v6025, %v6221
    %v6223 = vpop.f32.mrf.mxu0
    %6224 = vmatprep.mubr.f32.mxu0 0.0
    %v6225 = vand.u32 %v4226, 4294901760
    %6226 = vmatmul.mubr.f32.gmra.mxu0 %v6225
    %v6227 = vpop.f32.mrf.mxu0
    %v6228 = vadd.f32 %v6033, %v6227
    %v6229 = vpop.f32.mrf.mxu0
    %6230 = vmatprep.mubr.f32.mxu0 0.0
    %v6231 = vand.u32 %v4229, 4294901760
    %6232 = vmatmul.mubr.f32.gmra.mxu0 %v6231
    %v6233 = vpop.f32.mrf.mxu0
    %v6234 = vadd.f32 %v6041, %v6233
    %v6235 = vpop.f32.mrf.mxu0
    %6236 = vmatprep.mubr.f32.mxu0 0.0
    %v6237 = vand.u32 %v4232, 4294901760
    %6238 = vmatmul.mubr.f32.gmra.mxu0 %v6237
    %v6239 = vpop.f32.mrf.mxu0
    %v6240 = vadd.f32 %v6049, %v6239
    %v6241 = vpop.f32.mrf.mxu0
    %6242 = vmatprep.mubr.f32.mxu0 0.0
    %v6243 = vand.u32 %v4235, 4294901760
    %6244 = vmatmul.mubr.f32.gmra.mxu0 %v6243
    %v6245 = vpop.f32.mrf.mxu0
    %v6246 = vadd.f32 %v6057, %v6245
    %v6247 = vpop.f32.mrf.mxu0
    %6248 = vmatprep.mubr.f32.mxu0 0.0
    %v6249 = vand.u32 %v4238, 4294901760
    %6250 = vmatmul.mubr.f32.gmra.mxu0 %v6249
    %v6251 = vpop.f32.mrf.mxu0
    %v6252 = vadd.f32 %v6065, %v6251
    %v6253 = vpop.f32.mrf.mxu0
    %6254 = vmatprep.mubr.f32.mxu0 0.0
    %v6255 = vand.u32 %v4241, 4294901760
    %6256 = vmatmul.mubr.f32.gmra.mxu0 %v6255
    %v6257 = vpop.f32.mrf.mxu0
    %v6258 = vadd.f32 %v6073, %v6257
    %v6259 = vpop.f32.mrf.mxu0
    %6260 = vmatprep.mubr.f32.mxu0 0.0
    %v6261 = vand.u32 %v4244, 4294901760
    %6262 = vmatmul.mubr.f32.gmra.mxu0 %v6261
    %v6263 = vpop.f32.mrf.mxu0
    %v6264 = vadd.f32 %v6081, %v6263
    %v6265 = vpop.f32.mrf.mxu0
    %6266 = vmatprep.mubr.f32.mxu0 0.0
    %v6267 = vand.u32 %v4247, 4294901760
    %6268 = vmatmul.mubr.f32.gmra.mxu0 %v6267
    %v6269 = vpop.f32.mrf.mxu0
    %v6270 = vadd.f32 %v6089, %v6269
    %v6271 = vpop.f32.mrf.mxu0
    %6272 = vmatprep.mubr.f32.mxu0 0.0
    %v6273 = vand.u32 %v4250, 4294901760
    %6274 = vmatmul.mubr.f32.gmra.mxu0 %v6273
    %v6275 = vpop.f32.mrf.mxu0
    %v6276 = vadd.f32 %v6097, %v6275
    %v6277 = vpop.f32.mrf.mxu0
    %6278 = vmatprep.mubr.f32.mxu0 0.0
    %v6279 = vand.u32 %v4253, 4294901760
    %6280 = vmatmul.mubr.f32.gmra.mxu0 %v6279
    %v6281 = vpop.f32.mrf.mxu0
    %v6282 = vadd.f32 %v6105, %v6281
    %v6283 = vpop.f32.mrf.mxu0
    %6284 = vmatprep.mubr.f32.mxu0 0.0
    %v6285 = vand.u32 %v4256, 4294901760
    %6286 = vmatmul.mubr.f32.gmra.mxu0 %v6285
    %v6287 = vpop.f32.mrf.mxu0
    %v6288 = vadd.f32 %v6113, %v6287
    %v6289 = vpop.f32.mrf.mxu0
    %6290 = vmatprep.mubr.f32.mxu0 0.0
    %v6291 = vand.u32 %v4259, 4294901760
    %6292 = vmatmul.mubr.f32.gmra.mxu0 %v6291
    %v6293 = vpop.f32.mrf.mxu0
    %v6294 = vadd.f32 %v6121, %v6293
    %v6295 = vpop.f32.mrf.mxu0
    %6296 = vmatprep.mubr.f32.mxu0 0.0
    %v6297 = vand.u32 %v4262, 4294901760
    %6298 = vmatmul.mubr.f32.gmra.mxu0 %v6297
    %v6299 = vpop.f32.mrf.mxu0
    %v6300 = vadd.f32 %v6129, %v6299
    %v6301 = vpop.f32.mrf.mxu0
    %6302 = vmatprep.mubr.f32.mxu0 0.0
    %v6303 = vand.u32 %v4265, 4294901760
    %6304 = vmatmul.mubr.f32.gmra.mxu0 %v6303
    %v6305 = vpop.f32.mrf.mxu0
    %v6306 = vadd.f32 %v6137, %v6305
    %v6307 = vpop.f32.mrf.mxu0
    %6308 = vmatprep.mubr.f32.mxu0 0.0
    %v6309 = vand.u32 %v4268, 4294901760
    %6310 = vmatmul.mubr.f32.gmra.mxu0 %v6309
    %v6311 = vpop.f32.mrf.mxu0
    %v6312 = vadd.f32 %v6145, %v6311
    %v6313 = vpop.f32.mrf.mxu0
    %6314 = vdwg.mxu0
    %6315 = vmatprep.subr.mxu0 0.0
    %6316 = vmatpush1.msra.mxu0 0.0
    %6317 = vmatprep.subr.mxu0 0.0
    %6318 = vmatpush1.msra.mxu0 0.0
    %6319 = vmatprep.subr.mxu0 0.0
    %6320 = vmatpush1.msra.mxu0 0.0
    %6321 = vmatprep.subr.mxu0 0.0
    %6322 = vmatpush1.msra.mxu0 0.0
    %6323 = vmatprep.subr.mxu0 0.0
    %6324 = vmatpush1.msra.mxu0 0.0
    %6325 = vmatprep.subr.mxu0 0.0
    %6326 = vmatpush1.msra.mxu0 0.0
    %6327 = vmatprep.subr.mxu0 0.0
    %6328 = vmatpush1.msra.mxu0 0.0
    %6329 = vmatprep.subr.mxu0 0.0
    %6330 = vmatpush1.msra.mxu0 0.0
    %6331 = vmatprep.subr.mxu0 0.0
    %6332 = vmatpush1.msra.mxu0 0.0
    %6333 = vmatprep.subr.mxu0 0.0
    %6334 = vmatpush1.msra.mxu0 0.0
    %6335 = vmatprep.subr.mxu0 0.0
    %6336 = vmatpush1.msra.mxu0 0.0
    %6337 = vmatprep.subr.mxu0 0.0
    %6338 = vmatpush1.msra.mxu0 0.0
    %6339 = vmatprep.subr.mxu0 0.0
    %6340 = vmatpush1.msra.mxu0 0.0
    %6341 = vmatprep.subr.mxu0 0.0
    %6342 = vmatpush1.msra.mxu0 0.0
    %6343 = vmatprep.subr.mxu0 0.0
    %v6344 = vand.u32 %v1998, 4294901760
    %6345 = vmatpush1.msra.mxu0 %v6344
    %6346 = vmatprep.subr.mxu0 0.0
    %v6347 = vand.u32 %v1992, 4294901760
    %6348 = vmatpush1.msra.mxu0 %v6347
    %6349 = vmatprep.subr.mxu0 0.0
    %6350 = vmatpush2.msra.mxu0 0.0
    %6351 = vmatprep.subr.mxu0 0.0
    %6352 = vmatpush2.msra.mxu0 0.0
    %6353 = vmatprep.subr.mxu0 0.0
    %6354 = vmatpush2.msra.mxu0 0.0
    %6355 = vmatprep.subr.mxu0 0.0
    %6356 = vmatpush2.msra.mxu0 0.0
    %6357 = vmatprep.subr.mxu0 0.0
    %6358 = vmatpush2.msra.mxu0 0.0
    %6359 = vmatprep.subr.mxu0 0.0
    %6360 = vmatpush2.msra.mxu0 0.0
    %6361 = vmatprep.subr.mxu0 0.0
    %6362 = vmatpush2.msra.mxu0 0.0
    %6363 = vmatprep.subr.mxu0 0.0
    %6364 = vmatpush2.msra.mxu0 0.0
    %6365 = vmatprep.subr.mxu0 0.0
    %6366 = vmatpush2.msra.mxu0 0.0
    %6367 = vmatprep.subr.mxu0 0.0
    %6368 = vmatpush2.msra.mxu0 0.0
    %6369 = vmatprep.subr.mxu0 0.0
    %6370 = vmatpush2.msra.mxu0 0.0
    %6371 = vmatprep.subr.mxu0 0.0
    %6372 = vmatpush2.msra.mxu0 0.0
    %6373 = vmatprep.subr.mxu0 0.0
    %6374 = vmatpush2.msra.mxu0 0.0
    %6375 = vmatprep.subr.mxu0 0.0
    %6376 = vmatpush2.msra.mxu0 0.0
    %6377 = vmatprep.subr.mxu0 0.0
    %6378 = vmatpush2.msra.mxu0 0.0
    %6379 = vmatprep.subr.mxu0 0.0
    %6380 = vmatpush2.msra.mxu0 0.0
    %6381 = vmatprep.mubr.f32.mxu0 0.0
    %v6382 = vand.u32 %v4223, 4294901760
    %6383 = vmatmul.mubr.f32.gmra.mxu0 %v6382
    %v6384 = vpop.f32.mrf.mxu0
    %v6385 = vadd.f32 %v6222, %v6384
    %v6386 = vpop.f32.mrf.mxu0
    %6387 = vmatprep.mubr.f32.mxu0 0.0
    %v6388 = vand.u32 %v4226, 4294901760
    %6389 = vmatmul.mubr.f32.gmra.mxu0 %v6388
    %v6390 = vpop.f32.mrf.mxu0
    %v6391 = vadd.f32 %v6228, %v6390
    %v6392 = vpop.f32.mrf.mxu0
    %6393 = vmatprep.mubr.f32.mxu0 0.0
    %v6394 = vand.u32 %v4229, 4294901760
    %6395 = vmatmul.mubr.f32.gmra.mxu0 %v6394
    %v6396 = vpop.f32.mrf.mxu0
    %v6397 = vadd.f32 %v6234, %v6396
    %v6398 = vpop.f32.mrf.mxu0
    %6399 = vmatprep.mubr.f32.mxu0 0.0
    %v6400 = vand.u32 %v4232, 4294901760
    %6401 = vmatmul.mubr.f32.gmra.mxu0 %v6400
    %v6402 = vpop.f32.mrf.mxu0
    %v6403 = vadd.f32 %v6240, %v6402
    %v6404 = vpop.f32.mrf.mxu0
    %6405 = vmatprep.mubr.f32.mxu0 0.0
    %v6406 = vand.u32 %v4235, 4294901760
    %6407 = vmatmul.mubr.f32.gmra.mxu0 %v6406
    %v6408 = vpop.f32.mrf.mxu0
    %v6409 = vadd.f32 %v6246, %v6408
    %v6410 = vpop.f32.mrf.mxu0
    %6411 = vmatprep.mubr.f32.mxu0 0.0
    %v6412 = vand.u32 %v4238, 4294901760
    %6413 = vmatmul.mubr.f32.gmra.mxu0 %v6412
    %v6414 = vpop.f32.mrf.mxu0
    %v6415 = vadd.f32 %v6252, %v6414
    %v6416 = vpop.f32.mrf.mxu0
    %6417 = vmatprep.mubr.f32.mxu0 0.0
    %v6418 = vand.u32 %v4241, 4294901760
    %6419 = vmatmul.mubr.f32.gmra.mxu0 %v6418
    %v6420 = vpop.f32.mrf.mxu0
    %v6421 = vadd.f32 %v6258, %v6420
    %v6422 = vpop.f32.mrf.mxu0
    %6423 = vmatprep.mubr.f32.mxu0 0.0
    %v6424 = vand.u32 %v4244, 4294901760
    %6425 = vmatmul.mubr.f32.gmra.mxu0 %v6424
    %v6426 = vpop.f32.mrf.mxu0
    %v6427 = vadd.f32 %v6264, %v6426
    %v6428 = vpop.f32.mrf.mxu0
    %6429 = vmatprep.mubr.f32.mxu0 0.0
    %v6430 = vand.u32 %v4247, 4294901760
    %6431 = vmatmul.mubr.f32.gmra.mxu0 %v6430
    %v6432 = vpop.f32.mrf.mxu0
    %v6433 = vadd.f32 %v6270, %v6432
    %v6434 = vpop.f32.mrf.mxu0
    %6435 = vmatprep.mubr.f32.mxu0 0.0
    %v6436 = vand.u32 %v4250, 4294901760
    %6437 = vmatmul.mubr.f32.gmra.mxu0 %v6436
    %v6438 = vpop.f32.mrf.mxu0
    %v6439 = vadd.f32 %v6276, %v6438
    %v6440 = vpop.f32.mrf.mxu0
    %6441 = vmatprep.mubr.f32.mxu0 0.0
    %v6442 = vand.u32 %v4253, 4294901760
    %6443 = vmatmul.mubr.f32.gmra.mxu0 %v6442
    %v6444 = vpop.f32.mrf.mxu0
    %v6445 = vadd.f32 %v6282, %v6444
    %v6446 = vpop.f32.mrf.mxu0
    %6447 = vmatprep.mubr.f32.mxu0 0.0
    %v6448 = vand.u32 %v4256, 4294901760
    %6449 = vmatmul.mubr.f32.gmra.mxu0 %v6448
    %v6450 = vpop.f32.mrf.mxu0
    %v6451 = vadd.f32 %v6288, %v6450
    %v6452 = vpop.f32.mrf.mxu0
    %6453 = vmatprep.mubr.f32.mxu0 0.0
    %v6454 = vand.u32 %v4259, 4294901760
    %6455 = vmatmul.mubr.f32.gmra.mxu0 %v6454
    %v6456 = vpop.f32.mrf.mxu0
    %v6457 = vadd.f32 %v6294, %v6456
    %v6458 = vpop.f32.mrf.mxu0
    %6459 = vmatprep.mubr.f32.mxu0 0.0
    %v6460 = vand.u32 %v4262, 4294901760
    %6461 = vmatmul.mubr.f32.gmra.mxu0 %v6460
    %v6462 = vpop.f32.mrf.mxu0
    %v6463 = vadd.f32 %v6300, %v6462
    %v6464 = vpop.f32.mrf.mxu0
    %6465 = vmatprep.mubr.f32.mxu0 0.0
    %v6466 = vand.u32 %v4265, 4294901760
    %6467 = vmatmul.mubr.f32.gmra.mxu0 %v6466
    %v6468 = vpop.f32.mrf.mxu0
    %v6469 = vadd.f32 %v6306, %v6468
    %v6470 = vpop.f32.mrf.mxu0
    %6471 = vmatprep.mubr.f32.mxu0 0.0
    %v6472 = vand.u32 %v4268, 4294901760
    %6473 = vmatmul.mubr.f32.gmra.mxu0 %v6472
    %v6474 = vpop.f32.mrf.mxu0
    %v6475 = vadd.f32 %v6312, %v6474
    %v6476 = vpop.f32.mrf.mxu0
    %6477 = vdwg.mxu0
    %v6478 = vmul.f32 %v4129, %v5281
    %v6479 = vmul.f32 %v4135, %v5287
    %v6480 = vmul.f32 %v4141, %v5293
    %v6481 = vmul.f32 %v4147, %v5299
    %v6482 = vmul.f32 %v4153, %v5305
    %v6483 = vmul.f32 %v4159, %v5311
    %v6484 = vmul.f32 %v4165, %v5317
    %v6485 = vmul.f32 %v4171, %v5323
    %v6486 = vmul.f32 %v4177, %v5329
    %v6487 = vmul.f32 %v4183, %v5335
    %v6488 = vmul.f32 %v4189, %v5341
    %v6489 = vmul.f32 %v4195, %v5347
    %v6490 = vmul.f32 %v4201, %v5353
    %v6491 = vmul.f32 %v4207, %v5359
    %v6492 = vmul.f32 %v4213, %v5365
    %v6493 = vmul.f32 %v4219, %v5371
    %v6495 = vsel %vm355, %v6478, 0
    %v6498 = vsel %vm355, %v6479, 0
    %v6501 = vsel %vm355, %v6480, 0
    %v6504 = vsel %vm355, %v6481, 0
    %v6507 = vsel %vm355, %v6482, 0
    %v6510 = vsel %vm355, %v6483, 0
    %v6513 = vsel %vm355, %v6484, 0
    %v6516 = vsel %vm355, %v6485, 0
    %v6519 = vsel %vm355, %v6486, 0
    %v6522 = vsel %vm355, %v6487, 0
    %v6525 = vsel %vm355, %v6488, 0
    %v6528 = vsel %vm355, %v6489, 0
    %v6531 = vsel %vm355, %v6490, 0
    %v6534 = vsel %vm355, %v6491, 0
    %v6537 = vsel %vm355, %v6492, 0
    %v6540 = vsel %vm355, %v6493, 0
    %6542 = vmatprep.subr.mxu0 0.0
    %6543 = vmatpush1.msra.mxu0 0.0
    %6544 = vmatprep.subr.mxu0 0.0
    %6545 = vmatpush1.msra.mxu0 0.0
    %6546 = vmatprep.subr.mxu0 0.0
    %6547 = vmatpush1.msra.mxu0 0.0
    %6548 = vmatprep.subr.mxu0 0.0
    %6549 = vmatpush1.msra.mxu0 0.0
    %6550 = vmatprep.subr.mxu0 0.0
    %6551 = vmatpush1.msra.mxu0 0.0
    %6552 = vmatprep.subr.mxu0 0.0
    %6553 = vmatpush1.msra.mxu0 0.0
    %6554 = vmatprep.subr.mxu0 0.0
    %6555 = vmatpush1.msra.mxu0 0.0
    %6556 = vmatprep.subr.mxu0 0.0
    %6557 = vmatpush1.msra.mxu0 0.0
    %6558 = vmatprep.subr.mxu0 0.0
    %6559 = vmatpush1.msra.mxu0 0.0
    %6560 = vmatprep.subr.mxu0 0.0
    %6561 = vmatpush1.msra.mxu0 0.0
    %6562 = vmatprep.subr.mxu0 0.0
    %6563 = vmatpush1.msra.mxu0 0.0
    %6564 = vmatprep.subr.mxu0 0.0
    %6565 = vmatpush1.msra.mxu0 0.0
    %6566 = vmatprep.subr.mxu0 0.0
    %6567 = vmatpush1.msra.mxu0 %v162
    %6568 = vmatprep.subr.mxu0 0.0
    %6569 = vmatpush1.msra.mxu0 %v161
    %6570 = vmatprep.subr.mxu0 0.0
    %6571 = vmatpush1.msra.mxu0 %v160
    %6572 = vmatprep.subr.mxu0 0.0
    %6573 = vmatpush1.msra.mxu0 %v159
    %6574 = vmatprep.subr.mxu0 0.0
    %6575 = vmatpush2.msra.mxu0 0.0
    %6576 = vmatprep.subr.mxu0 0.0
    %6577 = vmatpush2.msra.mxu0 0.0
    %6578 = vmatprep.subr.mxu0 0.0
    %6579 = vmatpush2.msra.mxu0 0.0
    %6580 = vmatprep.subr.mxu0 0.0
    %6581 = vmatpush2.msra.mxu0 0.0
    %6582 = vmatprep.subr.mxu0 0.0
    %6583 = vmatpush2.msra.mxu0 0.0
    %6584 = vmatprep.subr.mxu0 0.0
    %6585 = vmatpush2.msra.mxu0 0.0
    %6586 = vmatprep.subr.mxu0 0.0
    %6587 = vmatpush2.msra.mxu0 0.0
    %6588 = vmatprep.subr.mxu0 0.0
    %6589 = vmatpush2.msra.mxu0 0.0
    %6590 = vmatprep.subr.mxu0 0.0
    %6591 = vmatpush2.msra.mxu0 0.0
    %6592 = vmatprep.subr.mxu0 0.0
    %6593 = vmatpush2.msra.mxu0 0.0
    %6594 = vmatprep.subr.mxu0 0.0
    %6595 = vmatpush2.msra.mxu0 0.0
    %6596 = vmatprep.subr.mxu0 0.0
    %6597 = vmatpush2.msra.mxu0 0.0
    %6598 = vmatprep.subr.mxu0 0.0
    %6599 = vmatpush2.msra.mxu0 0.0
    %6600 = vmatprep.subr.mxu0 0.0
    %6601 = vmatpush2.msra.mxu0 0.0
    %6602 = vmatprep.subr.mxu0 0.0
    %6603 = vmatpush2.msra.mxu0 0.0
    %6604 = vmatprep.subr.mxu0 0.0
    %6605 = vmatpush2.msra.mxu0 0.0
    %6606 = vmatprep.mubr.f32.mxu0 0.0
    %v6607 = vand.u32 %v6495, 4294901760
    %v6608 = vsub.f32 %v6495, %v6607
    %v6609 = vand.u32 %v6608, 4294901760
    %v6610 = vsub.f32 %v6608, %v6609
    %v6611 = vand.u32 %v6610, 4294901760
    %6612 = vmatmul.mubr.f32.gmra.mxu0 %v6611
    %v6613 = vpop.f32.mrf.mxu0
    %v6614 = vadd.f32 0.0, %v6613
    %v6615 = vpop.f32.mrf.mxu0
    %6616 = vmatprep.mubr.f32.mxu0 0.0
    %v6617 = vand.u32 %v6498, 4294901760
    %v6618 = vsub.f32 %v6498, %v6617
    %v6619 = vand.u32 %v6618, 4294901760
    %v6620 = vsub.f32 %v6618, %v6619
    %v6621 = vand.u32 %v6620, 4294901760
    %6622 = vmatmul.mubr.f32.gmra.mxu0 %v6621
    %v6623 = vpop.f32.mrf.mxu0
    %v6624 = vadd.f32 0.0, %v6623
    %v6625 = vpop.f32.mrf.mxu0
    %6626 = vmatprep.mubr.f32.mxu0 0.0
    %v6627 = vand.u32 %v6501, 4294901760
    %v6628 = vsub.f32 %v6501, %v6627
    %v6629 = vand.u32 %v6628, 4294901760
    %v6630 = vsub.f32 %v6628, %v6629
    %v6631 = vand.u32 %v6630, 4294901760
    %6632 = vmatmul.mubr.f32.gmra.mxu0 %v6631
    %v6633 = vpop.f32.mrf.mxu0
    %v6634 = vadd.f32 0.0, %v6633
    %v6635 = vpop.f32.mrf.mxu0
    %6636 = vmatprep.mubr.f32.mxu0 0.0
    %v6637 = vand.u32 %v6504, 4294901760
    %v6638 = vsub.f32 %v6504, %v6637
    %v6639 = vand.u32 %v6638, 4294901760
    %v6640 = vsub.f32 %v6638, %v6639
    %v6641 = vand.u32 %v6640, 4294901760
    %6642 = vmatmul.mubr.f32.gmra.mxu0 %v6641
    %v6643 = vpop.f32.mrf.mxu0
    %v6644 = vadd.f32 0.0, %v6643
    %v6645 = vpop.f32.mrf.mxu0
    %6646 = vmatprep.mubr.f32.mxu0 0.0
    %v6647 = vand.u32 %v6507, 4294901760
    %v6648 = vsub.f32 %v6507, %v6647
    %v6649 = vand.u32 %v6648, 4294901760
    %v6650 = vsub.f32 %v6648, %v6649
    %v6651 = vand.u32 %v6650, 4294901760
    %6652 = vmatmul.mubr.f32.gmra.mxu0 %v6651
    %v6653 = vpop.f32.mrf.mxu0
    %v6654 = vadd.f32 0.0, %v6653
    %v6655 = vpop.f32.mrf.mxu0
    %6656 = vmatprep.mubr.f32.mxu0 0.0
    %v6657 = vand.u32 %v6510, 4294901760
    %v6658 = vsub.f32 %v6510, %v6657
    %v6659 = vand.u32 %v6658, 4294901760
    %v6660 = vsub.f32 %v6658, %v6659
    %v6661 = vand.u32 %v6660, 4294901760
    %6662 = vmatmul.mubr.f32.gmra.mxu0 %v6661
    %v6663 = vpop.f32.mrf.mxu0
    %v6664 = vadd.f32 0.0, %v6663
    %v6665 = vpop.f32.mrf.mxu0
    %6666 = vmatprep.mubr.f32.mxu0 0.0
    %v6667 = vand.u32 %v6513, 4294901760
    %v6668 = vsub.f32 %v6513, %v6667
    %v6669 = vand.u32 %v6668, 4294901760
    %v6670 = vsub.f32 %v6668, %v6669
    %v6671 = vand.u32 %v6670, 4294901760
    %6672 = vmatmul.mubr.f32.gmra.mxu0 %v6671
    %v6673 = vpop.f32.mrf.mxu0
    %v6674 = vadd.f32 0.0, %v6673
    %v6675 = vpop.f32.mrf.mxu0
    %6676 = vmatprep.mubr.f32.mxu0 0.0
    %v6677 = vand.u32 %v6516, 4294901760
    %v6678 = vsub.f32 %v6516, %v6677
    %v6679 = vand.u32 %v6678, 4294901760
    %v6680 = vsub.f32 %v6678, %v6679
    %v6681 = vand.u32 %v6680, 4294901760
    %6682 = vmatmul.mubr.f32.gmra.mxu0 %v6681
    %v6683 = vpop.f32.mrf.mxu0
    %v6684 = vadd.f32 0.0, %v6683
    %v6685 = vpop.f32.mrf.mxu0
    %6686 = vmatprep.mubr.f32.mxu0 0.0
    %v6687 = vand.u32 %v6519, 4294901760
    %v6688 = vsub.f32 %v6519, %v6687
    %v6689 = vand.u32 %v6688, 4294901760
    %v6690 = vsub.f32 %v6688, %v6689
    %v6691 = vand.u32 %v6690, 4294901760
    %6692 = vmatmul.mubr.f32.gmra.mxu0 %v6691
    %v6693 = vpop.f32.mrf.mxu0
    %v6694 = vadd.f32 0.0, %v6693
    %v6695 = vpop.f32.mrf.mxu0
    %6696 = vmatprep.mubr.f32.mxu0 0.0
    %v6697 = vand.u32 %v6522, 4294901760
    %v6698 = vsub.f32 %v6522, %v6697
    %v6699 = vand.u32 %v6698, 4294901760
    %v6700 = vsub.f32 %v6698, %v6699
    %v6701 = vand.u32 %v6700, 4294901760
    %6702 = vmatmul.mubr.f32.gmra.mxu0 %v6701
    %v6703 = vpop.f32.mrf.mxu0
    %v6704 = vadd.f32 0.0, %v6703
    %v6705 = vpop.f32.mrf.mxu0
    %6706 = vmatprep.mubr.f32.mxu0 0.0
    %v6707 = vand.u32 %v6525, 4294901760
    %v6708 = vsub.f32 %v6525, %v6707
    %v6709 = vand.u32 %v6708, 4294901760
    %v6710 = vsub.f32 %v6708, %v6709
    %v6711 = vand.u32 %v6710, 4294901760
    %6712 = vmatmul.mubr.f32.gmra.mxu0 %v6711
    %v6713 = vpop.f32.mrf.mxu0
    %v6714 = vadd.f32 0.0, %v6713
    %v6715 = vpop.f32.mrf.mxu0
    %6716 = vmatprep.mubr.f32.mxu0 0.0
    %v6717 = vand.u32 %v6528, 4294901760
    %v6718 = vsub.f32 %v6528, %v6717
    %v6719 = vand.u32 %v6718, 4294901760
    %v6720 = vsub.f32 %v6718, %v6719
    %v6721 = vand.u32 %v6720, 4294901760
    %6722 = vmatmul.mubr.f32.gmra.mxu0 %v6721
    %v6723 = vpop.f32.mrf.mxu0
    %v6724 = vadd.f32 0.0, %v6723
    %v6725 = vpop.f32.mrf.mxu0
    %6726 = vmatprep.mubr.f32.mxu0 0.0
    %v6727 = vand.u32 %v6531, 4294901760
    %v6728 = vsub.f32 %v6531, %v6727
    %v6729 = vand.u32 %v6728, 4294901760
    %v6730 = vsub.f32 %v6728, %v6729
    %v6731 = vand.u32 %v6730, 4294901760
    %6732 = vmatmul.mubr.f32.gmra.mxu0 %v6731
    %v6733 = vpop.f32.mrf.mxu0
    %v6734 = vadd.f32 0.0, %v6733
    %v6735 = vpop.f32.mrf.mxu0
    %6736 = vmatprep.mubr.f32.mxu0 0.0
    %v6737 = vand.u32 %v6534, 4294901760
    %v6738 = vsub.f32 %v6534, %v6737
    %v6739 = vand.u32 %v6738, 4294901760
    %v6740 = vsub.f32 %v6738, %v6739
    %v6741 = vand.u32 %v6740, 4294901760
    %6742 = vmatmul.mubr.f32.gmra.mxu0 %v6741
    %v6743 = vpop.f32.mrf.mxu0
    %v6744 = vadd.f32 0.0, %v6743
    %v6745 = vpop.f32.mrf.mxu0
    %6746 = vmatprep.mubr.f32.mxu0 0.0
    %v6747 = vand.u32 %v6537, 4294901760
    %v6748 = vsub.f32 %v6537, %v6747
    %v6749 = vand.u32 %v6748, 4294901760
    %v6750 = vsub.f32 %v6748, %v6749
    %v6751 = vand.u32 %v6750, 4294901760
    %6752 = vmatmul.mubr.f32.gmra.mxu0 %v6751
    %v6753 = vpop.f32.mrf.mxu0
    %v6754 = vadd.f32 0.0, %v6753
    %v6755 = vpop.f32.mrf.mxu0
    %6756 = vmatprep.mubr.f32.mxu0 0.0
    %v6757 = vand.u32 %v6540, 4294901760
    %v6758 = vsub.f32 %v6540, %v6757
    %v6759 = vand.u32 %v6758, 4294901760
    %v6760 = vsub.f32 %v6758, %v6759
    %v6761 = vand.u32 %v6760, 4294901760
    %6762 = vmatmul.mubr.f32.gmra.mxu0 %v6761
    %v6763 = vpop.f32.mrf.mxu0
    %v6764 = vadd.f32 0.0, %v6763
    %v6765 = vpop.f32.mrf.mxu0
    %6766 = vdwg.mxu0
    %6767 = vmatprep.subr.mxu0 0.0
    %6768 = vmatpush1.msra.mxu0 0.0
    %6769 = vmatprep.subr.mxu0 0.0
    %6770 = vmatpush1.msra.mxu0 0.0
    %6771 = vmatprep.subr.mxu0 0.0
    %6772 = vmatpush1.msra.mxu0 0.0
    %6773 = vmatprep.subr.mxu0 0.0
    %6774 = vmatpush1.msra.mxu0 0.0
    %6775 = vmatprep.subr.mxu0 0.0
    %6776 = vmatpush1.msra.mxu0 0.0
    %6777 = vmatprep.subr.mxu0 0.0
    %6778 = vmatpush1.msra.mxu0 0.0
    %6779 = vmatprep.subr.mxu0 0.0
    %6780 = vmatpush1.msra.mxu0 0.0
    %6781 = vmatprep.subr.mxu0 0.0
    %6782 = vmatpush1.msra.mxu0 0.0
    %6783 = vmatprep.subr.mxu0 0.0
    %6784 = vmatpush1.msra.mxu0 0.0
    %6785 = vmatprep.subr.mxu0 0.0
    %6786 = vmatpush1.msra.mxu0 0.0
    %6787 = vmatprep.subr.mxu0 0.0
    %6788 = vmatpush1.msra.mxu0 0.0
    %6789 = vmatprep.subr.mxu0 0.0
    %6790 = vmatpush1.msra.mxu0 0.0
    %6791 = vmatprep.subr.mxu0 0.0
    %v6792 = vsub.f32 %v162, %v162
    %v6793 = vand.u32 %v6792, 4294901760
    %v6794 = vsub.f32 %v6792, %v6793
    %v6795 = vand.u32 %v6794, 4294901760
    %6796 = vmatpush1.msra.mxu0 %v6795
    %6797 = vmatprep.subr.mxu0 0.0
    %v6798 = vsub.f32 %v161, %v161
    %v6799 = vand.u32 %v6798, 4294901760
    %v6800 = vsub.f32 %v6798, %v6799
    %v6801 = vand.u32 %v6800, 4294901760
    %6802 = vmatpush1.msra.mxu0 %v6801
    %6803 = vmatprep.subr.mxu0 0.0
    %v6804 = vsub.f32 %v160, %v160
    %v6805 = vand.u32 %v6804, 4294901760
    %v6806 = vsub.f32 %v6804, %v6805
    %v6807 = vand.u32 %v6806, 4294901760
    %6808 = vmatpush1.msra.mxu0 %v6807
    %6809 = vmatprep.subr.mxu0 0.0
    %v6810 = vsub.f32 %v159, %v159
    %v6811 = vand.u32 %v6810, 4294901760
    %v6812 = vsub.f32 %v6810, %v6811
    %v6813 = vand.u32 %v6812, 4294901760
    %6814 = vmatpush1.msra.mxu0 %v6813
    %6815 = vmatprep.subr.mxu0 0.0
    %6816 = vmatpush2.msra.mxu0 0.0
    %6817 = vmatprep.subr.mxu0 0.0
    %6818 = vmatpush2.msra.mxu0 0.0
    %6819 = vmatprep.subr.mxu0 0.0
    %6820 = vmatpush2.msra.mxu0 0.0
    %6821 = vmatprep.subr.mxu0 0.0
    %6822 = vmatpush2.msra.mxu0 0.0
    %6823 = vmatprep.subr.mxu0 0.0
    %6824 = vmatpush2.msra.mxu0 0.0
    %6825 = vmatprep.subr.mxu0 0.0
    %6826 = vmatpush2.msra.mxu0 0.0
    %6827 = vmatprep.subr.mxu0 0.0
    %6828 = vmatpush2.msra.mxu0 0.0
    %6829 = vmatprep.subr.mxu0 0.0
    %6830 = vmatpush2.msra.mxu0 0.0
    %6831 = vmatprep.subr.mxu0 0.0
    %6832 = vmatpush2.msra.mxu0 0.0
    %6833 = vmatprep.subr.mxu0 0.0
    %6834 = vmatpush2.msra.mxu0 0.0
    %6835 = vmatprep.subr.mxu0 0.0
    %6836 = vmatpush2.msra.mxu0 0.0
    %6837 = vmatprep.subr.mxu0 0.0
    %6838 = vmatpush2.msra.mxu0 0.0
    %6839 = vmatprep.subr.mxu0 0.0
    %6840 = vmatpush2.msra.mxu0 0.0
    %6841 = vmatprep.subr.mxu0 0.0
    %6842 = vmatpush2.msra.mxu0 0.0
    %6843 = vmatprep.subr.mxu0 0.0
    %6844 = vmatpush2.msra.mxu0 0.0
    %6845 = vmatprep.subr.mxu0 0.0
    %6846 = vmatpush2.msra.mxu0 0.0
    %6847 = vmatprep.mubr.f32.mxu0 0.0
    %v6848 = vand.u32 %v6495, 4294901760
    %6849 = vmatmul.mubr.f32.gmra.mxu0 %v6848
    %v6850 = vpop.f32.mrf.mxu0
    %v6851 = vadd.f32 %v6614, %v6850
    %v6852 = vpop.f32.mrf.mxu0
    %6853 = vmatprep.mubr.f32.mxu0 0.0
    %v6854 = vand.u32 %v6498, 4294901760
    %6855 = vmatmul.mubr.f32.gmra.mxu0 %v6854
    %v6856 = vpop.f32.mrf.mxu0
    %v6857 = vadd.f32 %v6624, %v6856
    %v6858 = vpop.f32.mrf.mxu0
    %6859 = vmatprep.mubr.f32.mxu0 0.0
    %v6860 = vand.u32 %v6501, 4294901760
    %6861 = vmatmul.mubr.f32.gmra.mxu0 %v6860
    %v6862 = vpop.f32.mrf.mxu0
    %v6863 = vadd.f32 %v6634, %v6862
    %v6864 = vpop.f32.mrf.mxu0
    %6865 = vmatprep.mubr.f32.mxu0 0.0
    %v6866 = vand.u32 %v6504, 4294901760
    %6867 = vmatmul.mubr.f32.gmra.mxu0 %v6866
    %v6868 = vpop.f32.mrf.mxu0
    %v6869 = vadd.f32 %v6644, %v6868
    %v6870 = vpop.f32.mrf.mxu0
    %6871 = vmatprep.mubr.f32.mxu0 0.0
    %v6872 = vand.u32 %v6507, 4294901760
    %6873 = vmatmul.mubr.f32.gmra.mxu0 %v6872
    %v6874 = vpop.f32.mrf.mxu0
    %v6875 = vadd.f32 %v6654, %v6874
    %v6876 = vpop.f32.mrf.mxu0
    %6877 = vmatprep.mubr.f32.mxu0 0.0
    %v6878 = vand.u32 %v6510, 4294901760
    %6879 = vmatmul.mubr.f32.gmra.mxu0 %v6878
    %v6880 = vpop.f32.mrf.mxu0
    %v6881 = vadd.f32 %v6664, %v6880
    %v6882 = vpop.f32.mrf.mxu0
    %6883 = vmatprep.mubr.f32.mxu0 0.0
    %v6884 = vand.u32 %v6513, 4294901760
    %6885 = vmatmul.mubr.f32.gmra.mxu0 %v6884
    %v6886 = vpop.f32.mrf.mxu0
    %v6887 = vadd.f32 %v6674, %v6886
    %v6888 = vpop.f32.mrf.mxu0
    %6889 = vmatprep.mubr.f32.mxu0 0.0
    %v6890 = vand.u32 %v6516, 4294901760
    %6891 = vmatmul.mubr.f32.gmra.mxu0 %v6890
    %v6892 = vpop.f32.mrf.mxu0
    %v6893 = vadd.f32 %v6684, %v6892
    %v6894 = vpop.f32.mrf.mxu0
    %6895 = vmatprep.mubr.f32.mxu0 0.0
    %v6896 = vand.u32 %v6519, 4294901760
    %6897 = vmatmul.mubr.f32.gmra.mxu0 %v6896
    %v6898 = vpop.f32.mrf.mxu0
    %v6899 = vadd.f32 %v6694, %v6898
    %v6900 = vpop.f32.mrf.mxu0
    %6901 = vmatprep.mubr.f32.mxu0 0.0
    %v6902 = vand.u32 %v6522, 4294901760
    %6903 = vmatmul.mubr.f32.gmra.mxu0 %v6902
    %v6904 = vpop.f32.mrf.mxu0
    %v6905 = vadd.f32 %v6704, %v6904
    %v6906 = vpop.f32.mrf.mxu0
    %6907 = vmatprep.mubr.f32.mxu0 0.0
    %v6908 = vand.u32 %v6525, 4294901760
    %6909 = vmatmul.mubr.f32.gmra.mxu0 %v6908
    %v6910 = vpop.f32.mrf.mxu0
    %v6911 = vadd.f32 %v6714, %v6910
    %v6912 = vpop.f32.mrf.mxu0
    %6913 = vmatprep.mubr.f32.mxu0 0.0
    %v6914 = vand.u32 %v6528, 4294901760
    %6915 = vmatmul.mubr.f32.gmra.mxu0 %v6914
    %v6916 = vpop.f32.mrf.mxu0
    %v6917 = vadd.f32 %v6724, %v6916
    %v6918 = vpop.f32.mrf.mxu0
    %6919 = vmatprep.mubr.f32.mxu0 0.0
    %v6920 = vand.u32 %v6531, 4294901760
    %6921 = vmatmul.mubr.f32.gmra.mxu0 %v6920
    %v6922 = vpop.f32.mrf.mxu0
    %v6923 = vadd.f32 %v6734, %v6922
    %v6924 = vpop.f32.mrf.mxu0
    %6925 = vmatprep.mubr.f32.mxu0 0.0
    %v6926 = vand.u32 %v6534, 4294901760
    %6927 = vmatmul.mubr.f32.gmra.mxu0 %v6926
    %v6928 = vpop.f32.mrf.mxu0
    %v6929 = vadd.f32 %v6744, %v6928
    %v6930 = vpop.f32.mrf.mxu0
    %6931 = vmatprep.mubr.f32.mxu0 0.0
    %v6932 = vand.u32 %v6537, 4294901760
    %6933 = vmatmul.mubr.f32.gmra.mxu0 %v6932
    %v6934 = vpop.f32.mrf.mxu0
    %v6935 = vadd.f32 %v6754, %v6934
    %v6936 = vpop.f32.mrf.mxu0
    %6937 = vmatprep.mubr.f32.mxu0 0.0
    %v6938 = vand.u32 %v6540, 4294901760
    %6939 = vmatmul.mubr.f32.gmra.mxu0 %v6938
    %v6940 = vpop.f32.mrf.mxu0
    %v6941 = vadd.f32 %v6764, %v6940
    %v6942 = vpop.f32.mrf.mxu0
    %6943 = vdwg.mxu0
    %6944 = vmatprep.subr.mxu0 0.0
    %6945 = vmatpush1.msra.mxu0 0.0
    %6946 = vmatprep.subr.mxu0 0.0
    %6947 = vmatpush1.msra.mxu0 0.0
    %6948 = vmatprep.subr.mxu0 0.0
    %6949 = vmatpush1.msra.mxu0 0.0
    %6950 = vmatprep.subr.mxu0 0.0
    %6951 = vmatpush1.msra.mxu0 0.0
    %6952 = vmatprep.subr.mxu0 0.0
    %6953 = vmatpush1.msra.mxu0 0.0
    %6954 = vmatprep.subr.mxu0 0.0
    %6955 = vmatpush1.msra.mxu0 0.0
    %6956 = vmatprep.subr.mxu0 0.0
    %6957 = vmatpush1.msra.mxu0 0.0
    %6958 = vmatprep.subr.mxu0 0.0
    %6959 = vmatpush1.msra.mxu0 0.0
    %6960 = vmatprep.subr.mxu0 0.0
    %6961 = vmatpush1.msra.mxu0 0.0
    %6962 = vmatprep.subr.mxu0 0.0
    %6963 = vmatpush1.msra.mxu0 0.0
    %6964 = vmatprep.subr.mxu0 0.0
    %6965 = vmatpush1.msra.mxu0 0.0
    %6966 = vmatprep.subr.mxu0 0.0
    %6967 = vmatpush1.msra.mxu0 0.0
    %6968 = vmatprep.subr.mxu0 0.0
    %v6969 = vsub.f32 %v162, %v162
    %6970 = vmatpush1.msra.mxu0 %v6969
    %6971 = vmatprep.subr.mxu0 0.0
    %v6972 = vsub.f32 %v161, %v161
    %6973 = vmatpush1.msra.mxu0 %v6972
    %6974 = vmatprep.subr.mxu0 0.0
    %v6975 = vsub.f32 %v160, %v160
    %6976 = vmatpush1.msra.mxu0 %v6975
    %6977 = vmatprep.subr.mxu0 0.0
    %v6978 = vsub.f32 %v159, %v159
    %6979 = vmatpush1.msra.mxu0 %v6978
    %6980 = vmatprep.subr.mxu0 0.0
    %6981 = vmatpush2.msra.mxu0 0.0
    %6982 = vmatprep.subr.mxu0 0.0
    %6983 = vmatpush2.msra.mxu0 0.0
    %6984 = vmatprep.subr.mxu0 0.0
    %6985 = vmatpush2.msra.mxu0 0.0
    %6986 = vmatprep.subr.mxu0 0.0
    %6987 = vmatpush2.msra.mxu0 0.0
    %6988 = vmatprep.subr.mxu0 0.0
    %6989 = vmatpush2.msra.mxu0 0.0
    %6990 = vmatprep.subr.mxu0 0.0
    %6991 = vmatpush2.msra.mxu0 0.0
    %6992 = vmatprep.subr.mxu0 0.0
    %6993 = vmatpush2.msra.mxu0 0.0
    %6994 = vmatprep.subr.mxu0 0.0
    %6995 = vmatpush2.msra.mxu0 0.0
    %6996 = vmatprep.subr.mxu0 0.0
    %6997 = vmatpush2.msra.mxu0 0.0
    %6998 = vmatprep.subr.mxu0 0.0
    %6999 = vmatpush2.msra.mxu0 0.0
    %7000 = vmatprep.subr.mxu0 0.0
    %7001 = vmatpush2.msra.mxu0 0.0
    %7002 = vmatprep.subr.mxu0 0.0
    %7003 = vmatpush2.msra.mxu0 0.0
    %7004 = vmatprep.subr.mxu0 0.0
    %7005 = vmatpush2.msra.mxu0 0.0
    %7006 = vmatprep.subr.mxu0 0.0
    %7007 = vmatpush2.msra.mxu0 0.0
    %7008 = vmatprep.subr.mxu0 0.0
    %7009 = vmatpush2.msra.mxu0 0.0
    %7010 = vmatprep.subr.mxu0 0.0
    %7011 = vmatpush2.msra.mxu0 0.0
    %7012 = vmatprep.mubr.f32.mxu0 0.0
    %v7013 = vand.u32 %v6495, 4294901760
    %v7014 = vsub.f32 %v6495, %v7013
    %7015 = vmatmul.mubr.f32.gmra.mxu0 %v7014
    %v7016 = vpop.f32.mrf.mxu0
    %v7017 = vadd.f32 %v6851, %v7016
    %v7018 = vpop.f32.mrf.mxu0
    %7019 = vmatprep.mubr.f32.mxu0 0.0
    %v7020 = vand.u32 %v6498, 4294901760
    %v7021 = vsub.f32 %v6498, %v7020
    %7022 = vmatmul.mubr.f32.gmra.mxu0 %v7021
    %v7023 = vpop.f32.mrf.mxu0
    %v7024 = vadd.f32 %v6857, %v7023
    %v7025 = vpop.f32.mrf.mxu0
    %7026 = vmatprep.mubr.f32.mxu0 0.0
    %v7027 = vand.u32 %v6501, 4294901760
    %v7028 = vsub.f32 %v6501, %v7027
    %7029 = vmatmul.mubr.f32.gmra.mxu0 %v7028
    %v7030 = vpop.f32.mrf.mxu0
    %v7031 = vadd.f32 %v6863, %v7030
    %v7032 = vpop.f32.mrf.mxu0
    %7033 = vmatprep.mubr.f32.mxu0 0.0
    %v7034 = vand.u32 %v6504, 4294901760
    %v7035 = vsub.f32 %v6504, %v7034
    %7036 = vmatmul.mubr.f32.gmra.mxu0 %v7035
    %v7037 = vpop.f32.mrf.mxu0
    %v7038 = vadd.f32 %v6869, %v7037
    %v7039 = vpop.f32.mrf.mxu0
    %7040 = vmatprep.mubr.f32.mxu0 0.0
    %v7041 = vand.u32 %v6507, 4294901760
    %v7042 = vsub.f32 %v6507, %v7041
    %7043 = vmatmul.mubr.f32.gmra.mxu0 %v7042
    %v7044 = vpop.f32.mrf.mxu0
    %v7045 = vadd.f32 %v6875, %v7044
    %v7046 = vpop.f32.mrf.mxu0
    %7047 = vmatprep.mubr.f32.mxu0 0.0
    %v7048 = vand.u32 %v6510, 4294901760
    %v7049 = vsub.f32 %v6510, %v7048
    %7050 = vmatmul.mubr.f32.gmra.mxu0 %v7049
    %v7051 = vpop.f32.mrf.mxu0
    %v7052 = vadd.f32 %v6881, %v7051
    %v7053 = vpop.f32.mrf.mxu0
    %7054 = vmatprep.mubr.f32.mxu0 0.0
    %v7055 = vand.u32 %v6513, 4294901760
    %v7056 = vsub.f32 %v6513, %v7055
    %7057 = vmatmul.mubr.f32.gmra.mxu0 %v7056
    %v7058 = vpop.f32.mrf.mxu0
    %v7059 = vadd.f32 %v6887, %v7058
    %v7060 = vpop.f32.mrf.mxu0
    %7061 = vmatprep.mubr.f32.mxu0 0.0
    %v7062 = vand.u32 %v6516, 4294901760
    %v7063 = vsub.f32 %v6516, %v7062
    %7064 = vmatmul.mubr.f32.gmra.mxu0 %v7063
    %v7065 = vpop.f32.mrf.mxu0
    %v7066 = vadd.f32 %v6893, %v7065
    %v7067 = vpop.f32.mrf.mxu0
    %7068 = vmatprep.mubr.f32.mxu0 0.0
    %v7069 = vand.u32 %v6519, 4294901760
    %v7070 = vsub.f32 %v6519, %v7069
    %7071 = vmatmul.mubr.f32.gmra.mxu0 %v7070
    %v7072 = vpop.f32.mrf.mxu0
    %v7073 = vadd.f32 %v6899, %v7072
    %v7074 = vpop.f32.mrf.mxu0
    %7075 = vmatprep.mubr.f32.mxu0 0.0
    %v7076 = vand.u32 %v6522, 4294901760
    %v7077 = vsub.f32 %v6522, %v7076
    %7078 = vmatmul.mubr.f32.gmra.mxu0 %v7077
    %v7079 = vpop.f32.mrf.mxu0
    %v7080 = vadd.f32 %v6905, %v7079
    %v7081 = vpop.f32.mrf.mxu0
    %7082 = vmatprep.mubr.f32.mxu0 0.0
    %v7083 = vand.u32 %v6525, 4294901760
    %v7084 = vsub.f32 %v6525, %v7083
    %7085 = vmatmul.mubr.f32.gmra.mxu0 %v7084
    %v7086 = vpop.f32.mrf.mxu0
    %v7087 = vadd.f32 %v6911, %v7086
    %v7088 = vpop.f32.mrf.mxu0
    %7089 = vmatprep.mubr.f32.mxu0 0.0
    %v7090 = vand.u32 %v6528, 4294901760
    %v7091 = vsub.f32 %v6528, %v7090
    %7092 = vmatmul.mubr.f32.gmra.mxu0 %v7091
    %v7093 = vpop.f32.mrf.mxu0
    %v7094 = vadd.f32 %v6917, %v7093
    %v7095 = vpop.f32.mrf.mxu0
    %7096 = vmatprep.mubr.f32.mxu0 0.0
    %v7097 = vand.u32 %v6531, 4294901760
    %v7098 = vsub.f32 %v6531, %v7097
    %7099 = vmatmul.mubr.f32.gmra.mxu0 %v7098
    %v7100 = vpop.f32.mrf.mxu0
    %v7101 = vadd.f32 %v6923, %v7100
    %v7102 = vpop.f32.mrf.mxu0
    %7103 = vmatprep.mubr.f32.mxu0 0.0
    %v7104 = vand.u32 %v6534, 4294901760
    %v7105 = vsub.f32 %v6534, %v7104
    %7106 = vmatmul.mubr.f32.gmra.mxu0 %v7105
    %v7107 = vpop.f32.mrf.mxu0
    %v7108 = vadd.f32 %v6929, %v7107
    %v7109 = vpop.f32.mrf.mxu0
    %7110 = vmatprep.mubr.f32.mxu0 0.0
    %v7111 = vand.u32 %v6537, 4294901760
    %v7112 = vsub.f32 %v6537, %v7111
    %7113 = vmatmul.mubr.f32.gmra.mxu0 %v7112
    %v7114 = vpop.f32.mrf.mxu0
    %v7115 = vadd.f32 %v6935, %v7114
    %v7116 = vpop.f32.mrf.mxu0
    %7117 = vmatprep.mubr.f32.mxu0 0.0
    %v7118 = vand.u32 %v6540, 4294901760
    %v7119 = vsub.f32 %v6540, %v7118
    %7120 = vmatmul.mubr.f32.gmra.mxu0 %v7119
    %v7121 = vpop.f32.mrf.mxu0
    %v7122 = vadd.f32 %v6941, %v7121
    %v7123 = vpop.f32.mrf.mxu0
    %7124 = vdwg.mxu0
    %7125 = vmatprep.subr.mxu0 0.0
    %7126 = vmatpush1.msra.mxu0 0.0
    %7127 = vmatprep.subr.mxu0 0.0
    %7128 = vmatpush1.msra.mxu0 0.0
    %7129 = vmatprep.subr.mxu0 0.0
    %7130 = vmatpush1.msra.mxu0 0.0
    %7131 = vmatprep.subr.mxu0 0.0
    %7132 = vmatpush1.msra.mxu0 0.0
    %7133 = vmatprep.subr.mxu0 0.0
    %7134 = vmatpush1.msra.mxu0 0.0
    %7135 = vmatprep.subr.mxu0 0.0
    %7136 = vmatpush1.msra.mxu0 0.0
    %7137 = vmatprep.subr.mxu0 0.0
    %7138 = vmatpush1.msra.mxu0 0.0
    %7139 = vmatprep.subr.mxu0 0.0
    %7140 = vmatpush1.msra.mxu0 0.0
    %7141 = vmatprep.subr.mxu0 0.0
    %7142 = vmatpush1.msra.mxu0 0.0
    %7143 = vmatprep.subr.mxu0 0.0
    %7144 = vmatpush1.msra.mxu0 0.0
    %7145 = vmatprep.subr.mxu0 0.0
    %7146 = vmatpush1.msra.mxu0 0.0
    %7147 = vmatprep.subr.mxu0 0.0
    %7148 = vmatpush1.msra.mxu0 0.0
    %7149 = vmatprep.subr.mxu0 0.0
    %7150 = vmatpush1.msra.mxu0 %v162
    %7151 = vmatprep.subr.mxu0 0.0
    %7152 = vmatpush1.msra.mxu0 %v161
    %7153 = vmatprep.subr.mxu0 0.0
    %7154 = vmatpush1.msra.mxu0 %v160
    %7155 = vmatprep.subr.mxu0 0.0
    %7156 = vmatpush1.msra.mxu0 %v159
    %7157 = vmatprep.subr.mxu0 0.0
    %7158 = vmatpush2.msra.mxu0 0.0
    %7159 = vmatprep.subr.mxu0 0.0
    %7160 = vmatpush2.msra.mxu0 0.0
    %7161 = vmatprep.subr.mxu0 0.0
    %7162 = vmatpush2.msra.mxu0 0.0
    %7163 = vmatprep.subr.mxu0 0.0
    %7164 = vmatpush2.msra.mxu0 0.0
    %7165 = vmatprep.subr.mxu0 0.0
    %7166 = vmatpush2.msra.mxu0 0.0
    %7167 = vmatprep.subr.mxu0 0.0
    %7168 = vmatpush2.msra.mxu0 0.0
    %7169 = vmatprep.subr.mxu0 0.0
    %7170 = vmatpush2.msra.mxu0 0.0
    %7171 = vmatprep.subr.mxu0 0.0
    %7172 = vmatpush2.msra.mxu0 0.0
    %7173 = vmatprep.subr.mxu0 0.0
    %7174 = vmatpush2.msra.mxu0 0.0
    %7175 = vmatprep.subr.mxu0 0.0
    %7176 = vmatpush2.msra.mxu0 0.0
    %7177 = vmatprep.subr.mxu0 0.0
    %7178 = vmatpush2.msra.mxu0 0.0
    %7179 = vmatprep.subr.mxu0 0.0
    %7180 = vmatpush2.msra.mxu0 0.0
    %7181 = vmatprep.subr.mxu0 0.0
    %7182 = vmatpush2.msra.mxu0 0.0
    %7183 = vmatprep.subr.mxu0 0.0
    %7184 = vmatpush2.msra.mxu0 0.0
    %7185 = vmatprep.subr.mxu0 0.0
    %7186 = vmatpush2.msra.mxu0 0.0
    %7187 = vmatprep.subr.mxu0 0.0
    %7188 = vmatpush2.msra.mxu0 0.0
    %7189 = vmatprep.mubr.f32.mxu0 0.0
    %v7190 = vand.u32 %v6495, 4294901760
    %v7191 = vsub.f32 %v6495, %v7190
    %v7192 = vand.u32 %v7191, 4294901760
    %7193 = vmatmul.mubr.f32.gmra.mxu0 %v7192
    %v7194 = vpop.f32.mrf.mxu0
    %v7195 = vadd.f32 %v7017, %v7194
    %v7196 = vpop.f32.mrf.mxu0
    %7197 = vmatprep.mubr.f32.mxu0 0.0
    %v7198 = vand.u32 %v6498, 4294901760
    %v7199 = vsub.f32 %v6498, %v7198
    %v7200 = vand.u32 %v7199, 4294901760
    %7201 = vmatmul.mubr.f32.gmra.mxu0 %v7200
    %v7202 = vpop.f32.mrf.mxu0
    %v7203 = vadd.f32 %v7024, %v7202
    %v7204 = vpop.f32.mrf.mxu0
    %7205 = vmatprep.mubr.f32.mxu0 0.0
    %v7206 = vand.u32 %v6501, 4294901760
    %v7207 = vsub.f32 %v6501, %v7206
    %v7208 = vand.u32 %v7207, 4294901760
    %7209 = vmatmul.mubr.f32.gmra.mxu0 %v7208
    %v7210 = vpop.f32.mrf.mxu0
    %v7211 = vadd.f32 %v7031, %v7210
    %v7212 = vpop.f32.mrf.mxu0
    %7213 = vmatprep.mubr.f32.mxu0 0.0
    %v7214 = vand.u32 %v6504, 4294901760
    %v7215 = vsub.f32 %v6504, %v7214
    %v7216 = vand.u32 %v7215, 4294901760
    %7217 = vmatmul.mubr.f32.gmra.mxu0 %v7216
    %v7218 = vpop.f32.mrf.mxu0
    %v7219 = vadd.f32 %v7038, %v7218
    %v7220 = vpop.f32.mrf.mxu0
    %7221 = vmatprep.mubr.f32.mxu0 0.0
    %v7222 = vand.u32 %v6507, 4294901760
    %v7223 = vsub.f32 %v6507, %v7222
    %v7224 = vand.u32 %v7223, 4294901760
    %7225 = vmatmul.mubr.f32.gmra.mxu0 %v7224
    %v7226 = vpop.f32.mrf.mxu0
    %v7227 = vadd.f32 %v7045, %v7226
    %v7228 = vpop.f32.mrf.mxu0
    %7229 = vmatprep.mubr.f32.mxu0 0.0
    %v7230 = vand.u32 %v6510, 4294901760
    %v7231 = vsub.f32 %v6510, %v7230
    %v7232 = vand.u32 %v7231, 4294901760
    %7233 = vmatmul.mubr.f32.gmra.mxu0 %v7232
    %v7234 = vpop.f32.mrf.mxu0
    %v7235 = vadd.f32 %v7052, %v7234
    %v7236 = vpop.f32.mrf.mxu0
    %7237 = vmatprep.mubr.f32.mxu0 0.0
    %v7238 = vand.u32 %v6513, 4294901760
    %v7239 = vsub.f32 %v6513, %v7238
    %v7240 = vand.u32 %v7239, 4294901760
    %7241 = vmatmul.mubr.f32.gmra.mxu0 %v7240
    %v7242 = vpop.f32.mrf.mxu0
    %v7243 = vadd.f32 %v7059, %v7242
    %v7244 = vpop.f32.mrf.mxu0
    %7245 = vmatprep.mubr.f32.mxu0 0.0
    %v7246 = vand.u32 %v6516, 4294901760
    %v7247 = vsub.f32 %v6516, %v7246
    %v7248 = vand.u32 %v7247, 4294901760
    %7249 = vmatmul.mubr.f32.gmra.mxu0 %v7248
    %v7250 = vpop.f32.mrf.mxu0
    %v7251 = vadd.f32 %v7066, %v7250
    %v7252 = vpop.f32.mrf.mxu0
    %7253 = vmatprep.mubr.f32.mxu0 0.0
    %v7254 = vand.u32 %v6519, 4294901760
    %v7255 = vsub.f32 %v6519, %v7254
    %v7256 = vand.u32 %v7255, 4294901760
    %7257 = vmatmul.mubr.f32.gmra.mxu0 %v7256
    %v7258 = vpop.f32.mrf.mxu0
    %v7259 = vadd.f32 %v7073, %v7258
    %v7260 = vpop.f32.mrf.mxu0
    %7261 = vmatprep.mubr.f32.mxu0 0.0
    %v7262 = vand.u32 %v6522, 4294901760
    %v7263 = vsub.f32 %v6522, %v7262
    %v7264 = vand.u32 %v7263, 4294901760
    %7265 = vmatmul.mubr.f32.gmra.mxu0 %v7264
    %v7266 = vpop.f32.mrf.mxu0
    %v7267 = vadd.f32 %v7080, %v7266
    %v7268 = vpop.f32.mrf.mxu0
    %7269 = vmatprep.mubr.f32.mxu0 0.0
    %v7270 = vand.u32 %v6525, 4294901760
    %v7271 = vsub.f32 %v6525, %v7270
    %v7272 = vand.u32 %v7271, 4294901760
    %7273 = vmatmul.mubr.f32.gmra.mxu0 %v7272
    %v7274 = vpop.f32.mrf.mxu0
    %v7275 = vadd.f32 %v7087, %v7274
    %v7276 = vpop.f32.mrf.mxu0
    %7277 = vmatprep.mubr.f32.mxu0 0.0
    %v7278 = vand.u32 %v6528, 4294901760
    %v7279 = vsub.f32 %v6528, %v7278
    %v7280 = vand.u32 %v7279, 4294901760
    %7281 = vmatmul.mubr.f32.gmra.mxu0 %v7280
    %v7282 = vpop.f32.mrf.mxu0
    %v7283 = vadd.f32 %v7094, %v7282
    %v7284 = vpop.f32.mrf.mxu0
    %7285 = vmatprep.mubr.f32.mxu0 0.0
    %v7286 = vand.u32 %v6531, 4294901760
    %v7287 = vsub.f32 %v6531, %v7286
    %v7288 = vand.u32 %v7287, 4294901760
    %7289 = vmatmul.mubr.f32.gmra.mxu0 %v7288
    %v7290 = vpop.f32.mrf.mxu0
    %v7291 = vadd.f32 %v7101, %v7290
    %v7292 = vpop.f32.mrf.mxu0
    %7293 = vmatprep.mubr.f32.mxu0 0.0
    %v7294 = vand.u32 %v6534, 4294901760
    %v7295 = vsub.f32 %v6534, %v7294
    %v7296 = vand.u32 %v7295, 4294901760
    %7297 = vmatmul.mubr.f32.gmra.mxu0 %v7296
    %v7298 = vpop.f32.mrf.mxu0
    %v7299 = vadd.f32 %v7108, %v7298
    %v7300 = vpop.f32.mrf.mxu0
    %7301 = vmatprep.mubr.f32.mxu0 0.0
    %v7302 = vand.u32 %v6537, 4294901760
    %v7303 = vsub.f32 %v6537, %v7302
    %v7304 = vand.u32 %v7303, 4294901760
    %7305 = vmatmul.mubr.f32.gmra.mxu0 %v7304
    %v7306 = vpop.f32.mrf.mxu0
    %v7307 = vadd.f32 %v7115, %v7306
    %v7308 = vpop.f32.mrf.mxu0
    %7309 = vmatprep.mubr.f32.mxu0 0.0
    %v7310 = vand.u32 %v6540, 4294901760
    %v7311 = vsub.f32 %v6540, %v7310
    %v7312 = vand.u32 %v7311, 4294901760
    %7313 = vmatmul.mubr.f32.gmra.mxu0 %v7312
    %v7314 = vpop.f32.mrf.mxu0
    %v7315 = vadd.f32 %v7122, %v7314
    %v7316 = vpop.f32.mrf.mxu0
    %7317 = vdwg.mxu0
    %7318 = vmatprep.subr.mxu0 0.0
    %7319 = vmatpush1.msra.mxu0 0.0
    %7320 = vmatprep.subr.mxu0 0.0
    %7321 = vmatpush1.msra.mxu0 0.0
    %7322 = vmatprep.subr.mxu0 0.0
    %7323 = vmatpush1.msra.mxu0 0.0
    %7324 = vmatprep.subr.mxu0 0.0
    %7325 = vmatpush1.msra.mxu0 0.0
    %7326 = vmatprep.subr.mxu0 0.0
    %7327 = vmatpush1.msra.mxu0 0.0
    %7328 = vmatprep.subr.mxu0 0.0
    %7329 = vmatpush1.msra.mxu0 0.0
    %7330 = vmatprep.subr.mxu0 0.0
    %7331 = vmatpush1.msra.mxu0 0.0
    %7332 = vmatprep.subr.mxu0 0.0
    %7333 = vmatpush1.msra.mxu0 0.0
    %7334 = vmatprep.subr.mxu0 0.0
    %7335 = vmatpush1.msra.mxu0 0.0
    %7336 = vmatprep.subr.mxu0 0.0
    %7337 = vmatpush1.msra.mxu0 0.0
    %7338 = vmatprep.subr.mxu0 0.0
    %7339 = vmatpush1.msra.mxu0 0.0
    %7340 = vmatprep.subr.mxu0 0.0
    %7341 = vmatpush1.msra.mxu0 0.0
    %7342 = vmatprep.subr.mxu0 0.0
    %v7343 = vsub.f32 %v162, %v162
    %v7344 = vand.u32 %v7343, 4294901760
    %7345 = vmatpush1.msra.mxu0 %v7344
    %7346 = vmatprep.subr.mxu0 0.0
    %v7347 = vsub.f32 %v161, %v161
    %v7348 = vand.u32 %v7347, 4294901760
    %7349 = vmatpush1.msra.mxu0 %v7348
    %7350 = vmatprep.subr.mxu0 0.0
    %v7351 = vsub.f32 %v160, %v160
    %v7352 = vand.u32 %v7351, 4294901760
    %7353 = vmatpush1.msra.mxu0 %v7352
    %7354 = vmatprep.subr.mxu0 0.0
    %v7355 = vsub.f32 %v159, %v159
    %v7356 = vand.u32 %v7355, 4294901760
    %7357 = vmatpush1.msra.mxu0 %v7356
    %7358 = vmatprep.subr.mxu0 0.0
    %7359 = vmatpush2.msra.mxu0 0.0
    %7360 = vmatprep.subr.mxu0 0.0
    %7361 = vmatpush2.msra.mxu0 0.0
    %7362 = vmatprep.subr.mxu0 0.0
    %7363 = vmatpush2.msra.mxu0 0.0
    %7364 = vmatprep.subr.mxu0 0.0
    %7365 = vmatpush2.msra.mxu0 0.0
    %7366 = vmatprep.subr.mxu0 0.0
    %7367 = vmatpush2.msra.mxu0 0.0
    %7368 = vmatprep.subr.mxu0 0.0
    %7369 = vmatpush2.msra.mxu0 0.0
    %7370 = vmatprep.subr.mxu0 0.0
    %7371 = vmatpush2.msra.mxu0 0.0
    %7372 = vmatprep.subr.mxu0 0.0
    %7373 = vmatpush2.msra.mxu0 0.0
    %7374 = vmatprep.subr.mxu0 0.0
    %7375 = vmatpush2.msra.mxu0 0.0
    %7376 = vmatprep.subr.mxu0 0.0
    %7377 = vmatpush2.msra.mxu0 0.0
    %7378 = vmatprep.subr.mxu0 0.0
    %7379 = vmatpush2.msra.mxu0 0.0
    %7380 = vmatprep.subr.mxu0 0.0
    %7381 = vmatpush2.msra.mxu0 0.0
    %7382 = vmatprep.subr.mxu0 0.0
    %7383 = vmatpush2.msra.mxu0 0.0
    %7384 = vmatprep.subr.mxu0 0.0
    %7385 = vmatpush2.msra.mxu0 0.0
    %7386 = vmatprep.subr.mxu0 0.0
    %7387 = vmatpush2.msra.mxu0 0.0
    %7388 = vmatprep.subr.mxu0 0.0
    %7389 = vmatpush2.msra.mxu0 0.0
    %7390 = vmatprep.mubr.f32.mxu0 0.0
    %v7391 = vand.u32 %v6495, 4294901760
    %7392 = vmatmul.mubr.f32.gmra.mxu0 %v7391
    %v7393 = vpop.f32.mrf.mxu0
    %v7394 = vadd.f32 %v7195, %v7393
    %v7395 = vpop.f32.mrf.mxu0
    %7396 = vmatprep.mubr.f32.mxu0 0.0
    %v7397 = vand.u32 %v6498, 4294901760
    %7398 = vmatmul.mubr.f32.gmra.mxu0 %v7397
    %v7399 = vpop.f32.mrf.mxu0
    %v7400 = vadd.f32 %v7203, %v7399
    %v7401 = vpop.f32.mrf.mxu0
    %7402 = vmatprep.mubr.f32.mxu0 0.0
    %v7403 = vand.u32 %v6501, 4294901760
    %7404 = vmatmul.mubr.f32.gmra.mxu0 %v7403
    %v7405 = vpop.f32.mrf.mxu0
    %v7406 = vadd.f32 %v7211, %v7405
    %v7407 = vpop.f32.mrf.mxu0
    %7408 = vmatprep.mubr.f32.mxu0 0.0
    %v7409 = vand.u32 %v6504, 4294901760
    %7410 = vmatmul.mubr.f32.gmra.mxu0 %v7409
    %v7411 = vpop.f32.mrf.mxu0
    %v7412 = vadd.f32 %v7219, %v7411
    %v7413 = vpop.f32.mrf.mxu0
    %7414 = vmatprep.mubr.f32.mxu0 0.0
    %v7415 = vand.u32 %v6507, 4294901760
    %7416 = vmatmul.mubr.f32.gmra.mxu0 %v7415
    %v7417 = vpop.f32.mrf.mxu0
    %v7418 = vadd.f32 %v7227, %v7417
    %v7419 = vpop.f32.mrf.mxu0
    %7420 = vmatprep.mubr.f32.mxu0 0.0
    %v7421 = vand.u32 %v6510, 4294901760
    %7422 = vmatmul.mubr.f32.gmra.mxu0 %v7421
    %v7423 = vpop.f32.mrf.mxu0
    %v7424 = vadd.f32 %v7235, %v7423
    %v7425 = vpop.f32.mrf.mxu0
    %7426 = vmatprep.mubr.f32.mxu0 0.0
    %v7427 = vand.u32 %v6513, 4294901760
    %7428 = vmatmul.mubr.f32.gmra.mxu0 %v7427
    %v7429 = vpop.f32.mrf.mxu0
    %v7430 = vadd.f32 %v7243, %v7429
    %v7431 = vpop.f32.mrf.mxu0
    %7432 = vmatprep.mubr.f32.mxu0 0.0
    %v7433 = vand.u32 %v6516, 4294901760
    %7434 = vmatmul.mubr.f32.gmra.mxu0 %v7433
    %v7435 = vpop.f32.mrf.mxu0
    %v7436 = vadd.f32 %v7251, %v7435
    %v7437 = vpop.f32.mrf.mxu0
    %7438 = vmatprep.mubr.f32.mxu0 0.0
    %v7439 = vand.u32 %v6519, 4294901760
    %7440 = vmatmul.mubr.f32.gmra.mxu0 %v7439
    %v7441 = vpop.f32.mrf.mxu0
    %v7442 = vadd.f32 %v7259, %v7441
    %v7443 = vpop.f32.mrf.mxu0
    %7444 = vmatprep.mubr.f32.mxu0 0.0
    %v7445 = vand.u32 %v6522, 4294901760
    %7446 = vmatmul.mubr.f32.gmra.mxu0 %v7445
    %v7447 = vpop.f32.mrf.mxu0
    %v7448 = vadd.f32 %v7267, %v7447
    %v7449 = vpop.f32.mrf.mxu0
    %7450 = vmatprep.mubr.f32.mxu0 0.0
    %v7451 = vand.u32 %v6525, 4294901760
    %7452 = vmatmul.mubr.f32.gmra.mxu0 %v7451
    %v7453 = vpop.f32.mrf.mxu0
    %v7454 = vadd.f32 %v7275, %v7453
    %v7455 = vpop.f32.mrf.mxu0
    %7456 = vmatprep.mubr.f32.mxu0 0.0
    %v7457 = vand.u32 %v6528, 4294901760
    %7458 = vmatmul.mubr.f32.gmra.mxu0 %v7457
    %v7459 = vpop.f32.mrf.mxu0
    %v7460 = vadd.f32 %v7283, %v7459
    %v7461 = vpop.f32.mrf.mxu0
    %7462 = vmatprep.mubr.f32.mxu0 0.0
    %v7463 = vand.u32 %v6531, 4294901760
    %7464 = vmatmul.mubr.f32.gmra.mxu0 %v7463
    %v7465 = vpop.f32.mrf.mxu0
    %v7466 = vadd.f32 %v7291, %v7465
    %v7467 = vpop.f32.mrf.mxu0
    %7468 = vmatprep.mubr.f32.mxu0 0.0
    %v7469 = vand.u32 %v6534, 4294901760
    %7470 = vmatmul.mubr.f32.gmra.mxu0 %v7469
    %v7471 = vpop.f32.mrf.mxu0
    %v7472 = vadd.f32 %v7299, %v7471
    %v7473 = vpop.f32.mrf.mxu0
    %7474 = vmatprep.mubr.f32.mxu0 0.0
    %v7475 = vand.u32 %v6537, 4294901760
    %7476 = vmatmul.mubr.f32.gmra.mxu0 %v7475
    %v7477 = vpop.f32.mrf.mxu0
    %v7478 = vadd.f32 %v7307, %v7477
    %v7479 = vpop.f32.mrf.mxu0
    %7480 = vmatprep.mubr.f32.mxu0 0.0
    %v7481 = vand.u32 %v6540, 4294901760
    %7482 = vmatmul.mubr.f32.gmra.mxu0 %v7481
    %v7483 = vpop.f32.mrf.mxu0
    %v7484 = vadd.f32 %v7315, %v7483
    %v7485 = vpop.f32.mrf.mxu0
    %7486 = vdwg.mxu0
    %7487 = vmatprep.subr.mxu0 0.0
    %7488 = vmatpush1.msra.mxu0 0.0
    %7489 = vmatprep.subr.mxu0 0.0
    %7490 = vmatpush1.msra.mxu0 0.0
    %7491 = vmatprep.subr.mxu0 0.0
    %7492 = vmatpush1.msra.mxu0 0.0
    %7493 = vmatprep.subr.mxu0 0.0
    %7494 = vmatpush1.msra.mxu0 0.0
    %7495 = vmatprep.subr.mxu0 0.0
    %7496 = vmatpush1.msra.mxu0 0.0
    %7497 = vmatprep.subr.mxu0 0.0
    %7498 = vmatpush1.msra.mxu0 0.0
    %7499 = vmatprep.subr.mxu0 0.0
    %7500 = vmatpush1.msra.mxu0 0.0
    %7501 = vmatprep.subr.mxu0 0.0
    %7502 = vmatpush1.msra.mxu0 0.0
    %7503 = vmatprep.subr.mxu0 0.0
    %7504 = vmatpush1.msra.mxu0 0.0
    %7505 = vmatprep.subr.mxu0 0.0
    %7506 = vmatpush1.msra.mxu0 0.0
    %7507 = vmatprep.subr.mxu0 0.0
    %7508 = vmatpush1.msra.mxu0 0.0
    %7509 = vmatprep.subr.mxu0 0.0
    %7510 = vmatpush1.msra.mxu0 0.0
    %7511 = vmatprep.subr.mxu0 0.0
    %7512 = vmatpush1.msra.mxu0 %v162
    %7513 = vmatprep.subr.mxu0 0.0
    %7514 = vmatpush1.msra.mxu0 %v161
    %7515 = vmatprep.subr.mxu0 0.0
    %7516 = vmatpush1.msra.mxu0 %v160
    %7517 = vmatprep.subr.mxu0 0.0
    %7518 = vmatpush1.msra.mxu0 %v159
    %7519 = vmatprep.subr.mxu0 0.0
    %7520 = vmatpush2.msra.mxu0 0.0
    %7521 = vmatprep.subr.mxu0 0.0
    %7522 = vmatpush2.msra.mxu0 0.0
    %7523 = vmatprep.subr.mxu0 0.0
    %7524 = vmatpush2.msra.mxu0 0.0
    %7525 = vmatprep.subr.mxu0 0.0
    %7526 = vmatpush2.msra.mxu0 0.0
    %7527 = vmatprep.subr.mxu0 0.0
    %7528 = vmatpush2.msra.mxu0 0.0
    %7529 = vmatprep.subr.mxu0 0.0
    %7530 = vmatpush2.msra.mxu0 0.0
    %7531 = vmatprep.subr.mxu0 0.0
    %7532 = vmatpush2.msra.mxu0 0.0
    %7533 = vmatprep.subr.mxu0 0.0
    %7534 = vmatpush2.msra.mxu0 0.0
    %7535 = vmatprep.subr.mxu0 0.0
    %7536 = vmatpush2.msra.mxu0 0.0
    %7537 = vmatprep.subr.mxu0 0.0
    %7538 = vmatpush2.msra.mxu0 0.0
    %7539 = vmatprep.subr.mxu0 0.0
    %7540 = vmatpush2.msra.mxu0 0.0
    %7541 = vmatprep.subr.mxu0 0.0
    %7542 = vmatpush2.msra.mxu0 0.0
    %7543 = vmatprep.subr.mxu0 0.0
    %7544 = vmatpush2.msra.mxu0 0.0
    %7545 = vmatprep.subr.mxu0 0.0
    %7546 = vmatpush2.msra.mxu0 0.0
    %7547 = vmatprep.subr.mxu0 0.0
    %7548 = vmatpush2.msra.mxu0 0.0
    %7549 = vmatprep.subr.mxu0 0.0
    %7550 = vmatpush2.msra.mxu0 0.0
    %7551 = vmatprep.mubr.f32.mxu0 0.0
    %v7552 = vand.u32 %v6495, 4294901760
    %7553 = vmatmul.mubr.f32.gmra.mxu0 %v7552
    %v7554 = vpop.f32.mrf.mxu0
    %v7555 = vadd.f32 %v7394, %v7554
    %v7556 = vpop.f32.mrf.mxu0
    %7557 = vmatprep.mubr.f32.mxu0 0.0
    %v7558 = vand.u32 %v6498, 4294901760
    %7559 = vmatmul.mubr.f32.gmra.mxu0 %v7558
    %v7560 = vpop.f32.mrf.mxu0
    %v7561 = vadd.f32 %v7400, %v7560
    %v7562 = vpop.f32.mrf.mxu0
    %7563 = vmatprep.mubr.f32.mxu0 0.0
    %v7564 = vand.u32 %v6501, 4294901760
    %7565 = vmatmul.mubr.f32.gmra.mxu0 %v7564
    %v7566 = vpop.f32.mrf.mxu0
    %v7567 = vadd.f32 %v7406, %v7566
    %v7568 = vpop.f32.mrf.mxu0
    %7569 = vmatprep.mubr.f32.mxu0 0.0
    %v7570 = vand.u32 %v6504, 4294901760
    %7571 = vmatmul.mubr.f32.gmra.mxu0 %v7570
    %v7572 = vpop.f32.mrf.mxu0
    %v7573 = vadd.f32 %v7412, %v7572
    %v7574 = vpop.f32.mrf.mxu0
    %7575 = vmatprep.mubr.f32.mxu0 0.0
    %v7576 = vand.u32 %v6507, 4294901760
    %7577 = vmatmul.mubr.f32.gmra.mxu0 %v7576
    %v7578 = vpop.f32.mrf.mxu0
    %v7579 = vadd.f32 %v7418, %v7578
    %v7580 = vpop.f32.mrf.mxu0
    %7581 = vmatprep.mubr.f32.mxu0 0.0
    %v7582 = vand.u32 %v6510, 4294901760
    %7583 = vmatmul.mubr.f32.gmra.mxu0 %v7582
    %v7584 = vpop.f32.mrf.mxu0
    %v7585 = vadd.f32 %v7424, %v7584
    %v7586 = vpop.f32.mrf.mxu0
    %7587 = vmatprep.mubr.f32.mxu0 0.0
    %v7588 = vand.u32 %v6513, 4294901760
    %7589 = vmatmul.mubr.f32.gmra.mxu0 %v7588
    %v7590 = vpop.f32.mrf.mxu0
    %v7591 = vadd.f32 %v7430, %v7590
    %v7592 = vpop.f32.mrf.mxu0
    %7593 = vmatprep.mubr.f32.mxu0 0.0
    %v7594 = vand.u32 %v6516, 4294901760
    %7595 = vmatmul.mubr.f32.gmra.mxu0 %v7594
    %v7596 = vpop.f32.mrf.mxu0
    %v7597 = vadd.f32 %v7436, %v7596
    %v7598 = vpop.f32.mrf.mxu0
    %7599 = vmatprep.mubr.f32.mxu0 0.0
    %v7600 = vand.u32 %v6519, 4294901760
    %7601 = vmatmul.mubr.f32.gmra.mxu0 %v7600
    %v7602 = vpop.f32.mrf.mxu0
    %v7603 = vadd.f32 %v7442, %v7602
    %v7604 = vpop.f32.mrf.mxu0
    %7605 = vmatprep.mubr.f32.mxu0 0.0
    %v7606 = vand.u32 %v6522, 4294901760
    %7607 = vmatmul.mubr.f32.gmra.mxu0 %v7606
    %v7608 = vpop.f32.mrf.mxu0
    %v7609 = vadd.f32 %v7448, %v7608
    %v7610 = vpop.f32.mrf.mxu0
    %7611 = vmatprep.mubr.f32.mxu0 0.0
    %v7612 = vand.u32 %v6525, 4294901760
    %7613 = vmatmul.mubr.f32.gmra.mxu0 %v7612
    %v7614 = vpop.f32.mrf.mxu0
    %v7615 = vadd.f32 %v7454, %v7614
    %v7616 = vpop.f32.mrf.mxu0
    %7617 = vmatprep.mubr.f32.mxu0 0.0
    %v7618 = vand.u32 %v6528, 4294901760
    %7619 = vmatmul.mubr.f32.gmra.mxu0 %v7618
    %v7620 = vpop.f32.mrf.mxu0
    %v7621 = vadd.f32 %v7460, %v7620
    %v7622 = vpop.f32.mrf.mxu0
    %7623 = vmatprep.mubr.f32.mxu0 0.0
    %v7624 = vand.u32 %v6531, 4294901760
    %7625 = vmatmul.mubr.f32.gmra.mxu0 %v7624
    %v7626 = vpop.f32.mrf.mxu0
    %v7627 = vadd.f32 %v7466, %v7626
    %v7628 = vpop.f32.mrf.mxu0
    %7629 = vmatprep.mubr.f32.mxu0 0.0
    %v7630 = vand.u32 %v6534, 4294901760
    %7631 = vmatmul.mubr.f32.gmra.mxu0 %v7630
    %v7632 = vpop.f32.mrf.mxu0
    %v7633 = vadd.f32 %v7472, %v7632
    %v7634 = vpop.f32.mrf.mxu0
    %7635 = vmatprep.mubr.f32.mxu0 0.0
    %v7636 = vand.u32 %v6537, 4294901760
    %7637 = vmatmul.mubr.f32.gmra.mxu0 %v7636
    %v7638 = vpop.f32.mrf.mxu0
    %v7639 = vadd.f32 %v7478, %v7638
    %v7640 = vpop.f32.mrf.mxu0
    %7641 = vmatprep.mubr.f32.mxu0 0.0
    %v7642 = vand.u32 %v6540, 4294901760
    %7643 = vmatmul.mubr.f32.gmra.mxu0 %v7642
    %v7644 = vpop.f32.mrf.mxu0
    %v7645 = vadd.f32 %v7484, %v7644
    %v7646 = vpop.f32.mrf.mxu0
    %7647 = vdwg.mxu0
    %7649 = vset.pattern.permute.xlu0 0
    %7650 = vperm.xlu0 %7649, %v64
    %v7651 = vpop.permute.xlu0 %7650
    %7654 = vset.pattern.permute.xlu0 0
    %7655 = vperm.xlu0 %7654, %v65
    %v7656 = vpop.permute.xlu0 %7655
    %7659 = vset.pattern.permute.xlu0 0
    %7660 = vperm.xlu0 %7659, %v66
    %v7661 = vpop.permute.xlu0 %7660
    %7664 = vset.pattern.permute.xlu0 0
    %7665 = vperm.xlu0 %7664, %v67
    %v7666 = vpop.permute.xlu0 %7665
    %7669 = vset.pattern.permute.xlu0 0
    %7670 = vperm.xlu0 %7669, %v68
    %v7671 = vpop.permute.xlu0 %7670
    %7674 = vset.pattern.permute.xlu0 0
    %7675 = vperm.xlu0 %7674, %v69
    %v7676 = vpop.permute.xlu0 %7675
    %7679 = vset.pattern.permute.xlu0 0
    %7680 = vperm.xlu0 %7679, %v70
    %v7681 = vpop.permute.xlu0 %7680
    %7684 = vset.pattern.permute.xlu0 0
    %7685 = vperm.xlu0 %7684, %v71
    %v7686 = vpop.permute.xlu0 %7685
    %7689 = vset.pattern.permute.xlu0 0
    %7690 = vperm.xlu0 %7689, %v72
    %v7691 = vpop.permute.xlu0 %7690
    %7694 = vset.pattern.permute.xlu0 0
    %7695 = vperm.xlu0 %7694, %v73
    %v7696 = vpop.permute.xlu0 %7695
    %7699 = vset.pattern.permute.xlu0 0
    %7700 = vperm.xlu0 %7699, %v74
    %v7701 = vpop.permute.xlu0 %7700
    %7704 = vset.pattern.permute.xlu0 0
    %7705 = vperm.xlu0 %7704, %v75
    %v7706 = vpop.permute.xlu0 %7705
    %7709 = vset.pattern.permute.xlu0 0
    %7710 = vperm.xlu0 %7709, %v76
    %v7711 = vpop.permute.xlu0 %7710
    %7714 = vset.pattern.permute.xlu0 0
    %7715 = vperm.xlu0 %7714, %v77
    %v7716 = vpop.permute.xlu0 %7715
    %7719 = vset.pattern.permute.xlu0 0
    %7720 = vperm.xlu0 %7719, %v78
    %v7721 = vpop.permute.xlu0 %7720
    %7724 = vset.pattern.permute.xlu0 0
    %7725 = vperm.xlu0 %7724, %v79
    %v7726 = vpop.permute.xlu0 %7725
    %v7728 = vadd.f32 %v7555, %v7651
    %v7729 = vadd.f32 %v7561, %v7656
    %v7730 = vadd.f32 %v7567, %v7661
    %v7731 = vadd.f32 %v7573, %v7666
    %v7732 = vadd.f32 %v7579, %v7671
    %v7733 = vadd.f32 %v7585, %v7676
    %v7734 = vadd.f32 %v7591, %v7681
    %v7735 = vadd.f32 %v7597, %v7686
    %v7736 = vadd.f32 %v7603, %v7691
    %v7737 = vadd.f32 %v7609, %v7696
    %v7738 = vadd.f32 %v7615, %v7701
    %v7739 = vadd.f32 %v7621, %v7706
    %v7740 = vadd.f32 %v7627, %v7711
    %v7741 = vadd.f32 %v7633, %v7716
    %v7742 = vadd.f32 %v7639, %v7721
    %v7743 = vadd.f32 %v7645, %v7726
    %vm7744 = vcmask 64512
    %v7745 = vsel %vm7744, %v7728, -inf
    %v7746 = vrot.slane %v7745, 4
    %v7747 = vmax.f32 %v7745, %v7746
    %v7748 = vrot.slane %v7747, 2
    %v7749 = vmax.f32 %v7747, %v7748
    %v7750 = vrot.slane %v7749, 1
    %v7751 = vmax.f32 %v7749, %v7750
    %v7752 = vsel %vm7744, %v7729, -inf
    %v7753 = vrot.slane %v7752, 4
    %v7754 = vmax.f32 %v7752, %v7753
    %v7755 = vrot.slane %v7754, 2
    %v7756 = vmax.f32 %v7754, %v7755
    %v7757 = vrot.slane %v7756, 1
    %v7758 = vmax.f32 %v7756, %v7757
    %v7759 = vsel %vm7744, %v7730, -inf
    %v7760 = vrot.slane %v7759, 4
    %v7761 = vmax.f32 %v7759, %v7760
    %v7762 = vrot.slane %v7761, 2
    %v7763 = vmax.f32 %v7761, %v7762
    %v7764 = vrot.slane %v7763, 1
    %v7765 = vmax.f32 %v7763, %v7764
    %v7766 = vsel %vm7744, %v7731, -inf
    %v7767 = vrot.slane %v7766, 4
    %v7768 = vmax.f32 %v7766, %v7767
    %v7769 = vrot.slane %v7768, 2
    %v7770 = vmax.f32 %v7768, %v7769
    %v7771 = vrot.slane %v7770, 1
    %v7772 = vmax.f32 %v7770, %v7771
    %v7773 = vsel %vm7744, %v7732, -inf
    %v7774 = vrot.slane %v7773, 4
    %v7775 = vmax.f32 %v7773, %v7774
    %v7776 = vrot.slane %v7775, 2
    %v7777 = vmax.f32 %v7775, %v7776
    %v7778 = vrot.slane %v7777, 1
    %v7779 = vmax.f32 %v7777, %v7778
    %v7780 = vsel %vm7744, %v7733, -inf
    %v7781 = vrot.slane %v7780, 4
    %v7782 = vmax.f32 %v7780, %v7781
    %v7783 = vrot.slane %v7782, 2
    %v7784 = vmax.f32 %v7782, %v7783
    %v7785 = vrot.slane %v7784, 1
    %v7786 = vmax.f32 %v7784, %v7785
    %v7787 = vsel %vm7744, %v7734, -inf
    %v7788 = vrot.slane %v7787, 4
    %v7789 = vmax.f32 %v7787, %v7788
    %v7790 = vrot.slane %v7789, 2
    %v7791 = vmax.f32 %v7789, %v7790
    %v7792 = vrot.slane %v7791, 1
    %v7793 = vmax.f32 %v7791, %v7792
    %v7794 = vsel %vm7744, %v7735, -inf
    %v7795 = vrot.slane %v7794, 4
    %v7796 = vmax.f32 %v7794, %v7795
    %v7797 = vrot.slane %v7796, 2
    %v7798 = vmax.f32 %v7796, %v7797
    %v7799 = vrot.slane %v7798, 1
    %v7800 = vmax.f32 %v7798, %v7799
    %v7801 = vsel %vm7744, %v7736, -inf
    %v7802 = vrot.slane %v7801, 4
    %v7803 = vmax.f32 %v7801, %v7802
    %v7804 = vrot.slane %v7803, 2
    %v7805 = vmax.f32 %v7803, %v7804
    %v7806 = vrot.slane %v7805, 1
    %v7807 = vmax.f32 %v7805, %v7806
    %v7808 = vsel %vm7744, %v7737, -inf
    %v7809 = vrot.slane %v7808, 4
    %v7810 = vmax.f32 %v7808, %v7809
    %v7811 = vrot.slane %v7810, 2
    %v7812 = vmax.f32 %v7810, %v7811
    %v7813 = vrot.slane %v7812, 1
    %v7814 = vmax.f32 %v7812, %v7813
    %v7815 = vsel %vm7744, %v7738, -inf
    %v7816 = vrot.slane %v7815, 4
    %v7817 = vmax.f32 %v7815, %v7816
    %v7818 = vrot.slane %v7817, 2
    %v7819 = vmax.f32 %v7817, %v7818
    %v7820 = vrot.slane %v7819, 1
    %v7821 = vmax.f32 %v7819, %v7820
    %v7822 = vsel %vm7744, %v7739, -inf
    %v7823 = vrot.slane %v7822, 4
    %v7824 = vmax.f32 %v7822, %v7823
    %v7825 = vrot.slane %v7824, 2
    %v7826 = vmax.f32 %v7824, %v7825
    %v7827 = vrot.slane %v7826, 1
    %v7828 = vmax.f32 %v7826, %v7827
    %v7829 = vsel %vm7744, %v7740, -inf
    %v7830 = vrot.slane %v7829, 4
    %v7831 = vmax.f32 %v7829, %v7830
    %v7832 = vrot.slane %v7831, 2
    %v7833 = vmax.f32 %v7831, %v7832
    %v7834 = vrot.slane %v7833, 1
    %v7835 = vmax.f32 %v7833, %v7834
    %v7836 = vsel %vm7744, %v7741, -inf
    %v7837 = vrot.slane %v7836, 4
    %v7838 = vmax.f32 %v7836, %v7837
    %v7839 = vrot.slane %v7838, 2
    %v7840 = vmax.f32 %v7838, %v7839
    %v7841 = vrot.slane %v7840, 1
    %v7842 = vmax.f32 %v7840, %v7841
    %v7843 = vsel %vm7744, %v7742, -inf
    %v7844 = vrot.slane %v7843, 4
    %v7845 = vmax.f32 %v7843, %v7844
    %v7846 = vrot.slane %v7845, 2
    %v7847 = vmax.f32 %v7845, %v7846
    %v7848 = vrot.slane %v7847, 1
    %v7849 = vmax.f32 %v7847, %v7848
    %v7850 = vsel %vm7744, %v7743, -inf
    %v7851 = vrot.slane %v7850, 4
    %v7852 = vmax.f32 %v7850, %v7851
    %v7853 = vrot.slane %v7852, 2
    %v7854 = vmax.f32 %v7852, %v7853
    %v7855 = vrot.slane %v7854, 1
    %v7856 = vmax.f32 %v7854, %v7855
    %v7857 = vsub.f32 %v7728, %v7751
    %v7858 = vsub.f32 %v7729, %v7758
    %v7859 = vsub.f32 %v7730, %v7765
    %v7860 = vsub.f32 %v7731, %v7772
    %v7861 = vsub.f32 %v7732, %v7779
    %v7862 = vsub.f32 %v7733, %v7786
    %v7863 = vsub.f32 %v7734, %v7793
    %v7864 = vsub.f32 %v7735, %v7800
    %v7865 = vsub.f32 %v7736, %v7807
    %v7866 = vsub.f32 %v7737, %v7814
    %v7867 = vsub.f32 %v7738, %v7821
    %v7868 = vsub.f32 %v7739, %v7828
    %v7869 = vsub.f32 %v7740, %v7835
    %v7870 = vsub.f32 %v7741, %v7842
    %v7871 = vsub.f32 %v7742, %v7849
    %v7872 = vsub.f32 %v7743, %v7856
    %v7873 = vmul.f32 %v7857, 1.442695
    %v7874 = vpow.pop %v7873
    %v7875 = vmul.f32 %v7858, 1.442695
    %v7876 = vpow.pop %v7875
    %v7877 = vmul.f32 %v7859, 1.442695
    %v7878 = vpow.pop %v7877
    %v7879 = vmul.f32 %v7860, 1.442695
    %v7880 = vpow.pop %v7879
    %v7881 = vmul.f32 %v7861, 1.442695
    %v7882 = vpow.pop %v7881
    %v7883 = vmul.f32 %v7862, 1.442695
    %v7884 = vpow.pop %v7883
    %v7885 = vmul.f32 %v7863, 1.442695
    %v7886 = vpow.pop %v7885
    %v7887 = vmul.f32 %v7864, 1.442695
    %v7888 = vpow.pop %v7887
    %v7889 = vmul.f32 %v7865, 1.442695
    %v7890 = vpow.pop %v7889
    %v7891 = vmul.f32 %v7866, 1.442695
    %v7892 = vpow.pop %v7891
    %v7893 = vmul.f32 %v7867, 1.442695
    %v7894 = vpow.pop %v7893
    %v7895 = vmul.f32 %v7868, 1.442695
    %v7896 = vpow.pop %v7895
    %v7897 = vmul.f32 %v7869, 1.442695
    %v7898 = vpow.pop %v7897
    %v7899 = vmul.f32 %v7870, 1.442695
    %v7900 = vpow.pop %v7899
    %v7901 = vmul.f32 %v7871, 1.442695
    %v7902 = vpow.pop %v7901
    %v7903 = vmul.f32 %v7872, 1.442695
    %v7904 = vpow.pop %v7903
    %v7905 = vsel %vm7744, %v7874, 0.0
    %v7906 = vrot.slane %v7905, 4
    %v7907 = vadd.f32 %v7905, %v7906
    %v7908 = vrot.slane %v7907, 2
    %v7909 = vadd.f32 %v7907, %v7908
    %v7910 = vrot.slane %v7909, 1
    %v7911 = vadd.f32 %v7909, %v7910
    %v7912 = vsel %vm7744, %v7876, 0.0
    %v7913 = vrot.slane %v7912, 4
    %v7914 = vadd.f32 %v7912, %v7913
    %v7915 = vrot.slane %v7914, 2
    %v7916 = vadd.f32 %v7914, %v7915
    %v7917 = vrot.slane %v7916, 1
    %v7918 = vadd.f32 %v7916, %v7917
    %v7919 = vsel %vm7744, %v7878, 0.0
    %v7920 = vrot.slane %v7919, 4
    %v7921 = vadd.f32 %v7919, %v7920
    %v7922 = vrot.slane %v7921, 2
    %v7923 = vadd.f32 %v7921, %v7922
    %v7924 = vrot.slane %v7923, 1
    %v7925 = vadd.f32 %v7923, %v7924
    %v7926 = vsel %vm7744, %v7880, 0.0
    %v7927 = vrot.slane %v7926, 4
    %v7928 = vadd.f32 %v7926, %v7927
    %v7929 = vrot.slane %v7928, 2
    %v7930 = vadd.f32 %v7928, %v7929
    %v7931 = vrot.slane %v7930, 1
    %v7932 = vadd.f32 %v7930, %v7931
    %v7933 = vsel %vm7744, %v7882, 0.0
    %v7934 = vrot.slane %v7933, 4
    %v7935 = vadd.f32 %v7933, %v7934
    %v7936 = vrot.slane %v7935, 2
    %v7937 = vadd.f32 %v7935, %v7936
    %v7938 = vrot.slane %v7937, 1
    %v7939 = vadd.f32 %v7937, %v7938
    %v7940 = vsel %vm7744, %v7884, 0.0
    %v7941 = vrot.slane %v7940, 4
    %v7942 = vadd.f32 %v7940, %v7941
    %v7943 = vrot.slane %v7942, 2
    %v7944 = vadd.f32 %v7942, %v7943
    %v7945 = vrot.slane %v7944, 1
    %v7946 = vadd.f32 %v7944, %v7945
    %v7947 = vsel %vm7744, %v7886, 0.0
    %v7948 = vrot.slane %v7947, 4
    %v7949 = vadd.f32 %v7947, %v7948
    %v7950 = vrot.slane %v7949, 2
    %v7951 = vadd.f32 %v7949, %v7950
    %v7952 = vrot.slane %v7951, 1
    %v7953 = vadd.f32 %v7951, %v7952
    %v7954 = vsel %vm7744, %v7888, 0.0
    %v7955 = vrot.slane %v7954, 4
    %v7956 = vadd.f32 %v7954, %v7955
    %v7957 = vrot.slane %v7956, 2
    %v7958 = vadd.f32 %v7956, %v7957
    %v7959 = vrot.slane %v7958, 1
    %v7960 = vadd.f32 %v7958, %v7959
    %v7961 = vsel %vm7744, %v7890, 0.0
    %v7962 = vrot.slane %v7961, 4
    %v7963 = vadd.f32 %v7961, %v7962
    %v7964 = vrot.slane %v7963, 2
    %v7965 = vadd.f32 %v7963, %v7964
    %v7966 = vrot.slane %v7965, 1
    %v7967 = vadd.f32 %v7965, %v7966
    %v7968 = vsel %vm7744, %v7892, 0.0
    %v7969 = vrot.slane %v7968, 4
    %v7970 = vadd.f32 %v7968, %v7969
    %v7971 = vrot.slane %v7970, 2
    %v7972 = vadd.f32 %v7970, %v7971
    %v7973 = vrot.slane %v7972, 1
    %v7974 = vadd.f32 %v7972, %v7973
    %v7975 = vsel %vm7744, %v7894, 0.0
    %v7976 = vrot.slane %v7975, 4
    %v7977 = vadd.f32 %v7975, %v7976
    %v7978 = vrot.slane %v7977, 2
    %v7979 = vadd.f32 %v7977, %v7978
    %v7980 = vrot.slane %v7979, 1
    %v7981 = vadd.f32 %v7979, %v7980
    %v7982 = vsel %vm7744, %v7896, 0.0
    %v7983 = vrot.slane %v7982, 4
    %v7984 = vadd.f32 %v7982, %v7983
    %v7985 = vrot.slane %v7984, 2
    %v7986 = vadd.f32 %v7984, %v7985
    %v7987 = vrot.slane %v7986, 1
    %v7988 = vadd.f32 %v7986, %v7987
    %v7989 = vsel %vm7744, %v7898, 0.0
    %v7990 = vrot.slane %v7989, 4
    %v7991 = vadd.f32 %v7989, %v7990
    %v7992 = vrot.slane %v7991, 2
    %v7993 = vadd.f32 %v7991, %v7992
    %v7994 = vrot.slane %v7993, 1
    %v7995 = vadd.f32 %v7993, %v7994
    %v7996 = vsel %vm7744, %v7900, 0.0
    %v7997 = vrot.slane %v7996, 4
    %v7998 = vadd.f32 %v7996, %v7997
    %v7999 = vrot.slane %v7998, 2
    %v8000 = vadd.f32 %v7998, %v7999
    %v8001 = vrot.slane %v8000, 1
    %v8002 = vadd.f32 %v8000, %v8001
    %v8003 = vsel %vm7744, %v7902, 0.0
    %v8004 = vrot.slane %v8003, 4
    %v8005 = vadd.f32 %v8003, %v8004
    %v8006 = vrot.slane %v8005, 2
    %v8007 = vadd.f32 %v8005, %v8006
    %v8008 = vrot.slane %v8007, 1
    %v8009 = vadd.f32 %v8007, %v8008
    %v8010 = vsel %vm7744, %v7904, 0.0
    %v8011 = vrot.slane %v8010, 4
    %v8012 = vadd.f32 %v8010, %v8011
    %v8013 = vrot.slane %v8012, 2
    %v8014 = vadd.f32 %v8012, %v8013
    %v8015 = vrot.slane %v8014, 1
    %v8016 = vadd.f32 %v8014, %v8015
    %v8017 = vrcp.pop %v7911
    %v8018 = vrcp.pop %v7918
    %v8019 = vrcp.pop %v7925
    %v8020 = vrcp.pop %v7932
    %v8021 = vrcp.pop %v7939
    %v8022 = vrcp.pop %v7946
    %v8023 = vrcp.pop %v7953
    %v8024 = vrcp.pop %v7960
    %v8025 = vrcp.pop %v7967
    %v8026 = vrcp.pop %v7974
    %v8027 = vrcp.pop %v7981
    %v8028 = vrcp.pop %v7988
    %v8029 = vrcp.pop %v7995
    %v8030 = vrcp.pop %v8002
    %v8031 = vrcp.pop %v8009
    %v8032 = vrcp.pop %v8016
    %v8033 = vmul.f32 %v7874, %v8017
    %v8034 = vmul.f32 %v7876, %v8018
    %v8035 = vmul.f32 %v7878, %v8019
    %v8036 = vmul.f32 %v7880, %v8020
    %v8037 = vmul.f32 %v7882, %v8021
    %v8038 = vmul.f32 %v7884, %v8022
    %v8039 = vmul.f32 %v7886, %v8023
    %v8040 = vmul.f32 %v7888, %v8024
    %v8041 = vmul.f32 %v7890, %v8025
    %v8042 = vmul.f32 %v7892, %v8026
    %v8043 = vmul.f32 %v7894, %v8027
    %v8044 = vmul.f32 %v7896, %v8028
    %v8045 = vmul.f32 %v7898, %v8029
    %v8046 = vmul.f32 %v7900, %v8030
    %v8047 = vmul.f32 %v7902, %v8031
    %v8048 = vmul.f32 %v7904, %v8032
    %v8050 = vsel %vm7744, %v8033, 0
    %v8053 = vsel %vm7744, %v8034, 0
    %v8056 = vsel %vm7744, %v8035, 0
    %v8059 = vsel %vm7744, %v8036, 0
    %v8062 = vsel %vm7744, %v8037, 0
    %v8065 = vsel %vm7744, %v8038, 0
    %v8068 = vsel %vm7744, %v8039, 0
    %v8071 = vsel %vm7744, %v8040, 0
    %v8074 = vsel %vm7744, %v8041, 0
    %v8077 = vsel %vm7744, %v8042, 0
    %v8080 = vsel %vm7744, %v8043, 0
    %v8083 = vsel %vm7744, %v8044, 0
    %v8086 = vsel %vm7744, %v8045, 0
    %v8089 = vsel %vm7744, %v8046, 0
    %v8092 = vsel %vm7744, %v8047, 0
    %v8095 = vsel %vm7744, %v8048, 0
    %8097 = vmatprep.subr.mxu0 0.0
    %8098 = vmatpush1.msra.mxu0 0.0
    %8099 = vmatprep.subr.mxu0 0.0
    %8100 = vmatpush1.msra.mxu0 0.0
    %8101 = vmatprep.subr.mxu0 0.0
    %8102 = vmatpush1.msra.mxu0 0.0
    %8103 = vmatprep.subr.mxu0 0.0
    %8104 = vmatpush1.msra.mxu0 0.0
    %8105 = vmatprep.subr.mxu0 0.0
    %8106 = vmatpush1.msra.mxu0 0.0
    %8107 = vmatprep.subr.mxu0 0.0
    %8108 = vmatpush1.msra.mxu0 0.0
    %8109 = vmatprep.subr.mxu0 0.0
    %8110 = vmatpush1.msra.mxu0 0.0
    %8111 = vmatprep.subr.mxu0 0.0
    %8112 = vmatpush1.msra.mxu0 0.0
    %8113 = vmatprep.subr.mxu0 0.0
    %8114 = vmatpush1.msra.mxu0 0.0
    %8115 = vmatprep.subr.mxu0 0.0
    %8116 = vmatpush1.msra.mxu0 0.0
    %8117 = vmatprep.subr.mxu0 0.0
    %8118 = vmatpush1.msra.mxu0 0.0
    %8119 = vmatprep.subr.mxu0 0.0
    %8120 = vmatpush1.msra.mxu0 0.0
    %8121 = vmatprep.subr.mxu0 0.0
    %8122 = vmatpush1.msra.mxu0 0.0
    %8123 = vmatprep.subr.mxu0 0.0
    %8124 = vmatpush1.msra.mxu0 0.0
    %8125 = vmatprep.subr.mxu0 0.0
    %8126 = vmatpush1.msra.mxu0 0.0
    %8127 = vmatprep.subr.mxu0 0.0
    %8128 = vmatpush1.msra.mxu0 %v164
    %8129 = vmatprep.subr.mxu0 0.0
    %8130 = vmatpush2.msra.mxu0 0.0
    %8131 = vmatprep.subr.mxu0 0.0
    %8132 = vmatpush2.msra.mxu0 0.0
    %8133 = vmatprep.subr.mxu0 0.0
    %8134 = vmatpush2.msra.mxu0 0.0
    %8135 = vmatprep.subr.mxu0 0.0
    %8136 = vmatpush2.msra.mxu0 0.0
    %8137 = vmatprep.subr.mxu0 0.0
    %8138 = vmatpush2.msra.mxu0 0.0
    %8139 = vmatprep.subr.mxu0 0.0
    %8140 = vmatpush2.msra.mxu0 0.0
    %8141 = vmatprep.subr.mxu0 0.0
    %8142 = vmatpush2.msra.mxu0 0.0
    %8143 = vmatprep.subr.mxu0 0.0
    %8144 = vmatpush2.msra.mxu0 0.0
    %8145 = vmatprep.subr.mxu0 0.0
    %8146 = vmatpush2.msra.mxu0 0.0
    %8147 = vmatprep.subr.mxu0 0.0
    %8148 = vmatpush2.msra.mxu0 0.0
    %8149 = vmatprep.subr.mxu0 0.0
    %8150 = vmatpush2.msra.mxu0 0.0
    %8151 = vmatprep.subr.mxu0 0.0
    %8152 = vmatpush2.msra.mxu0 0.0
    %8153 = vmatprep.subr.mxu0 0.0
    %8154 = vmatpush2.msra.mxu0 0.0
    %8155 = vmatprep.subr.mxu0 0.0
    %8156 = vmatpush2.msra.mxu0 0.0
    %8157 = vmatprep.subr.mxu0 0.0
    %8158 = vmatpush2.msra.mxu0 0.0
    %8159 = vmatprep.subr.mxu0 0.0
    %8160 = vmatpush2.msra.mxu0 0.0
    %8161 = vmatprep.mubr.f32.mxu0 0.0
    %v8162 = vand.u32 %v8050, 4294901760
    %v8163 = vsub.f32 %v8050, %v8162
    %v8164 = vand.u32 %v8163, 4294901760
    %v8165 = vsub.f32 %v8163, %v8164
    %v8166 = vand.u32 %v8165, 4294901760
    %8167 = vmatmul.mubr.f32.gmra.mxu0 %v8166
    %v8168 = vpop.f32.mrf.mxu0
    %v8169 = vadd.f32 0.0, %v8168
    %v8170 = vpop.f32.mrf.mxu0
    %8171 = vmatprep.mubr.f32.mxu0 0.0
    %v8172 = vand.u32 %v8053, 4294901760
    %v8173 = vsub.f32 %v8053, %v8172
    %v8174 = vand.u32 %v8173, 4294901760
    %v8175 = vsub.f32 %v8173, %v8174
    %v8176 = vand.u32 %v8175, 4294901760
    %8177 = vmatmul.mubr.f32.gmra.mxu0 %v8176
    %v8178 = vpop.f32.mrf.mxu0
    %v8179 = vadd.f32 0.0, %v8178
    %v8180 = vpop.f32.mrf.mxu0
    %8181 = vmatprep.mubr.f32.mxu0 0.0
    %v8182 = vand.u32 %v8056, 4294901760
    %v8183 = vsub.f32 %v8056, %v8182
    %v8184 = vand.u32 %v8183, 4294901760
    %v8185 = vsub.f32 %v8183, %v8184
    %v8186 = vand.u32 %v8185, 4294901760
    %8187 = vmatmul.mubr.f32.gmra.mxu0 %v8186
    %v8188 = vpop.f32.mrf.mxu0
    %v8189 = vadd.f32 0.0, %v8188
    %v8190 = vpop.f32.mrf.mxu0
    %8191 = vmatprep.mubr.f32.mxu0 0.0
    %v8192 = vand.u32 %v8059, 4294901760
    %v8193 = vsub.f32 %v8059, %v8192
    %v8194 = vand.u32 %v8193, 4294901760
    %v8195 = vsub.f32 %v8193, %v8194
    %v8196 = vand.u32 %v8195, 4294901760
    %8197 = vmatmul.mubr.f32.gmra.mxu0 %v8196
    %v8198 = vpop.f32.mrf.mxu0
    %v8199 = vadd.f32 0.0, %v8198
    %v8200 = vpop.f32.mrf.mxu0
    %8201 = vmatprep.mubr.f32.mxu0 0.0
    %v8202 = vand.u32 %v8062, 4294901760
    %v8203 = vsub.f32 %v8062, %v8202
    %v8204 = vand.u32 %v8203, 4294901760
    %v8205 = vsub.f32 %v8203, %v8204
    %v8206 = vand.u32 %v8205, 4294901760
    %8207 = vmatmul.mubr.f32.gmra.mxu0 %v8206
    %v8208 = vpop.f32.mrf.mxu0
    %v8209 = vadd.f32 0.0, %v8208
    %v8210 = vpop.f32.mrf.mxu0
    %8211 = vmatprep.mubr.f32.mxu0 0.0
    %v8212 = vand.u32 %v8065, 4294901760
    %v8213 = vsub.f32 %v8065, %v8212
    %v8214 = vand.u32 %v8213, 4294901760
    %v8215 = vsub.f32 %v8213, %v8214
    %v8216 = vand.u32 %v8215, 4294901760
    %8217 = vmatmul.mubr.f32.gmra.mxu0 %v8216
    %v8218 = vpop.f32.mrf.mxu0
    %v8219 = vadd.f32 0.0, %v8218
    %v8220 = vpop.f32.mrf.mxu0
    %8221 = vmatprep.mubr.f32.mxu0 0.0
    %v8222 = vand.u32 %v8068, 4294901760
    %v8223 = vsub.f32 %v8068, %v8222
    %v8224 = vand.u32 %v8223, 4294901760
    %v8225 = vsub.f32 %v8223, %v8224
    %v8226 = vand.u32 %v8225, 4294901760
    %8227 = vmatmul.mubr.f32.gmra.mxu0 %v8226
    %v8228 = vpop.f32.mrf.mxu0
    %v8229 = vadd.f32 0.0, %v8228
    %v8230 = vpop.f32.mrf.mxu0
    %8231 = vmatprep.mubr.f32.mxu0 0.0
    %v8232 = vand.u32 %v8071, 4294901760
    %v8233 = vsub.f32 %v8071, %v8232
    %v8234 = vand.u32 %v8233, 4294901760
    %v8235 = vsub.f32 %v8233, %v8234
    %v8236 = vand.u32 %v8235, 4294901760
    %8237 = vmatmul.mubr.f32.gmra.mxu0 %v8236
    %v8238 = vpop.f32.mrf.mxu0
    %v8239 = vadd.f32 0.0, %v8238
    %v8240 = vpop.f32.mrf.mxu0
    %8241 = vmatprep.mubr.f32.mxu0 0.0
    %v8242 = vand.u32 %v8074, 4294901760
    %v8243 = vsub.f32 %v8074, %v8242
    %v8244 = vand.u32 %v8243, 4294901760
    %v8245 = vsub.f32 %v8243, %v8244
    %v8246 = vand.u32 %v8245, 4294901760
    %8247 = vmatmul.mubr.f32.gmra.mxu0 %v8246
    %v8248 = vpop.f32.mrf.mxu0
    %v8249 = vadd.f32 0.0, %v8248
    %v8250 = vpop.f32.mrf.mxu0
    %8251 = vmatprep.mubr.f32.mxu0 0.0
    %v8252 = vand.u32 %v8077, 4294901760
    %v8253 = vsub.f32 %v8077, %v8252
    %v8254 = vand.u32 %v8253, 4294901760
    %v8255 = vsub.f32 %v8253, %v8254
    %v8256 = vand.u32 %v8255, 4294901760
    %8257 = vmatmul.mubr.f32.gmra.mxu0 %v8256
    %v8258 = vpop.f32.mrf.mxu0
    %v8259 = vadd.f32 0.0, %v8258
    %v8260 = vpop.f32.mrf.mxu0
    %8261 = vmatprep.mubr.f32.mxu0 0.0
    %v8262 = vand.u32 %v8080, 4294901760
    %v8263 = vsub.f32 %v8080, %v8262
    %v8264 = vand.u32 %v8263, 4294901760
    %v8265 = vsub.f32 %v8263, %v8264
    %v8266 = vand.u32 %v8265, 4294901760
    %8267 = vmatmul.mubr.f32.gmra.mxu0 %v8266
    %v8268 = vpop.f32.mrf.mxu0
    %v8269 = vadd.f32 0.0, %v8268
    %v8270 = vpop.f32.mrf.mxu0
    %8271 = vmatprep.mubr.f32.mxu0 0.0
    %v8272 = vand.u32 %v8083, 4294901760
    %v8273 = vsub.f32 %v8083, %v8272
    %v8274 = vand.u32 %v8273, 4294901760
    %v8275 = vsub.f32 %v8273, %v8274
    %v8276 = vand.u32 %v8275, 4294901760
    %8277 = vmatmul.mubr.f32.gmra.mxu0 %v8276
    %v8278 = vpop.f32.mrf.mxu0
    %v8279 = vadd.f32 0.0, %v8278
    %v8280 = vpop.f32.mrf.mxu0
    %8281 = vmatprep.mubr.f32.mxu0 0.0
    %v8282 = vand.u32 %v8086, 4294901760
    %v8283 = vsub.f32 %v8086, %v8282
    %v8284 = vand.u32 %v8283, 4294901760
    %v8285 = vsub.f32 %v8283, %v8284
    %v8286 = vand.u32 %v8285, 4294901760
    %8287 = vmatmul.mubr.f32.gmra.mxu0 %v8286
    %v8288 = vpop.f32.mrf.mxu0
    %v8289 = vadd.f32 0.0, %v8288
    %v8290 = vpop.f32.mrf.mxu0
    %8291 = vmatprep.mubr.f32.mxu0 0.0
    %v8292 = vand.u32 %v8089, 4294901760
    %v8293 = vsub.f32 %v8089, %v8292
    %v8294 = vand.u32 %v8293, 4294901760
    %v8295 = vsub.f32 %v8293, %v8294
    %v8296 = vand.u32 %v8295, 4294901760
    %8297 = vmatmul.mubr.f32.gmra.mxu0 %v8296
    %v8298 = vpop.f32.mrf.mxu0
    %v8299 = vadd.f32 0.0, %v8298
    %v8300 = vpop.f32.mrf.mxu0
    %8301 = vmatprep.mubr.f32.mxu0 0.0
    %v8302 = vand.u32 %v8092, 4294901760
    %v8303 = vsub.f32 %v8092, %v8302
    %v8304 = vand.u32 %v8303, 4294901760
    %v8305 = vsub.f32 %v8303, %v8304
    %v8306 = vand.u32 %v8305, 4294901760
    %8307 = vmatmul.mubr.f32.gmra.mxu0 %v8306
    %v8308 = vpop.f32.mrf.mxu0
    %v8309 = vadd.f32 0.0, %v8308
    %v8310 = vpop.f32.mrf.mxu0
    %8311 = vmatprep.mubr.f32.mxu0 0.0
    %v8312 = vand.u32 %v8095, 4294901760
    %v8313 = vsub.f32 %v8095, %v8312
    %v8314 = vand.u32 %v8313, 4294901760
    %v8315 = vsub.f32 %v8313, %v8314
    %v8316 = vand.u32 %v8315, 4294901760
    %8317 = vmatmul.mubr.f32.gmra.mxu0 %v8316
    %v8318 = vpop.f32.mrf.mxu0
    %v8319 = vadd.f32 0.0, %v8318
    %v8320 = vpop.f32.mrf.mxu0
    %8321 = vdwg.mxu0
    %8322 = vmatprep.subr.mxu0 0.0
    %8323 = vmatpush1.msra.mxu0 0.0
    %8324 = vmatprep.subr.mxu0 0.0
    %8325 = vmatpush1.msra.mxu0 0.0
    %8326 = vmatprep.subr.mxu0 0.0
    %8327 = vmatpush1.msra.mxu0 0.0
    %8328 = vmatprep.subr.mxu0 0.0
    %8329 = vmatpush1.msra.mxu0 0.0
    %8330 = vmatprep.subr.mxu0 0.0
    %8331 = vmatpush1.msra.mxu0 0.0
    %8332 = vmatprep.subr.mxu0 0.0
    %8333 = vmatpush1.msra.mxu0 0.0
    %8334 = vmatprep.subr.mxu0 0.0
    %8335 = vmatpush1.msra.mxu0 0.0
    %8336 = vmatprep.subr.mxu0 0.0
    %8337 = vmatpush1.msra.mxu0 0.0
    %8338 = vmatprep.subr.mxu0 0.0
    %8339 = vmatpush1.msra.mxu0 0.0
    %8340 = vmatprep.subr.mxu0 0.0
    %8341 = vmatpush1.msra.mxu0 0.0
    %8342 = vmatprep.subr.mxu0 0.0
    %8343 = vmatpush1.msra.mxu0 0.0
    %8344 = vmatprep.subr.mxu0 0.0
    %8345 = vmatpush1.msra.mxu0 0.0
    %8346 = vmatprep.subr.mxu0 0.0
    %8347 = vmatpush1.msra.mxu0 0.0
    %8348 = vmatprep.subr.mxu0 0.0
    %8349 = vmatpush1.msra.mxu0 0.0
    %8350 = vmatprep.subr.mxu0 0.0
    %8351 = vmatpush1.msra.mxu0 0.0
    %8352 = vmatprep.subr.mxu0 0.0
    %v8353 = vsub.f32 %v164, %v164
    %v8354 = vand.u32 %v8353, 4294901760
    %v8355 = vsub.f32 %v8353, %v8354
    %v8356 = vand.u32 %v8355, 4294901760
    %8357 = vmatpush1.msra.mxu0 %v8356
    %8358 = vmatprep.subr.mxu0 0.0
    %8359 = vmatpush2.msra.mxu0 0.0
    %8360 = vmatprep.subr.mxu0 0.0
    %8361 = vmatpush2.msra.mxu0 0.0
    %8362 = vmatprep.subr.mxu0 0.0
    %8363 = vmatpush2.msra.mxu0 0.0
    %8364 = vmatprep.subr.mxu0 0.0
    %8365 = vmatpush2.msra.mxu0 0.0
    %8366 = vmatprep.subr.mxu0 0.0
    %8367 = vmatpush2.msra.mxu0 0.0
    %8368 = vmatprep.subr.mxu0 0.0
    %8369 = vmatpush2.msra.mxu0 0.0
    %8370 = vmatprep.subr.mxu0 0.0
    %8371 = vmatpush2.msra.mxu0 0.0
    %8372 = vmatprep.subr.mxu0 0.0
    %8373 = vmatpush2.msra.mxu0 0.0
    %8374 = vmatprep.subr.mxu0 0.0
    %8375 = vmatpush2.msra.mxu0 0.0
    %8376 = vmatprep.subr.mxu0 0.0
    %8377 = vmatpush2.msra.mxu0 0.0
    %8378 = vmatprep.subr.mxu0 0.0
    %8379 = vmatpush2.msra.mxu0 0.0
    %8380 = vmatprep.subr.mxu0 0.0
    %8381 = vmatpush2.msra.mxu0 0.0
    %8382 = vmatprep.subr.mxu0 0.0
    %8383 = vmatpush2.msra.mxu0 0.0
    %8384 = vmatprep.subr.mxu0 0.0
    %8385 = vmatpush2.msra.mxu0 0.0
    %8386 = vmatprep.subr.mxu0 0.0
    %8387 = vmatpush2.msra.mxu0 0.0
    %8388 = vmatprep.subr.mxu0 0.0
    %8389 = vmatpush2.msra.mxu0 0.0
    %8390 = vmatprep.mubr.f32.mxu0 0.0
    %v8391 = vand.u32 %v8050, 4294901760
    %8392 = vmatmul.mubr.f32.gmra.mxu0 %v8391
    %v8393 = vpop.f32.mrf.mxu0
    %v8394 = vadd.f32 %v8169, %v8393
    %v8395 = vpop.f32.mrf.mxu0
    %8396 = vmatprep.mubr.f32.mxu0 0.0
    %v8397 = vand.u32 %v8053, 4294901760
    %8398 = vmatmul.mubr.f32.gmra.mxu0 %v8397
    %v8399 = vpop.f32.mrf.mxu0
    %v8400 = vadd.f32 %v8179, %v8399
    %v8401 = vpop.f32.mrf.mxu0
    %8402 = vmatprep.mubr.f32.mxu0 0.0
    %v8403 = vand.u32 %v8056, 4294901760
    %8404 = vmatmul.mubr.f32.gmra.mxu0 %v8403
    %v8405 = vpop.f32.mrf.mxu0
    %v8406 = vadd.f32 %v8189, %v8405
    %v8407 = vpop.f32.mrf.mxu0
    %8408 = vmatprep.mubr.f32.mxu0 0.0
    %v8409 = vand.u32 %v8059, 4294901760
    %8410 = vmatmul.mubr.f32.gmra.mxu0 %v8409
    %v8411 = vpop.f32.mrf.mxu0
    %v8412 = vadd.f32 %v8199, %v8411
    %v8413 = vpop.f32.mrf.mxu0
    %8414 = vmatprep.mubr.f32.mxu0 0.0
    %v8415 = vand.u32 %v8062, 4294901760
    %8416 = vmatmul.mubr.f32.gmra.mxu0 %v8415
    %v8417 = vpop.f32.mrf.mxu0
    %v8418 = vadd.f32 %v8209, %v8417
    %v8419 = vpop.f32.mrf.mxu0
    %8420 = vmatprep.mubr.f32.mxu0 0.0
    %v8421 = vand.u32 %v8065, 4294901760
    %8422 = vmatmul.mubr.f32.gmra.mxu0 %v8421
    %v8423 = vpop.f32.mrf.mxu0
    %v8424 = vadd.f32 %v8219, %v8423
    %v8425 = vpop.f32.mrf.mxu0
    %8426 = vmatprep.mubr.f32.mxu0 0.0
    %v8427 = vand.u32 %v8068, 4294901760
    %8428 = vmatmul.mubr.f32.gmra.mxu0 %v8427
    %v8429 = vpop.f32.mrf.mxu0
    %v8430 = vadd.f32 %v8229, %v8429
    %v8431 = vpop.f32.mrf.mxu0
    %8432 = vmatprep.mubr.f32.mxu0 0.0
    %v8433 = vand.u32 %v8071, 4294901760
    %8434 = vmatmul.mubr.f32.gmra.mxu0 %v8433
    %v8435 = vpop.f32.mrf.mxu0
    %v8436 = vadd.f32 %v8239, %v8435
    %v8437 = vpop.f32.mrf.mxu0
    %8438 = vmatprep.mubr.f32.mxu0 0.0
    %v8439 = vand.u32 %v8074, 4294901760
    %8440 = vmatmul.mubr.f32.gmra.mxu0 %v8439
    %v8441 = vpop.f32.mrf.mxu0
    %v8442 = vadd.f32 %v8249, %v8441
    %v8443 = vpop.f32.mrf.mxu0
    %8444 = vmatprep.mubr.f32.mxu0 0.0
    %v8445 = vand.u32 %v8077, 4294901760
    %8446 = vmatmul.mubr.f32.gmra.mxu0 %v8445
    %v8447 = vpop.f32.mrf.mxu0
    %v8448 = vadd.f32 %v8259, %v8447
    %v8449 = vpop.f32.mrf.mxu0
    %8450 = vmatprep.mubr.f32.mxu0 0.0
    %v8451 = vand.u32 %v8080, 4294901760
    %8452 = vmatmul.mubr.f32.gmra.mxu0 %v8451
    %v8453 = vpop.f32.mrf.mxu0
    %v8454 = vadd.f32 %v8269, %v8453
    %v8455 = vpop.f32.mrf.mxu0
    %8456 = vmatprep.mubr.f32.mxu0 0.0
    %v8457 = vand.u32 %v8083, 4294901760
    %8458 = vmatmul.mubr.f32.gmra.mxu0 %v8457
    %v8459 = vpop.f32.mrf.mxu0
    %v8460 = vadd.f32 %v8279, %v8459
    %v8461 = vpop.f32.mrf.mxu0
    %8462 = vmatprep.mubr.f32.mxu0 0.0
    %v8463 = vand.u32 %v8086, 4294901760
    %8464 = vmatmul.mubr.f32.gmra.mxu0 %v8463
    %v8465 = vpop.f32.mrf.mxu0
    %v8466 = vadd.f32 %v8289, %v8465
    %v8467 = vpop.f32.mrf.mxu0
    %8468 = vmatprep.mubr.f32.mxu0 0.0
    %v8469 = vand.u32 %v8089, 4294901760
    %8470 = vmatmul.mubr.f32.gmra.mxu0 %v8469
    %v8471 = vpop.f32.mrf.mxu0
    %v8472 = vadd.f32 %v8299, %v8471
    %v8473 = vpop.f32.mrf.mxu0
    %8474 = vmatprep.mubr.f32.mxu0 0.0
    %v8475 = vand.u32 %v8092, 4294901760
    %8476 = vmatmul.mubr.f32.gmra.mxu0 %v8475
    %v8477 = vpop.f32.mrf.mxu0
    %v8478 = vadd.f32 %v8309, %v8477
    %v8479 = vpop.f32.mrf.mxu0
    %8480 = vmatprep.mubr.f32.mxu0 0.0
    %v8481 = vand.u32 %v8095, 4294901760
    %8482 = vmatmul.mubr.f32.gmra.mxu0 %v8481
    %v8483 = vpop.f32.mrf.mxu0
    %v8484 = vadd.f32 %v8319, %v8483
    %v8485 = vpop.f32.mrf.mxu0
    %8486 = vdwg.mxu0
    %8487 = vmatprep.subr.mxu0 0.0
    %8488 = vmatpush1.msra.mxu0 0.0
    %8489 = vmatprep.subr.mxu0 0.0
    %8490 = vmatpush1.msra.mxu0 0.0
    %8491 = vmatprep.subr.mxu0 0.0
    %8492 = vmatpush1.msra.mxu0 0.0
    %8493 = vmatprep.subr.mxu0 0.0
    %8494 = vmatpush1.msra.mxu0 0.0
    %8495 = vmatprep.subr.mxu0 0.0
    %8496 = vmatpush1.msra.mxu0 0.0
    %8497 = vmatprep.subr.mxu0 0.0
    %8498 = vmatpush1.msra.mxu0 0.0
    %8499 = vmatprep.subr.mxu0 0.0
    %8500 = vmatpush1.msra.mxu0 0.0
    %8501 = vmatprep.subr.mxu0 0.0
    %8502 = vmatpush1.msra.mxu0 0.0
    %8503 = vmatprep.subr.mxu0 0.0
    %8504 = vmatpush1.msra.mxu0 0.0
    %8505 = vmatprep.subr.mxu0 0.0
    %8506 = vmatpush1.msra.mxu0 0.0
    %8507 = vmatprep.subr.mxu0 0.0
    %8508 = vmatpush1.msra.mxu0 0.0
    %8509 = vmatprep.subr.mxu0 0.0
    %8510 = vmatpush1.msra.mxu0 0.0
    %8511 = vmatprep.subr.mxu0 0.0
    %8512 = vmatpush1.msra.mxu0 0.0
    %8513 = vmatprep.subr.mxu0 0.0
    %8514 = vmatpush1.msra.mxu0 0.0
    %8515 = vmatprep.subr.mxu0 0.0
    %8516 = vmatpush1.msra.mxu0 0.0
    %8517 = vmatprep.subr.mxu0 0.0
    %v8518 = vsub.f32 %v164, %v164
    %8519 = vmatpush1.msra.mxu0 %v8518
    %8520 = vmatprep.subr.mxu0 0.0
    %8521 = vmatpush2.msra.mxu0 0.0
    %8522 = vmatprep.subr.mxu0 0.0
    %8523 = vmatpush2.msra.mxu0 0.0
    %8524 = vmatprep.subr.mxu0 0.0
    %8525 = vmatpush2.msra.mxu0 0.0
    %8526 = vmatprep.subr.mxu0 0.0
    %8527 = vmatpush2.msra.mxu0 0.0
    %8528 = vmatprep.subr.mxu0 0.0
    %8529 = vmatpush2.msra.mxu0 0.0
    %8530 = vmatprep.subr.mxu0 0.0
    %8531 = vmatpush2.msra.mxu0 0.0
    %8532 = vmatprep.subr.mxu0 0.0
    %8533 = vmatpush2.msra.mxu0 0.0
    %8534 = vmatprep.subr.mxu0 0.0
    %8535 = vmatpush2.msra.mxu0 0.0
    %8536 = vmatprep.subr.mxu0 0.0
    %8537 = vmatpush2.msra.mxu0 0.0
    %8538 = vmatprep.subr.mxu0 0.0
    %8539 = vmatpush2.msra.mxu0 0.0
    %8540 = vmatprep.subr.mxu0 0.0
    %8541 = vmatpush2.msra.mxu0 0.0
    %8542 = vmatprep.subr.mxu0 0.0
    %8543 = vmatpush2.msra.mxu0 0.0
    %8544 = vmatprep.subr.mxu0 0.0
    %8545 = vmatpush2.msra.mxu0 0.0
    %8546 = vmatprep.subr.mxu0 0.0
    %8547 = vmatpush2.msra.mxu0 0.0
    %8548 = vmatprep.subr.mxu0 0.0
    %8549 = vmatpush2.msra.mxu0 0.0
    %8550 = vmatprep.subr.mxu0 0.0
    %8551 = vmatpush2.msra.mxu0 0.0
    %8552 = vmatprep.mubr.f32.mxu0 0.0
    %v8553 = vand.u32 %v8050, 4294901760
    %v8554 = vsub.f32 %v8050, %v8553
    %8555 = vmatmul.mubr.f32.gmra.mxu0 %v8554
    %v8556 = vpop.f32.mrf.mxu0
    %v8557 = vadd.f32 %v8394, %v8556
    %v8558 = vpop.f32.mrf.mxu0
    %8559 = vmatprep.mubr.f32.mxu0 0.0
    %v8560 = vand.u32 %v8053, 4294901760
    %v8561 = vsub.f32 %v8053, %v8560
    %8562 = vmatmul.mubr.f32.gmra.mxu0 %v8561
    %v8563 = vpop.f32.mrf.mxu0
    %v8564 = vadd.f32 %v8400, %v8563
    %v8565 = vpop.f32.mrf.mxu0
    %8566 = vmatprep.mubr.f32.mxu0 0.0
    %v8567 = vand.u32 %v8056, 4294901760
    %v8568 = vsub.f32 %v8056, %v8567
    %8569 = vmatmul.mubr.f32.gmra.mxu0 %v8568
    %v8570 = vpop.f32.mrf.mxu0
    %v8571 = vadd.f32 %v8406, %v8570
    %v8572 = vpop.f32.mrf.mxu0
    %8573 = vmatprep.mubr.f32.mxu0 0.0
    %v8574 = vand.u32 %v8059, 4294901760
    %v8575 = vsub.f32 %v8059, %v8574
    %8576 = vmatmul.mubr.f32.gmra.mxu0 %v8575
    %v8577 = vpop.f32.mrf.mxu0
    %v8578 = vadd.f32 %v8412, %v8577
    %v8579 = vpop.f32.mrf.mxu0
    %8580 = vmatprep.mubr.f32.mxu0 0.0
    %v8581 = vand.u32 %v8062, 4294901760
    %v8582 = vsub.f32 %v8062, %v8581
    %8583 = vmatmul.mubr.f32.gmra.mxu0 %v8582
    %v8584 = vpop.f32.mrf.mxu0
    %v8585 = vadd.f32 %v8418, %v8584
    %v8586 = vpop.f32.mrf.mxu0
    %8587 = vmatprep.mubr.f32.mxu0 0.0
    %v8588 = vand.u32 %v8065, 4294901760
    %v8589 = vsub.f32 %v8065, %v8588
    %8590 = vmatmul.mubr.f32.gmra.mxu0 %v8589
    %v8591 = vpop.f32.mrf.mxu0
    %v8592 = vadd.f32 %v8424, %v8591
    %v8593 = vpop.f32.mrf.mxu0
    %8594 = vmatprep.mubr.f32.mxu0 0.0
    %v8595 = vand.u32 %v8068, 4294901760
    %v8596 = vsub.f32 %v8068, %v8595
    %8597 = vmatmul.mubr.f32.gmra.mxu0 %v8596
    %v8598 = vpop.f32.mrf.mxu0
    %v8599 = vadd.f32 %v8430, %v8598
    %v8600 = vpop.f32.mrf.mxu0
    %8601 = vmatprep.mubr.f32.mxu0 0.0
    %v8602 = vand.u32 %v8071, 4294901760
    %v8603 = vsub.f32 %v8071, %v8602
    %8604 = vmatmul.mubr.f32.gmra.mxu0 %v8603
    %v8605 = vpop.f32.mrf.mxu0
    %v8606 = vadd.f32 %v8436, %v8605
    %v8607 = vpop.f32.mrf.mxu0
    %8608 = vmatprep.mubr.f32.mxu0 0.0
    %v8609 = vand.u32 %v8074, 4294901760
    %v8610 = vsub.f32 %v8074, %v8609
    %8611 = vmatmul.mubr.f32.gmra.mxu0 %v8610
    %v8612 = vpop.f32.mrf.mxu0
    %v8613 = vadd.f32 %v8442, %v8612
    %v8614 = vpop.f32.mrf.mxu0
    %8615 = vmatprep.mubr.f32.mxu0 0.0
    %v8616 = vand.u32 %v8077, 4294901760
    %v8617 = vsub.f32 %v8077, %v8616
    %8618 = vmatmul.mubr.f32.gmra.mxu0 %v8617
    %v8619 = vpop.f32.mrf.mxu0
    %v8620 = vadd.f32 %v8448, %v8619
    %v8621 = vpop.f32.mrf.mxu0
    %8622 = vmatprep.mubr.f32.mxu0 0.0
    %v8623 = vand.u32 %v8080, 4294901760
    %v8624 = vsub.f32 %v8080, %v8623
    %8625 = vmatmul.mubr.f32.gmra.mxu0 %v8624
    %v8626 = vpop.f32.mrf.mxu0
    %v8627 = vadd.f32 %v8454, %v8626
    %v8628 = vpop.f32.mrf.mxu0
    %8629 = vmatprep.mubr.f32.mxu0 0.0
    %v8630 = vand.u32 %v8083, 4294901760
    %v8631 = vsub.f32 %v8083, %v8630
    %8632 = vmatmul.mubr.f32.gmra.mxu0 %v8631
    %v8633 = vpop.f32.mrf.mxu0
    %v8634 = vadd.f32 %v8460, %v8633
    %v8635 = vpop.f32.mrf.mxu0
    %8636 = vmatprep.mubr.f32.mxu0 0.0
    %v8637 = vand.u32 %v8086, 4294901760
    %v8638 = vsub.f32 %v8086, %v8637
    %8639 = vmatmul.mubr.f32.gmra.mxu0 %v8638
    %v8640 = vpop.f32.mrf.mxu0
    %v8641 = vadd.f32 %v8466, %v8640
    %v8642 = vpop.f32.mrf.mxu0
    %8643 = vmatprep.mubr.f32.mxu0 0.0
    %v8644 = vand.u32 %v8089, 4294901760
    %v8645 = vsub.f32 %v8089, %v8644
    %8646 = vmatmul.mubr.f32.gmra.mxu0 %v8645
    %v8647 = vpop.f32.mrf.mxu0
    %v8648 = vadd.f32 %v8472, %v8647
    %v8649 = vpop.f32.mrf.mxu0
    %8650 = vmatprep.mubr.f32.mxu0 0.0
    %v8651 = vand.u32 %v8092, 4294901760
    %v8652 = vsub.f32 %v8092, %v8651
    %8653 = vmatmul.mubr.f32.gmra.mxu0 %v8652
    %v8654 = vpop.f32.mrf.mxu0
    %v8655 = vadd.f32 %v8478, %v8654
    %v8656 = vpop.f32.mrf.mxu0
    %8657 = vmatprep.mubr.f32.mxu0 0.0
    %v8658 = vand.u32 %v8095, 4294901760
    %v8659 = vsub.f32 %v8095, %v8658
    %8660 = vmatmul.mubr.f32.gmra.mxu0 %v8659
    %v8661 = vpop.f32.mrf.mxu0
    %v8662 = vadd.f32 %v8484, %v8661
    %v8663 = vpop.f32.mrf.mxu0
    %8664 = vdwg.mxu0
    %8665 = vmatprep.subr.mxu0 0.0
    %8666 = vmatpush1.msra.mxu0 0.0
    %8667 = vmatprep.subr.mxu0 0.0
    %8668 = vmatpush1.msra.mxu0 0.0
    %8669 = vmatprep.subr.mxu0 0.0
    %8670 = vmatpush1.msra.mxu0 0.0
    %8671 = vmatprep.subr.mxu0 0.0
    %8672 = vmatpush1.msra.mxu0 0.0
    %8673 = vmatprep.subr.mxu0 0.0
    %8674 = vmatpush1.msra.mxu0 0.0
    %8675 = vmatprep.subr.mxu0 0.0
    %8676 = vmatpush1.msra.mxu0 0.0
    %8677 = vmatprep.subr.mxu0 0.0
    %8678 = vmatpush1.msra.mxu0 0.0
    %8679 = vmatprep.subr.mxu0 0.0
    %8680 = vmatpush1.msra.mxu0 0.0
    %8681 = vmatprep.subr.mxu0 0.0
    %8682 = vmatpush1.msra.mxu0 0.0
    %8683 = vmatprep.subr.mxu0 0.0
    %8684 = vmatpush1.msra.mxu0 0.0
    %8685 = vmatprep.subr.mxu0 0.0
    %8686 = vmatpush1.msra.mxu0 0.0
    %8687 = vmatprep.subr.mxu0 0.0
    %8688 = vmatpush1.msra.mxu0 0.0
    %8689 = vmatprep.subr.mxu0 0.0
    %8690 = vmatpush1.msra.mxu0 0.0
    %8691 = vmatprep.subr.mxu0 0.0
    %8692 = vmatpush1.msra.mxu0 0.0
    %8693 = vmatprep.subr.mxu0 0.0
    %8694 = vmatpush1.msra.mxu0 0.0
    %8695 = vmatprep.subr.mxu0 0.0
    %8696 = vmatpush1.msra.mxu0 %v164
    %8697 = vmatprep.subr.mxu0 0.0
    %8698 = vmatpush2.msra.mxu0 0.0
    %8699 = vmatprep.subr.mxu0 0.0
    %8700 = vmatpush2.msra.mxu0 0.0
    %8701 = vmatprep.subr.mxu0 0.0
    %8702 = vmatpush2.msra.mxu0 0.0
    %8703 = vmatprep.subr.mxu0 0.0
    %8704 = vmatpush2.msra.mxu0 0.0
    %8705 = vmatprep.subr.mxu0 0.0
    %8706 = vmatpush2.msra.mxu0 0.0
    %8707 = vmatprep.subr.mxu0 0.0
    %8708 = vmatpush2.msra.mxu0 0.0
    %8709 = vmatprep.subr.mxu0 0.0
    %8710 = vmatpush2.msra.mxu0 0.0
    %8711 = vmatprep.subr.mxu0 0.0
    %8712 = vmatpush2.msra.mxu0 0.0
    %8713 = vmatprep.subr.mxu0 0.0
    %8714 = vmatpush2.msra.mxu0 0.0
    %8715 = vmatprep.subr.mxu0 0.0
    %8716 = vmatpush2.msra.mxu0 0.0
    %8717 = vmatprep.subr.mxu0 0.0
    %8718 = vmatpush2.msra.mxu0 0.0
    %8719 = vmatprep.subr.mxu0 0.0
    %8720 = vmatpush2.msra.mxu0 0.0
    %8721 = vmatprep.subr.mxu0 0.0
    %8722 = vmatpush2.msra.mxu0 0.0
    %8723 = vmatprep.subr.mxu0 0.0
    %8724 = vmatpush2.msra.mxu0 0.0
    %8725 = vmatprep.subr.mxu0 0.0
    %8726 = vmatpush2.msra.mxu0 0.0
    %8727 = vmatprep.subr.mxu0 0.0
    %8728 = vmatpush2.msra.mxu0 0.0
    %8729 = vmatprep.mubr.f32.mxu0 0.0
    %v8730 = vand.u32 %v8050, 4294901760
    %v8731 = vsub.f32 %v8050, %v8730
    %v8732 = vand.u32 %v8731, 4294901760
    %8733 = vmatmul.mubr.f32.gmra.mxu0 %v8732
    %v8734 = vpop.f32.mrf.mxu0
    %v8735 = vadd.f32 %v8557, %v8734
    %v8736 = vpop.f32.mrf.mxu0
    %8737 = vmatprep.mubr.f32.mxu0 0.0
    %v8738 = vand.u32 %v8053, 4294901760
    %v8739 = vsub.f32 %v8053, %v8738
    %v8740 = vand.u32 %v8739, 4294901760
    %8741 = vmatmul.mubr.f32.gmra.mxu0 %v8740
    %v8742 = vpop.f32.mrf.mxu0
    %v8743 = vadd.f32 %v8564, %v8742
    %v8744 = vpop.f32.mrf.mxu0
    %8745 = vmatprep.mubr.f32.mxu0 0.0
    %v8746 = vand.u32 %v8056, 4294901760
    %v8747 = vsub.f32 %v8056, %v8746
    %v8748 = vand.u32 %v8747, 4294901760
    %8749 = vmatmul.mubr.f32.gmra.mxu0 %v8748
    %v8750 = vpop.f32.mrf.mxu0
    %v8751 = vadd.f32 %v8571, %v8750
    %v8752 = vpop.f32.mrf.mxu0
    %8753 = vmatprep.mubr.f32.mxu0 0.0
    %v8754 = vand.u32 %v8059, 4294901760
    %v8755 = vsub.f32 %v8059, %v8754
    %v8756 = vand.u32 %v8755, 4294901760
    %8757 = vmatmul.mubr.f32.gmra.mxu0 %v8756
    %v8758 = vpop.f32.mrf.mxu0
    %v8759 = vadd.f32 %v8578, %v8758
    %v8760 = vpop.f32.mrf.mxu0
    %8761 = vmatprep.mubr.f32.mxu0 0.0
    %v8762 = vand.u32 %v8062, 4294901760
    %v8763 = vsub.f32 %v8062, %v8762
    %v8764 = vand.u32 %v8763, 4294901760
    %8765 = vmatmul.mubr.f32.gmra.mxu0 %v8764
    %v8766 = vpop.f32.mrf.mxu0
    %v8767 = vadd.f32 %v8585, %v8766
    %v8768 = vpop.f32.mrf.mxu0
    %8769 = vmatprep.mubr.f32.mxu0 0.0
    %v8770 = vand.u32 %v8065, 4294901760
    %v8771 = vsub.f32 %v8065, %v8770
    %v8772 = vand.u32 %v8771, 4294901760
    %8773 = vmatmul.mubr.f32.gmra.mxu0 %v8772
    %v8774 = vpop.f32.mrf.mxu0
    %v8775 = vadd.f32 %v8592, %v8774
    %v8776 = vpop.f32.mrf.mxu0
    %8777 = vmatprep.mubr.f32.mxu0 0.0
    %v8778 = vand.u32 %v8068, 4294901760
    %v8779 = vsub.f32 %v8068, %v8778
    %v8780 = vand.u32 %v8779, 4294901760
    %8781 = vmatmul.mubr.f32.gmra.mxu0 %v8780
    %v8782 = vpop.f32.mrf.mxu0
    %v8783 = vadd.f32 %v8599, %v8782
    %v8784 = vpop.f32.mrf.mxu0
    %8785 = vmatprep.mubr.f32.mxu0 0.0
    %v8786 = vand.u32 %v8071, 4294901760
    %v8787 = vsub.f32 %v8071, %v8786
    %v8788 = vand.u32 %v8787, 4294901760
    %8789 = vmatmul.mubr.f32.gmra.mxu0 %v8788
    %v8790 = vpop.f32.mrf.mxu0
    %v8791 = vadd.f32 %v8606, %v8790
    %v8792 = vpop.f32.mrf.mxu0
    %8793 = vmatprep.mubr.f32.mxu0 0.0
    %v8794 = vand.u32 %v8074, 4294901760
    %v8795 = vsub.f32 %v8074, %v8794
    %v8796 = vand.u32 %v8795, 4294901760
    %8797 = vmatmul.mubr.f32.gmra.mxu0 %v8796
    %v8798 = vpop.f32.mrf.mxu0
    %v8799 = vadd.f32 %v8613, %v8798
    %v8800 = vpop.f32.mrf.mxu0
    %8801 = vmatprep.mubr.f32.mxu0 0.0
    %v8802 = vand.u32 %v8077, 4294901760
    %v8803 = vsub.f32 %v8077, %v8802
    %v8804 = vand.u32 %v8803, 4294901760
    %8805 = vmatmul.mubr.f32.gmra.mxu0 %v8804
    %v8806 = vpop.f32.mrf.mxu0
    %v8807 = vadd.f32 %v8620, %v8806
    %v8808 = vpop.f32.mrf.mxu0
    %8809 = vmatprep.mubr.f32.mxu0 0.0
    %v8810 = vand.u32 %v8080, 4294901760
    %v8811 = vsub.f32 %v8080, %v8810
    %v8812 = vand.u32 %v8811, 4294901760
    %8813 = vmatmul.mubr.f32.gmra.mxu0 %v8812
    %v8814 = vpop.f32.mrf.mxu0
    %v8815 = vadd.f32 %v8627, %v8814
    %v8816 = vpop.f32.mrf.mxu0
    %8817 = vmatprep.mubr.f32.mxu0 0.0
    %v8818 = vand.u32 %v8083, 4294901760
    %v8819 = vsub.f32 %v8083, %v8818
    %v8820 = vand.u32 %v8819, 4294901760
    %8821 = vmatmul.mubr.f32.gmra.mxu0 %v8820
    %v8822 = vpop.f32.mrf.mxu0
    %v8823 = vadd.f32 %v8634, %v8822
    %v8824 = vpop.f32.mrf.mxu0
    %8825 = vmatprep.mubr.f32.mxu0 0.0
    %v8826 = vand.u32 %v8086, 4294901760
    %v8827 = vsub.f32 %v8086, %v8826
    %v8828 = vand.u32 %v8827, 4294901760
    %8829 = vmatmul.mubr.f32.gmra.mxu0 %v8828
    %v8830 = vpop.f32.mrf.mxu0
    %v8831 = vadd.f32 %v8641, %v8830
    %v8832 = vpop.f32.mrf.mxu0
    %8833 = vmatprep.mubr.f32.mxu0 0.0
    %v8834 = vand.u32 %v8089, 4294901760
    %v8835 = vsub.f32 %v8089, %v8834
    %v8836 = vand.u32 %v8835, 4294901760
    %8837 = vmatmul.mubr.f32.gmra.mxu0 %v8836
    %v8838 = vpop.f32.mrf.mxu0
    %v8839 = vadd.f32 %v8648, %v8838
    %v8840 = vpop.f32.mrf.mxu0
    %8841 = vmatprep.mubr.f32.mxu0 0.0
    %v8842 = vand.u32 %v8092, 4294901760
    %v8843 = vsub.f32 %v8092, %v8842
    %v8844 = vand.u32 %v8843, 4294901760
    %8845 = vmatmul.mubr.f32.gmra.mxu0 %v8844
    %v8846 = vpop.f32.mrf.mxu0
    %v8847 = vadd.f32 %v8655, %v8846
    %v8848 = vpop.f32.mrf.mxu0
    %8849 = vmatprep.mubr.f32.mxu0 0.0
    %v8850 = vand.u32 %v8095, 4294901760
    %v8851 = vsub.f32 %v8095, %v8850
    %v8852 = vand.u32 %v8851, 4294901760
    %8853 = vmatmul.mubr.f32.gmra.mxu0 %v8852
    %v8854 = vpop.f32.mrf.mxu0
    %v8855 = vadd.f32 %v8662, %v8854
    %v8856 = vpop.f32.mrf.mxu0
    %8857 = vdwg.mxu0
    %8858 = vmatprep.subr.mxu0 0.0
    %8859 = vmatpush1.msra.mxu0 0.0
    %8860 = vmatprep.subr.mxu0 0.0
    %8861 = vmatpush1.msra.mxu0 0.0
    %8862 = vmatprep.subr.mxu0 0.0
    %8863 = vmatpush1.msra.mxu0 0.0
    %8864 = vmatprep.subr.mxu0 0.0
    %8865 = vmatpush1.msra.mxu0 0.0
    %8866 = vmatprep.subr.mxu0 0.0
    %8867 = vmatpush1.msra.mxu0 0.0
    %8868 = vmatprep.subr.mxu0 0.0
    %8869 = vmatpush1.msra.mxu0 0.0
    %8870 = vmatprep.subr.mxu0 0.0
    %8871 = vmatpush1.msra.mxu0 0.0
    %8872 = vmatprep.subr.mxu0 0.0
    %8873 = vmatpush1.msra.mxu0 0.0
    %8874 = vmatprep.subr.mxu0 0.0
    %8875 = vmatpush1.msra.mxu0 0.0
    %8876 = vmatprep.subr.mxu0 0.0
    %8877 = vmatpush1.msra.mxu0 0.0
    %8878 = vmatprep.subr.mxu0 0.0
    %8879 = vmatpush1.msra.mxu0 0.0
    %8880 = vmatprep.subr.mxu0 0.0
    %8881 = vmatpush1.msra.mxu0 0.0
    %8882 = vmatprep.subr.mxu0 0.0
    %8883 = vmatpush1.msra.mxu0 0.0
    %8884 = vmatprep.subr.mxu0 0.0
    %8885 = vmatpush1.msra.mxu0 0.0
    %8886 = vmatprep.subr.mxu0 0.0
    %8887 = vmatpush1.msra.mxu0 0.0
    %8888 = vmatprep.subr.mxu0 0.0
    %v8889 = vsub.f32 %v164, %v164
    %v8890 = vand.u32 %v8889, 4294901760
    %8891 = vmatpush1.msra.mxu0 %v8890
    %8892 = vmatprep.subr.mxu0 0.0
    %8893 = vmatpush2.msra.mxu0 0.0
    %8894 = vmatprep.subr.mxu0 0.0
    %8895 = vmatpush2.msra.mxu0 0.0
    %8896 = vmatprep.subr.mxu0 0.0
    %8897 = vmatpush2.msra.mxu0 0.0
    %8898 = vmatprep.subr.mxu0 0.0
    %8899 = vmatpush2.msra.mxu0 0.0
    %8900 = vmatprep.subr.mxu0 0.0
    %8901 = vmatpush2.msra.mxu0 0.0
    %8902 = vmatprep.subr.mxu0 0.0
    %8903 = vmatpush2.msra.mxu0 0.0
    %8904 = vmatprep.subr.mxu0 0.0
    %8905 = vmatpush2.msra.mxu0 0.0
    %8906 = vmatprep.subr.mxu0 0.0
    %8907 = vmatpush2.msra.mxu0 0.0
    %8908 = vmatprep.subr.mxu0 0.0
    %8909 = vmatpush2.msra.mxu0 0.0
    %8910 = vmatprep.subr.mxu0 0.0
    %8911 = vmatpush2.msra.mxu0 0.0
    %8912 = vmatprep.subr.mxu0 0.0
    %8913 = vmatpush2.msra.mxu0 0.0
    %8914 = vmatprep.subr.mxu0 0.0
    %8915 = vmatpush2.msra.mxu0 0.0
    %8916 = vmatprep.subr.mxu0 0.0
    %8917 = vmatpush2.msra.mxu0 0.0
    %8918 = vmatprep.subr.mxu0 0.0
    %8919 = vmatpush2.msra.mxu0 0.0
    %8920 = vmatprep.subr.mxu0 0.0
    %8921 = vmatpush2.msra.mxu0 0.0
    %8922 = vmatprep.subr.mxu0 0.0
    %8923 = vmatpush2.msra.mxu0 0.0
    %8924 = vmatprep.mubr.f32.mxu0 0.0
    %v8925 = vand.u32 %v8050, 4294901760
    %8926 = vmatmul.mubr.f32.gmra.mxu0 %v8925
    %v8927 = vpop.f32.mrf.mxu0
    %v8928 = vadd.f32 %v8735, %v8927
    %v8929 = vpop.f32.mrf.mxu0
    %8930 = vmatprep.mubr.f32.mxu0 0.0
    %v8931 = vand.u32 %v8053, 4294901760
    %8932 = vmatmul.mubr.f32.gmra.mxu0 %v8931
    %v8933 = vpop.f32.mrf.mxu0
    %v8934 = vadd.f32 %v8743, %v8933
    %v8935 = vpop.f32.mrf.mxu0
    %8936 = vmatprep.mubr.f32.mxu0 0.0
    %v8937 = vand.u32 %v8056, 4294901760
    %8938 = vmatmul.mubr.f32.gmra.mxu0 %v8937
    %v8939 = vpop.f32.mrf.mxu0
    %v8940 = vadd.f32 %v8751, %v8939
    %v8941 = vpop.f32.mrf.mxu0
    %8942 = vmatprep.mubr.f32.mxu0 0.0
    %v8943 = vand.u32 %v8059, 4294901760
    %8944 = vmatmul.mubr.f32.gmra.mxu0 %v8943
    %v8945 = vpop.f32.mrf.mxu0
    %v8946 = vadd.f32 %v8759, %v8945
    %v8947 = vpop.f32.mrf.mxu0
    %8948 = vmatprep.mubr.f32.mxu0 0.0
    %v8949 = vand.u32 %v8062, 4294901760
    %8950 = vmatmul.mubr.f32.gmra.mxu0 %v8949
    %v8951 = vpop.f32.mrf.mxu0
    %v8952 = vadd.f32 %v8767, %v8951
    %v8953 = vpop.f32.mrf.mxu0
    %8954 = vmatprep.mubr.f32.mxu0 0.0
    %v8955 = vand.u32 %v8065, 4294901760
    %8956 = vmatmul.mubr.f32.gmra.mxu0 %v8955
    %v8957 = vpop.f32.mrf.mxu0
    %v8958 = vadd.f32 %v8775, %v8957
    %v8959 = vpop.f32.mrf.mxu0
    %8960 = vmatprep.mubr.f32.mxu0 0.0
    %v8961 = vand.u32 %v8068, 4294901760
    %8962 = vmatmul.mubr.f32.gmra.mxu0 %v8961
    %v8963 = vpop.f32.mrf.mxu0
    %v8964 = vadd.f32 %v8783, %v8963
    %v8965 = vpop.f32.mrf.mxu0
    %8966 = vmatprep.mubr.f32.mxu0 0.0
    %v8967 = vand.u32 %v8071, 4294901760
    %8968 = vmatmul.mubr.f32.gmra.mxu0 %v8967
    %v8969 = vpop.f32.mrf.mxu0
    %v8970 = vadd.f32 %v8791, %v8969
    %v8971 = vpop.f32.mrf.mxu0
    %8972 = vmatprep.mubr.f32.mxu0 0.0
    %v8973 = vand.u32 %v8074, 4294901760
    %8974 = vmatmul.mubr.f32.gmra.mxu0 %v8973
    %v8975 = vpop.f32.mrf.mxu0
    %v8976 = vadd.f32 %v8799, %v8975
    %v8977 = vpop.f32.mrf.mxu0
    %8978 = vmatprep.mubr.f32.mxu0 0.0
    %v8979 = vand.u32 %v8077, 4294901760
    %8980 = vmatmul.mubr.f32.gmra.mxu0 %v8979
    %v8981 = vpop.f32.mrf.mxu0
    %v8982 = vadd.f32 %v8807, %v8981
    %v8983 = vpop.f32.mrf.mxu0
    %8984 = vmatprep.mubr.f32.mxu0 0.0
    %v8985 = vand.u32 %v8080, 4294901760
    %8986 = vmatmul.mubr.f32.gmra.mxu0 %v8985
    %v8987 = vpop.f32.mrf.mxu0
    %v8988 = vadd.f32 %v8815, %v8987
    %v8989 = vpop.f32.mrf.mxu0
    %8990 = vmatprep.mubr.f32.mxu0 0.0
    %v8991 = vand.u32 %v8083, 4294901760
    %8992 = vmatmul.mubr.f32.gmra.mxu0 %v8991
    %v8993 = vpop.f32.mrf.mxu0
    %v8994 = vadd.f32 %v8823, %v8993
    %v8995 = vpop.f32.mrf.mxu0
    %8996 = vmatprep.mubr.f32.mxu0 0.0
    %v8997 = vand.u32 %v8086, 4294901760
    %8998 = vmatmul.mubr.f32.gmra.mxu0 %v8997
    %v8999 = vpop.f32.mrf.mxu0
    %v9000 = vadd.f32 %v8831, %v8999
    %v9001 = vpop.f32.mrf.mxu0
    %9002 = vmatprep.mubr.f32.mxu0 0.0
    %v9003 = vand.u32 %v8089, 4294901760
    %9004 = vmatmul.mubr.f32.gmra.mxu0 %v9003
    %v9005 = vpop.f32.mrf.mxu0
    %v9006 = vadd.f32 %v8839, %v9005
    %v9007 = vpop.f32.mrf.mxu0
    %9008 = vmatprep.mubr.f32.mxu0 0.0
    %v9009 = vand.u32 %v8092, 4294901760
    %9010 = vmatmul.mubr.f32.gmra.mxu0 %v9009
    %v9011 = vpop.f32.mrf.mxu0
    %v9012 = vadd.f32 %v8847, %v9011
    %v9013 = vpop.f32.mrf.mxu0
    %9014 = vmatprep.mubr.f32.mxu0 0.0
    %v9015 = vand.u32 %v8095, 4294901760
    %9016 = vmatmul.mubr.f32.gmra.mxu0 %v9015
    %v9017 = vpop.f32.mrf.mxu0
    %v9018 = vadd.f32 %v8855, %v9017
    %v9019 = vpop.f32.mrf.mxu0
    %9020 = vdwg.mxu0
    %9021 = vmatprep.subr.mxu0 0.0
    %9022 = vmatpush1.msra.mxu0 0.0
    %9023 = vmatprep.subr.mxu0 0.0
    %9024 = vmatpush1.msra.mxu0 0.0
    %9025 = vmatprep.subr.mxu0 0.0
    %9026 = vmatpush1.msra.mxu0 0.0
    %9027 = vmatprep.subr.mxu0 0.0
    %9028 = vmatpush1.msra.mxu0 0.0
    %9029 = vmatprep.subr.mxu0 0.0
    %9030 = vmatpush1.msra.mxu0 0.0
    %9031 = vmatprep.subr.mxu0 0.0
    %9032 = vmatpush1.msra.mxu0 0.0
    %9033 = vmatprep.subr.mxu0 0.0
    %9034 = vmatpush1.msra.mxu0 0.0
    %9035 = vmatprep.subr.mxu0 0.0
    %9036 = vmatpush1.msra.mxu0 0.0
    %9037 = vmatprep.subr.mxu0 0.0
    %9038 = vmatpush1.msra.mxu0 0.0
    %9039 = vmatprep.subr.mxu0 0.0
    %9040 = vmatpush1.msra.mxu0 0.0
    %9041 = vmatprep.subr.mxu0 0.0
    %9042 = vmatpush1.msra.mxu0 0.0
    %9043 = vmatprep.subr.mxu0 0.0
    %9044 = vmatpush1.msra.mxu0 0.0
    %9045 = vmatprep.subr.mxu0 0.0
    %9046 = vmatpush1.msra.mxu0 0.0
    %9047 = vmatprep.subr.mxu0 0.0
    %9048 = vmatpush1.msra.mxu0 0.0
    %9049 = vmatprep.subr.mxu0 0.0
    %9050 = vmatpush1.msra.mxu0 0.0
    %9051 = vmatprep.subr.mxu0 0.0
    %9052 = vmatpush1.msra.mxu0 %v164
    %9053 = vmatprep.subr.mxu0 0.0
    %9054 = vmatpush2.msra.mxu0 0.0
    %9055 = vmatprep.subr.mxu0 0.0
    %9056 = vmatpush2.msra.mxu0 0.0
    %9057 = vmatprep.subr.mxu0 0.0
    %9058 = vmatpush2.msra.mxu0 0.0
    %9059 = vmatprep.subr.mxu0 0.0
    %9060 = vmatpush2.msra.mxu0 0.0
    %9061 = vmatprep.subr.mxu0 0.0
    %9062 = vmatpush2.msra.mxu0 0.0
    %9063 = vmatprep.subr.mxu0 0.0
    %9064 = vmatpush2.msra.mxu0 0.0
    %9065 = vmatprep.subr.mxu0 0.0
    %9066 = vmatpush2.msra.mxu0 0.0
    %9067 = vmatprep.subr.mxu0 0.0
    %9068 = vmatpush2.msra.mxu0 0.0
    %9069 = vmatprep.subr.mxu0 0.0
    %9070 = vmatpush2.msra.mxu0 0.0
    %9071 = vmatprep.subr.mxu0 0.0
    %9072 = vmatpush2.msra.mxu0 0.0
    %9073 = vmatprep.subr.mxu0 0.0
    %9074 = vmatpush2.msra.mxu0 0.0
    %9075 = vmatprep.subr.mxu0 0.0
    %9076 = vmatpush2.msra.mxu0 0.0
    %9077 = vmatprep.subr.mxu0 0.0
    %9078 = vmatpush2.msra.mxu0 0.0
    %9079 = vmatprep.subr.mxu0 0.0
    %9080 = vmatpush2.msra.mxu0 0.0
    %9081 = vmatprep.subr.mxu0 0.0
    %9082 = vmatpush2.msra.mxu0 0.0
    %9083 = vmatprep.subr.mxu0 0.0
    %9084 = vmatpush2.msra.mxu0 0.0
    %9085 = vmatprep.mubr.f32.mxu0 0.0
    %v9086 = vand.u32 %v8050, 4294901760
    %9087 = vmatmul.mubr.f32.gmra.mxu0 %v9086
    %v9088 = vpop.f32.mrf.mxu0
    %v9089 = vadd.f32 %v8928, %v9088
    %v9090 = vpop.f32.mrf.mxu0
    %9091 = vmatprep.mubr.f32.mxu0 0.0
    %v9092 = vand.u32 %v8053, 4294901760
    %9093 = vmatmul.mubr.f32.gmra.mxu0 %v9092
    %v9094 = vpop.f32.mrf.mxu0
    %v9095 = vadd.f32 %v8934, %v9094
    %v9096 = vpop.f32.mrf.mxu0
    %9097 = vmatprep.mubr.f32.mxu0 0.0
    %v9098 = vand.u32 %v8056, 4294901760
    %9099 = vmatmul.mubr.f32.gmra.mxu0 %v9098
    %v9100 = vpop.f32.mrf.mxu0
    %v9101 = vadd.f32 %v8940, %v9100
    %v9102 = vpop.f32.mrf.mxu0
    %9103 = vmatprep.mubr.f32.mxu0 0.0
    %v9104 = vand.u32 %v8059, 4294901760
    %9105 = vmatmul.mubr.f32.gmra.mxu0 %v9104
    %v9106 = vpop.f32.mrf.mxu0
    %v9107 = vadd.f32 %v8946, %v9106
    %v9108 = vpop.f32.mrf.mxu0
    %9109 = vmatprep.mubr.f32.mxu0 0.0
    %v9110 = vand.u32 %v8062, 4294901760
    %9111 = vmatmul.mubr.f32.gmra.mxu0 %v9110
    %v9112 = vpop.f32.mrf.mxu0
    %v9113 = vadd.f32 %v8952, %v9112
    %v9114 = vpop.f32.mrf.mxu0
    %9115 = vmatprep.mubr.f32.mxu0 0.0
    %v9116 = vand.u32 %v8065, 4294901760
    %9117 = vmatmul.mubr.f32.gmra.mxu0 %v9116
    %v9118 = vpop.f32.mrf.mxu0
    %v9119 = vadd.f32 %v8958, %v9118
    %v9120 = vpop.f32.mrf.mxu0
    %9121 = vmatprep.mubr.f32.mxu0 0.0
    %v9122 = vand.u32 %v8068, 4294901760
    %9123 = vmatmul.mubr.f32.gmra.mxu0 %v9122
    %v9124 = vpop.f32.mrf.mxu0
    %v9125 = vadd.f32 %v8964, %v9124
    %v9126 = vpop.f32.mrf.mxu0
    %9127 = vmatprep.mubr.f32.mxu0 0.0
    %v9128 = vand.u32 %v8071, 4294901760
    %9129 = vmatmul.mubr.f32.gmra.mxu0 %v9128
    %v9130 = vpop.f32.mrf.mxu0
    %v9131 = vadd.f32 %v8970, %v9130
    %v9132 = vpop.f32.mrf.mxu0
    %9133 = vmatprep.mubr.f32.mxu0 0.0
    %v9134 = vand.u32 %v8074, 4294901760
    %9135 = vmatmul.mubr.f32.gmra.mxu0 %v9134
    %v9136 = vpop.f32.mrf.mxu0
    %v9137 = vadd.f32 %v8976, %v9136
    %v9138 = vpop.f32.mrf.mxu0
    %9139 = vmatprep.mubr.f32.mxu0 0.0
    %v9140 = vand.u32 %v8077, 4294901760
    %9141 = vmatmul.mubr.f32.gmra.mxu0 %v9140
    %v9142 = vpop.f32.mrf.mxu0
    %v9143 = vadd.f32 %v8982, %v9142
    %v9144 = vpop.f32.mrf.mxu0
    %9145 = vmatprep.mubr.f32.mxu0 0.0
    %v9146 = vand.u32 %v8080, 4294901760
    %9147 = vmatmul.mubr.f32.gmra.mxu0 %v9146
    %v9148 = vpop.f32.mrf.mxu0
    %v9149 = vadd.f32 %v8988, %v9148
    %v9150 = vpop.f32.mrf.mxu0
    %9151 = vmatprep.mubr.f32.mxu0 0.0
    %v9152 = vand.u32 %v8083, 4294901760
    %9153 = vmatmul.mubr.f32.gmra.mxu0 %v9152
    %v9154 = vpop.f32.mrf.mxu0
    %v9155 = vadd.f32 %v8994, %v9154
    %v9156 = vpop.f32.mrf.mxu0
    %9157 = vmatprep.mubr.f32.mxu0 0.0
    %v9158 = vand.u32 %v8086, 4294901760
    %9159 = vmatmul.mubr.f32.gmra.mxu0 %v9158
    %v9160 = vpop.f32.mrf.mxu0
    %v9161 = vadd.f32 %v9000, %v9160
    %v9162 = vpop.f32.mrf.mxu0
    %9163 = vmatprep.mubr.f32.mxu0 0.0
    %v9164 = vand.u32 %v8089, 4294901760
    %9165 = vmatmul.mubr.f32.gmra.mxu0 %v9164
    %v9166 = vpop.f32.mrf.mxu0
    %v9167 = vadd.f32 %v9006, %v9166
    %v9168 = vpop.f32.mrf.mxu0
    %9169 = vmatprep.mubr.f32.mxu0 0.0
    %v9170 = vand.u32 %v8092, 4294901760
    %9171 = vmatmul.mubr.f32.gmra.mxu0 %v9170
    %v9172 = vpop.f32.mrf.mxu0
    %v9173 = vadd.f32 %v9012, %v9172
    %v9174 = vpop.f32.mrf.mxu0
    %9175 = vmatprep.mubr.f32.mxu0 0.0
    %v9176 = vand.u32 %v8095, 4294901760
    %9177 = vmatmul.mubr.f32.gmra.mxu0 %v9176
    %v9178 = vpop.f32.mrf.mxu0
    %v9179 = vadd.f32 %v9018, %v9178
    %v9180 = vpop.f32.mrf.mxu0
    %9181 = vdwg.mxu0
    %v9182 = vmul.f32 %v9089, %v6385
    %v9183 = vmul.f32 %v9095, %v6391
    %v9184 = vmul.f32 %v9101, %v6397
    %v9185 = vmul.f32 %v9107, %v6403
    %v9186 = vmul.f32 %v9113, %v6409
    %v9187 = vmul.f32 %v9119, %v6415
    %v9188 = vmul.f32 %v9125, %v6421
    %v9189 = vmul.f32 %v9131, %v6427
    %v9190 = vmul.f32 %v9137, %v6433
    %v9191 = vmul.f32 %v9143, %v6439
    %v9192 = vmul.f32 %v9149, %v6445
    %v9193 = vmul.f32 %v9155, %v6451
    %v9194 = vmul.f32 %v9161, %v6457
    %v9195 = vmul.f32 %v9167, %v6463
    %v9196 = vmul.f32 %v9173, %v6469
    %v9197 = vmul.f32 %v9179, %v6475
    %v9198 = vsel %vm355, %v9182, 0.0
    %v9199 = vrot.slane %v9198, 4
    %v9200 = vadd.f32 %v9198, %v9199
    %v9201 = vrot.slane %v9200, 2
    %v9202 = vadd.f32 %v9200, %v9201
    %v9203 = vrot.slane %v9202, 1
    %v9204 = vadd.f32 %v9202, %v9203
    %v9205 = vsel %vm355, %v9183, 0.0
    %v9206 = vrot.slane %v9205, 4
    %v9207 = vadd.f32 %v9205, %v9206
    %v9208 = vrot.slane %v9207, 2
    %v9209 = vadd.f32 %v9207, %v9208
    %v9210 = vrot.slane %v9209, 1
    %v9211 = vadd.f32 %v9209, %v9210
    %v9212 = vsel %vm355, %v9184, 0.0
    %v9213 = vrot.slane %v9212, 4
    %v9214 = vadd.f32 %v9212, %v9213
    %v9215 = vrot.slane %v9214, 2
    %v9216 = vadd.f32 %v9214, %v9215
    %v9217 = vrot.slane %v9216, 1
    %v9218 = vadd.f32 %v9216, %v9217
    %v9219 = vsel %vm355, %v9185, 0.0
    %v9220 = vrot.slane %v9219, 4
    %v9221 = vadd.f32 %v9219, %v9220
    %v9222 = vrot.slane %v9221, 2
    %v9223 = vadd.f32 %v9221, %v9222
    %v9224 = vrot.slane %v9223, 1
    %v9225 = vadd.f32 %v9223, %v9224
    %v9226 = vsel %vm355, %v9186, 0.0
    %v9227 = vrot.slane %v9226, 4
    %v9228 = vadd.f32 %v9226, %v9227
    %v9229 = vrot.slane %v9228, 2
    %v9230 = vadd.f32 %v9228, %v9229
    %v9231 = vrot.slane %v9230, 1
    %v9232 = vadd.f32 %v9230, %v9231
    %v9233 = vsel %vm355, %v9187, 0.0
    %v9234 = vrot.slane %v9233, 4
    %v9235 = vadd.f32 %v9233, %v9234
    %v9236 = vrot.slane %v9235, 2
    %v9237 = vadd.f32 %v9235, %v9236
    %v9238 = vrot.slane %v9237, 1
    %v9239 = vadd.f32 %v9237, %v9238
    %v9240 = vsel %vm355, %v9188, 0.0
    %v9241 = vrot.slane %v9240, 4
    %v9242 = vadd.f32 %v9240, %v9241
    %v9243 = vrot.slane %v9242, 2
    %v9244 = vadd.f32 %v9242, %v9243
    %v9245 = vrot.slane %v9244, 1
    %v9246 = vadd.f32 %v9244, %v9245
    %v9247 = vsel %vm355, %v9189, 0.0
    %v9248 = vrot.slane %v9247, 4
    %v9249 = vadd.f32 %v9247, %v9248
    %v9250 = vrot.slane %v9249, 2
    %v9251 = vadd.f32 %v9249, %v9250
    %v9252 = vrot.slane %v9251, 1
    %v9253 = vadd.f32 %v9251, %v9252
    %v9254 = vsel %vm355, %v9190, 0.0
    %v9255 = vrot.slane %v9254, 4
    %v9256 = vadd.f32 %v9254, %v9255
    %v9257 = vrot.slane %v9256, 2
    %v9258 = vadd.f32 %v9256, %v9257
    %v9259 = vrot.slane %v9258, 1
    %v9260 = vadd.f32 %v9258, %v9259
    %v9261 = vsel %vm355, %v9191, 0.0
    %v9262 = vrot.slane %v9261, 4
    %v9263 = vadd.f32 %v9261, %v9262
    %v9264 = vrot.slane %v9263, 2
    %v9265 = vadd.f32 %v9263, %v9264
    %v9266 = vrot.slane %v9265, 1
    %v9267 = vadd.f32 %v9265, %v9266
    %v9268 = vsel %vm355, %v9192, 0.0
    %v9269 = vrot.slane %v9268, 4
    %v9270 = vadd.f32 %v9268, %v9269
    %v9271 = vrot.slane %v9270, 2
    %v9272 = vadd.f32 %v9270, %v9271
    %v9273 = vrot.slane %v9272, 1
    %v9274 = vadd.f32 %v9272, %v9273
    %v9275 = vsel %vm355, %v9193, 0.0
    %v9276 = vrot.slane %v9275, 4
    %v9277 = vadd.f32 %v9275, %v9276
    %v9278 = vrot.slane %v9277, 2
    %v9279 = vadd.f32 %v9277, %v9278
    %v9280 = vrot.slane %v9279, 1
    %v9281 = vadd.f32 %v9279, %v9280
    %v9282 = vsel %vm355, %v9194, 0.0
    %v9283 = vrot.slane %v9282, 4
    %v9284 = vadd.f32 %v9282, %v9283
    %v9285 = vrot.slane %v9284, 2
    %v9286 = vadd.f32 %v9284, %v9285
    %v9287 = vrot.slane %v9286, 1
    %v9288 = vadd.f32 %v9286, %v9287
    %v9289 = vsel %vm355, %v9195, 0.0
    %v9290 = vrot.slane %v9289, 4
    %v9291 = vadd.f32 %v9289, %v9290
    %v9292 = vrot.slane %v9291, 2
    %v9293 = vadd.f32 %v9291, %v9292
    %v9294 = vrot.slane %v9293, 1
    %v9295 = vadd.f32 %v9293, %v9294
    %v9296 = vsel %vm355, %v9196, 0.0
    %v9297 = vrot.slane %v9296, 4
    %v9298 = vadd.f32 %v9296, %v9297
    %v9299 = vrot.slane %v9298, 2
    %v9300 = vadd.f32 %v9298, %v9299
    %v9301 = vrot.slane %v9300, 1
    %v9302 = vadd.f32 %v9300, %v9301
    %v9303 = vsel %vm355, %v9197, 0.0
    %v9304 = vrot.slane %v9303, 4
    %v9305 = vadd.f32 %v9303, %v9304
    %v9306 = vrot.slane %v9305, 2
    %v9307 = vadd.f32 %v9305, %v9306
    %v9308 = vrot.slane %v9307, 1
    %v9309 = vadd.f32 %v9307, %v9308
    %v9310 = vld [vmem:[%s11] sm:$0xff]
    %v9311 = vld [vmem:[%s11 + $0x8] sm:$0xff]
    %v9312 = vld [vmem:[%s11 + $0x10] sm:$0xff]
    %v9313 = vld [vmem:[%s11 + $0x18] sm:$0xff]
    %v9315 = vlaneseq
    %v9316 = vshrl.u32 %v9315, 7
    %v9317 = vsub.s32 0, %v9316
    %v9318 = vrot.slane %v85, %v9317
    %vm9336 = vcmask 1041409
    %v9337 = vsel %vm9336, %v9211, %v9204
    %vm9338 = vcmask 1042434
    %v9339 = vsel %vm9338, %v9218, %v9337
    %vm9340 = vcmask 1043459
    %v9341 = vsel %vm9340, %v9225, %v9339
    %vm9342 = vcmask 1044484
    %v9343 = vsel %vm9342, %v9232, %v9341
    %vm9344 = vcmask 1045509
    %v9345 = vsel %vm9344, %v9239, %v9343
    %vm9346 = vcmask 1046534
    %v9347 = vsel %vm9346, %v9246, %v9345
    %vm9348 = vcmask 1047559
    %v9349 = vsel %vm9348, %v9253, %v9347
    %v9350 = vsel %vm9336, %v9267, %v9260
    %v9351 = vsel %vm9338, %v9274, %v9350
    %v9352 = vsel %vm9340, %v9281, %v9351
    %v9353 = vsel %vm9342, %v9288, %v9352
    %v9354 = vsel %vm9344, %v9295, %v9353
    %v9355 = vsel %vm9346, %v9302, %v9354
    %v9356 = vsel %vm9348, %v9309, %v9355
    %v9357 = vsel %vm355, %v9349, 0
    %v9359 = vsel %vm355, %v9356, 0
    %9361 = vmatprep.subr.mxu0 0.0
    %9362 = vmatpush1.msra.mxu0 0.0
    %9363 = vmatprep.subr.mxu0 0.0
    %9364 = vmatpush1.msra.mxu0 0.0
    %9365 = vmatprep.subr.mxu0 0.0
    %9366 = vmatpush1.msra.mxu0 0.0
    %9367 = vmatprep.subr.mxu0 0.0
    %9368 = vmatpush1.msra.mxu0 0.0
    %9369 = vmatprep.subr.mxu0 0.0
    %9370 = vmatpush1.msra.mxu0 0.0
    %9371 = vmatprep.subr.mxu0 0.0
    %9372 = vmatpush1.msra.mxu0 0.0
    %9373 = vmatprep.subr.mxu0 0.0
    %9374 = vmatpush1.msra.mxu0 0.0
    %9375 = vmatprep.subr.mxu0 0.0
    %9376 = vmatpush1.msra.mxu0 0.0
    %9377 = vmatprep.subr.mxu0 0.0
    %9378 = vmatpush1.msra.mxu0 0.0
    %9379 = vmatprep.subr.mxu0 0.0
    %9380 = vmatpush1.msra.mxu0 0.0
    %9381 = vmatprep.subr.mxu0 0.0
    %9382 = vmatpush1.msra.mxu0 0.0
    %9383 = vmatprep.subr.mxu0 0.0
    %9384 = vmatpush1.msra.mxu0 0.0
    %9385 = vmatprep.subr.mxu0 0.0
    %v9386 = vand.u32 %v9313, 4294901760
    %9387 = vmatpush1.msra.mxu0 %v9386
    %9388 = vmatprep.subr.mxu0 0.0
    %v9389 = vand.u32 %v9312, 4294901760
    %9390 = vmatpush1.msra.mxu0 %v9389
    %9391 = vmatprep.subr.mxu0 0.0
    %v9392 = vand.u32 %v9311, 4294901760
    %9393 = vmatpush1.msra.mxu0 %v9392
    %9394 = vmatprep.subr.mxu0 0.0
    %v9395 = vand.u32 %v9310, 4294901760
    %9396 = vmatpush1.msra.mxu0 %v9395
    %9397 = vmatprep.subr.mxu0 0.0
    %9398 = vmatpush2.msra.mxu0 0.0
    %9399 = vmatprep.subr.mxu0 0.0
    %9400 = vmatpush2.msra.mxu0 0.0
    %9401 = vmatprep.subr.mxu0 0.0
    %9402 = vmatpush2.msra.mxu0 0.0
    %9403 = vmatprep.subr.mxu0 0.0
    %9404 = vmatpush2.msra.mxu0 0.0
    %9405 = vmatprep.subr.mxu0 0.0
    %9406 = vmatpush2.msra.mxu0 0.0
    %9407 = vmatprep.subr.mxu0 0.0
    %9408 = vmatpush2.msra.mxu0 0.0
    %9409 = vmatprep.subr.mxu0 0.0
    %9410 = vmatpush2.msra.mxu0 0.0
    %9411 = vmatprep.subr.mxu0 0.0
    %9412 = vmatpush2.msra.mxu0 0.0
    %9413 = vmatprep.subr.mxu0 0.0
    %9414 = vmatpush2.msra.mxu0 0.0
    %9415 = vmatprep.subr.mxu0 0.0
    %9416 = vmatpush2.msra.mxu0 0.0
    %9417 = vmatprep.subr.mxu0 0.0
    %9418 = vmatpush2.msra.mxu0 0.0
    %9419 = vmatprep.subr.mxu0 0.0
    %9420 = vmatpush2.msra.mxu0 0.0
    %9421 = vmatprep.subr.mxu0 0.0
    %9422 = vmatpush2.msra.mxu0 0.0
    %9423 = vmatprep.subr.mxu0 0.0
    %9424 = vmatpush2.msra.mxu0 0.0
    %9425 = vmatprep.subr.mxu0 0.0
    %9426 = vmatpush2.msra.mxu0 0.0
    %9427 = vmatprep.subr.mxu0 0.0
    %9428 = vmatpush2.msra.mxu0 0.0
    %9429 = vmatprep.mubr.f32.mxu0 0.0
    %v9430 = vand.u32 %v9357, 4294901760
    %v9431 = vsub.f32 %v9357, %v9430
    %v9432 = vand.u32 %v9431, 4294901760
    %v9433 = vsub.f32 %v9431, %v9432
    %v9434 = vand.u32 %v9433, 4294901760
    %9435 = vmatmul.mubr.f32.gmra.mxu0 %v9434
    %v9436 = vpop.f32.mrf.mxu0
    %v9437 = vadd.f32 %v9318, %v9436
    %v9438 = vpop.f32.mrf.mxu0
    %9439 = vmatprep.mubr.f32.mxu0 0.0
    %v9440 = vand.u32 %v9359, 4294901760
    %v9441 = vsub.f32 %v9359, %v9440
    %v9442 = vand.u32 %v9441, 4294901760
    %v9443 = vsub.f32 %v9441, %v9442
    %v9444 = vand.u32 %v9443, 4294901760
    %9445 = vmatmul.mubr.f32.gmra.mxu0 %v9444
    %v9446 = vpop.f32.mrf.mxu0
    %v9447 = vadd.f32 %v9318, %v9446
    %v9448 = vpop.f32.mrf.mxu0
    %9449 = vdwg.mxu0
    %9450 = vmatprep.subr.mxu0 0.0
    %9451 = vmatpush1.msra.mxu0 0.0
    %9452 = vmatprep.subr.mxu0 0.0
    %9453 = vmatpush1.msra.mxu0 0.0
    %9454 = vmatprep.subr.mxu0 0.0
    %9455 = vmatpush1.msra.mxu0 0.0
    %9456 = vmatprep.subr.mxu0 0.0
    %9457 = vmatpush1.msra.mxu0 0.0
    %9458 = vmatprep.subr.mxu0 0.0
    %9459 = vmatpush1.msra.mxu0 0.0
    %9460 = vmatprep.subr.mxu0 0.0
    %9461 = vmatpush1.msra.mxu0 0.0
    %9462 = vmatprep.subr.mxu0 0.0
    %9463 = vmatpush1.msra.mxu0 0.0
    %9464 = vmatprep.subr.mxu0 0.0
    %9465 = vmatpush1.msra.mxu0 0.0
    %9466 = vmatprep.subr.mxu0 0.0
    %9467 = vmatpush1.msra.mxu0 0.0
    %9468 = vmatprep.subr.mxu0 0.0
    %9469 = vmatpush1.msra.mxu0 0.0
    %9470 = vmatprep.subr.mxu0 0.0
    %9471 = vmatpush1.msra.mxu0 0.0
    %9472 = vmatprep.subr.mxu0 0.0
    %9473 = vmatpush1.msra.mxu0 0.0
    %9474 = vmatprep.subr.mxu0 0.0
    %v9475 = vand.u32 %v9313, 4294901760
    %v9476 = vsub.f32 %v9313, %v9475
    %v9477 = vand.u32 %v9476, 4294901760
    %v9478 = vsub.f32 %v9476, %v9477
    %v9479 = vand.u32 %v9478, 4294901760
    %9480 = vmatpush1.msra.mxu0 %v9479
    %9481 = vmatprep.subr.mxu0 0.0
    %v9482 = vand.u32 %v9312, 4294901760
    %v9483 = vsub.f32 %v9312, %v9482
    %v9484 = vand.u32 %v9483, 4294901760
    %v9485 = vsub.f32 %v9483, %v9484
    %v9486 = vand.u32 %v9485, 4294901760
    %9487 = vmatpush1.msra.mxu0 %v9486
    %9488 = vmatprep.subr.mxu0 0.0
    %v9489 = vand.u32 %v9311, 4294901760
    %v9490 = vsub.f32 %v9311, %v9489
    %v9491 = vand.u32 %v9490, 4294901760
    %v9492 = vsub.f32 %v9490, %v9491
    %v9493 = vand.u32 %v9492, 4294901760
    %9494 = vmatpush1.msra.mxu0 %v9493
    %9495 = vmatprep.subr.mxu0 0.0
    %v9496 = vand.u32 %v9310, 4294901760
    %v9497 = vsub.f32 %v9310, %v9496
    %v9498 = vand.u32 %v9497, 4294901760
    %v9499 = vsub.f32 %v9497, %v9498
    %v9500 = vand.u32 %v9499, 4294901760
    %9501 = vmatpush1.msra.mxu0 %v9500
    %9502 = vmatprep.subr.mxu0 0.0
    %9503 = vmatpush2.msra.mxu0 0.0
    %9504 = vmatprep.subr.mxu0 0.0
    %9505 = vmatpush2.msra.mxu0 0.0
    %9506 = vmatprep.subr.mxu0 0.0
    %9507 = vmatpush2.msra.mxu0 0.0
    %9508 = vmatprep.subr.mxu0 0.0
    %9509 = vmatpush2.msra.mxu0 0.0
    %9510 = vmatprep.subr.mxu0 0.0
    %9511 = vmatpush2.msra.mxu0 0.0
    %9512 = vmatprep.subr.mxu0 0.0
    %9513 = vmatpush2.msra.mxu0 0.0
    %9514 = vmatprep.subr.mxu0 0.0
    %9515 = vmatpush2.msra.mxu0 0.0
    %9516 = vmatprep.subr.mxu0 0.0
    %9517 = vmatpush2.msra.mxu0 0.0
    %9518 = vmatprep.subr.mxu0 0.0
    %9519 = vmatpush2.msra.mxu0 0.0
    %9520 = vmatprep.subr.mxu0 0.0
    %9521 = vmatpush2.msra.mxu0 0.0
    %9522 = vmatprep.subr.mxu0 0.0
    %9523 = vmatpush2.msra.mxu0 0.0
    %9524 = vmatprep.subr.mxu0 0.0
    %9525 = vmatpush2.msra.mxu0 0.0
    %9526 = vmatprep.subr.mxu0 0.0
    %9527 = vmatpush2.msra.mxu0 0.0
    %9528 = vmatprep.subr.mxu0 0.0
    %9529 = vmatpush2.msra.mxu0 0.0
    %9530 = vmatprep.subr.mxu0 0.0
    %9531 = vmatpush2.msra.mxu0 0.0
    %9532 = vmatprep.subr.mxu0 0.0
    %9533 = vmatpush2.msra.mxu0 0.0
    %9534 = vmatprep.mubr.f32.mxu0 0.0
    %v9535 = vand.u32 %v9357, 4294901760
    %9536 = vmatmul.mubr.f32.gmra.mxu0 %v9535
    %v9537 = vpop.f32.mrf.mxu0
    %v9538 = vadd.f32 %v9437, %v9537
    %v9539 = vpop.f32.mrf.mxu0
    %9540 = vmatprep.mubr.f32.mxu0 0.0
    %v9541 = vand.u32 %v9359, 4294901760
    %9542 = vmatmul.mubr.f32.gmra.mxu0 %v9541
    %v9543 = vpop.f32.mrf.mxu0
    %v9544 = vadd.f32 %v9447, %v9543
    %v9545 = vpop.f32.mrf.mxu0
    %9546 = vdwg.mxu0
    %9547 = vmatprep.subr.mxu0 0.0
    %9548 = vmatpush1.msra.mxu0 0.0
    %9549 = vmatprep.subr.mxu0 0.0
    %9550 = vmatpush1.msra.mxu0 0.0
    %9551 = vmatprep.subr.mxu0 0.0
    %9552 = vmatpush1.msra.mxu0 0.0
    %9553 = vmatprep.subr.mxu0 0.0
    %9554 = vmatpush1.msra.mxu0 0.0
    %9555 = vmatprep.subr.mxu0 0.0
    %9556 = vmatpush1.msra.mxu0 0.0
    %9557 = vmatprep.subr.mxu0 0.0
    %9558 = vmatpush1.msra.mxu0 0.0
    %9559 = vmatprep.subr.mxu0 0.0
    %9560 = vmatpush1.msra.mxu0 0.0
    %9561 = vmatprep.subr.mxu0 0.0
    %9562 = vmatpush1.msra.mxu0 0.0
    %9563 = vmatprep.subr.mxu0 0.0
    %9564 = vmatpush1.msra.mxu0 0.0
    %9565 = vmatprep.subr.mxu0 0.0
    %9566 = vmatpush1.msra.mxu0 0.0
    %9567 = vmatprep.subr.mxu0 0.0
    %9568 = vmatpush1.msra.mxu0 0.0
    %9569 = vmatprep.subr.mxu0 0.0
    %9570 = vmatpush1.msra.mxu0 0.0
    %9571 = vmatprep.subr.mxu0 0.0
    %v9572 = vand.u32 %v9313, 4294901760
    %v9573 = vsub.f32 %v9313, %v9572
    %9574 = vmatpush1.msra.mxu0 %v9573
    %9575 = vmatprep.subr.mxu0 0.0
    %v9576 = vand.u32 %v9312, 4294901760
    %v9577 = vsub.f32 %v9312, %v9576
    %9578 = vmatpush1.msra.mxu0 %v9577
    %9579 = vmatprep.subr.mxu0 0.0
    %v9580 = vand.u32 %v9311, 4294901760
    %v9581 = vsub.f32 %v9311, %v9580
    %9582 = vmatpush1.msra.mxu0 %v9581
    %9583 = vmatprep.subr.mxu0 0.0
    %v9584 = vand.u32 %v9310, 4294901760
    %v9585 = vsub.f32 %v9310, %v9584
    %9586 = vmatpush1.msra.mxu0 %v9585
    %9587 = vmatprep.subr.mxu0 0.0
    %9588 = vmatpush2.msra.mxu0 0.0
    %9589 = vmatprep.subr.mxu0 0.0
    %9590 = vmatpush2.msra.mxu0 0.0
    %9591 = vmatprep.subr.mxu0 0.0
    %9592 = vmatpush2.msra.mxu0 0.0
    %9593 = vmatprep.subr.mxu0 0.0
    %9594 = vmatpush2.msra.mxu0 0.0
    %9595 = vmatprep.subr.mxu0 0.0
    %9596 = vmatpush2.msra.mxu0 0.0
    %9597 = vmatprep.subr.mxu0 0.0
    %9598 = vmatpush2.msra.mxu0 0.0
    %9599 = vmatprep.subr.mxu0 0.0
    %9600 = vmatpush2.msra.mxu0 0.0
    %9601 = vmatprep.subr.mxu0 0.0
    %9602 = vmatpush2.msra.mxu0 0.0
    %9603 = vmatprep.subr.mxu0 0.0
    %9604 = vmatpush2.msra.mxu0 0.0
    %9605 = vmatprep.subr.mxu0 0.0
    %9606 = vmatpush2.msra.mxu0 0.0
    %9607 = vmatprep.subr.mxu0 0.0
    %9608 = vmatpush2.msra.mxu0 0.0
    %9609 = vmatprep.subr.mxu0 0.0
    %9610 = vmatpush2.msra.mxu0 0.0
    %9611 = vmatprep.subr.mxu0 0.0
    %9612 = vmatpush2.msra.mxu0 0.0
    %9613 = vmatprep.subr.mxu0 0.0
    %9614 = vmatpush2.msra.mxu0 0.0
    %9615 = vmatprep.subr.mxu0 0.0
    %9616 = vmatpush2.msra.mxu0 0.0
    %9617 = vmatprep.subr.mxu0 0.0
    %9618 = vmatpush2.msra.mxu0 0.0
    %9619 = vmatprep.mubr.f32.mxu0 0.0
    %v9620 = vand.u32 %v9357, 4294901760
    %v9621 = vsub.f32 %v9357, %v9620
    %9622 = vmatmul.mubr.f32.gmra.mxu0 %v9621
    %v9623 = vpop.f32.mrf.mxu0
    %v9624 = vadd.f32 %v9538, %v9623
    %v9625 = vpop.f32.mrf.mxu0
    %9626 = vmatprep.mubr.f32.mxu0 0.0
    %v9627 = vand.u32 %v9359, 4294901760
    %v9628 = vsub.f32 %v9359, %v9627
    %9629 = vmatmul.mubr.f32.gmra.mxu0 %v9628
    %v9630 = vpop.f32.mrf.mxu0
    %v9631 = vadd.f32 %v9544, %v9630
    %v9632 = vpop.f32.mrf.mxu0
    %9633 = vdwg.mxu0
    %9634 = vmatprep.subr.mxu0 0.0
    %9635 = vmatpush1.msra.mxu0 0.0
    %9636 = vmatprep.subr.mxu0 0.0
    %9637 = vmatpush1.msra.mxu0 0.0
    %9638 = vmatprep.subr.mxu0 0.0
    %9639 = vmatpush1.msra.mxu0 0.0
    %9640 = vmatprep.subr.mxu0 0.0
    %9641 = vmatpush1.msra.mxu0 0.0
    %9642 = vmatprep.subr.mxu0 0.0
    %9643 = vmatpush1.msra.mxu0 0.0
    %9644 = vmatprep.subr.mxu0 0.0
    %9645 = vmatpush1.msra.mxu0 0.0
    %9646 = vmatprep.subr.mxu0 0.0
    %9647 = vmatpush1.msra.mxu0 0.0
    %9648 = vmatprep.subr.mxu0 0.0
    %9649 = vmatpush1.msra.mxu0 0.0
    %9650 = vmatprep.subr.mxu0 0.0
    %9651 = vmatpush1.msra.mxu0 0.0
    %9652 = vmatprep.subr.mxu0 0.0
    %9653 = vmatpush1.msra.mxu0 0.0
    %9654 = vmatprep.subr.mxu0 0.0
    %9655 = vmatpush1.msra.mxu0 0.0
    %9656 = vmatprep.subr.mxu0 0.0
    %9657 = vmatpush1.msra.mxu0 0.0
    %9658 = vmatprep.subr.mxu0 0.0
    %v9659 = vand.u32 %v9313, 4294901760
    %9660 = vmatpush1.msra.mxu0 %v9659
    %9661 = vmatprep.subr.mxu0 0.0
    %v9662 = vand.u32 %v9312, 4294901760
    %9663 = vmatpush1.msra.mxu0 %v9662
    %9664 = vmatprep.subr.mxu0 0.0
    %v9665 = vand.u32 %v9311, 4294901760
    %9666 = vmatpush1.msra.mxu0 %v9665
    %9667 = vmatprep.subr.mxu0 0.0
    %v9668 = vand.u32 %v9310, 4294901760
    %9669 = vmatpush1.msra.mxu0 %v9668
    %9670 = vmatprep.subr.mxu0 0.0
    %9671 = vmatpush2.msra.mxu0 0.0
    %9672 = vmatprep.subr.mxu0 0.0
    %9673 = vmatpush2.msra.mxu0 0.0
    %9674 = vmatprep.subr.mxu0 0.0
    %9675 = vmatpush2.msra.mxu0 0.0
    %9676 = vmatprep.subr.mxu0 0.0
    %9677 = vmatpush2.msra.mxu0 0.0
    %9678 = vmatprep.subr.mxu0 0.0
    %9679 = vmatpush2.msra.mxu0 0.0
    %9680 = vmatprep.subr.mxu0 0.0
    %9681 = vmatpush2.msra.mxu0 0.0
    %9682 = vmatprep.subr.mxu0 0.0
    %9683 = vmatpush2.msra.mxu0 0.0
    %9684 = vmatprep.subr.mxu0 0.0
    %9685 = vmatpush2.msra.mxu0 0.0
    %9686 = vmatprep.subr.mxu0 0.0
    %9687 = vmatpush2.msra.mxu0 0.0
    %9688 = vmatprep.subr.mxu0 0.0
    %9689 = vmatpush2.msra.mxu0 0.0
    %9690 = vmatprep.subr.mxu0 0.0
    %9691 = vmatpush2.msra.mxu0 0.0
    %9692 = vmatprep.subr.mxu0 0.0
    %9693 = vmatpush2.msra.mxu0 0.0
    %9694 = vmatprep.subr.mxu0 0.0
    %9695 = vmatpush2.msra.mxu0 0.0
    %9696 = vmatprep.subr.mxu0 0.0
    %9697 = vmatpush2.msra.mxu0 0.0
    %9698 = vmatprep.subr.mxu0 0.0
    %9699 = vmatpush2.msra.mxu0 0.0
    %9700 = vmatprep.subr.mxu0 0.0
    %9701 = vmatpush2.msra.mxu0 0.0
    %9702 = vmatprep.mubr.f32.mxu0 0.0
    %v9703 = vand.u32 %v9357, 4294901760
    %v9704 = vsub.f32 %v9357, %v9703
    %v9705 = vand.u32 %v9704, 4294901760
    %9706 = vmatmul.mubr.f32.gmra.mxu0 %v9705
    %v9707 = vpop.f32.mrf.mxu0
    %v9708 = vadd.f32 %v9624, %v9707
    %v9709 = vpop.f32.mrf.mxu0
    %9710 = vmatprep.mubr.f32.mxu0 0.0
    %v9711 = vand.u32 %v9359, 4294901760
    %v9712 = vsub.f32 %v9359, %v9711
    %v9713 = vand.u32 %v9712, 4294901760
    %9714 = vmatmul.mubr.f32.gmra.mxu0 %v9713
    %v9715 = vpop.f32.mrf.mxu0
    %v9716 = vadd.f32 %v9631, %v9715
    %v9717 = vpop.f32.mrf.mxu0
    %9718 = vdwg.mxu0
    %9719 = vmatprep.subr.mxu0 0.0
    %9720 = vmatpush1.msra.mxu0 0.0
    %9721 = vmatprep.subr.mxu0 0.0
    %9722 = vmatpush1.msra.mxu0 0.0
    %9723 = vmatprep.subr.mxu0 0.0
    %9724 = vmatpush1.msra.mxu0 0.0
    %9725 = vmatprep.subr.mxu0 0.0
    %9726 = vmatpush1.msra.mxu0 0.0
    %9727 = vmatprep.subr.mxu0 0.0
    %9728 = vmatpush1.msra.mxu0 0.0
    %9729 = vmatprep.subr.mxu0 0.0
    %9730 = vmatpush1.msra.mxu0 0.0
    %9731 = vmatprep.subr.mxu0 0.0
    %9732 = vmatpush1.msra.mxu0 0.0
    %9733 = vmatprep.subr.mxu0 0.0
    %9734 = vmatpush1.msra.mxu0 0.0
    %9735 = vmatprep.subr.mxu0 0.0
    %9736 = vmatpush1.msra.mxu0 0.0
    %9737 = vmatprep.subr.mxu0 0.0
    %9738 = vmatpush1.msra.mxu0 0.0
    %9739 = vmatprep.subr.mxu0 0.0
    %9740 = vmatpush1.msra.mxu0 0.0
    %9741 = vmatprep.subr.mxu0 0.0
    %9742 = vmatpush1.msra.mxu0 0.0
    %9743 = vmatprep.subr.mxu0 0.0
    %v9744 = vand.u32 %v9313, 4294901760
    %v9745 = vsub.f32 %v9313, %v9744
    %v9746 = vand.u32 %v9745, 4294901760
    %9747 = vmatpush1.msra.mxu0 %v9746
    %9748 = vmatprep.subr.mxu0 0.0
    %v9749 = vand.u32 %v9312, 4294901760
    %v9750 = vsub.f32 %v9312, %v9749
    %v9751 = vand.u32 %v9750, 4294901760
    %9752 = vmatpush1.msra.mxu0 %v9751
    %9753 = vmatprep.subr.mxu0 0.0
    %v9754 = vand.u32 %v9311, 4294901760
    %v9755 = vsub.f32 %v9311, %v9754
    %v9756 = vand.u32 %v9755, 4294901760
    %9757 = vmatpush1.msra.mxu0 %v9756
    %9758 = vmatprep.subr.mxu0 0.0
    %v9759 = vand.u32 %v9310, 4294901760
    %v9760 = vsub.f32 %v9310, %v9759
    %v9761 = vand.u32 %v9760, 4294901760
    %9762 = vmatpush1.msra.mxu0 %v9761
    %9763 = vmatprep.subr.mxu0 0.0
    %9764 = vmatpush2.msra.mxu0 0.0
    %9765 = vmatprep.subr.mxu0 0.0
    %9766 = vmatpush2.msra.mxu0 0.0
    %9767 = vmatprep.subr.mxu0 0.0
    %9768 = vmatpush2.msra.mxu0 0.0
    %9769 = vmatprep.subr.mxu0 0.0
    %9770 = vmatpush2.msra.mxu0 0.0
    %9771 = vmatprep.subr.mxu0 0.0
    %9772 = vmatpush2.msra.mxu0 0.0
    %9773 = vmatprep.subr.mxu0 0.0
    %9774 = vmatpush2.msra.mxu0 0.0
    %9775 = vmatprep.subr.mxu0 0.0
    %9776 = vmatpush2.msra.mxu0 0.0
    %9777 = vmatprep.subr.mxu0 0.0
    %9778 = vmatpush2.msra.mxu0 0.0
    %9779 = vmatprep.subr.mxu0 0.0
    %9780 = vmatpush2.msra.mxu0 0.0
    %9781 = vmatprep.subr.mxu0 0.0
    %9782 = vmatpush2.msra.mxu0 0.0
    %9783 = vmatprep.subr.mxu0 0.0
    %9784 = vmatpush2.msra.mxu0 0.0
    %9785 = vmatprep.subr.mxu0 0.0
    %9786 = vmatpush2.msra.mxu0 0.0
    %9787 = vmatprep.subr.mxu0 0.0
    %9788 = vmatpush2.msra.mxu0 0.0
    %9789 = vmatprep.subr.mxu0 0.0
    %9790 = vmatpush2.msra.mxu0 0.0
    %9791 = vmatprep.subr.mxu0 0.0
    %9792 = vmatpush2.msra.mxu0 0.0
    %9793 = vmatprep.subr.mxu0 0.0
    %9794 = vmatpush2.msra.mxu0 0.0
    %9795 = vmatprep.mubr.f32.mxu0 0.0
    %v9796 = vand.u32 %v9357, 4294901760
    %9797 = vmatmul.mubr.f32.gmra.mxu0 %v9796
    %v9798 = vpop.f32.mrf.mxu0
    %v9799 = vadd.f32 %v9708, %v9798
    %v9800 = vpop.f32.mrf.mxu0
    %9801 = vmatprep.mubr.f32.mxu0 0.0
    %v9802 = vand.u32 %v9359, 4294901760
    %9803 = vmatmul.mubr.f32.gmra.mxu0 %v9802
    %v9804 = vpop.f32.mrf.mxu0
    %v9805 = vadd.f32 %v9716, %v9804
    %v9806 = vpop.f32.mrf.mxu0
    %9807 = vdwg.mxu0
    %9808 = vmatprep.subr.mxu0 0.0
    %9809 = vmatpush1.msra.mxu0 0.0
    %9810 = vmatprep.subr.mxu0 0.0
    %9811 = vmatpush1.msra.mxu0 0.0
    %9812 = vmatprep.subr.mxu0 0.0
    %9813 = vmatpush1.msra.mxu0 0.0
    %9814 = vmatprep.subr.mxu0 0.0
    %9815 = vmatpush1.msra.mxu0 0.0
    %9816 = vmatprep.subr.mxu0 0.0
    %9817 = vmatpush1.msra.mxu0 0.0
    %9818 = vmatprep.subr.mxu0 0.0
    %9819 = vmatpush1.msra.mxu0 0.0
    %9820 = vmatprep.subr.mxu0 0.0
    %9821 = vmatpush1.msra.mxu0 0.0
    %9822 = vmatprep.subr.mxu0 0.0
    %9823 = vmatpush1.msra.mxu0 0.0
    %9824 = vmatprep.subr.mxu0 0.0
    %9825 = vmatpush1.msra.mxu0 0.0
    %9826 = vmatprep.subr.mxu0 0.0
    %9827 = vmatpush1.msra.mxu0 0.0
    %9828 = vmatprep.subr.mxu0 0.0
    %9829 = vmatpush1.msra.mxu0 0.0
    %9830 = vmatprep.subr.mxu0 0.0
    %9831 = vmatpush1.msra.mxu0 0.0
    %9832 = vmatprep.subr.mxu0 0.0
    %v9833 = vand.u32 %v9313, 4294901760
    %9834 = vmatpush1.msra.mxu0 %v9833
    %9835 = vmatprep.subr.mxu0 0.0
    %v9836 = vand.u32 %v9312, 4294901760
    %9837 = vmatpush1.msra.mxu0 %v9836
    %9838 = vmatprep.subr.mxu0 0.0
    %v9839 = vand.u32 %v9311, 4294901760
    %9840 = vmatpush1.msra.mxu0 %v9839
    %9841 = vmatprep.subr.mxu0 0.0
    %v9842 = vand.u32 %v9310, 4294901760
    %9843 = vmatpush1.msra.mxu0 %v9842
    %9844 = vmatprep.subr.mxu0 0.0
    %9845 = vmatpush2.msra.mxu0 0.0
    %9846 = vmatprep.subr.mxu0 0.0
    %9847 = vmatpush2.msra.mxu0 0.0
    %9848 = vmatprep.subr.mxu0 0.0
    %9849 = vmatpush2.msra.mxu0 0.0
    %9850 = vmatprep.subr.mxu0 0.0
    %9851 = vmatpush2.msra.mxu0 0.0
    %9852 = vmatprep.subr.mxu0 0.0
    %9853 = vmatpush2.msra.mxu0 0.0
    %9854 = vmatprep.subr.mxu0 0.0
    %9855 = vmatpush2.msra.mxu0 0.0
    %9856 = vmatprep.subr.mxu0 0.0
    %9857 = vmatpush2.msra.mxu0 0.0
    %9858 = vmatprep.subr.mxu0 0.0
    %9859 = vmatpush2.msra.mxu0 0.0
    %9860 = vmatprep.subr.mxu0 0.0
    %9861 = vmatpush2.msra.mxu0 0.0
    %9862 = vmatprep.subr.mxu0 0.0
    %9863 = vmatpush2.msra.mxu0 0.0
    %9864 = vmatprep.subr.mxu0 0.0
    %9865 = vmatpush2.msra.mxu0 0.0
    %9866 = vmatprep.subr.mxu0 0.0
    %9867 = vmatpush2.msra.mxu0 0.0
    %9868 = vmatprep.subr.mxu0 0.0
    %9869 = vmatpush2.msra.mxu0 0.0
    %9870 = vmatprep.subr.mxu0 0.0
    %9871 = vmatpush2.msra.mxu0 0.0
    %9872 = vmatprep.subr.mxu0 0.0
    %9873 = vmatpush2.msra.mxu0 0.0
    %9874 = vmatprep.subr.mxu0 0.0
    %9875 = vmatpush2.msra.mxu0 0.0
    %9876 = vmatprep.mubr.f32.mxu0 0.0
    %v9877 = vand.u32 %v9357, 4294901760
    %9878 = vmatmul.mubr.f32.gmra.mxu0 %v9877
    %v9879 = vpop.f32.mrf.mxu0
    %v9880 = vadd.f32 %v9799, %v9879
    %v9881 = vpop.f32.mrf.mxu0
    %9882 = vmatprep.mubr.f32.mxu0 0.0
    %v9883 = vand.u32 %v9359, 4294901760
    %9884 = vmatmul.mubr.f32.gmra.mxu0 %v9883
    %v9885 = vpop.f32.mrf.mxu0
    %v9886 = vadd.f32 %v9805, %v9885
    %v9887 = vpop.f32.mrf.mxu0
    %9888 = vdwg.mxu0
    %v9889 = vadd.f32 %v60, %v9880
    %v9890 = vadd.f32 %v61, %v9886
    %v9891 = vmul.f32 %v9889, %v9889
    %v9892 = vmul.f32 %v9890, %v9890
    %v9893 = vsel %vm355, %v9891, 0.0
    %9894 = vadd.xlane.f32.xlu0 %v9893
    %v9895 = vpop.xlane.xlu0 %9894
    %v9896 = vsel %vm355, %v9892, 0.0
    %9897 = vadd.xlane.f32.xlu0 %v9896
    %v9898 = vpop.xlane.xlu0 %9897
    %v9899 = vmul.f32 %v9895, %v362
    %v9900 = vmul.f32 %v9898, %v362
    %v9901 = vadd.f32 %v9899, 1e-05
    %v9902 = vadd.f32 %v9900, 1e-05
    %v9903 = vrsqrt.pop %v9901
    %v9904 = vrsqrt.pop %v9902
    %v9905 = vmul.f32 %v9889, %v9903
    %v9906 = vmul.f32 %v9890, %v9904
    %v9908 = vlaneseq
    %v9909 = vshrl.u32 %v9908, 7
    %v9910 = vsub.s32 0, %v9909
    %v9911 = vrot.slane %v81, %v9910
    %v9913 = vmul.f32 %v9905, %v9911
    %v9914 = vmul.f32 %v9906, %v9911
    %v9915 = vld [vmem:[%s14] sm:$0xff]
    %v9916 = vld [vmem:[%s14 + $0x8] sm:$0xff]
    %v9917 = vld [vmem:[%s14 + $0x10] sm:$0xff]
    %v9918 = vld [vmem:[%s14 + $0x18] sm:$0xff]
    %v9920 = vlaneseq
    %v9921 = vshrl.u32 %v9920, 7
    %v9922 = vsub.s32 0, %v9921
    %v9923 = vrot.slane %v86, %v9922
    %v9926 = vsel %vm355, %v9913, 0
    %v9929 = vsel %vm355, %v9914, 0
    %9931 = vmatprep.subr.mxu0 0.0
    %9932 = vmatpush1.msra.mxu0 0.0
    %9933 = vmatprep.subr.mxu0 0.0
    %9934 = vmatpush1.msra.mxu0 0.0
    %9935 = vmatprep.subr.mxu0 0.0
    %9936 = vmatpush1.msra.mxu0 0.0
    %9937 = vmatprep.subr.mxu0 0.0
    %9938 = vmatpush1.msra.mxu0 0.0
    %9939 = vmatprep.subr.mxu0 0.0
    %9940 = vmatpush1.msra.mxu0 0.0
    %9941 = vmatprep.subr.mxu0 0.0
    %9942 = vmatpush1.msra.mxu0 0.0
    %9943 = vmatprep.subr.mxu0 0.0
    %9944 = vmatpush1.msra.mxu0 0.0
    %9945 = vmatprep.subr.mxu0 0.0
    %9946 = vmatpush1.msra.mxu0 0.0
    %9947 = vmatprep.subr.mxu0 0.0
    %9948 = vmatpush1.msra.mxu0 0.0
    %9949 = vmatprep.subr.mxu0 0.0
    %9950 = vmatpush1.msra.mxu0 0.0
    %9951 = vmatprep.subr.mxu0 0.0
    %9952 = vmatpush1.msra.mxu0 0.0
    %9953 = vmatprep.subr.mxu0 0.0
    %9954 = vmatpush1.msra.mxu0 0.0
    %9955 = vmatprep.subr.mxu0 0.0
    %v9956 = vand.u32 %v9918, 4294901760
    %9957 = vmatpush1.msra.mxu0 %v9956
    %9958 = vmatprep.subr.mxu0 0.0
    %v9959 = vand.u32 %v9917, 4294901760
    %9960 = vmatpush1.msra.mxu0 %v9959
    %9961 = vmatprep.subr.mxu0 0.0
    %v9962 = vand.u32 %v9916, 4294901760
    %9963 = vmatpush1.msra.mxu0 %v9962
    %9964 = vmatprep.subr.mxu0 0.0
    %v9965 = vand.u32 %v9915, 4294901760
    %9966 = vmatpush1.msra.mxu0 %v9965
    %9967 = vmatprep.subr.mxu0 0.0
    %9968 = vmatpush2.msra.mxu0 0.0
    %9969 = vmatprep.subr.mxu0 0.0
    %9970 = vmatpush2.msra.mxu0 0.0
    %9971 = vmatprep.subr.mxu0 0.0
    %9972 = vmatpush2.msra.mxu0 0.0
    %9973 = vmatprep.subr.mxu0 0.0
    %9974 = vmatpush2.msra.mxu0 0.0
    %9975 = vmatprep.subr.mxu0 0.0
    %9976 = vmatpush2.msra.mxu0 0.0
    %9977 = vmatprep.subr.mxu0 0.0
    %9978 = vmatpush2.msra.mxu0 0.0
    %9979 = vmatprep.subr.mxu0 0.0
    %9980 = vmatpush2.msra.mxu0 0.0
    %9981 = vmatprep.subr.mxu0 0.0
    %9982 = vmatpush2.msra.mxu0 0.0
    %9983 = vmatprep.subr.mxu0 0.0
    %9984 = vmatpush2.msra.mxu0 0.0
    %9985 = vmatprep.subr.mxu0 0.0
    %9986 = vmatpush2.msra.mxu0 0.0
    %9987 = vmatprep.subr.mxu0 0.0
    %9988 = vmatpush2.msra.mxu0 0.0
    %9989 = vmatprep.subr.mxu0 0.0
    %9990 = vmatpush2.msra.mxu0 0.0
    %9991 = vmatprep.subr.mxu0 0.0
    %9992 = vmatpush2.msra.mxu0 0.0
    %9993 = vmatprep.subr.mxu0 0.0
    %9994 = vmatpush2.msra.mxu0 0.0
    %9995 = vmatprep.subr.mxu0 0.0
    %9996 = vmatpush2.msra.mxu0 0.0
    %9997 = vmatprep.subr.mxu0 0.0
    %9998 = vmatpush2.msra.mxu0 0.0
    %9999 = vmatprep.mubr.f32.mxu0 0.0
    %v10000 = vand.u32 %v9926, 4294901760
    %v10001 = vsub.f32 %v9926, %v10000
    %v10002 = vand.u32 %v10001, 4294901760
    %v10003 = vsub.f32 %v10001, %v10002
    %v10004 = vand.u32 %v10003, 4294901760
    %10005 = vmatmul.mubr.f32.gmra.mxu0 %v10004
    %v10006 = vpop.f32.mrf.mxu0
    %v10007 = vadd.f32 %v9923, %v10006
    %v10008 = vpop.f32.mrf.mxu0
    %10009 = vmatprep.mubr.f32.mxu0 0.0
    %v10010 = vand.u32 %v9929, 4294901760
    %v10011 = vsub.f32 %v9929, %v10010
    %v10012 = vand.u32 %v10011, 4294901760
    %v10013 = vsub.f32 %v10011, %v10012
    %v10014 = vand.u32 %v10013, 4294901760
    %10015 = vmatmul.mubr.f32.gmra.mxu0 %v10014
    %v10016 = vpop.f32.mrf.mxu0
    %v10017 = vadd.f32 %v9923, %v10016
    %v10018 = vpop.f32.mrf.mxu0
    %10019 = vdwg.mxu0
    %10020 = vmatprep.subr.mxu0 0.0
    %10021 = vmatpush1.msra.mxu0 0.0
    %10022 = vmatprep.subr.mxu0 0.0
    %10023 = vmatpush1.msra.mxu0 0.0
    %10024 = vmatprep.subr.mxu0 0.0
    %10025 = vmatpush1.msra.mxu0 0.0
    %10026 = vmatprep.subr.mxu0 0.0
    %10027 = vmatpush1.msra.mxu0 0.0
    %10028 = vmatprep.subr.mxu0 0.0
    %10029 = vmatpush1.msra.mxu0 0.0
    %10030 = vmatprep.subr.mxu0 0.0
    %10031 = vmatpush1.msra.mxu0 0.0
    %10032 = vmatprep.subr.mxu0 0.0
    %10033 = vmatpush1.msra.mxu0 0.0
    %10034 = vmatprep.subr.mxu0 0.0
    %10035 = vmatpush1.msra.mxu0 0.0
    %10036 = vmatprep.subr.mxu0 0.0
    %10037 = vmatpush1.msra.mxu0 0.0
    %10038 = vmatprep.subr.mxu0 0.0
    %10039 = vmatpush1.msra.mxu0 0.0
    %10040 = vmatprep.subr.mxu0 0.0
    %10041 = vmatpush1.msra.mxu0 0.0
    %10042 = vmatprep.subr.mxu0 0.0
    %10043 = vmatpush1.msra.mxu0 0.0
    %10044 = vmatprep.subr.mxu0 0.0
    %v10045 = vand.u32 %v9918, 4294901760
    %v10046 = vsub.f32 %v9918, %v10045
    %v10047 = vand.u32 %v10046, 4294901760
    %v10048 = vsub.f32 %v10046, %v10047
    %v10049 = vand.u32 %v10048, 4294901760
    %10050 = vmatpush1.msra.mxu0 %v10049
    %10051 = vmatprep.subr.mxu0 0.0
    %v10052 = vand.u32 %v9917, 4294901760
    %v10053 = vsub.f32 %v9917, %v10052
    %v10054 = vand.u32 %v10053, 4294901760
    %v10055 = vsub.f32 %v10053, %v10054
    %v10056 = vand.u32 %v10055, 4294901760
    %10057 = vmatpush1.msra.mxu0 %v10056
    %10058 = vmatprep.subr.mxu0 0.0
    %v10059 = vand.u32 %v9916, 4294901760
    %v10060 = vsub.f32 %v9916, %v10059
    %v10061 = vand.u32 %v10060, 4294901760
    %v10062 = vsub.f32 %v10060, %v10061
    %v10063 = vand.u32 %v10062, 4294901760
    %10064 = vmatpush1.msra.mxu0 %v10063
    %10065 = vmatprep.subr.mxu0 0.0
    %v10066 = vand.u32 %v9915, 4294901760
    %v10067 = vsub.f32 %v9915, %v10066
    %v10068 = vand.u32 %v10067, 4294901760
    %v10069 = vsub.f32 %v10067, %v10068
    %v10070 = vand.u32 %v10069, 4294901760
    %10071 = vmatpush1.msra.mxu0 %v10070
    %10072 = vmatprep.subr.mxu0 0.0
    %10073 = vmatpush2.msra.mxu0 0.0
    %10074 = vmatprep.subr.mxu0 0.0
    %10075 = vmatpush2.msra.mxu0 0.0
    %10076 = vmatprep.subr.mxu0 0.0
    %10077 = vmatpush2.msra.mxu0 0.0
    %10078 = vmatprep.subr.mxu0 0.0
    %10079 = vmatpush2.msra.mxu0 0.0
    %10080 = vmatprep.subr.mxu0 0.0
    %10081 = vmatpush2.msra.mxu0 0.0
    %10082 = vmatprep.subr.mxu0 0.0
    %10083 = vmatpush2.msra.mxu0 0.0
    %10084 = vmatprep.subr.mxu0 0.0
    %10085 = vmatpush2.msra.mxu0 0.0
    %10086 = vmatprep.subr.mxu0 0.0
    %10087 = vmatpush2.msra.mxu0 0.0
    %10088 = vmatprep.subr.mxu0 0.0
    %10089 = vmatpush2.msra.mxu0 0.0
    %10090 = vmatprep.subr.mxu0 0.0
    %10091 = vmatpush2.msra.mxu0 0.0
    %10092 = vmatprep.subr.mxu0 0.0
    %10093 = vmatpush2.msra.mxu0 0.0
    %10094 = vmatprep.subr.mxu0 0.0
    %10095 = vmatpush2.msra.mxu0 0.0
    %10096 = vmatprep.subr.mxu0 0.0
    %10097 = vmatpush2.msra.mxu0 0.0
    %10098 = vmatprep.subr.mxu0 0.0
    %10099 = vmatpush2.msra.mxu0 0.0
    %10100 = vmatprep.subr.mxu0 0.0
    %10101 = vmatpush2.msra.mxu0 0.0
    %10102 = vmatprep.subr.mxu0 0.0
    %10103 = vmatpush2.msra.mxu0 0.0
    %10104 = vmatprep.mubr.f32.mxu0 0.0
    %v10105 = vand.u32 %v9926, 4294901760
    %10106 = vmatmul.mubr.f32.gmra.mxu0 %v10105
    %v10107 = vpop.f32.mrf.mxu0
    %v10108 = vadd.f32 %v10007, %v10107
    %v10109 = vpop.f32.mrf.mxu0
    %10110 = vmatprep.mubr.f32.mxu0 0.0
    %v10111 = vand.u32 %v9929, 4294901760
    %10112 = vmatmul.mubr.f32.gmra.mxu0 %v10111
    %v10113 = vpop.f32.mrf.mxu0
    %v10114 = vadd.f32 %v10017, %v10113
    %v10115 = vpop.f32.mrf.mxu0
    %10116 = vdwg.mxu0
    %10117 = vmatprep.subr.mxu0 0.0
    %10118 = vmatpush1.msra.mxu0 0.0
    %10119 = vmatprep.subr.mxu0 0.0
    %10120 = vmatpush1.msra.mxu0 0.0
    %10121 = vmatprep.subr.mxu0 0.0
    %10122 = vmatpush1.msra.mxu0 0.0
    %10123 = vmatprep.subr.mxu0 0.0
    %10124 = vmatpush1.msra.mxu0 0.0
    %10125 = vmatprep.subr.mxu0 0.0
    %10126 = vmatpush1.msra.mxu0 0.0
    %10127 = vmatprep.subr.mxu0 0.0
    %10128 = vmatpush1.msra.mxu0 0.0
    %10129 = vmatprep.subr.mxu0 0.0
    %10130 = vmatpush1.msra.mxu0 0.0
    %10131 = vmatprep.subr.mxu0 0.0
    %10132 = vmatpush1.msra.mxu0 0.0
    %10133 = vmatprep.subr.mxu0 0.0
    %10134 = vmatpush1.msra.mxu0 0.0
    %10135 = vmatprep.subr.mxu0 0.0
    %10136 = vmatpush1.msra.mxu0 0.0
    %10137 = vmatprep.subr.mxu0 0.0
    %10138 = vmatpush1.msra.mxu0 0.0
    %10139 = vmatprep.subr.mxu0 0.0
    %10140 = vmatpush1.msra.mxu0 0.0
    %10141 = vmatprep.subr.mxu0 0.0
    %v10142 = vand.u32 %v9918, 4294901760
    %v10143 = vsub.f32 %v9918, %v10142
    %10144 = vmatpush1.msra.mxu0 %v10143
    %10145 = vmatprep.subr.mxu0 0.0
    %v10146 = vand.u32 %v9917, 4294901760
    %v10147 = vsub.f32 %v9917, %v10146
    %10148 = vmatpush1.msra.mxu0 %v10147
    %10149 = vmatprep.subr.mxu0 0.0
    %v10150 = vand.u32 %v9916, 4294901760
    %v10151 = vsub.f32 %v9916, %v10150
    %10152 = vmatpush1.msra.mxu0 %v10151
    %10153 = vmatprep.subr.mxu0 0.0
    %v10154 = vand.u32 %v9915, 4294901760
    %v10155 = vsub.f32 %v9915, %v10154
    %10156 = vmatpush1.msra.mxu0 %v10155
    %10157 = vmatprep.subr.mxu0 0.0
    %10158 = vmatpush2.msra.mxu0 0.0
    %10159 = vmatprep.subr.mxu0 0.0
    %10160 = vmatpush2.msra.mxu0 0.0
    %10161 = vmatprep.subr.mxu0 0.0
    %10162 = vmatpush2.msra.mxu0 0.0
    %10163 = vmatprep.subr.mxu0 0.0
    %10164 = vmatpush2.msra.mxu0 0.0
    %10165 = vmatprep.subr.mxu0 0.0
    %10166 = vmatpush2.msra.mxu0 0.0
    %10167 = vmatprep.subr.mxu0 0.0
    %10168 = vmatpush2.msra.mxu0 0.0
    %10169 = vmatprep.subr.mxu0 0.0
    %10170 = vmatpush2.msra.mxu0 0.0
    %10171 = vmatprep.subr.mxu0 0.0
    %10172 = vmatpush2.msra.mxu0 0.0
    %10173 = vmatprep.subr.mxu0 0.0
    %10174 = vmatpush2.msra.mxu0 0.0
    %10175 = vmatprep.subr.mxu0 0.0
    %10176 = vmatpush2.msra.mxu0 0.0
    %10177 = vmatprep.subr.mxu0 0.0
    %10178 = vmatpush2.msra.mxu0 0.0
    %10179 = vmatprep.subr.mxu0 0.0
    %10180 = vmatpush2.msra.mxu0 0.0
    %10181 = vmatprep.subr.mxu0 0.0
    %10182 = vmatpush2.msra.mxu0 0.0
    %10183 = vmatprep.subr.mxu0 0.0
    %10184 = vmatpush2.msra.mxu0 0.0
    %10185 = vmatprep.subr.mxu0 0.0
    %10186 = vmatpush2.msra.mxu0 0.0
    %10187 = vmatprep.subr.mxu0 0.0
    %10188 = vmatpush2.msra.mxu0 0.0
    %10189 = vmatprep.mubr.f32.mxu0 0.0
    %v10190 = vand.u32 %v9926, 4294901760
    %v10191 = vsub.f32 %v9926, %v10190
    %10192 = vmatmul.mubr.f32.gmra.mxu0 %v10191
    %v10193 = vpop.f32.mrf.mxu0
    %v10194 = vadd.f32 %v10108, %v10193
    %v10195 = vpop.f32.mrf.mxu0
    %10196 = vmatprep.mubr.f32.mxu0 0.0
    %v10197 = vand.u32 %v9929, 4294901760
    %v10198 = vsub.f32 %v9929, %v10197
    %10199 = vmatmul.mubr.f32.gmra.mxu0 %v10198
    %v10200 = vpop.f32.mrf.mxu0
    %v10201 = vadd.f32 %v10114, %v10200
    %v10202 = vpop.f32.mrf.mxu0
    %10203 = vdwg.mxu0
    %10204 = vmatprep.subr.mxu0 0.0
    %10205 = vmatpush1.msra.mxu0 0.0
    %10206 = vmatprep.subr.mxu0 0.0
    %10207 = vmatpush1.msra.mxu0 0.0
    %10208 = vmatprep.subr.mxu0 0.0
    %10209 = vmatpush1.msra.mxu0 0.0
    %10210 = vmatprep.subr.mxu0 0.0
    %10211 = vmatpush1.msra.mxu0 0.0
    %10212 = vmatprep.subr.mxu0 0.0
    %10213 = vmatpush1.msra.mxu0 0.0
    %10214 = vmatprep.subr.mxu0 0.0
    %10215 = vmatpush1.msra.mxu0 0.0
    %10216 = vmatprep.subr.mxu0 0.0
    %10217 = vmatpush1.msra.mxu0 0.0
    %10218 = vmatprep.subr.mxu0 0.0
    %10219 = vmatpush1.msra.mxu0 0.0
    %10220 = vmatprep.subr.mxu0 0.0
    %10221 = vmatpush1.msra.mxu0 0.0
    %10222 = vmatprep.subr.mxu0 0.0
    %10223 = vmatpush1.msra.mxu0 0.0
    %10224 = vmatprep.subr.mxu0 0.0
    %10225 = vmatpush1.msra.mxu0 0.0
    %10226 = vmatprep.subr.mxu0 0.0
    %10227 = vmatpush1.msra.mxu0 0.0
    %10228 = vmatprep.subr.mxu0 0.0
    %v10229 = vand.u32 %v9918, 4294901760
    %10230 = vmatpush1.msra.mxu0 %v10229
    %10231 = vmatprep.subr.mxu0 0.0
    %v10232 = vand.u32 %v9917, 4294901760
    %10233 = vmatpush1.msra.mxu0 %v10232
    %10234 = vmatprep.subr.mxu0 0.0
    %v10235 = vand.u32 %v9916, 4294901760
    %10236 = vmatpush1.msra.mxu0 %v10235
    %10237 = vmatprep.subr.mxu0 0.0
    %v10238 = vand.u32 %v9915, 4294901760
    %10239 = vmatpush1.msra.mxu0 %v10238
    %10240 = vmatprep.subr.mxu0 0.0
    %10241 = vmatpush2.msra.mxu0 0.0
    %10242 = vmatprep.subr.mxu0 0.0
    %10243 = vmatpush2.msra.mxu0 0.0
    %10244 = vmatprep.subr.mxu0 0.0
    %10245 = vmatpush2.msra.mxu0 0.0
    %10246 = vmatprep.subr.mxu0 0.0
    %10247 = vmatpush2.msra.mxu0 0.0
    %10248 = vmatprep.subr.mxu0 0.0
    %10249 = vmatpush2.msra.mxu0 0.0
    %10250 = vmatprep.subr.mxu0 0.0
    %10251 = vmatpush2.msra.mxu0 0.0
    %10252 = vmatprep.subr.mxu0 0.0
    %10253 = vmatpush2.msra.mxu0 0.0
    %10254 = vmatprep.subr.mxu0 0.0
    %10255 = vmatpush2.msra.mxu0 0.0
    %10256 = vmatprep.subr.mxu0 0.0
    %10257 = vmatpush2.msra.mxu0 0.0
    %10258 = vmatprep.subr.mxu0 0.0
    %10259 = vmatpush2.msra.mxu0 0.0
    %10260 = vmatprep.subr.mxu0 0.0
    %10261 = vmatpush2.msra.mxu0 0.0
    %10262 = vmatprep.subr.mxu0 0.0
    %10263 = vmatpush2.msra.mxu0 0.0
    %10264 = vmatprep.subr.mxu0 0.0
    %10265 = vmatpush2.msra.mxu0 0.0
    %10266 = vmatprep.subr.mxu0 0.0
    %10267 = vmatpush2.msra.mxu0 0.0
    %10268 = vmatprep.subr.mxu0 0.0
    %10269 = vmatpush2.msra.mxu0 0.0
    %10270 = vmatprep.subr.mxu0 0.0
    %10271 = vmatpush2.msra.mxu0 0.0
    %10272 = vmatprep.mubr.f32.mxu0 0.0
    %v10273 = vand.u32 %v9926, 4294901760
    %v10274 = vsub.f32 %v9926, %v10273
    %v10275 = vand.u32 %v10274, 4294901760
    %10276 = vmatmul.mubr.f32.gmra.mxu0 %v10275
    %v10277 = vpop.f32.mrf.mxu0
    %v10278 = vadd.f32 %v10194, %v10277
    %v10279 = vpop.f32.mrf.mxu0
    %10280 = vmatprep.mubr.f32.mxu0 0.0
    %v10281 = vand.u32 %v9929, 4294901760
    %v10282 = vsub.f32 %v9929, %v10281
    %v10283 = vand.u32 %v10282, 4294901760
    %10284 = vmatmul.mubr.f32.gmra.mxu0 %v10283
    %v10285 = vpop.f32.mrf.mxu0
    %v10286 = vadd.f32 %v10201, %v10285
    %v10287 = vpop.f32.mrf.mxu0
    %10288 = vdwg.mxu0
    %10289 = vmatprep.subr.mxu0 0.0
    %10290 = vmatpush1.msra.mxu0 0.0
    %10291 = vmatprep.subr.mxu0 0.0
    %10292 = vmatpush1.msra.mxu0 0.0
    %10293 = vmatprep.subr.mxu0 0.0
    %10294 = vmatpush1.msra.mxu0 0.0
    %10295 = vmatprep.subr.mxu0 0.0
    %10296 = vmatpush1.msra.mxu0 0.0
    %10297 = vmatprep.subr.mxu0 0.0
    %10298 = vmatpush1.msra.mxu0 0.0
    %10299 = vmatprep.subr.mxu0 0.0
    %10300 = vmatpush1.msra.mxu0 0.0
    %10301 = vmatprep.subr.mxu0 0.0
    %10302 = vmatpush1.msra.mxu0 0.0
    %10303 = vmatprep.subr.mxu0 0.0
    %10304 = vmatpush1.msra.mxu0 0.0
    %10305 = vmatprep.subr.mxu0 0.0
    %10306 = vmatpush1.msra.mxu0 0.0
    %10307 = vmatprep.subr.mxu0 0.0
    %10308 = vmatpush1.msra.mxu0 0.0
    %10309 = vmatprep.subr.mxu0 0.0
    %10310 = vmatpush1.msra.mxu0 0.0
    %10311 = vmatprep.subr.mxu0 0.0
    %10312 = vmatpush1.msra.mxu0 0.0
    %10313 = vmatprep.subr.mxu0 0.0
    %v10314 = vand.u32 %v9918, 4294901760
    %v10315 = vsub.f32 %v9918, %v10314
    %v10316 = vand.u32 %v10315, 4294901760
    %10317 = vmatpush1.msra.mxu0 %v10316
    %10318 = vmatprep.subr.mxu0 0.0
    %v10319 = vand.u32 %v9917, 4294901760
    %v10320 = vsub.f32 %v9917, %v10319
    %v10321 = vand.u32 %v10320, 4294901760
    %10322 = vmatpush1.msra.mxu0 %v10321
    %10323 = vmatprep.subr.mxu0 0.0
    %v10324 = vand.u32 %v9916, 4294901760
    %v10325 = vsub.f32 %v9916, %v10324
    %v10326 = vand.u32 %v10325, 4294901760
    %10327 = vmatpush1.msra.mxu0 %v10326
    %10328 = vmatprep.subr.mxu0 0.0
    %v10329 = vand.u32 %v9915, 4294901760
    %v10330 = vsub.f32 %v9915, %v10329
    %v10331 = vand.u32 %v10330, 4294901760
    %10332 = vmatpush1.msra.mxu0 %v10331
    %10333 = vmatprep.subr.mxu0 0.0
    %10334 = vmatpush2.msra.mxu0 0.0
    %10335 = vmatprep.subr.mxu0 0.0
    %10336 = vmatpush2.msra.mxu0 0.0
    %10337 = vmatprep.subr.mxu0 0.0
    %10338 = vmatpush2.msra.mxu0 0.0
    %10339 = vmatprep.subr.mxu0 0.0
    %10340 = vmatpush2.msra.mxu0 0.0
    %10341 = vmatprep.subr.mxu0 0.0
    %10342 = vmatpush2.msra.mxu0 0.0
    %10343 = vmatprep.subr.mxu0 0.0
    %10344 = vmatpush2.msra.mxu0 0.0
    %10345 = vmatprep.subr.mxu0 0.0
    %10346 = vmatpush2.msra.mxu0 0.0
    %10347 = vmatprep.subr.mxu0 0.0
    %10348 = vmatpush2.msra.mxu0 0.0
    %10349 = vmatprep.subr.mxu0 0.0
    %10350 = vmatpush2.msra.mxu0 0.0
    %10351 = vmatprep.subr.mxu0 0.0
    %10352 = vmatpush2.msra.mxu0 0.0
    %10353 = vmatprep.subr.mxu0 0.0
    %10354 = vmatpush2.msra.mxu0 0.0
    %10355 = vmatprep.subr.mxu0 0.0
    %10356 = vmatpush2.msra.mxu0 0.0
    %10357 = vmatprep.subr.mxu0 0.0
    %10358 = vmatpush2.msra.mxu0 0.0
    %10359 = vmatprep.subr.mxu0 0.0
    %10360 = vmatpush2.msra.mxu0 0.0
    %10361 = vmatprep.subr.mxu0 0.0
    %10362 = vmatpush2.msra.mxu0 0.0
    %10363 = vmatprep.subr.mxu0 0.0
    %10364 = vmatpush2.msra.mxu0 0.0
    %10365 = vmatprep.mubr.f32.mxu0 0.0
    %v10366 = vand.u32 %v9926, 4294901760
    %10367 = vmatmul.mubr.f32.gmra.mxu0 %v10366
    %v10368 = vpop.f32.mrf.mxu0
    %v10369 = vadd.f32 %v10278, %v10368
    %v10370 = vpop.f32.mrf.mxu0
    %10371 = vmatprep.mubr.f32.mxu0 0.0
    %v10372 = vand.u32 %v9929, 4294901760
    %10373 = vmatmul.mubr.f32.gmra.mxu0 %v10372
    %v10374 = vpop.f32.mrf.mxu0
    %v10375 = vadd.f32 %v10286, %v10374
    %v10376 = vpop.f32.mrf.mxu0
    %10377 = vdwg.mxu0
    %10378 = vmatprep.subr.mxu0 0.0
    %10379 = vmatpush1.msra.mxu0 0.0
    %10380 = vmatprep.subr.mxu0 0.0
    %10381 = vmatpush1.msra.mxu0 0.0
    %10382 = vmatprep.subr.mxu0 0.0
    %10383 = vmatpush1.msra.mxu0 0.0
    %10384 = vmatprep.subr.mxu0 0.0
    %10385 = vmatpush1.msra.mxu0 0.0
    %10386 = vmatprep.subr.mxu0 0.0
    %10387 = vmatpush1.msra.mxu0 0.0
    %10388 = vmatprep.subr.mxu0 0.0
    %10389 = vmatpush1.msra.mxu0 0.0
    %10390 = vmatprep.subr.mxu0 0.0
    %10391 = vmatpush1.msra.mxu0 0.0
    %10392 = vmatprep.subr.mxu0 0.0
    %10393 = vmatpush1.msra.mxu0 0.0
    %10394 = vmatprep.subr.mxu0 0.0
    %10395 = vmatpush1.msra.mxu0 0.0
    %10396 = vmatprep.subr.mxu0 0.0
    %10397 = vmatpush1.msra.mxu0 0.0
    %10398 = vmatprep.subr.mxu0 0.0
    %10399 = vmatpush1.msra.mxu0 0.0
    %10400 = vmatprep.subr.mxu0 0.0
    %10401 = vmatpush1.msra.mxu0 0.0
    %10402 = vmatprep.subr.mxu0 0.0
    %v10403 = vand.u32 %v9918, 4294901760
    %10404 = vmatpush1.msra.mxu0 %v10403
    %10405 = vmatprep.subr.mxu0 0.0
    %v10406 = vand.u32 %v9917, 4294901760
    %10407 = vmatpush1.msra.mxu0 %v10406
    %10408 = vmatprep.subr.mxu0 0.0
    %v10409 = vand.u32 %v9916, 4294901760
    %10410 = vmatpush1.msra.mxu0 %v10409
    %10411 = vmatprep.subr.mxu0 0.0
    %v10412 = vand.u32 %v9915, 4294901760
    %10413 = vmatpush1.msra.mxu0 %v10412
    %10414 = vmatprep.subr.mxu0 0.0
    %10415 = vmatpush2.msra.mxu0 0.0
    %10416 = vmatprep.subr.mxu0 0.0
    %10417 = vmatpush2.msra.mxu0 0.0
    %10418 = vmatprep.subr.mxu0 0.0
    %10419 = vmatpush2.msra.mxu0 0.0
    %10420 = vmatprep.subr.mxu0 0.0
    %10421 = vmatpush2.msra.mxu0 0.0
    %10422 = vmatprep.subr.mxu0 0.0
    %10423 = vmatpush2.msra.mxu0 0.0
    %10424 = vmatprep.subr.mxu0 0.0
    %10425 = vmatpush2.msra.mxu0 0.0
    %10426 = vmatprep.subr.mxu0 0.0
    %10427 = vmatpush2.msra.mxu0 0.0
    %10428 = vmatprep.subr.mxu0 0.0
    %10429 = vmatpush2.msra.mxu0 0.0
    %10430 = vmatprep.subr.mxu0 0.0
    %10431 = vmatpush2.msra.mxu0 0.0
    %10432 = vmatprep.subr.mxu0 0.0
    %10433 = vmatpush2.msra.mxu0 0.0
    %10434 = vmatprep.subr.mxu0 0.0
    %10435 = vmatpush2.msra.mxu0 0.0
    %10436 = vmatprep.subr.mxu0 0.0
    %10437 = vmatpush2.msra.mxu0 0.0
    %10438 = vmatprep.subr.mxu0 0.0
    %10439 = vmatpush2.msra.mxu0 0.0
    %10440 = vmatprep.subr.mxu0 0.0
    %10441 = vmatpush2.msra.mxu0 0.0
    %10442 = vmatprep.subr.mxu0 0.0
    %10443 = vmatpush2.msra.mxu0 0.0
    %10444 = vmatprep.subr.mxu0 0.0
    %10445 = vmatpush2.msra.mxu0 0.0
    %10446 = vmatprep.mubr.f32.mxu0 0.0
    %v10447 = vand.u32 %v9926, 4294901760
    %10448 = vmatmul.mubr.f32.gmra.mxu0 %v10447
    %v10449 = vpop.f32.mrf.mxu0
    %v10450 = vadd.f32 %v10369, %v10449
    %v10451 = vpop.f32.mrf.mxu0
    %10452 = vmatprep.mubr.f32.mxu0 0.0
    %v10453 = vand.u32 %v9929, 4294901760
    %10454 = vmatmul.mubr.f32.gmra.mxu0 %v10453
    %v10455 = vpop.f32.mrf.mxu0
    %v10456 = vadd.f32 %v10375, %v10455
    %v10457 = vpop.f32.mrf.mxu0
    %10458 = vdwg.mxu0
    %v10459 = vxor.u32 %v10450, 2147483648
    %v10460 = vxor.u32 %v10456, 2147483648
    %v10461 = vmul.f32 %v10459, 1.442695
    %v10462 = vpow.pop %v10461
    %v10463 = vmul.f32 %v10460, 1.442695
    %v10464 = vpow.pop %v10463
    %v10465 = vadd.f32 %v10462, 1.0
    %v10466 = vadd.f32 %v10464, 1.0
    %v10467 = vrcp.pop %v10465
    %v10468 = vmul.f32 1.0, %v10467
    %v10469 = vrcp.pop %v10466
    %v10470 = vmul.f32 1.0, %v10469
    %v10471 = vmul.f32 %v10450, %v10468
    %v10472 = vmul.f32 %v10456, %v10470
    %v10473 = vld [vmem:[%s16] sm:$0xff]
    %v10474 = vld [vmem:[%s16 + $0x8] sm:$0xff]
    %v10475 = vld [vmem:[%s16 + $0x10] sm:$0xff]
    %v10476 = vld [vmem:[%s16 + $0x18] sm:$0xff]
    %v10477 = vld [vmem:[%s16 + $0x20] sm:$0xff]
    %v10478 = vld [vmem:[%s16 + $0x28] sm:$0xff]
    %v10479 = vld [vmem:[%s16 + $0x30] sm:$0xff]
    %v10480 = vld [vmem:[%s16 + $0x38] sm:$0xff]
    %vm10481 = vcmask 523264
    %v10483 = vsel %vm10481, %v10471, 0
    %v10486 = vsel %vm10481, %v10472, 0
    %10488 = vmatprep.subr.mxu0 0.0
    %10489 = vmatpush1.msra.mxu0 0.0
    %10490 = vmatprep.subr.mxu0 0.0
    %10491 = vmatpush1.msra.mxu0 0.0
    %10492 = vmatprep.subr.mxu0 0.0
    %10493 = vmatpush1.msra.mxu0 0.0
    %10494 = vmatprep.subr.mxu0 0.0
    %10495 = vmatpush1.msra.mxu0 0.0
    %10496 = vmatprep.subr.mxu0 0.0
    %10497 = vmatpush1.msra.mxu0 0.0
    %10498 = vmatprep.subr.mxu0 0.0
    %10499 = vmatpush1.msra.mxu0 0.0
    %10500 = vmatprep.subr.mxu0 0.0
    %10501 = vmatpush1.msra.mxu0 0.0
    %10502 = vmatprep.subr.mxu0 0.0
    %10503 = vmatpush1.msra.mxu0 0.0
    %10504 = vmatprep.subr.mxu0 0.0
    %v10505 = vand.u32 %v10480, 4294901760
    %10506 = vmatpush1.msra.mxu0 %v10505
    %10507 = vmatprep.subr.mxu0 0.0
    %v10508 = vand.u32 %v10479, 4294901760
    %10509 = vmatpush1.msra.mxu0 %v10508
    %10510 = vmatprep.subr.mxu0 0.0
    %v10511 = vand.u32 %v10478, 4294901760
    %10512 = vmatpush1.msra.mxu0 %v10511
    %10513 = vmatprep.subr.mxu0 0.0
    %v10514 = vand.u32 %v10477, 4294901760
    %10515 = vmatpush1.msra.mxu0 %v10514
    %10516 = vmatprep.subr.mxu0 0.0
    %v10517 = vand.u32 %v10476, 4294901760
    %10518 = vmatpush1.msra.mxu0 %v10517
    %10519 = vmatprep.subr.mxu0 0.0
    %v10520 = vand.u32 %v10475, 4294901760
    %10521 = vmatpush1.msra.mxu0 %v10520
    %10522 = vmatprep.subr.mxu0 0.0
    %v10523 = vand.u32 %v10474, 4294901760
    %10524 = vmatpush1.msra.mxu0 %v10523
    %10525 = vmatprep.subr.mxu0 0.0
    %v10526 = vand.u32 %v10473, 4294901760
    %10527 = vmatpush1.msra.mxu0 %v10526
    %10528 = vmatprep.subr.mxu0 0.0
    %10529 = vmatpush2.msra.mxu0 0.0
    %10530 = vmatprep.subr.mxu0 0.0
    %10531 = vmatpush2.msra.mxu0 0.0
    %10532 = vmatprep.subr.mxu0 0.0
    %10533 = vmatpush2.msra.mxu0 0.0
    %10534 = vmatprep.subr.mxu0 0.0
    %10535 = vmatpush2.msra.mxu0 0.0
    %10536 = vmatprep.subr.mxu0 0.0
    %10537 = vmatpush2.msra.mxu0 0.0
    %10538 = vmatprep.subr.mxu0 0.0
    %10539 = vmatpush2.msra.mxu0 0.0
    %10540 = vmatprep.subr.mxu0 0.0
    %10541 = vmatpush2.msra.mxu0 0.0
    %10542 = vmatprep.subr.mxu0 0.0
    %10543 = vmatpush2.msra.mxu0 0.0
    %10544 = vmatprep.subr.mxu0 0.0
    %10545 = vmatpush2.msra.mxu0 0.0
    %10546 = vmatprep.subr.mxu0 0.0
    %10547 = vmatpush2.msra.mxu0 0.0
    %10548 = vmatprep.subr.mxu0 0.0
    %10549 = vmatpush2.msra.mxu0 0.0
    %10550 = vmatprep.subr.mxu0 0.0
    %10551 = vmatpush2.msra.mxu0 0.0
    %10552 = vmatprep.subr.mxu0 0.0
    %10553 = vmatpush2.msra.mxu0 0.0
    %10554 = vmatprep.subr.mxu0 0.0
    %10555 = vmatpush2.msra.mxu0 0.0
    %10556 = vmatprep.subr.mxu0 0.0
    %10557 = vmatpush2.msra.mxu0 0.0
    %10558 = vmatprep.subr.mxu0 0.0
    %10559 = vmatpush2.msra.mxu0 0.0
    %10560 = vmatprep.mubr.f32.mxu0 0.0
    %v10561 = vand.u32 %v10483, 4294901760
    %v10562 = vsub.f32 %v10483, %v10561
    %v10563 = vand.u32 %v10562, 4294901760
    %v10564 = vsub.f32 %v10562, %v10563
    %v10565 = vand.u32 %v10564, 4294901760
    %10566 = vmatmul.mubr.f32.gmra.mxu0 %v10565
    %v10567 = vpop.f32.mrf.mxu0
    %v10568 = vadd.f32 0.0, %v10567
    %v10569 = vpop.f32.mrf.mxu0
    %10570 = vmatprep.mubr.f32.mxu0 0.0
    %v10571 = vand.u32 %v10486, 4294901760
    %v10572 = vsub.f32 %v10486, %v10571
    %v10573 = vand.u32 %v10572, 4294901760
    %v10574 = vsub.f32 %v10572, %v10573
    %v10575 = vand.u32 %v10574, 4294901760
    %10576 = vmatmul.mubr.f32.gmra.mxu0 %v10575
    %v10577 = vpop.f32.mrf.mxu0
    %v10578 = vadd.f32 0.0, %v10577
    %v10579 = vpop.f32.mrf.mxu0
    %10580 = vdwg.mxu0
    %10581 = vmatprep.subr.mxu0 0.0
    %10582 = vmatpush1.msra.mxu0 0.0
    %10583 = vmatprep.subr.mxu0 0.0
    %10584 = vmatpush1.msra.mxu0 0.0
    %10585 = vmatprep.subr.mxu0 0.0
    %10586 = vmatpush1.msra.mxu0 0.0
    %10587 = vmatprep.subr.mxu0 0.0
    %10588 = vmatpush1.msra.mxu0 0.0
    %10589 = vmatprep.subr.mxu0 0.0
    %10590 = vmatpush1.msra.mxu0 0.0
    %10591 = vmatprep.subr.mxu0 0.0
    %10592 = vmatpush1.msra.mxu0 0.0
    %10593 = vmatprep.subr.mxu0 0.0
    %10594 = vmatpush1.msra.mxu0 0.0
    %10595 = vmatprep.subr.mxu0 0.0
    %10596 = vmatpush1.msra.mxu0 0.0
    %10597 = vmatprep.subr.mxu0 0.0
    %v10598 = vand.u32 %v10480, 4294901760
    %v10599 = vsub.f32 %v10480, %v10598
    %v10600 = vand.u32 %v10599, 4294901760
    %v10601 = vsub.f32 %v10599, %v10600
    %v10602 = vand.u32 %v10601, 4294901760
    %10603 = vmatpush1.msra.mxu0 %v10602
    %10604 = vmatprep.subr.mxu0 0.0
    %v10605 = vand.u32 %v10479, 4294901760
    %v10606 = vsub.f32 %v10479, %v10605
    %v10607 = vand.u32 %v10606, 4294901760
    %v10608 = vsub.f32 %v10606, %v10607
    %v10609 = vand.u32 %v10608, 4294901760
    %10610 = vmatpush1.msra.mxu0 %v10609
    %10611 = vmatprep.subr.mxu0 0.0
    %v10612 = vand.u32 %v10478, 4294901760
    %v10613 = vsub.f32 %v10478, %v10612
    %v10614 = vand.u32 %v10613, 4294901760
    %v10615 = vsub.f32 %v10613, %v10614
    %v10616 = vand.u32 %v10615, 4294901760
    %10617 = vmatpush1.msra.mxu0 %v10616
    %10618 = vmatprep.subr.mxu0 0.0
    %v10619 = vand.u32 %v10477, 4294901760
    %v10620 = vsub.f32 %v10477, %v10619
    %v10621 = vand.u32 %v10620, 4294901760
    %v10622 = vsub.f32 %v10620, %v10621
    %v10623 = vand.u32 %v10622, 4294901760
    %10624 = vmatpush1.msra.mxu0 %v10623
    %10625 = vmatprep.subr.mxu0 0.0
    %v10626 = vand.u32 %v10476, 4294901760
    %v10627 = vsub.f32 %v10476, %v10626
    %v10628 = vand.u32 %v10627, 4294901760
    %v10629 = vsub.f32 %v10627, %v10628
    %v10630 = vand.u32 %v10629, 4294901760
    %10631 = vmatpush1.msra.mxu0 %v10630
    %10632 = vmatprep.subr.mxu0 0.0
    %v10633 = vand.u32 %v10475, 4294901760
    %v10634 = vsub.f32 %v10475, %v10633
    %v10635 = vand.u32 %v10634, 4294901760
    %v10636 = vsub.f32 %v10634, %v10635
    %v10637 = vand.u32 %v10636, 4294901760
    %10638 = vmatpush1.msra.mxu0 %v10637
    %10639 = vmatprep.subr.mxu0 0.0
    %v10640 = vand.u32 %v10474, 4294901760
    %v10641 = vsub.f32 %v10474, %v10640
    %v10642 = vand.u32 %v10641, 4294901760
    %v10643 = vsub.f32 %v10641, %v10642
    %v10644 = vand.u32 %v10643, 4294901760
    %10645 = vmatpush1.msra.mxu0 %v10644
    %10646 = vmatprep.subr.mxu0 0.0
    %v10647 = vand.u32 %v10473, 4294901760
    %v10648 = vsub.f32 %v10473, %v10647
    %v10649 = vand.u32 %v10648, 4294901760
    %v10650 = vsub.f32 %v10648, %v10649
    %v10651 = vand.u32 %v10650, 4294901760
    %10652 = vmatpush1.msra.mxu0 %v10651
    %10653 = vmatprep.subr.mxu0 0.0
    %10654 = vmatpush2.msra.mxu0 0.0
    %10655 = vmatprep.subr.mxu0 0.0
    %10656 = vmatpush2.msra.mxu0 0.0
    %10657 = vmatprep.subr.mxu0 0.0
    %10658 = vmatpush2.msra.mxu0 0.0
    %10659 = vmatprep.subr.mxu0 0.0
    %10660 = vmatpush2.msra.mxu0 0.0
    %10661 = vmatprep.subr.mxu0 0.0
    %10662 = vmatpush2.msra.mxu0 0.0
    %10663 = vmatprep.subr.mxu0 0.0
    %10664 = vmatpush2.msra.mxu0 0.0
    %10665 = vmatprep.subr.mxu0 0.0
    %10666 = vmatpush2.msra.mxu0 0.0
    %10667 = vmatprep.subr.mxu0 0.0
    %10668 = vmatpush2.msra.mxu0 0.0
    %10669 = vmatprep.subr.mxu0 0.0
    %10670 = vmatpush2.msra.mxu0 0.0
    %10671 = vmatprep.subr.mxu0 0.0
    %10672 = vmatpush2.msra.mxu0 0.0
    %10673 = vmatprep.subr.mxu0 0.0
    %10674 = vmatpush2.msra.mxu0 0.0
    %10675 = vmatprep.subr.mxu0 0.0
    %10676 = vmatpush2.msra.mxu0 0.0
    %10677 = vmatprep.subr.mxu0 0.0
    %10678 = vmatpush2.msra.mxu0 0.0
    %10679 = vmatprep.subr.mxu0 0.0
    %10680 = vmatpush2.msra.mxu0 0.0
    %10681 = vmatprep.subr.mxu0 0.0
    %10682 = vmatpush2.msra.mxu0 0.0
    %10683 = vmatprep.subr.mxu0 0.0
    %10684 = vmatpush2.msra.mxu0 0.0
    %10685 = vmatprep.mubr.f32.mxu0 0.0
    %v10686 = vand.u32 %v10483, 4294901760
    %10687 = vmatmul.mubr.f32.gmra.mxu0 %v10686
    %v10688 = vpop.f32.mrf.mxu0
    %v10689 = vadd.f32 %v10568, %v10688
    %v10690 = vpop.f32.mrf.mxu0
    %10691 = vmatprep.mubr.f32.mxu0 0.0
    %v10692 = vand.u32 %v10486, 4294901760
    %10693 = vmatmul.mubr.f32.gmra.mxu0 %v10692
    %v10694 = vpop.f32.mrf.mxu0
    %v10695 = vadd.f32 %v10578, %v10694
    %v10696 = vpop.f32.mrf.mxu0
    %10697 = vdwg.mxu0
    %10698 = vmatprep.subr.mxu0 0.0
    %10699 = vmatpush1.msra.mxu0 0.0
    %10700 = vmatprep.subr.mxu0 0.0
    %10701 = vmatpush1.msra.mxu0 0.0
    %10702 = vmatprep.subr.mxu0 0.0
    %10703 = vmatpush1.msra.mxu0 0.0
    %10704 = vmatprep.subr.mxu0 0.0
    %10705 = vmatpush1.msra.mxu0 0.0
    %10706 = vmatprep.subr.mxu0 0.0
    %10707 = vmatpush1.msra.mxu0 0.0
    %10708 = vmatprep.subr.mxu0 0.0
    %10709 = vmatpush1.msra.mxu0 0.0
    %10710 = vmatprep.subr.mxu0 0.0
    %10711 = vmatpush1.msra.mxu0 0.0
    %10712 = vmatprep.subr.mxu0 0.0
    %10713 = vmatpush1.msra.mxu0 0.0
    %10714 = vmatprep.subr.mxu0 0.0
    %v10715 = vand.u32 %v10480, 4294901760
    %v10716 = vsub.f32 %v10480, %v10715
    %10717 = vmatpush1.msra.mxu0 %v10716
    %10718 = vmatprep.subr.mxu0 0.0
    %v10719 = vand.u32 %v10479, 4294901760
    %v10720 = vsub.f32 %v10479, %v10719
    %10721 = vmatpush1.msra.mxu0 %v10720
    %10722 = vmatprep.subr.mxu0 0.0
    %v10723 = vand.u32 %v10478, 4294901760
    %v10724 = vsub.f32 %v10478, %v10723
    %10725 = vmatpush1.msra.mxu0 %v10724
    %10726 = vmatprep.subr.mxu0 0.0
    %v10727 = vand.u32 %v10477, 4294901760
    %v10728 = vsub.f32 %v10477, %v10727
    %10729 = vmatpush1.msra.mxu0 %v10728
    %10730 = vmatprep.subr.mxu0 0.0
    %v10731 = vand.u32 %v10476, 4294901760
    %v10732 = vsub.f32 %v10476, %v10731
    %10733 = vmatpush1.msra.mxu0 %v10732
    %10734 = vmatprep.subr.mxu0 0.0
    %v10735 = vand.u32 %v10475, 4294901760
    %v10736 = vsub.f32 %v10475, %v10735
    %10737 = vmatpush1.msra.mxu0 %v10736
    %10738 = vmatprep.subr.mxu0 0.0
    %v10739 = vand.u32 %v10474, 4294901760
    %v10740 = vsub.f32 %v10474, %v10739
    %10741 = vmatpush1.msra.mxu0 %v10740
    %10742 = vmatprep.subr.mxu0 0.0
    %v10743 = vand.u32 %v10473, 4294901760
    %v10744 = vsub.f32 %v10473, %v10743
    %10745 = vmatpush1.msra.mxu0 %v10744
    %10746 = vmatprep.subr.mxu0 0.0
    %10747 = vmatpush2.msra.mxu0 0.0
    %10748 = vmatprep.subr.mxu0 0.0
    %10749 = vmatpush2.msra.mxu0 0.0
    %10750 = vmatprep.subr.mxu0 0.0
    %10751 = vmatpush2.msra.mxu0 0.0
    %10752 = vmatprep.subr.mxu0 0.0
    %10753 = vmatpush2.msra.mxu0 0.0
    %10754 = vmatprep.subr.mxu0 0.0
    %10755 = vmatpush2.msra.mxu0 0.0
    %10756 = vmatprep.subr.mxu0 0.0
    %10757 = vmatpush2.msra.mxu0 0.0
    %10758 = vmatprep.subr.mxu0 0.0
    %10759 = vmatpush2.msra.mxu0 0.0
    %10760 = vmatprep.subr.mxu0 0.0
    %10761 = vmatpush2.msra.mxu0 0.0
    %10762 = vmatprep.subr.mxu0 0.0
    %10763 = vmatpush2.msra.mxu0 0.0
    %10764 = vmatprep.subr.mxu0 0.0
    %10765 = vmatpush2.msra.mxu0 0.0
    %10766 = vmatprep.subr.mxu0 0.0
    %10767 = vmatpush2.msra.mxu0 0.0
    %10768 = vmatprep.subr.mxu0 0.0
    %10769 = vmatpush2.msra.mxu0 0.0
    %10770 = vmatprep.subr.mxu0 0.0
    %10771 = vmatpush2.msra.mxu0 0.0
    %10772 = vmatprep.subr.mxu0 0.0
    %10773 = vmatpush2.msra.mxu0 0.0
    %10774 = vmatprep.subr.mxu0 0.0
    %10775 = vmatpush2.msra.mxu0 0.0
    %10776 = vmatprep.subr.mxu0 0.0
    %10777 = vmatpush2.msra.mxu0 0.0
    %10778 = vmatprep.mubr.f32.mxu0 0.0
    %v10779 = vand.u32 %v10483, 4294901760
    %v10780 = vsub.f32 %v10483, %v10779
    %10781 = vmatmul.mubr.f32.gmra.mxu0 %v10780
    %v10782 = vpop.f32.mrf.mxu0
    %v10783 = vadd.f32 %v10689, %v10782
    %v10784 = vpop.f32.mrf.mxu0
    %10785 = vmatprep.mubr.f32.mxu0 0.0
    %v10786 = vand.u32 %v10486, 4294901760
    %v10787 = vsub.f32 %v10486, %v10786
    %10788 = vmatmul.mubr.f32.gmra.mxu0 %v10787
    %v10789 = vpop.f32.mrf.mxu0
    %v10790 = vadd.f32 %v10695, %v10789
    %v10791 = vpop.f32.mrf.mxu0
    %10792 = vdwg.mxu0
    %10793 = vmatprep.subr.mxu0 0.0
    %10794 = vmatpush1.msra.mxu0 0.0
    %10795 = vmatprep.subr.mxu0 0.0
    %10796 = vmatpush1.msra.mxu0 0.0
    %10797 = vmatprep.subr.mxu0 0.0
    %10798 = vmatpush1.msra.mxu0 0.0
    %10799 = vmatprep.subr.mxu0 0.0
    %10800 = vmatpush1.msra.mxu0 0.0
    %10801 = vmatprep.subr.mxu0 0.0
    %10802 = vmatpush1.msra.mxu0 0.0
    %10803 = vmatprep.subr.mxu0 0.0
    %10804 = vmatpush1.msra.mxu0 0.0
    %10805 = vmatprep.subr.mxu0 0.0
    %10806 = vmatpush1.msra.mxu0 0.0
    %10807 = vmatprep.subr.mxu0 0.0
    %10808 = vmatpush1.msra.mxu0 0.0
    %10809 = vmatprep.subr.mxu0 0.0
    %v10810 = vand.u32 %v10480, 4294901760
    %10811 = vmatpush1.msra.mxu0 %v10810
    %10812 = vmatprep.subr.mxu0 0.0
    %v10813 = vand.u32 %v10479, 4294901760
    %10814 = vmatpush1.msra.mxu0 %v10813
    %10815 = vmatprep.subr.mxu0 0.0
    %v10816 = vand.u32 %v10478, 4294901760
    %10817 = vmatpush1.msra.mxu0 %v10816
    %10818 = vmatprep.subr.mxu0 0.0
    %v10819 = vand.u32 %v10477, 4294901760
    %10820 = vmatpush1.msra.mxu0 %v10819
    %10821 = vmatprep.subr.mxu0 0.0
    %v10822 = vand.u32 %v10476, 4294901760
    %10823 = vmatpush1.msra.mxu0 %v10822
    %10824 = vmatprep.subr.mxu0 0.0
    %v10825 = vand.u32 %v10475, 4294901760
    %10826 = vmatpush1.msra.mxu0 %v10825
    %10827 = vmatprep.subr.mxu0 0.0
    %v10828 = vand.u32 %v10474, 4294901760
    %10829 = vmatpush1.msra.mxu0 %v10828
    %10830 = vmatprep.subr.mxu0 0.0
    %v10831 = vand.u32 %v10473, 4294901760
    %10832 = vmatpush1.msra.mxu0 %v10831
    %10833 = vmatprep.subr.mxu0 0.0
    %10834 = vmatpush2.msra.mxu0 0.0
    %10835 = vmatprep.subr.mxu0 0.0
    %10836 = vmatpush2.msra.mxu0 0.0
    %10837 = vmatprep.subr.mxu0 0.0
    %10838 = vmatpush2.msra.mxu0 0.0
    %10839 = vmatprep.subr.mxu0 0.0
    %10840 = vmatpush2.msra.mxu0 0.0
    %10841 = vmatprep.subr.mxu0 0.0
    %10842 = vmatpush2.msra.mxu0 0.0
    %10843 = vmatprep.subr.mxu0 0.0
    %10844 = vmatpush2.msra.mxu0 0.0
    %10845 = vmatprep.subr.mxu0 0.0
    %10846 = vmatpush2.msra.mxu0 0.0
    %10847 = vmatprep.subr.mxu0 0.0
    %10848 = vmatpush2.msra.mxu0 0.0
    %10849 = vmatprep.subr.mxu0 0.0
    %10850 = vmatpush2.msra.mxu0 0.0
    %10851 = vmatprep.subr.mxu0 0.0
    %10852 = vmatpush2.msra.mxu0 0.0
    %10853 = vmatprep.subr.mxu0 0.0
    %10854 = vmatpush2.msra.mxu0 0.0
    %10855 = vmatprep.subr.mxu0 0.0
    %10856 = vmatpush2.msra.mxu0 0.0
    %10857 = vmatprep.subr.mxu0 0.0
    %10858 = vmatpush2.msra.mxu0 0.0
    %10859 = vmatprep.subr.mxu0 0.0
    %10860 = vmatpush2.msra.mxu0 0.0
    %10861 = vmatprep.subr.mxu0 0.0
    %10862 = vmatpush2.msra.mxu0 0.0
    %10863 = vmatprep.subr.mxu0 0.0
    %10864 = vmatpush2.msra.mxu0 0.0
    %10865 = vmatprep.mubr.f32.mxu0 0.0
    %v10866 = vand.u32 %v10483, 4294901760
    %v10867 = vsub.f32 %v10483, %v10866
    %v10868 = vand.u32 %v10867, 4294901760
    %10869 = vmatmul.mubr.f32.gmra.mxu0 %v10868
    %v10870 = vpop.f32.mrf.mxu0
    %v10871 = vadd.f32 %v10783, %v10870
    %v10872 = vpop.f32.mrf.mxu0
    %10873 = vmatprep.mubr.f32.mxu0 0.0
    %v10874 = vand.u32 %v10486, 4294901760
    %v10875 = vsub.f32 %v10486, %v10874
    %v10876 = vand.u32 %v10875, 4294901760
    %10877 = vmatmul.mubr.f32.gmra.mxu0 %v10876
    %v10878 = vpop.f32.mrf.mxu0
    %v10879 = vadd.f32 %v10790, %v10878
    %v10880 = vpop.f32.mrf.mxu0
    %10881 = vdwg.mxu0
    %10882 = vmatprep.subr.mxu0 0.0
    %10883 = vmatpush1.msra.mxu0 0.0
    %10884 = vmatprep.subr.mxu0 0.0
    %10885 = vmatpush1.msra.mxu0 0.0
    %10886 = vmatprep.subr.mxu0 0.0
    %10887 = vmatpush1.msra.mxu0 0.0
    %10888 = vmatprep.subr.mxu0 0.0
    %10889 = vmatpush1.msra.mxu0 0.0
    %10890 = vmatprep.subr.mxu0 0.0
    %10891 = vmatpush1.msra.mxu0 0.0
    %10892 = vmatprep.subr.mxu0 0.0
    %10893 = vmatpush1.msra.mxu0 0.0
    %10894 = vmatprep.subr.mxu0 0.0
    %10895 = vmatpush1.msra.mxu0 0.0
    %10896 = vmatprep.subr.mxu0 0.0
    %10897 = vmatpush1.msra.mxu0 0.0
    %10898 = vmatprep.subr.mxu0 0.0
    %v10899 = vand.u32 %v10480, 4294901760
    %v10900 = vsub.f32 %v10480, %v10899
    %v10901 = vand.u32 %v10900, 4294901760
    %10902 = vmatpush1.msra.mxu0 %v10901
    %10903 = vmatprep.subr.mxu0 0.0
    %v10904 = vand.u32 %v10479, 4294901760
    %v10905 = vsub.f32 %v10479, %v10904
    %v10906 = vand.u32 %v10905, 4294901760
    %10907 = vmatpush1.msra.mxu0 %v10906
    %10908 = vmatprep.subr.mxu0 0.0
    %v10909 = vand.u32 %v10478, 4294901760
    %v10910 = vsub.f32 %v10478, %v10909
    %v10911 = vand.u32 %v10910, 4294901760
    %10912 = vmatpush1.msra.mxu0 %v10911
    %10913 = vmatprep.subr.mxu0 0.0
    %v10914 = vand.u32 %v10477, 4294901760
    %v10915 = vsub.f32 %v10477, %v10914
    %v10916 = vand.u32 %v10915, 4294901760
    %10917 = vmatpush1.msra.mxu0 %v10916
    %10918 = vmatprep.subr.mxu0 0.0
    %v10919 = vand.u32 %v10476, 4294901760
    %v10920 = vsub.f32 %v10476, %v10919
    %v10921 = vand.u32 %v10920, 4294901760
    %10922 = vmatpush1.msra.mxu0 %v10921
    %10923 = vmatprep.subr.mxu0 0.0
    %v10924 = vand.u32 %v10475, 4294901760
    %v10925 = vsub.f32 %v10475, %v10924
    %v10926 = vand.u32 %v10925, 4294901760
    %10927 = vmatpush1.msra.mxu0 %v10926
    %10928 = vmatprep.subr.mxu0 0.0
    %v10929 = vand.u32 %v10474, 4294901760
    %v10930 = vsub.f32 %v10474, %v10929
    %v10931 = vand.u32 %v10930, 4294901760
    %10932 = vmatpush1.msra.mxu0 %v10931
    %10933 = vmatprep.subr.mxu0 0.0
    %v10934 = vand.u32 %v10473, 4294901760
    %v10935 = vsub.f32 %v10473, %v10934
    %v10936 = vand.u32 %v10935, 4294901760
    %10937 = vmatpush1.msra.mxu0 %v10936
    %10938 = vmatprep.subr.mxu0 0.0
    %10939 = vmatpush2.msra.mxu0 0.0
    %10940 = vmatprep.subr.mxu0 0.0
    %10941 = vmatpush2.msra.mxu0 0.0
    %10942 = vmatprep.subr.mxu0 0.0
    %10943 = vmatpush2.msra.mxu0 0.0
    %10944 = vmatprep.subr.mxu0 0.0
    %10945 = vmatpush2.msra.mxu0 0.0
    %10946 = vmatprep.subr.mxu0 0.0
    %10947 = vmatpush2.msra.mxu0 0.0
    %10948 = vmatprep.subr.mxu0 0.0
    %10949 = vmatpush2.msra.mxu0 0.0
    %10950 = vmatprep.subr.mxu0 0.0
    %10951 = vmatpush2.msra.mxu0 0.0
    %10952 = vmatprep.subr.mxu0 0.0
    %10953 = vmatpush2.msra.mxu0 0.0
    %10954 = vmatprep.subr.mxu0 0.0
    %10955 = vmatpush2.msra.mxu0 0.0
    %10956 = vmatprep.subr.mxu0 0.0
    %10957 = vmatpush2.msra.mxu0 0.0
    %10958 = vmatprep.subr.mxu0 0.0
    %10959 = vmatpush2.msra.mxu0 0.0
    %10960 = vmatprep.subr.mxu0 0.0
    %10961 = vmatpush2.msra.mxu0 0.0
    %10962 = vmatprep.subr.mxu0 0.0
    %10963 = vmatpush2.msra.mxu0 0.0
    %10964 = vmatprep.subr.mxu0 0.0
    %10965 = vmatpush2.msra.mxu0 0.0
    %10966 = vmatprep.subr.mxu0 0.0
    %10967 = vmatpush2.msra.mxu0 0.0
    %10968 = vmatprep.subr.mxu0 0.0
    %10969 = vmatpush2.msra.mxu0 0.0
    %10970 = vmatprep.mubr.f32.mxu0 0.0
    %v10971 = vand.u32 %v10483, 4294901760
    %10972 = vmatmul.mubr.f32.gmra.mxu0 %v10971
    %v10973 = vpop.f32.mrf.mxu0
    %v10974 = vadd.f32 %v10871, %v10973
    %v10975 = vpop.f32.mrf.mxu0
    %10976 = vmatprep.mubr.f32.mxu0 0.0
    %v10977 = vand.u32 %v10486, 4294901760
    %10978 = vmatmul.mubr.f32.gmra.mxu0 %v10977
    %v10979 = vpop.f32.mrf.mxu0
    %v10980 = vadd.f32 %v10879, %v10979
    %v10981 = vpop.f32.mrf.mxu0
    %10982 = vdwg.mxu0
    %10983 = vmatprep.subr.mxu0 0.0
    %10984 = vmatpush1.msra.mxu0 0.0
    %10985 = vmatprep.subr.mxu0 0.0
    %10986 = vmatpush1.msra.mxu0 0.0
    %10987 = vmatprep.subr.mxu0 0.0
    %10988 = vmatpush1.msra.mxu0 0.0
    %10989 = vmatprep.subr.mxu0 0.0
    %10990 = vmatpush1.msra.mxu0 0.0
    %10991 = vmatprep.subr.mxu0 0.0
    %10992 = vmatpush1.msra.mxu0 0.0
    %10993 = vmatprep.subr.mxu0 0.0
    %10994 = vmatpush1.msra.mxu0 0.0
    %10995 = vmatprep.subr.mxu0 0.0
    %10996 = vmatpush1.msra.mxu0 0.0
    %10997 = vmatprep.subr.mxu0 0.0
    %10998 = vmatpush1.msra.mxu0 0.0
    %10999 = vmatprep.subr.mxu0 0.0
    %v11000 = vand.u32 %v10480, 4294901760
    %11001 = vmatpush1.msra.mxu0 %v11000
    %11002 = vmatprep.subr.mxu0 0.0
    %v11003 = vand.u32 %v10479, 4294901760
    %11004 = vmatpush1.msra.mxu0 %v11003
    %11005 = vmatprep.subr.mxu0 0.0
    %v11006 = vand.u32 %v10478, 4294901760
    %11007 = vmatpush1.msra.mxu0 %v11006
    %11008 = vmatprep.subr.mxu0 0.0
    %v11009 = vand.u32 %v10477, 4294901760
    %11010 = vmatpush1.msra.mxu0 %v11009
    %11011 = vmatprep.subr.mxu0 0.0
    %v11012 = vand.u32 %v10476, 4294901760
    %11013 = vmatpush1.msra.mxu0 %v11012
    %11014 = vmatprep.subr.mxu0 0.0
    %v11015 = vand.u32 %v10475, 4294901760
    %11016 = vmatpush1.msra.mxu0 %v11015
    %11017 = vmatprep.subr.mxu0 0.0
    %v11018 = vand.u32 %v10474, 4294901760
    %11019 = vmatpush1.msra.mxu0 %v11018
    %11020 = vmatprep.subr.mxu0 0.0
    %v11021 = vand.u32 %v10473, 4294901760
    %11022 = vmatpush1.msra.mxu0 %v11021
    %11023 = vmatprep.subr.mxu0 0.0
    %11024 = vmatpush2.msra.mxu0 0.0
    %11025 = vmatprep.subr.mxu0 0.0
    %11026 = vmatpush2.msra.mxu0 0.0
    %11027 = vmatprep.subr.mxu0 0.0
    %11028 = vmatpush2.msra.mxu0 0.0
    %11029 = vmatprep.subr.mxu0 0.0
    %11030 = vmatpush2.msra.mxu0 0.0
    %11031 = vmatprep.subr.mxu0 0.0
    %11032 = vmatpush2.msra.mxu0 0.0
    %11033 = vmatprep.subr.mxu0 0.0
    %11034 = vmatpush2.msra.mxu0 0.0
    %11035 = vmatprep.subr.mxu0 0.0
    %11036 = vmatpush2.msra.mxu0 0.0
    %11037 = vmatprep.subr.mxu0 0.0
    %11038 = vmatpush2.msra.mxu0 0.0
    %11039 = vmatprep.subr.mxu0 0.0
    %11040 = vmatpush2.msra.mxu0 0.0
    %11041 = vmatprep.subr.mxu0 0.0
    %11042 = vmatpush2.msra.mxu0 0.0
    %11043 = vmatprep.subr.mxu0 0.0
    %11044 = vmatpush2.msra.mxu0 0.0
    %11045 = vmatprep.subr.mxu0 0.0
    %11046 = vmatpush2.msra.mxu0 0.0
    %11047 = vmatprep.subr.mxu0 0.0
    %11048 = vmatpush2.msra.mxu0 0.0
    %11049 = vmatprep.subr.mxu0 0.0
    %11050 = vmatpush2.msra.mxu0 0.0
    %11051 = vmatprep.subr.mxu0 0.0
    %11052 = vmatpush2.msra.mxu0 0.0
    %11053 = vmatprep.subr.mxu0 0.0
    %11054 = vmatpush2.msra.mxu0 0.0
    %11055 = vmatprep.mubr.f32.mxu0 0.0
    %v11056 = vand.u32 %v10483, 4294901760
    %11057 = vmatmul.mubr.f32.gmra.mxu0 %v11056
    %v11058 = vpop.f32.mrf.mxu0
    %v11059 = vadd.f32 %v10974, %v11058
    %v11060 = vpop.f32.mrf.mxu0
    %11061 = vmatprep.mubr.f32.mxu0 0.0
    %v11062 = vand.u32 %v10486, 4294901760
    %11063 = vmatmul.mubr.f32.gmra.mxu0 %v11062
    %v11064 = vpop.f32.mrf.mxu0
    %v11065 = vadd.f32 %v10980, %v11064
    %v11066 = vpop.f32.mrf.mxu0
    %11067 = vdwg.mxu0
    %v11068 = vadd.f32 %v9889, %v11059
    %v11069 = vadd.f32 %v9890, %v11065
    %v11071 = vlaneseq
    %v11072 = vshrl.u32 %v11071, 7
    %v11073 = vsub.s32 0, %v11072
    %v11074 = vrot.slane %v87, %v11073
    %v11076 = vadd.f32 %v11068, %v11074
    %v11077 = vadd.f32 %v11069, %v11074
    %11078 = vst.msk [vmem:[#allocation2] sm:$0xff] %vm355, %v11076
    %11079 = vst.msk [vmem:[#allocation2 + $0x8] sm:$0xff] %vm355, %v11077
    // Predicated region
    $region74: #{tpu_custom_call.1} parent=1 // pred_check
      _
    $region75: #{tpu_custom_call.1} parent=1 // pred_check_branch
      %11081 = sbr.rel (0) target = $region77
    $region76: #{tpu_custom_call.1} parent=1 // pred_region
      %s11083 = ssub.s32 256, 256
      %11084 = vsyncadd [#allocation3], %s11083
      %s11085 = sshll.u32 [#allocation2], 4
      %s11086 = int_to_ptr.vmem [resolvable:$true] %s11085
      %11091 = dma.vmem_to_hbm [thread:$0]  %s11086, 256, %s18, [#allocation3], 128, 128, 8
    $region77: #{tpu_custom_call.1} parent=1 // pred_fallthru
      _
    // Predicated region
    $region78: #{tpu_custom_call.1} parent=1 // pred_check
      _
    $region79: #{tpu_custom_call.1} parent=1 // pred_check_branch
      %11093 = sbr.rel (0) target = $region81
    $region80: #{tpu_custom_call.1} parent=1 // pred_region
      %11094 = dma.done [#allocation3], 256
    $region81: #{tpu_custom_call.1} parent=1 // pred_fallthru
      _
    %11095 = vsyncpa [#allocation3], 1

</llo_original>
